<compile_context>
chip_gen: v6e
topology: v6e:2x2x1
jax: 0.10.0
libtpu: 0.0.40
codegen_flags: <defaults>
</compile_context>

<pallas_src>
import functools

import numpy as np
import jax
import jax.numpy as jnp
from jax.experimental import pallas as pl
from jax.experimental.pallas import tpu as pltpu

# ----------------------------- configuration -------------------------------
BATCH = 2
INPUT_CHANNELS = 4
LATENT_DIM = 32
IMAGE_SIZE = 16
FINAL_ACT = "sigmoid"

ENC_CHANNELS = [min(c, 256) for c in
                [max(16, INPUT_CHANNELS * 2),
                 max(32, INPUT_CHANNELS * 4),
                 max(64, INPUT_CHANNELS * 8)]]        # [16, 32, 64]
KERNELS = [7, 5, 3]
PADDINGS = [3, 2, 1]


def _conv_out(d, k, p, s=2):
    return (d + 2 * p - k) // s + 1


ENC_DIMS = [IMAGE_SIZE]
for _i in range(len(ENC_CHANNELS)):
    ENC_DIMS.append(_conv_out(ENC_DIMS[-1], KERNELS[_i], PADDINGS[_i]))
FDIM = ENC_DIMS[-1]                                   # 2
FINAL_CH = ENC_CHANNELS[-1]                           # 64
FLAT = FINAL_CH * FDIM * FDIM                         # 256

DEC_CHANNELS = ENC_CHANNELS[-2::-1] + [INPUT_CHANNELS]  # [32, 16, 4]
DEC_KERNELS = KERNELS[::-1]
DEC_PADDINGS = PADDINGS[::-1]
OUTPUT_PADDINGS = []
_cur = FDIM
for _i in range(len(DEC_CHANNELS)):
    _k, _p = DEC_KERNELS[_i], DEC_PADDINGS[_i]
    _target = _cur * 2 if _i < len(DEC_CHANNELS) - 1 else IMAGE_SIZE
    OUTPUT_PADDINGS.append(max(0, _target - ((_cur - 1) * 2 - 2 * _p + _k)))
    if _i < len(DEC_CHANNELS) - 1:
        _cur = _target

DEC_DIMS = [FDIM]
for _i in range(len(DEC_CHANNELS)):
    DEC_DIMS.append((DEC_DIMS[-1] - 1) * 2 - 2 * DEC_PADDINGS[_i]
                    + DEC_KERNELS[_i] + OUTPUT_PADDINGS[_i])
# TODO(synk): the PyTorch module falls back to bilinear interpolation / crop
# when the decoder output size mismatches; shapes match exactly here.
assert DEC_DIMS[-1] == IMAGE_SIZE, DEC_DIMS

BN_EPS = 1e-5
LAYER_ORDER = ["e1", "e2", "e3", "fc", "dfc", "d1", "d2", "d3"]


# ------------------------------ Pallas kernel -------------------------------
def _vae_kernel(x_ref, eps_ref,
                e1b, e1e, e2b, e2e, e3b, e3e,
                fcb, fce, dfb, dfe,
                d1b, d1e, d2b, d2e, d3b, d3e,
                recon_ref, mlv_ref, *, final_act):
    """Whole VAE forward: 8 dense matmuls + fused epilogues, all in VMEM.

    Each layer:  y = (act(A_bf16 @ B_bf16 + bias)) * scale + shift
    with (bias, scale, shift) packed as a (3, N) row block (scale=1, shift=0
    for layers without BatchNorm).  Order matches PyTorch: Conv -> ReLU -> BN.
    """

    def dense(h, b_ref, e_ref, act):
        e = e_ref[...]                                      # (3, N) f32
        y = jnp.dot(h.astype(jnp.bfloat16), b_ref[...],
                    preferred_element_type=jnp.float32)
        y = y + e[0:1, :]                                   # bias
        if act == "relu":
            y = jnp.maximum(y, 0.0)
        elif act == "sigmoid":
            y = jax.nn.sigmoid(y)
        elif act == "tanh":
            y = jnp.tanh(y)
        return y * e[1:2, :] + e[2:3, :]                    # BN (eval) / identity

    # ----- encoder: Conv2d -> ReLU -> BatchNorm2d (Dropout2d = identity) -----
    h = dense(x_ref[...], e1b, e1e, "relu")                 # (N, 8*8*16)
    h = dense(h, e2b, e2e, "relu")                          # (N, 4*4*32)
    h = dense(h, e3b, e3e, "relu")                          # (N, 2*2*64)

    # ----- fc_mu / fc_logvar (fused into one matmul) -----
    ml = dense(h, fcb, fce, None)                           # (N, 2*LATENT)
    mlv_ref[...] = ml
    mu = ml[:, :LATENT_DIM]
    logvar = ml[:, LATENT_DIM:]

    # ----- reparameterize -----
    z = mu + eps_ref[...] * jnp.exp(0.5 * logvar)

    # ----- decoder -----
    h = dense(z, dfb, dfe, None)                            # decoder_fc_to_conv
    h = dense(h, d1b, d1e, "relu")                          # deconv1 + ReLU + BN
    h = dense(h, d2b, d2e, "relu")                          # deconv2 + ReLU + BN
    recon_ref[...] = dense(h, d3b, d3e, final_act)          # deconv3 + sigmoid


# --------------------------------- wrapper ----------------------------------
def vae_forward(packed, x_nchw, eps):
    n = x_nchw.shape[0]
    flat_img = INPUT_CHANNELS * IMAGE_SIZE * IMAGE_SIZE
    # First packed matrix is (c, h, w)-row-ordered, so the NCHW flatten feeds it
    # directly (no transpose / pad / cast on the wrapper side).
    x_flat = x_nchw.reshape(n, flat_img)

    operands = [x_flat, eps]
    for name in LAYER_ORDER:
        operands += [packed[name]["B"], packed[name]["epi"]]

    vmem = pl.BlockSpec(memory_space=pltpu.MemorySpace.VMEM)
    recon_flat, mulogvar = pl.pallas_call(
        functools.partial(_vae_kernel, final_act=FINAL_ACT),
        out_shape=(jax.ShapeDtypeStruct((n, flat_img), jnp.float32),
                   jax.ShapeDtypeStruct((n, 2 * LATENT_DIM), jnp.float32)),
        in_specs=[vmem] * len(operands),
        out_specs=(vmem, vmem),
        compiler_params=pltpu.CompilerParams(
            vmem_limit_bytes=32 * 1024 * 1024),
    )(*operands)

    # Last packed matrix emits (c, h, w)-ordered columns -> direct NCHW reshape.
    recon = recon_flat.reshape(n, INPUT_CHANNELS, IMAGE_SIZE, IMAGE_SIZE)
    mu = mulogvar[:, :LATENT_DIM]
    logvar = mulogvar[:, LATENT_DIM:]
    return recon, mu, logvar


# -------------------------------- parameters --------------------------------
def init_params(key):
    keys = iter(jax.random.split(key, 64))

    def nrm(shape, s=0.05):
        return s * jax.random.normal(next(keys), shape, jnp.float32)

    def bn_params(c):
        gamma = 1.0 + nrm((c,))
        beta = nrm((c,))
        mean = nrm((c,))
        var = 1.0 + 0.1 * jax.random.uniform(next(keys), (c,), jnp.float32)
        return (gamma, beta, mean, var)

    params = {}
    enc, cin = [], INPUT_CHANNELS
    for i, cout in enumerate(ENC_CHANNELS):
        k = KERNELS[i]
        enc.append(dict(w=nrm((cout, cin, k, k)), b=nrm((cout,)),
                        bn=bn_params(cout)))
        cin = cout
    params["enc"] = enc
    params["fc_mu"] = dict(w=nrm((LATENT_DIM, FLAT)), b=nrm((LATENT_DIM,)))
    params["fc_logvar"] = dict(w=nrm((LATENT_DIM, FLAT)), b=nrm((LATENT_DIM,)))
    params["dec_fc"] = dict(w=nrm((FLAT, LATENT_DIM)), b=nrm((FLAT,)))
    dec, cin = [], FINAL_CH
    for i, cout in enumerate(DEC_CHANNELS):
        k = DEC_KERNELS[i]
        last = i == len(DEC_CHANNELS) - 1
        dec.append(dict(w=nrm((cin, cout, k, k)), b=nrm((cout,)),
                        bn=None if last else bn_params(cout)))
        cin = cout
    params["dec"] = dec
    return params


# ------------------------- one-time weight packing ---------------------------
def _conv_dense_np(w, hin, hout, k, p, in_channel_major=False):
    """Dense matrix for Conv2d stride 2: out[(oh,ow,co)] = sum x[rows] * B."""
    w = np.asarray(w, np.float32)                      # torch (Cout, Cin, k, k)
    c_out, c_in = w.shape[0], w.shape[1]
    wt = np.transpose(w, (2, 3, 1, 0))                 # (k, k, Cin, Cout)
    if in_channel_major:                               # rows ordered (c, h, w)
        B = np.zeros((c_in, hin, hin, hout, hout, c_out), np.float32)
    else:                                              # rows ordered (h, w, c)
        B = np.zeros((hin, hin, c_in, hout, hout, c_out), np.float32)
    for kh in range(k):
        for kw in range(k):
            for oh in range(hout):
                h = 2 * oh + kh - p
                if h < 0 or h >= hin:
                    continue
                for ow in range(hout):
                    wi = 2 * ow + kw - p
                    if wi < 0 or wi >= hin:
                        continue
                    if in_channel_major:
                        B[:, h, wi, oh, ow, :] = wt[kh, kw]
                    else:
                        B[h, wi, :, oh, ow, :] = wt[kh, kw]
    return B.reshape(hin * hin * c_in, hout * hout * c_out)


def _deconv_dense_np(w, hin, hout, k, p, out_channel_major=False):
    """Dense matrix for ConvTranspose2d stride 2 (padding/output_padding folded)."""
    w = np.asarray(w, np.float32)                      # torch (Cin, Cout, k, k)
    c_in, c_out = w.shape[0], w.shape[1]
    wt = np.transpose(w, (2, 3, 0, 1))                 # (k, k, Cin, Cout)
    if out_channel_major:                              # cols ordered (c, i, j)
        B = np.zeros((hin, hin, c_in, c_out, hout, hout), np.float32)
    else:                                              # cols ordered (i, j, c)
        B = np.zeros((hin, hin, c_in, hout, hout, c_out), np.float32)
    for kh in range(k):
        for kw in range(k):
            for h in range(hin):
                i = 2 * h + kh - p
                if i < 0 or i >= hout:
                    continue
                for wpos in range(hin):
                    j = 2 * wpos + kw - p
                    if j < 0 or j >= hout:
                        continue
                    if out_channel_major:
                        B[h, wpos, :, :, i, j] += wt[kh, kw]
                    else:
                        B[h, wpos, :, i, j, :] += wt[kh, kw]
    return B.reshape(hin * hin * c_in, hout * hout * c_out)


def _bn_scale_shift_np(bn):
    gamma, beta, mean, var = (np.asarray(t, np.float64) for t in bn)
    scale = gamma / np.sqrt(var + BN_EPS)
    shift = beta - mean * scale
    return scale.astype(np.float32), shift.astype(np.float32)


def _epi_rows(bias_vec, bn, reps, channel_major=False):
    """(3, N) row block: [bias; bn_scale; bn_shift] tiled over spatial positions."""
    def tile(v):
        v = np.asarray(v, np.float32)
        if reps == 1:
            return v
        return np.repeat(v, reps) if channel_major else np.tile(v, reps)

    bias = tile(bias_vec)
    if bn is None:
        scale, shift = np.ones_like(bias), np.zeros_like(bias)
    else:
        s, t = _bn_scale_shift_np(bn)
        scale, shift = tile(s), tile(t)
    return np.stack([bias, scale, shift]).astype(np.float32)


def pack_params(params):
    """One-time hoist: fold conv/deconv spatial structure, NCHW<->NHWC layout
    permutations, bias and BatchNorm(eval) stats into per-layer matmul operands."""
    packed = {}

    # encoder convs (first layer consumes the raw NCHW flatten directly)
    for i, layer in enumerate(params["enc"]):
        B = _conv_dense_np(layer["w"], ENC_DIMS[i], ENC_DIMS[i + 1],
                           KERNELS[i], PADDINGS[i], in_channel_major=(i == 0))
        epi = _epi_rows(np.asarray(layer["b"]), layer["bn"], ENC_DIMS[i + 1] ** 2)
        packed[f"e{i + 1}"] = dict(B=jnp.asarray(B, jnp.bfloat16),
                                   epi=jnp.asarray(epi))

    # fc_mu / fc_logvar, fused; rows re-ordered from torch's (c,h,w) flatten to
    # the encoder's (h,w,c) column order.
    def fc_rows(w):
        w = np.asarray(w, np.float32)                  # (LATENT, FLAT)
        return (w.T.reshape(FINAL_CH, FDIM, FDIM, LATENT_DIM)
                .transpose(1, 2, 0, 3).reshape(FLAT, LATENT_DIM))

    Bfc = np.concatenate([fc_rows(params["fc_mu"]["w"]),
                          fc_rows(params["fc_logvar"]["w"])], axis=1)
    bfc = np.concatenate([np.asarray(params["fc_mu"]["b"], np.float32),
                          np.asarray(params["fc_logvar"]["b"], np.float32)])
    packed["fc"] = dict(B=jnp.asarray(Bfc, jnp.bfloat16),
                        epi=jnp.asarray(_epi_rows(bfc, None, 1)))

    # decoder_fc_to_conv: columns permuted so its output is (h,w,c)-ordered.
    wd = np.asarray(params["dec_fc"]["w"], np.float32)  # (FLAT, LATENT)
    Bdf = (wd.T.reshape(LATENT_DIM, FINAL_CH, FDIM, FDIM)
           .transpose(0, 2, 3, 1).reshape(LATENT_DIM, FLAT))
    bdf = (np.asarray(params["dec_fc"]["b"], np.float32)
           .reshape(FINAL_CH, FDIM, FDIM).transpose(1, 2, 0).reshape(FLAT))
    packed["dfc"] = dict(B=jnp.asarray(Bdf, jnp.bfloat16),
                         epi=jnp.asarray(_epi_rows(bdf, None, 1)))

    # decoder transposed convs (last layer emits (c,h,w)-ordered columns so the
    # kernel output is already the NCHW flatten).
    for i, layer in enumerate(params["dec"]):
        last = i == len(params["dec"]) - 1
        B = _deconv_dense_np(layer["w"], DEC_DIMS[i], DEC_DIMS[i + 1],
                             DEC_KERNELS[i], DEC_PADDINGS[i],
                             out_channel_major=last)
        epi = _epi_rows(np.asarray(layer["b"]), layer["bn"],
                        DEC_DIMS[i + 1] ** 2, channel_major=last)
        packed[f"d{i + 1}"] = dict(B=jnp.asarray(B, jnp.bfloat16),
                                   epi=jnp.asarray(epi))
    return packed


# ----------------------------------- main ------------------------------------
if __name__ == "__main__":
    key = jax.random.PRNGKey(0)
    pkey, xkey, ekey = jax.random.split(key, 3)
    params = init_params(pkey)
    packed = pack_params(params)        # one-time weight prep, outside the jit

    x = jax.random.uniform(xkey, (BATCH, INPUT_CHANNELS, IMAGE_SIZE, IMAGE_SIZE),
                           jnp.float32)
    eps = jax.random.normal(ekey, (BATCH, LATENT_DIM), jnp.float32)

    recon, mu, logvar = jax.jit(vae_forward)(packed, x, eps)
    jax.block_until_ready((recon, mu, logvar))

    assert recon.shape == x.shape, recon.shape
    assert mu.shape == (BATCH, LATENT_DIM)
    assert logvar.shape == (BATCH, LATENT_DIM)
    assert bool(jnp.all(jnp.isfinite(recon)))
    assert bool(jnp.all((recon >= 0.0) & (recon <= 1.0)))   # sigmoid range
    print("KERNEL_OK")
</pallas_src>

<mosaic_0001>
module attributes {stable_mosaic.version = 11 : i64} {
  func.func @_vae_kernel(%arg0: memref<2x1024xf32, #tpu.memory_space<vmem>>, %arg1: memref<2x32xf32, #tpu.memory_space<vmem>>, %arg2: memref<1024x1024xbf16, #tpu.memory_space<vmem>>, %arg3: memref<3x1024xf32, #tpu.memory_space<vmem>>, %arg4: memref<1024x512xbf16, #tpu.memory_space<vmem>>, %arg5: memref<3x512xf32, #tpu.memory_space<vmem>>, %arg6: memref<512x256xbf16, #tpu.memory_space<vmem>>, %arg7: memref<3x256xf32, #tpu.memory_space<vmem>>, %arg8: memref<256x64xbf16, #tpu.memory_space<vmem>>, %arg9: memref<3x64xf32, #tpu.memory_space<vmem>>, %arg10: memref<32x256xbf16, #tpu.memory_space<vmem>>, %arg11: memref<3x256xf32, #tpu.memory_space<vmem>>, %arg12: memref<256x512xbf16, #tpu.memory_space<vmem>>, %arg13: memref<3x512xf32, #tpu.memory_space<vmem>>, %arg14: memref<512x1024xbf16, #tpu.memory_space<vmem>>, %arg15: memref<3x1024xf32, #tpu.memory_space<vmem>>, %arg16: memref<1024x1024xbf16, #tpu.memory_space<vmem>>, %arg17: memref<3x1024xf32, #tpu.memory_space<vmem>>, %arg18: memref<2x1024xf32, #tpu.memory_space<vmem>>, %arg19: memref<2x64xf32, #tpu.memory_space<vmem>>) attributes {dimension_semantics = [], scalar_prefetch = 0 : i64, scratch_operands = 0 : i64, tpu.core_type = #tpu.core_type<tc>} {
    %c0 = arith.constant 0 : index
    %c0_0 = arith.constant 0 : index
    %0 = vector.load %arg0[%c0, %c0_0] : memref<2x1024xf32, #tpu.memory_space<vmem>>, vector<2x1024xf32>
    %c0_1 = arith.constant 0 : index
    %c0_2 = arith.constant 0 : index
    %1 = vector.load %arg3[%c0_1, %c0_2] : memref<3x1024xf32, #tpu.memory_space<vmem>>, vector<3x1024xf32>
    %2 = arith.truncf %0 : vector<2x1024xf32> to vector<2x1024xbf16>
    %c0_3 = arith.constant 0 : index
    %c0_4 = arith.constant 0 : index
    %3 = vector.load %arg2[%c0_3, %c0_4] : memref<1024x1024xbf16, #tpu.memory_space<vmem>>, vector<1024x1024xbf16>
    %cst = arith.constant dense<0.000000e+00> : vector<2x1024xf32>
    %4 = tpu.matmul %2, %3, %cst {dimension_numbers = #tpu.dot_dimension_numbers<[1], [0], [0], [1], [0, 0, 1, 1], [], []>} : vector<2x1024xbf16>, vector<1024x1024xbf16>, vector<2x1024xf32> -> vector<2x1024xf32>
    %5 = vector.extract_strided_slice %1 {offsets = [0, 0], sizes = [1, 1024], strides = [1, 1]} : vector<3x1024xf32> to vector<1x1024xf32>
    %6 = vector.broadcast %5 : vector<1x1024xf32> to vector<2x1024xf32>
    %7 = arith.addf %4, %6 : vector<2x1024xf32>
    %cst_5 = arith.constant 0.000000e+00 : f32
    %8 = vector.broadcast %cst_5 : f32 to vector<2x1024xf32>
    %9 = arith.maximumf %7, %8 : vector<2x1024xf32>
    %10 = vector.extract_strided_slice %1 {offsets = [1, 0], sizes = [1, 1024], strides = [1, 1]} : vector<3x1024xf32> to vector<1x1024xf32>
    %11 = vector.broadcast %10 : vector<1x1024xf32> to vector<2x1024xf32>
    %12 = arith.mulf %9, %11 : vector<2x1024xf32>
    %13 = vector.extract_strided_slice %1 {offsets = [2, 0], sizes = [1, 1024], strides = [1, 1]} : vector<3x1024xf32> to vector<1x1024xf32>
    %14 = vector.broadcast %13 : vector<1x1024xf32> to vector<2x1024xf32>
    %15 = arith.addf %12, %14 : vector<2x1024xf32>
    %c0_6 = arith.constant 0 : index
    %c0_7 = arith.constant 0 : index
    %16 = vector.load %arg5[%c0_6, %c0_7] : memref<3x512xf32, #tpu.memory_space<vmem>>, vector<3x512xf32>
    %17 = arith.truncf %15 : vector<2x1024xf32> to vector<2x1024xbf16>
    %c0_8 = arith.constant 0 : index
    %c0_9 = arith.constant 0 : index
    %18 = vector.load %arg4[%c0_8, %c0_9] : memref<1024x512xbf16, #tpu.memory_space<vmem>>, vector<1024x512xbf16>
    %cst_10 = arith.constant dense<0.000000e+00> : vector<2x512xf32>
    %19 = tpu.matmul %17, %18, %cst_10 {dimension_numbers = #tpu.dot_dimension_numbers<[1], [0], [0], [1], [0, 0, 1, 1], [], []>} : vector<2x1024xbf16>, vector<1024x512xbf16>, vector<2x512xf32> -> vector<2x512xf32>
    %20 = vector.extract_strided_slice %16 {offsets = [0, 0], sizes = [1, 512], strides = [1, 1]} : vector<3x512xf32> to vector<1x512xf32>
    %21 = vector.broadcast %20 : vector<1x512xf32> to vector<2x512xf32>
    %22 = arith.addf %19, %21 : vector<2x512xf32>
    %cst_11 = arith.constant 0.000000e+00 : f32
    %23 = vector.broadcast %cst_11 : f32 to vector<2x512xf32>
    %24 = arith.maximumf %22, %23 : vector<2x512xf32>
    %25 = vector.extract_strided_slice %16 {offsets = [1, 0], sizes = [1, 512], strides = [1, 1]} : vector<3x512xf32> to vector<1x512xf32>
    %26 = vector.broadcast %25 : vector<1x512xf32> to vector<2x512xf32>
    %27 = arith.mulf %24, %26 : vector<2x512xf32>
    %28 = vector.extract_strided_slice %16 {offsets = [2, 0], sizes = [1, 512], strides = [1, 1]} : vector<3x512xf32> to vector<1x512xf32>
    %29 = vector.broadcast %28 : vector<1x512xf32> to vector<2x512xf32>
    %30 = arith.addf %27, %29 : vector<2x512xf32>
    %c0_12 = arith.constant 0 : index
    %c0_13 = arith.constant 0 : index
    %31 = vector.load %arg7[%c0_12, %c0_13] : memref<3x256xf32, #tpu.memory_space<vmem>>, vector<3x256xf32>
    %32 = arith.truncf %30 : vector<2x512xf32> to vector<2x512xbf16>
    %c0_14 = arith.constant 0 : index
    %c0_15 = arith.constant 0 : index
    %33 = vector.load %arg6[%c0_14, %c0_15] : memref<512x256xbf16, #tpu.memory_space<vmem>>, vector<512x256xbf16>
    %cst_16 = arith.constant dense<0.000000e+00> : vector<2x256xf32>
    %34 = tpu.matmul %32, %33, %cst_16 {dimension_numbers = #tpu.dot_dimension_numbers<[1], [0], [0], [1], [0, 0, 1, 1], [], []>} : vector<2x512xbf16>, vector<512x256xbf16>, vector<2x256xf32> -> vector<2x256xf32>
    %35 = vector.extract_strided_slice %31 {offsets = [0, 0], sizes = [1, 256], strides = [1, 1]} : vector<3x256xf32> to vector<1x256xf32>
    %36 = vector.broadcast %35 : vector<1x256xf32> to vector<2x256xf32>
    %37 = arith.addf %34, %36 : vector<2x256xf32>
    %cst_17 = arith.constant 0.000000e+00 : f32
    %38 = vector.broadcast %cst_17 : f32 to vector<2x256xf32>
    %39 = arith.maximumf %37, %38 : vector<2x256xf32>
    %40 = vector.extract_strided_slice %31 {offsets = [1, 0], sizes = [1, 256], strides = [1, 1]} : vector<3x256xf32> to vector<1x256xf32>
    %41 = vector.broadcast %40 : vector<1x256xf32> to vector<2x256xf32>
    %42 = arith.mulf %39, %41 : vector<2x256xf32>
    %43 = vector.extract_strided_slice %31 {offsets = [2, 0], sizes = [1, 256], strides = [1, 1]} : vector<3x256xf32> to vector<1x256xf32>
    %44 = vector.broadcast %43 : vector<1x256xf32> to vector<2x256xf32>
    %45 = arith.addf %42, %44 : vector<2x256xf32>
    %c0_18 = arith.constant 0 : index
    %c0_19 = arith.constant 0 : index
    %46 = vector.load %arg9[%c0_18, %c0_19] : memref<3x64xf32, #tpu.memory_space<vmem>>, vector<3x64xf32>
    %47 = arith.truncf %45 : vector<2x256xf32> to vector<2x256xbf16>
    %c0_20 = arith.constant 0 : index
    %c0_21 = arith.constant 0 : index
    %48 = vector.load %arg8[%c0_20, %c0_21] : memref<256x64xbf16, #tpu.memory_space<vmem>>, vector<256x64xbf16>
    %cst_22 = arith.constant dense<0.000000e+00> : vector<2x64xf32>
    %49 = tpu.matmul %47, %48, %cst_22 {dimension_numbers = #tpu.dot_dimension_numbers<[1], [0], [0], [1], [0, 0, 1, 1], [], []>} : vector<2x256xbf16>, vector<256x64xbf16>, vector<2x64xf32> -> vector<2x64xf32>
    %50 = vector.extract_strided_slice %46 {offsets = [0, 0], sizes = [1, 64], strides = [1, 1]} : vector<3x64xf32> to vector<1x64xf32>
    %51 = vector.broadcast %50 : vector<1x64xf32> to vector<2x64xf32>
    %52 = arith.addf %49, %51 : vector<2x64xf32>
    %53 = vector.extract_strided_slice %46 {offsets = [1, 0], sizes = [1, 64], strides = [1, 1]} : vector<3x64xf32> to vector<1x64xf32>
    %54 = vector.broadcast %53 : vector<1x64xf32> to vector<2x64xf32>
    %55 = arith.mulf %52, %54 : vector<2x64xf32>
    %56 = vector.extract_strided_slice %46 {offsets = [2, 0], sizes = [1, 64], strides = [1, 1]} : vector<3x64xf32> to vector<1x64xf32>
    %57 = vector.broadcast %56 : vector<1x64xf32> to vector<2x64xf32>
    %58 = arith.addf %55, %57 : vector<2x64xf32>
    %c0_23 = arith.constant 0 : index
    %c0_24 = arith.constant 0 : index
    %59 = vector.load %arg19[%c0_23, %c0_24] : memref<2x64xf32, #tpu.memory_space<vmem>>, vector<2x64xf32>
    tpu.vector_store %arg19[%c0_23, %c0_24], %58 {strides = array<i32>} : memref<2x64xf32, #tpu.memory_space<vmem>>, vector<2x64xf32>,
    %60 = vector.extract_strided_slice %58 {offsets = [0, 0], sizes = [2, 32], strides = [1, 1]} : vector<2x64xf32> to vector<2x32xf32>
    %61 = vector.extract_strided_slice %58 {offsets = [0, 32], sizes = [2, 32], strides = [1, 1]} : vector<2x64xf32> to vector<2x32xf32>
    %c0_25 = arith.constant 0 : index
    %c0_26 = arith.constant 0 : index
    %62 = vector.load %arg1[%c0_25, %c0_26] : memref<2x32xf32, #tpu.memory_space<vmem>>, vector<2x32xf32>
    %cst_27 = arith.constant 5.000000e-01 : f32
    %63 = vector.broadcast %cst_27 : f32 to vector<2x32xf32>
    %64 = arith.mulf %63, %61 : vector<2x32xf32>
    %65 = math.exp %64 : vector<2x32xf32>
    %66 = arith.mulf %62, %65 : vector<2x32xf32>
    %67 = arith.addf %60, %66 : vector<2x32xf32>
    %c0_28 = arith.constant 0 : index
    %c0_29 = arith.constant 0 : index
    %68 = vector.load %arg11[%c0_28, %c0_29] : memref<3x256xf32, #tpu.memory_space<vmem>>, vector<3x256xf32>
    %69 = arith.truncf %67 : vector<2x32xf32> to vector<2x32xbf16>
    %c0_30 = arith.constant 0 : index
    %c0_31 = arith.constant 0 : index
    %70 = vector.load %arg10[%c0_30, %c0_31] : memref<32x256xbf16, #tpu.memory_space<vmem>>, vector<32x256xbf16>
    %cst_32 = arith.constant dense<0.000000e+00> : vector<2x256xf32>
    %71 = tpu.matmul %69, %70, %cst_32 {dimension_numbers = #tpu.dot_dimension_numbers<[1], [0], [0], [1], [0, 0, 1, 1], [], []>} : vector<2x32xbf16>, vector<32x256xbf16>, vector<2x256xf32> -> vector<2x256xf32>
    %72 = vector.extract_strided_slice %68 {offsets = [0, 0], sizes = [1, 256], strides = [1, 1]} : vector<3x256xf32> to vector<1x256xf32>
    %73 = vector.broadcast %72 : vector<1x256xf32> to vector<2x256xf32>
    %74 = arith.addf %71, %73 : vector<2x256xf32>
    %75 = vector.extract_strided_slice %68 {offsets = [1, 0], sizes = [1, 256], strides = [1, 1]} : vector<3x256xf32> to vector<1x256xf32>
    %76 = vector.broadcast %75 : vector<1x256xf32> to vector<2x256xf32>
    %77 = arith.mulf %74, %76 : vector<2x256xf32>
    %78 = vector.extract_strided_slice %68 {offsets = [2, 0], sizes = [1, 256], strides = [1, 1]} : vector<3x256xf32> to vector<1x256xf32>
    %79 = vector.broadcast %78 : vector<1x256xf32> to vector<2x256xf32>
    %80 = arith.addf %77, %79 : vector<2x256xf32>
    %c0_33 = arith.constant 0 : index
    %c0_34 = arith.constant 0 : index
    %81 = vector.load %arg13[%c0_33, %c0_34] : memref<3x512xf32, #tpu.memory_space<vmem>>, vector<3x512xf32>
    %82 = arith.truncf %80 : vector<2x256xf32> to vector<2x256xbf16>
    %c0_35 = arith.constant 0 : index
    %c0_36 = arith.constant 0 : index
    %83 = vector.load %arg12[%c0_35, %c0_36] : memref<256x512xbf16, #tpu.memory_space<vmem>>, vector<256x512xbf16>
    %cst_37 = arith.constant dense<0.000000e+00> : vector<2x512xf32>
    %84 = tpu.matmul %82, %83, %cst_37 {dimension_numbers = #tpu.dot_dimension_numbers<[1], [0], [0], [1], [0, 0, 1, 1], [], []>} : vector<2x256xbf16>, vector<256x512xbf16>, vector<2x512xf32> -> vector<2x512xf32>
    %85 = vector.extract_strided_slice %81 {offsets = [0, 0], sizes = [1, 512], strides = [1, 1]} : vector<3x512xf32> to vector<1x512xf32>
    %86 = vector.broadcast %85 : vector<1x512xf32> to vector<2x512xf32>
    %87 = arith.addf %84, %86 : vector<2x512xf32>
    %cst_38 = arith.constant 0.000000e+00 : f32
    %88 = vector.broadcast %cst_38 : f32 to vector<2x512xf32>
    %89 = arith.maximumf %87, %88 : vector<2x512xf32>
    %90 = vector.extract_strided_slice %81 {offsets = [1, 0], sizes = [1, 512], strides = [1, 1]} : vector<3x512xf32> to vector<1x512xf32>
    %91 = vector.broadcast %90 : vector<1x512xf32> to vector<2x512xf32>
    %92 = arith.mulf %89, %91 : vector<2x512xf32>
    %93 = vector.extract_strided_slice %81 {offsets = [2, 0], sizes = [1, 512], strides = [1, 1]} : vector<3x512xf32> to vector<1x512xf32>
    %94 = vector.broadcast %93 : vector<1x512xf32> to vector<2x512xf32>
    %95 = arith.addf %92, %94 : vector<2x512xf32>
    %c0_39 = arith.constant 0 : index
    %c0_40 = arith.constant 0 : index
    %96 = vector.load %arg15[%c0_39, %c0_40] : memref<3x1024xf32, #tpu.memory_space<vmem>>, vector<3x1024xf32>
    %97 = arith.truncf %95 : vector<2x512xf32> to vector<2x512xbf16>
    %c0_41 = arith.constant 0 : index
    %c0_42 = arith.constant 0 : index
    %98 = vector.load %arg14[%c0_41, %c0_42] : memref<512x1024xbf16, #tpu.memory_space<vmem>>, vector<512x1024xbf16>
    %cst_43 = arith.constant dense<0.000000e+00> : vector<2x1024xf32>
    %99 = tpu.matmul %97, %98, %cst_43 {dimension_numbers = #tpu.dot_dimension_numbers<[1], [0], [0], [1], [0, 0, 1, 1], [], []>} : vector<2x512xbf16>, vector<512x1024xbf16>, vector<2x1024xf32> -> vector<2x1024xf32>
    %100 = vector.extract_strided_slice %96 {offsets = [0, 0], sizes = [1, 1024], strides = [1, 1]} : vector<3x1024xf32> to vector<1x1024xf32>
    %101 = vector.broadcast %100 : vector<1x1024xf32> to vector<2x1024xf32>
    %102 = arith.addf %99, %101 : vector<2x1024xf32>
    %cst_44 = arith.constant 0.000000e+00 : f32
    %103 = vector.broadcast %cst_44 : f32 to vector<2x1024xf32>
    %104 = arith.maximumf %102, %103 : vector<2x1024xf32>
    %105 = vector.extract_strided_slice %96 {offsets = [1, 0], sizes = [1, 1024], strides = [1, 1]} : vector<3x1024xf32> to vector<1x1024xf32>
    %106 = vector.broadcast %105 : vector<1x1024xf32> to vector<2x1024xf32>
    %107 = arith.mulf %104, %106 : vector<2x1024xf32>
    %108 = vector.extract_strided_slice %96 {offsets = [2, 0], sizes = [1, 1024], strides = [1, 1]} : vector<3x1024xf32> to vector<1x1024xf32>
    %109 = vector.broadcast %108 : vector<1x1024xf32> to vector<2x1024xf32>
    %110 = arith.addf %107, %109 : vector<2x1024xf32>
    %c0_45 = arith.constant 0 : index
    %c0_46 = arith.constant 0 : index
    %111 = vector.load %arg17[%c0_45, %c0_46] : memref<3x1024xf32, #tpu.memory_space<vmem>>, vector<3x1024xf32>
    %112 = arith.truncf %110 : vector<2x1024xf32> to vector<2x1024xbf16>
    %c0_47 = arith.constant 0 : index
    %c0_48 = arith.constant 0 : index
    %113 = vector.load %arg16[%c0_47, %c0_48] : memref<1024x1024xbf16, #tpu.memory_space<vmem>>, vector<1024x1024xbf16>
    %cst_49 = arith.constant dense<0.000000e+00> : vector<2x1024xf32>
    %114 = tpu.matmul %112, %113, %cst_49 {dimension_numbers = #tpu.dot_dimension_numbers<[1], [0], [0], [1], [0, 0, 1, 1], [], []>} : vector<2x1024xbf16>, vector<1024x1024xbf16>, vector<2x1024xf32> -> vector<2x1024xf32>
    %115 = vector.extract_strided_slice %111 {offsets = [0, 0], sizes = [1, 1024], strides = [1, 1]} : vector<3x1024xf32> to vector<1x1024xf32>
    %116 = vector.broadcast %115 : vector<1x1024xf32> to vector<2x1024xf32>
    %117 = arith.addf %114, %116 : vector<2x1024xf32>
    %118 = arith.negf %117 : vector<2x1024xf32>
    %119 = math.exp %118 : vector<2x1024xf32>
    %cst_50 = arith.constant 1.000000e+00 : f32
    %120 = vector.broadcast %cst_50 : f32 to vector<2x1024xf32>
    %121 = arith.addf %120, %119 : vector<2x1024xf32>
    %122 = arith.divf %120, %121 : vector<2x1024xf32>
    %123 = vector.extract_strided_slice %111 {offsets = [1, 0], sizes = [1, 1024], strides = [1, 1]} : vector<3x1024xf32> to vector<1x1024xf32>
    %124 = vector.broadcast %123 : vector<1x1024xf32> to vector<2x1024xf32>
    %125 = arith.mulf %122, %124 : vector<2x1024xf32>
    %126 = vector.extract_strided_slice %111 {offsets = [2, 0], sizes = [1, 1024], strides = [1, 1]} : vector<3x1024xf32> to vector<1x1024xf32>
    %127 = vector.broadcast %126 : vector<1x1024xf32> to vector<2x1024xf32>
    %128 = arith.addf %125, %127 : vector<2x1024xf32>
    %c0_51 = arith.constant 0 : index
    %c0_52 = arith.constant 0 : index
    %129 = vector.load %arg18[%c0_51, %c0_52] : memref<2x1024xf32, #tpu.memory_space<vmem>>, vector<2x1024xf32>
    tpu.vector_store %arg18[%c0_51, %c0_52], %128 {strides = array<i32>} : memref<2x1024xf32, #tpu.memory_space<vmem>>, vector<2x1024xf32>,
    return
  }
}

</mosaic_0001>

<llo_original>
// kernel: vae_forward.1
$region0: #{vae_forward.1}
  #allocation0 [shape = 'u32[]', space=smem, size = 0x4, offset = 0x4, fixed_abs, tag = 'smem constant byte address 0x4 - core index']
  #allocation1 [shape = 'u32[144,128]{1,0:T(1,128)}', space=vmem, size = 0x12000, scoped, tag = 'internal scratch']
  %s0 = inlined_call_operand.vmem [shape: f32[2,1024], index: 0, kind: input, shape index: {}]
  %s1 = inlined_call_operand.hbm [shape: f32[2,32], index: 1, kind: input, shape index: {}]
  %s2 = inlined_call_operand.hbm [shape: bf16[1024,1024], index: 2, kind: input, shape index: {}]
  %s3 = inlined_call_operand.hbm [shape: f32[3,1024], index: 3, kind: input, shape index: {}]
  %s4 = inlined_call_operand.hbm [shape: bf16[1024,512], index: 4, kind: input, shape index: {}]
  %s5 = inlined_call_operand.hbm [shape: f32[3,512], index: 5, kind: input, shape index: {}]
  %s6 = inlined_call_operand.hbm [shape: bf16[512,256], index: 6, kind: input, shape index: {}]
  %s7 = inlined_call_operand.hbm [shape: f32[3,256], index: 7, kind: input, shape index: {}]
  %s8 = inlined_call_operand.vmem [shape: bf16[256,64], index: 8, kind: input, shape index: {}]
  %s9 = inlined_call_operand.hbm [shape: f32[3,64], index: 9, kind: input, shape index: {}]
  %s10 = inlined_call_operand.hbm [shape: bf16[32,256], index: 10, kind: input, shape index: {}]
  %s11 = inlined_call_operand.hbm [shape: f32[3,256], index: 11, kind: input, shape index: {}]
  %s12 = inlined_call_operand.hbm [shape: bf16[256,512], index: 12, kind: input, shape index: {}]
  %s13 = inlined_call_operand.hbm [shape: f32[3,512], index: 13, kind: input, shape index: {}]
  %s14 = inlined_call_operand.hbm [shape: bf16[512,1024], index: 14, kind: input, shape index: {}]
  %s15 = inlined_call_operand.hbm [shape: f32[3,1024], index: 15, kind: input, shape index: {}]
  %s16 = inlined_call_operand.hbm [shape: bf16[1024,1024], index: 16, kind: input, shape index: {}]
  %s17 = inlined_call_operand.hbm [shape: f32[3,1024], index: 17, kind: input, shape index: {}]
  %s18 = inlined_call_operand.vmem [shape: f32[2,1024], index: 18, kind: output, shape index: {0}]
  %s19 = inlined_call_operand.vmem [shape: f32[2,64], index: 19, kind: output, shape index: {1}]
  %20 = xla_tuple %s18, %s19
  %s21 = sld [smem:[#allocation0]]
  $region154: #{vae_forward.1} parent=0
    _
  %s23 = ssub.s32 1, %s21
  %s24 = scalar_select 0, %s23, %s21
  $region1: #{vae_forward.1} parent=0
    #allocation2 [shape = 'u8[1024]{0}', space=vmem, size = 0x400, scoped, tag = 'input window, operand 1, single buffered']
    #allocation3 [shape = 's32[1]{0}', space=sflag, size = 0x4, scoped, tag = 'scoped memory for vae_forward.1']
    #allocation4 [shape = 'u8[2097152]{0}', space=vmem, size = 0x200000, scoped, tag = 'input window, operand 2, single buffered']
    #allocation5 [shape = 's32[1]{0}', space=sflag, size = 0x4, scoped, tag = 'scoped memory for vae_forward.1']
    #allocation6 [shape = 'u8[16384]{0}', space=vmem, size = 0x4000, scoped, tag = 'input window, operand 3, single buffered']
    #allocation7 [shape = 'u8[1048576]{0}', space=vmem, size = 0x100000, scoped, tag = 'input window, operand 4, single buffered']
    #allocation8 [shape = 's32[1]{0}', space=sflag, size = 0x4, scoped, tag = 'scoped memory for vae_forward.1']
    #allocation9 [shape = 'u8[8192]{0}', space=vmem, size = 0x2000, scoped, tag = 'input window, operand 5, single buffered']
    #allocation10 [shape = 'u8[262144]{0}', space=vmem, size = 0x40000, scoped, tag = 'input window, operand 6, single buffered']
    #allocation11 [shape = 's32[1]{0}', space=sflag, size = 0x4, scoped, tag = 'scoped memory for vae_forward.1']
    #allocation12 [shape = 'u8[4096]{0}', space=vmem, size = 0x1000, scoped, tag = 'input window, operand 7, single buffered']
    #allocation13 [shape = 'u8[2048]{0}', space=vmem, size = 0x800, scoped, tag = 'input window, operand 9, single buffered']
    #allocation14 [shape = 's32[1]{0}', space=sflag, size = 0x4, scoped, tag = 'scoped memory for vae_forward.1']
    #allocation15 [shape = 'u8[16384]{0}', space=vmem, size = 0x4000, scoped, tag = 'input window, operand 10, single buffered']
    #allocation16 [shape = 'u8[4096]{0}', space=vmem, size = 0x1000, scoped, tag = 'input window, operand 11, single buffered']
    #allocation17 [shape = 's32[1]{0}', space=sflag, size = 0x4, scoped, tag = 'scoped memory for vae_forward.1']
    #allocation18 [shape = 'u8[262144]{0}', space=vmem, size = 0x40000, scoped, tag = 'input window, operand 12, single buffered']
    #allocation19 [shape = 'u8[8192]{0}', space=vmem, size = 0x2000, scoped, tag = 'input window, operand 13, single buffered']
    #allocation20 [shape = 's32[1]{0}', space=sflag, size = 0x4, scoped, tag = 'scoped memory for vae_forward.1']
    #allocation21 [shape = 'u8[1048576]{0}', space=vmem, size = 0x100000, scoped, tag = 'input window, operand 14, single buffered']
    #allocation22 [shape = 'u8[16384]{0}', space=vmem, size = 0x4000, scoped, tag = 'input window, operand 15, single buffered']
    #allocation23 [shape = 's32[1]{0}', space=sflag, size = 0x4, scoped, tag = 'scoped memory for vae_forward.1']
    #allocation24 [shape = 'u8[2097152]{0}', space=vmem, size = 0x200000, scoped, tag = 'input window, operand 16, single buffered']
    #allocation25 [shape = 'u8[16384]{0}', space=vmem, size = 0x4000, scoped, tag = 'input window, operand 17, single buffered']
    #allocation26 [shape = 's32[1]{0}', space=sflag, size = 0x4, scoped, tag = 'scoped memory for vae_forward.1']
    %25 = vsyncpa [#allocation3], 0
    %26 = vsyncpa [#allocation5], 0
    %27 = vsyncpa [#allocation8], 0
    %28 = vsyncpa [#allocation11], 0
    %29 = vsyncpa [#allocation14], 0
    %30 = vsyncpa [#allocation17], 0
    %31 = vsyncpa [#allocation20], 0
    %32 = vsyncpa [#allocation23], 0
    %33 = vsyncpa [#allocation26], 0
    // Predicated region
    $region2: #{vae_forward.1} parent=1 // pred_check
      _
    $region3: #{vae_forward.1} parent=1 // pred_check_branch
      %35 = sbr.rel (0) target = $region5
    $region4: #{vae_forward.1} parent=1 // pred_region
      _
    $region5: #{vae_forward.1} parent=1 // pred_fallthru
      _
    // Predicated region
    $region6: #{vae_forward.1} parent=1 // pred_check
      _
    $region7: #{vae_forward.1} parent=1 // pred_check_branch
      %37 = sbr.rel (0) target = $region9
    $region8: #{vae_forward.1} parent=1 // pred_region
      %s39 = ssub.s32 32, 32
      %40 = vsyncadd [#allocation3], %s39
      %s42 = sshll.u32 [#allocation2], 4
      %s43 = int_to_ptr.vmem [resolvable:$true] %s42
      %45 = dma.hbm_to_vmem [thread:$0]  %s1, 32, %s43, [#allocation3]
    $region9: #{vae_forward.1} parent=1 // pred_fallthru
      _
    // Predicated region
    $region10: #{vae_forward.1} parent=1 // pred_check
      _
    $region11: #{vae_forward.1} parent=1 // pred_check_branch
      %47 = sbr.rel (0) target = $region13
    $region12: #{vae_forward.1} parent=1 // pred_region
      %s49 = ssub.s32 65536, 65536
      %50 = vsyncadd [#allocation5], %s49
      %s51 = sshll.u32 [#allocation4], 4
      %s52 = int_to_ptr.vmem [resolvable:$true] %s51
      %57 = dma.hbm_to_vmem [thread:$0]  %s2, 65536, %s52, [#allocation5], 512, 512, 32
    $region13: #{vae_forward.1} parent=1 // pred_fallthru
      _
    // Predicated region
    $region14: #{vae_forward.1} parent=1 // pred_check
      _
    $region15: #{vae_forward.1} parent=1 // pred_check_branch
      %59 = sbr.rel (0) target = $region17
    $region16: #{vae_forward.1} parent=1 // pred_region
      %s61 = ssub.s32 512, 512
      %62 = vsyncadd [#allocation5], %s61
      %s64 = sshll.u32 [#allocation6], 4
      %s65 = int_to_ptr.vmem [resolvable:$true] %s64
      %67 = dma.hbm_to_vmem [thread:$0]  %s3, 512, %s65, [#allocation5]
    $region17: #{vae_forward.1} parent=1 // pred_fallthru
      _
    // Predicated region
    $region18: #{vae_forward.1} parent=1 // pred_check
      _
    $region19: #{vae_forward.1} parent=1 // pred_check_branch
      %69 = sbr.rel (0) target = $region21
    $region20: #{vae_forward.1} parent=1 // pred_region
      %s71 = ssub.s32 32768, 32768
      %72 = vsyncadd [#allocation8], %s71
      %s73 = sshll.u32 [#allocation7], 4
      %s74 = int_to_ptr.vmem [resolvable:$true] %s73
      %79 = dma.hbm_to_vmem [thread:$0]  %s4, 32768, %s74, [#allocation8], 256, 256, 16
    $region21: #{vae_forward.1} parent=1 // pred_fallthru
      _
    // Predicated region
    $region22: #{vae_forward.1} parent=1 // pred_check
      _
    $region23: #{vae_forward.1} parent=1 // pred_check_branch
      %81 = sbr.rel (0) target = $region25
    $region24: #{vae_forward.1} parent=1 // pred_region
      %s83 = ssub.s32 256, 256
      %84 = vsyncadd [#allocation8], %s83
      %s86 = sshll.u32 [#allocation9], 4
      %s87 = int_to_ptr.vmem [resolvable:$true] %s86
      %89 = dma.hbm_to_vmem [thread:$0]  %s5, 256, %s87, [#allocation8]
    $region25: #{vae_forward.1} parent=1 // pred_fallthru
      _
    // Predicated region
    $region26: #{vae_forward.1} parent=1 // pred_check
      _
    $region27: #{vae_forward.1} parent=1 // pred_check_branch
      %91 = sbr.rel (0) target = $region29
    $region28: #{vae_forward.1} parent=1 // pred_region
      %s93 = ssub.s32 8192, 8192
      %94 = vsyncadd [#allocation11], %s93
      %s95 = sshll.u32 [#allocation10], 4
      %s96 = int_to_ptr.vmem [resolvable:$true] %s95
      %101 = dma.hbm_to_vmem [thread:$0]  %s6, 8192, %s96, [#allocation11], 128, 128, 8
    $region29: #{vae_forward.1} parent=1 // pred_fallthru
      _
    // Predicated region
    $region30: #{vae_forward.1} parent=1 // pred_check
      _
    $region31: #{vae_forward.1} parent=1 // pred_check_branch
      %103 = sbr.rel (0) target = $region33
    $region32: #{vae_forward.1} parent=1 // pred_region
      %s105 = ssub.s32 128, 128
      %106 = vsyncadd [#allocation11], %s105
      %s108 = sshll.u32 [#allocation12], 4
      %s109 = int_to_ptr.vmem [resolvable:$true] %s108
      %111 = dma.hbm_to_vmem [thread:$0]  %s7, 128, %s109, [#allocation11]
    $region33: #{vae_forward.1} parent=1 // pred_fallthru
      _
    // Predicated region
    $region34: #{vae_forward.1} parent=1 // pred_check
      _
    $region35: #{vae_forward.1} parent=1 // pred_check_branch
      %113 = sbr.rel (0) target = $region37
    $region36: #{vae_forward.1} parent=1 // pred_region
      _
    $region37: #{vae_forward.1} parent=1 // pred_fallthru
      _
    // Predicated region
    $region38: #{vae_forward.1} parent=1 // pred_check
      _
    $region39: #{vae_forward.1} parent=1 // pred_check_branch
      %115 = sbr.rel (0) target = $region41
    $region40: #{vae_forward.1} parent=1 // pred_region
      %s117 = ssub.s32 64, 64
      %118 = vsyncadd [#allocation14], %s117
      %s120 = sshll.u32 [#allocation13], 4
      %s121 = int_to_ptr.vmem [resolvable:$true] %s120
      %123 = dma.hbm_to_vmem [thread:$0]  %s9, 64, %s121, [#allocation14]
    $region41: #{vae_forward.1} parent=1 // pred_fallthru
      _
    // Predicated region
    $region42: #{vae_forward.1} parent=1 // pred_check
      _
    $region43: #{vae_forward.1} parent=1 // pred_check_branch
      %125 = sbr.rel (0) target = $region45
    $region44: #{vae_forward.1} parent=1 // pred_region
      %s127 = ssub.s32 512, 512
      %128 = vsyncadd [#allocation14], %s127
      %s129 = sshll.u32 [#allocation15], 4
      %s130 = int_to_ptr.vmem [resolvable:$true] %s129
      %135 = dma.hbm_to_vmem [thread:$0]  %s10, 512, %s130, [#allocation14], 128, 128, 8
    $region45: #{vae_forward.1} parent=1 // pred_fallthru
      _
    // Predicated region
    $region46: #{vae_forward.1} parent=1 // pred_check
      _
    $region47: #{vae_forward.1} parent=1 // pred_check_branch
      %137 = sbr.rel (0) target = $region49
    $region48: #{vae_forward.1} parent=1 // pred_region
      %s139 = ssub.s32 128, 128
      %140 = vsyncadd [#allocation17], %s139
      %s142 = sshll.u32 [#allocation16], 4
      %s143 = int_to_ptr.vmem [resolvable:$true] %s142
      %145 = dma.hbm_to_vmem [thread:$0]  %s11, 128, %s143, [#allocation17]
    $region49: #{vae_forward.1} parent=1 // pred_fallthru
      _
    // Predicated region
    $region50: #{vae_forward.1} parent=1 // pred_check
      _
    $region51: #{vae_forward.1} parent=1 // pred_check_branch
      %147 = sbr.rel (0) target = $region53
    $region52: #{vae_forward.1} parent=1 // pred_region
      %s149 = ssub.s32 8192, 8192
      %150 = vsyncadd [#allocation17], %s149
      %s151 = sshll.u32 [#allocation18], 4
      %s152 = int_to_ptr.vmem [resolvable:$true] %s151
      %157 = dma.hbm_to_vmem [thread:$0]  %s12, 8192, %s152, [#allocation17], 256, 256, 16
    $region53: #{vae_forward.1} parent=1 // pred_fallthru
      _
    // Predicated region
    $region54: #{vae_forward.1} parent=1 // pred_check
      _
    $region55: #{vae_forward.1} parent=1 // pred_check_branch
      %159 = sbr.rel (0) target = $region57
    $region56: #{vae_forward.1} parent=1 // pred_region
      %s161 = ssub.s32 256, 256
      %162 = vsyncadd [#allocation20], %s161
      %s164 = sshll.u32 [#allocation19], 4
      %s165 = int_to_ptr.vmem [resolvable:$true] %s164
      %167 = dma.hbm_to_vmem [thread:$0]  %s13, 256, %s165, [#allocation20]
    $region57: #{vae_forward.1} parent=1 // pred_fallthru
      _
    // Predicated region
    $region58: #{vae_forward.1} parent=1 // pred_check
      _
    $region59: #{vae_forward.1} parent=1 // pred_check_branch
      %169 = sbr.rel (0) target = $region61
    $region60: #{vae_forward.1} parent=1 // pred_region
      %s171 = ssub.s32 32768, 32768
      %172 = vsyncadd [#allocation20], %s171
      %s173 = sshll.u32 [#allocation21], 4
      %s174 = int_to_ptr.vmem [resolvable:$true] %s173
      %179 = dma.hbm_to_vmem [thread:$0]  %s14, 32768, %s174, [#allocation20], 512, 512, 32
    $region61: #{vae_forward.1} parent=1 // pred_fallthru
      _
    // Predicated region
    $region62: #{vae_forward.1} parent=1 // pred_check
      _
    $region63: #{vae_forward.1} parent=1 // pred_check_branch
      %181 = sbr.rel (0) target = $region65
    $region64: #{vae_forward.1} parent=1 // pred_region
      %s183 = ssub.s32 512, 512
      %184 = vsyncadd [#allocation23], %s183
      %s186 = sshll.u32 [#allocation22], 4
      %s187 = int_to_ptr.vmem [resolvable:$true] %s186
      %189 = dma.hbm_to_vmem [thread:$0]  %s15, 512, %s187, [#allocation23]
    $region65: #{vae_forward.1} parent=1 // pred_fallthru
      _
    // Predicated region
    $region66: #{vae_forward.1} parent=1 // pred_check
      _
    $region67: #{vae_forward.1} parent=1 // pred_check_branch
      %191 = sbr.rel (0) target = $region69
    $region68: #{vae_forward.1} parent=1 // pred_region
      %s193 = ssub.s32 65536, 65536
      %194 = vsyncadd [#allocation23], %s193
      %s195 = sshll.u32 [#allocation24], 4
      %s196 = int_to_ptr.vmem [resolvable:$true] %s195
      %201 = dma.hbm_to_vmem [thread:$0]  %s16, 65536, %s196, [#allocation23], 512, 512, 32
    $region69: #{vae_forward.1} parent=1 // pred_fallthru
      _
    // Predicated region
    $region70: #{vae_forward.1} parent=1 // pred_check
      _
    $region71: #{vae_forward.1} parent=1 // pred_check_branch
      %203 = sbr.rel (0) target = $region73
    $region72: #{vae_forward.1} parent=1 // pred_region
      %s205 = ssub.s32 512, 512
      %206 = vsyncadd [#allocation26], %s205
      %s208 = sshll.u32 [#allocation25], 4
      %s209 = int_to_ptr.vmem [resolvable:$true] %s208
      %211 = dma.hbm_to_vmem [thread:$0]  %s17, 512, %s209, [#allocation26]
    $region73: #{vae_forward.1} parent=1 // pred_fallthru
      _
    // Predicated region
    $region74: #{vae_forward.1} parent=1 // pred_check
      _
    $region75: #{vae_forward.1} parent=1 // pred_check_branch
      %213 = sbr.rel (0) target = $region77
    $region76: #{vae_forward.1} parent=1 // pred_region
      %214 = dma.done [#allocation3], 32
    $region77: #{vae_forward.1} parent=1 // pred_fallthru
      _
    // Predicated region
    $region78: #{vae_forward.1} parent=1 // pred_check
      _
    $region79: #{vae_forward.1} parent=1 // pred_check_branch
      %216 = sbr.rel (0) target = $region81
    $region80: #{vae_forward.1} parent=1 // pred_region
      %217 = dma.done [#allocation5], 65536
    $region81: #{vae_forward.1} parent=1 // pred_fallthru
      _
    // Predicated region
    $region82: #{vae_forward.1} parent=1 // pred_check
      _
    $region83: #{vae_forward.1} parent=1 // pred_check_branch
      %219 = sbr.rel (0) target = $region85
    $region84: #{vae_forward.1} parent=1 // pred_region
      %220 = dma.done [#allocation5], 512
    $region85: #{vae_forward.1} parent=1 // pred_fallthru
      _
    // Predicated region
    $region86: #{vae_forward.1} parent=1 // pred_check
      _
    $region87: #{vae_forward.1} parent=1 // pred_check_branch
      %222 = sbr.rel (0) target = $region89
    $region88: #{vae_forward.1} parent=1 // pred_region
      %223 = dma.done [#allocation8], 32768
    $region89: #{vae_forward.1} parent=1 // pred_fallthru
      _
    // Predicated region
    $region90: #{vae_forward.1} parent=1 // pred_check
      _
    $region91: #{vae_forward.1} parent=1 // pred_check_branch
      %225 = sbr.rel (0) target = $region93
    $region92: #{vae_forward.1} parent=1 // pred_region
      %226 = dma.done [#allocation8], 256
    $region93: #{vae_forward.1} parent=1 // pred_fallthru
      _
    // Predicated region
    $region94: #{vae_forward.1} parent=1 // pred_check
      _
    $region95: #{vae_forward.1} parent=1 // pred_check_branch
      %228 = sbr.rel (0) target = $region97
    $region96: #{vae_forward.1} parent=1 // pred_region
      %229 = dma.done [#allocation11], 8192
    $region97: #{vae_forward.1} parent=1 // pred_fallthru
      _
    // Predicated region
    $region98: #{vae_forward.1} parent=1 // pred_check
      _
    $region99: #{vae_forward.1} parent=1 // pred_check_branch
      %231 = sbr.rel (0) target = $region101
    $region100: #{vae_forward.1} parent=1 // pred_region
      %232 = dma.done [#allocation11], 128
    $region101: #{vae_forward.1} parent=1 // pred_fallthru
      _
    // Predicated region
    $region102: #{vae_forward.1} parent=1 // pred_check
      _
    $region103: #{vae_forward.1} parent=1 // pred_check_branch
      %234 = sbr.rel (0) target = $region105
    $region104: #{vae_forward.1} parent=1 // pred_region
      %235 = dma.done [#allocation14], 64
    $region105: #{vae_forward.1} parent=1 // pred_fallthru
      _
    // Predicated region
    $region106: #{vae_forward.1} parent=1 // pred_check
      _
    $region107: #{vae_forward.1} parent=1 // pred_check_branch
      %237 = sbr.rel (0) target = $region109
    $region108: #{vae_forward.1} parent=1 // pred_region
      %238 = dma.done [#allocation14], 512
    $region109: #{vae_forward.1} parent=1 // pred_fallthru
      _
    // Predicated region
    $region110: #{vae_forward.1} parent=1 // pred_check
      _
    $region111: #{vae_forward.1} parent=1 // pred_check_branch
      %240 = sbr.rel (0) target = $region113
    $region112: #{vae_forward.1} parent=1 // pred_region
      %241 = dma.done [#allocation17], 128
    $region113: #{vae_forward.1} parent=1 // pred_fallthru
      _
    // Predicated region
    $region114: #{vae_forward.1} parent=1 // pred_check
      _
    $region115: #{vae_forward.1} parent=1 // pred_check_branch
      %243 = sbr.rel (0) target = $region117
    $region116: #{vae_forward.1} parent=1 // pred_region
      %244 = dma.done [#allocation17], 8192
    $region117: #{vae_forward.1} parent=1 // pred_fallthru
      _
    // Predicated region
    $region118: #{vae_forward.1} parent=1 // pred_check
      _
    $region119: #{vae_forward.1} parent=1 // pred_check_branch
      %246 = sbr.rel (0) target = $region121
    $region120: #{vae_forward.1} parent=1 // pred_region
      %247 = dma.done [#allocation20], 256
    $region121: #{vae_forward.1} parent=1 // pred_fallthru
      _
    // Predicated region
    $region122: #{vae_forward.1} parent=1 // pred_check
      _
    $region123: #{vae_forward.1} parent=1 // pred_check_branch
      %249 = sbr.rel (0) target = $region125
    $region124: #{vae_forward.1} parent=1 // pred_region
      %250 = dma.done [#allocation20], 32768
    $region125: #{vae_forward.1} parent=1 // pred_fallthru
      _
    // Predicated region
    $region126: #{vae_forward.1} parent=1 // pred_check
      _
    $region127: #{vae_forward.1} parent=1 // pred_check_branch
      %252 = sbr.rel (0) target = $region129
    $region128: #{vae_forward.1} parent=1 // pred_region
      %253 = dma.done [#allocation23], 512
    $region129: #{vae_forward.1} parent=1 // pred_fallthru
      _
    // Predicated region
    $region130: #{vae_forward.1} parent=1 // pred_check
      _
    $region131: #{vae_forward.1} parent=1 // pred_check_branch
      %255 = sbr.rel (0) target = $region133
    $region132: #{vae_forward.1} parent=1 // pred_region
      %256 = dma.done [#allocation23], 65536
    $region133: #{vae_forward.1} parent=1 // pred_fallthru
      _
    // Predicated region
    $region134: #{vae_forward.1} parent=1 // pred_check
      _
    $region135: #{vae_forward.1} parent=1 // pred_check_branch
      %258 = sbr.rel (0) target = $region137
    $region136: #{vae_forward.1} parent=1 // pred_region
      %259 = dma.done [#allocation26], 512
    $region137: #{vae_forward.1} parent=1 // pred_fallthru
      _
    %v261 = vld [vmem:[%s0] sm:$0xff]
    %v262 = vld [vmem:[%s0 + $0x8] sm:$0xff]
    %v263 = vld [vmem:[#allocation6] sm:$0x77]
    %v264 = vld [vmem:[#allocation6 + $0x8] sm:$0x77]
    %v265 = vld [vmem:[#allocation6 + $0x10] sm:$0x77]
    %v266 = vld [vmem:[#allocation6 + $0x18] sm:$0x77]
    %v269 = vcombine.high %v261, %v261
    %v271 = vunpack.c.l.s4 1983009808
    %v272 = vunpack.c.0.s8 %v271
    %v273 = vlaneseq
    %v274 = vshrl.u32 %v273, 7
    %v275 = vsub.s32 %v272, %v274
    %v276 = vrot.slane %v261, %v275
    %v278 = vunpack.c.l.s4 1983009808
    %v279 = vunpack.c.0.s8 %v278
    %v280 = vlaneseq
    %v281 = vshrl.u32 %v280, 7
    %v282 = vsub.s32 %v279, %v281
    %v283 = vrot.slane %v269, %v282
    %v284 = vcombine.high %v276, %v276
    %v285 = vcombine.high %v283, %v283
    %v286 = vcombine.high %v262, %v262
    %v288 = vunpack.c.l.s4 1983009808
    %v289 = vunpack.c.0.s8 %v288
    %v290 = vlaneseq
    %v291 = vshrl.u32 %v290, 7
    %v292 = vsub.s32 %v289, %v291
    %v293 = vrot.slane %v262, %v292
    %v295 = vunpack.c.l.s4 1983009808
    %v296 = vunpack.c.0.s8 %v295
    %v297 = vlaneseq
    %v298 = vshrl.u32 %v297, 7
    %v299 = vsub.s32 %v296, %v298
    %v300 = vrot.slane %v286, %v299
    %v301 = vcombine.high %v293, %v293
    %v302 = vcombine.high %v300, %v300
    %v311 = vpack.c.bf16 %v276, %v276
    %v312 = vpack.c.bf16 %v284, %v284
    %v313 = vpack.c.bf16 %v283, %v283
    %v314 = vpack.c.bf16 %v285, %v285
    %v315 = vpack.c.bf16 %v293, %v293
    %v316 = vpack.c.bf16 %v301, %v301
    %v317 = vpack.c.bf16 %v300, %v300
    %v318 = vpack.c.bf16 %v302, %v302
    %v319 = vld [vmem:[#allocation4] sm:$0xff]
    %v320 = vld [vmem:[#allocation4 + $0x8] sm:$0xff]
    %v321 = vld [vmem:[#allocation4 + $0x10] sm:$0xff]
    %v322 = vld [vmem:[#allocation4 + $0x18] sm:$0xff]
    %v323 = vld [vmem:[#allocation4 + $0x20] sm:$0xff]
    %v324 = vld [vmem:[#allocation4 + $0x28] sm:$0xff]
    %v325 = vld [vmem:[#allocation4 + $0x30] sm:$0xff]
    %v326 = vld [vmem:[#allocation4 + $0x38] sm:$0xff]
    %v327 = vld [vmem:[#allocation4 + $0x40] sm:$0xff]
    %v328 = vld [vmem:[#allocation4 + $0x48] sm:$0xff]
    %v329 = vld [vmem:[#allocation4 + $0x50] sm:$0xff]
    %v330 = vld [vmem:[#allocation4 + $0x58] sm:$0xff]
    %v331 = vld [vmem:[#allocation4 + $0x60] sm:$0xff]
    %v332 = vld [vmem:[#allocation4 + $0x68] sm:$0xff]
    %v333 = vld [vmem:[#allocation4 + $0x70] sm:$0xff]
    %v334 = vld [vmem:[#allocation4 + $0x78] sm:$0xff]
    %v335 = vld [vmem:[#allocation4 + $0x80] sm:$0xff]
    %v336 = vld [vmem:[#allocation4 + $0x88] sm:$0xff]
    %v337 = vld [vmem:[#allocation4 + $0x90] sm:$0xff]
    %v338 = vld [vmem:[#allocation4 + $0x98] sm:$0xff]
    %v339 = vld [vmem:[#allocation4 + $0xa0] sm:$0xff]
    %v340 = vld [vmem:[#allocation4 + $0xa8] sm:$0xff]
    %v341 = vld [vmem:[#allocation4 + $0xb0] sm:$0xff]
    %v342 = vld [vmem:[#allocation4 + $0xb8] sm:$0xff]
    %v343 = vld [vmem:[#allocation4 + $0xc0] sm:$0xff]
    %v344 = vld [vmem:[#allocation4 + $0xc8] sm:$0xff]
    %v345 = vld [vmem:[#allocation4 + $0xd0] sm:$0xff]
    %v346 = vld [vmem:[#allocation4 + $0xd8] sm:$0xff]
    %v347 = vld [vmem:[#allocation4 + $0xe0] sm:$0xff]
    %v348 = vld [vmem:[#allocation4 + $0xe8] sm:$0xff]
    %v349 = vld [vmem:[#allocation4 + $0xf0] sm:$0xff]
    %v350 = vld [vmem:[#allocation4 + $0xf8] sm:$0xff]
    %v351 = vld [vmem:[#allocation4 + $0x100] sm:$0xff]
    %v352 = vld [vmem:[#allocation4 + $0x108] sm:$0xff]
    %v353 = vld [vmem:[#allocation4 + $0x110] sm:$0xff]
    %v354 = vld [vmem:[#allocation4 + $0x118] sm:$0xff]
    %v355 = vld [vmem:[#allocation4 + $0x120] sm:$0xff]
    %v356 = vld [vmem:[#allocation4 + $0x128] sm:$0xff]
    %v357 = vld [vmem:[#allocation4 + $0x130] sm:$0xff]
    %v358 = vld [vmem:[#allocation4 + $0x138] sm:$0xff]
    %v359 = vld [vmem:[#allocation4 + $0x140] sm:$0xff]
    %v360 = vld [vmem:[#allocation4 + $0x148] sm:$0xff]
    %v361 = vld [vmem:[#allocation4 + $0x150] sm:$0xff]
    %v362 = vld [vmem:[#allocation4 + $0x158] sm:$0xff]
    %v363 = vld [vmem:[#allocation4 + $0x160] sm:$0xff]
    %v364 = vld [vmem:[#allocation4 + $0x168] sm:$0xff]
    %v365 = vld [vmem:[#allocation4 + $0x170] sm:$0xff]
    %v366 = vld [vmem:[#allocation4 + $0x178] sm:$0xff]
    %v367 = vld [vmem:[#allocation4 + $0x180] sm:$0xff]
    %v368 = vld [vmem:[#allocation4 + $0x188] sm:$0xff]
    %v369 = vld [vmem:[#allocation4 + $0x190] sm:$0xff]
    %v370 = vld [vmem:[#allocation4 + $0x198] sm:$0xff]
    %v371 = vld [vmem:[#allocation4 + $0x1a0] sm:$0xff]
    %v372 = vld [vmem:[#allocation4 + $0x1a8] sm:$0xff]
    %v373 = vld [vmem:[#allocation4 + $0x1b0] sm:$0xff]
    %v374 = vld [vmem:[#allocation4 + $0x1b8] sm:$0xff]
    %v375 = vld [vmem:[#allocation4 + $0x1c0] sm:$0xff]
    %v376 = vld [vmem:[#allocation4 + $0x1c8] sm:$0xff]
    %v377 = vld [vmem:[#allocation4 + $0x1d0] sm:$0xff]
    %v378 = vld [vmem:[#allocation4 + $0x1d8] sm:$0xff]
    %v379 = vld [vmem:[#allocation4 + $0x1e0] sm:$0xff]
    %v380 = vld [vmem:[#allocation4 + $0x1e8] sm:$0xff]
    %v381 = vld [vmem:[#allocation4 + $0x1f0] sm:$0xff]
    %v382 = vld [vmem:[#allocation4 + $0x1f8] sm:$0xff]
    %v383 = vld [vmem:[#allocation4 + $0x200] sm:$0xff]
    %v384 = vld [vmem:[#allocation4 + $0x208] sm:$0xff]
    %v385 = vld [vmem:[#allocation4 + $0x210] sm:$0xff]
    %v386 = vld [vmem:[#allocation4 + $0x218] sm:$0xff]
    %v387 = vld [vmem:[#allocation4 + $0x220] sm:$0xff]
    %v388 = vld [vmem:[#allocation4 + $0x228] sm:$0xff]
    %v389 = vld [vmem:[#allocation4 + $0x230] sm:$0xff]
    %v390 = vld [vmem:[#allocation4 + $0x238] sm:$0xff]
    %v391 = vld [vmem:[#allocation4 + $0x240] sm:$0xff]
    %v392 = vld [vmem:[#allocation4 + $0x248] sm:$0xff]
    %v393 = vld [vmem:[#allocation4 + $0x250] sm:$0xff]
    %v394 = vld [vmem:[#allocation4 + $0x258] sm:$0xff]
    %v395 = vld [vmem:[#allocation4 + $0x260] sm:$0xff]
    %v396 = vld [vmem:[#allocation4 + $0x268] sm:$0xff]
    %v397 = vld [vmem:[#allocation4 + $0x270] sm:$0xff]
    %v398 = vld [vmem:[#allocation4 + $0x278] sm:$0xff]
    %v399 = vld [vmem:[#allocation4 + $0x280] sm:$0xff]
    %v400 = vld [vmem:[#allocation4 + $0x288] sm:$0xff]
    %v401 = vld [vmem:[#allocation4 + $0x290] sm:$0xff]
    %v402 = vld [vmem:[#allocation4 + $0x298] sm:$0xff]
    %v403 = vld [vmem:[#allocation4 + $0x2a0] sm:$0xff]
    %v404 = vld [vmem:[#allocation4 + $0x2a8] sm:$0xff]
    %v405 = vld [vmem:[#allocation4 + $0x2b0] sm:$0xff]
    %v406 = vld [vmem:[#allocation4 + $0x2b8] sm:$0xff]
    %v407 = vld [vmem:[#allocation4 + $0x2c0] sm:$0xff]
    %v408 = vld [vmem:[#allocation4 + $0x2c8] sm:$0xff]
    %v409 = vld [vmem:[#allocation4 + $0x2d0] sm:$0xff]
    %v410 = vld [vmem:[#allocation4 + $0x2d8] sm:$0xff]
    %v411 = vld [vmem:[#allocation4 + $0x2e0] sm:$0xff]
    %v412 = vld [vmem:[#allocation4 + $0x2e8] sm:$0xff]
    %v413 = vld [vmem:[#allocation4 + $0x2f0] sm:$0xff]
    %v414 = vld [vmem:[#allocation4 + $0x2f8] sm:$0xff]
    %v415 = vld [vmem:[#allocation4 + $0x300] sm:$0xff]
    %v416 = vld [vmem:[#allocation4 + $0x308] sm:$0xff]
    %v417 = vld [vmem:[#allocation4 + $0x310] sm:$0xff]
    %v418 = vld [vmem:[#allocation4 + $0x318] sm:$0xff]
    %v419 = vld [vmem:[#allocation4 + $0x320] sm:$0xff]
    %v420 = vld [vmem:[#allocation4 + $0x328] sm:$0xff]
    %v421 = vld [vmem:[#allocation4 + $0x330] sm:$0xff]
    %v422 = vld [vmem:[#allocation4 + $0x338] sm:$0xff]
    %v423 = vld [vmem:[#allocation4 + $0x340] sm:$0xff]
    %v424 = vld [vmem:[#allocation4 + $0x348] sm:$0xff]
    %v425 = vld [vmem:[#allocation4 + $0x350] sm:$0xff]
    %v426 = vld [vmem:[#allocation4 + $0x358] sm:$0xff]
    %v427 = vld [vmem:[#allocation4 + $0x360] sm:$0xff]
    %v428 = vld [vmem:[#allocation4 + $0x368] sm:$0xff]
    %v429 = vld [vmem:[#allocation4 + $0x370] sm:$0xff]
    %v430 = vld [vmem:[#allocation4 + $0x378] sm:$0xff]
    %v431 = vld [vmem:[#allocation4 + $0x380] sm:$0xff]
    %v432 = vld [vmem:[#allocation4 + $0x388] sm:$0xff]
    %v433 = vld [vmem:[#allocation4 + $0x390] sm:$0xff]
    %v434 = vld [vmem:[#allocation4 + $0x398] sm:$0xff]
    %v435 = vld [vmem:[#allocation4 + $0x3a0] sm:$0xff]
    %v436 = vld [vmem:[#allocation4 + $0x3a8] sm:$0xff]
    %v437 = vld [vmem:[#allocation4 + $0x3b0] sm:$0xff]
    %v438 = vld [vmem:[#allocation4 + $0x3b8] sm:$0xff]
    %v439 = vld [vmem:[#allocation4 + $0x3c0] sm:$0xff]
    %v440 = vld [vmem:[#allocation4 + $0x3c8] sm:$0xff]
    %v441 = vld [vmem:[#allocation4 + $0x3d0] sm:$0xff]
    %v442 = vld [vmem:[#allocation4 + $0x3d8] sm:$0xff]
    %v443 = vld [vmem:[#allocation4 + $0x3e0] sm:$0xff]
    %v444 = vld [vmem:[#allocation4 + $0x3e8] sm:$0xff]
    %v445 = vld [vmem:[#allocation4 + $0x3f0] sm:$0xff]
    %v446 = vld [vmem:[#allocation4 + $0x3f8] sm:$0xff]
    %v447 = vld [vmem:[#allocation4 + $0x400] sm:$0xff]
    %v448 = vld [vmem:[#allocation4 + $0x408] sm:$0xff]
    %v449 = vld [vmem:[#allocation4 + $0x410] sm:$0xff]
    %v450 = vld [vmem:[#allocation4 + $0x418] sm:$0xff]
    %v451 = vld [vmem:[#allocation4 + $0x420] sm:$0xff]
    %v452 = vld [vmem:[#allocation4 + $0x428] sm:$0xff]
    %v453 = vld [vmem:[#allocation4 + $0x430] sm:$0xff]
    %v454 = vld [vmem:[#allocation4 + $0x438] sm:$0xff]
    %v455 = vld [vmem:[#allocation4 + $0x440] sm:$0xff]
    %v456 = vld [vmem:[#allocation4 + $0x448] sm:$0xff]
    %v457 = vld [vmem:[#allocation4 + $0x450] sm:$0xff]
    %v458 = vld [vmem:[#allocation4 + $0x458] sm:$0xff]
    %v459 = vld [vmem:[#allocation4 + $0x460] sm:$0xff]
    %v460 = vld [vmem:[#allocation4 + $0x468] sm:$0xff]
    %v461 = vld [vmem:[#allocation4 + $0x470] sm:$0xff]
    %v462 = vld [vmem:[#allocation4 + $0x478] sm:$0xff]
    %v463 = vld [vmem:[#allocation4 + $0x480] sm:$0xff]
    %v464 = vld [vmem:[#allocation4 + $0x488] sm:$0xff]
    %v465 = vld [vmem:[#allocation4 + $0x490] sm:$0xff]
    %v466 = vld [vmem:[#allocation4 + $0x498] sm:$0xff]
    %v467 = vld [vmem:[#allocation4 + $0x4a0] sm:$0xff]
    %v468 = vld [vmem:[#allocation4 + $0x4a8] sm:$0xff]
    %v469 = vld [vmem:[#allocation4 + $0x4b0] sm:$0xff]
    %v470 = vld [vmem:[#allocation4 + $0x4b8] sm:$0xff]
    %v471 = vld [vmem:[#allocation4 + $0x4c0] sm:$0xff]
    %v472 = vld [vmem:[#allocation4 + $0x4c8] sm:$0xff]
    %v473 = vld [vmem:[#allocation4 + $0x4d0] sm:$0xff]
    %v474 = vld [vmem:[#allocation4 + $0x4d8] sm:$0xff]
    %v475 = vld [vmem:[#allocation4 + $0x4e0] sm:$0xff]
    %v476 = vld [vmem:[#allocation4 + $0x4e8] sm:$0xff]
    %v477 = vld [vmem:[#allocation4 + $0x4f0] sm:$0xff]
    %v478 = vld [vmem:[#allocation4 + $0x4f8] sm:$0xff]
    %v479 = vld [vmem:[#allocation4 + $0x500] sm:$0xff]
    %v480 = vld [vmem:[#allocation4 + $0x508] sm:$0xff]
    %v481 = vld [vmem:[#allocation4 + $0x510] sm:$0xff]
    %v482 = vld [vmem:[#allocation4 + $0x518] sm:$0xff]
    %v483 = vld [vmem:[#allocation4 + $0x520] sm:$0xff]
    %v484 = vld [vmem:[#allocation4 + $0x528] sm:$0xff]
    %v485 = vld [vmem:[#allocation4 + $0x530] sm:$0xff]
    %v486 = vld [vmem:[#allocation4 + $0x538] sm:$0xff]
    %v487 = vld [vmem:[#allocation4 + $0x540] sm:$0xff]
    %v488 = vld [vmem:[#allocation4 + $0x548] sm:$0xff]
    %v489 = vld [vmem:[#allocation4 + $0x550] sm:$0xff]
    %v490 = vld [vmem:[#allocation4 + $0x558] sm:$0xff]
    %v491 = vld [vmem:[#allocation4 + $0x560] sm:$0xff]
    %v492 = vld [vmem:[#allocation4 + $0x568] sm:$0xff]
    %v493 = vld [vmem:[#allocation4 + $0x570] sm:$0xff]
    %v494 = vld [vmem:[#allocation4 + $0x578] sm:$0xff]
    %v495 = vld [vmem:[#allocation4 + $0x580] sm:$0xff]
    %v496 = vld [vmem:[#allocation4 + $0x588] sm:$0xff]
    %v497 = vld [vmem:[#allocation4 + $0x590] sm:$0xff]
    %v498 = vld [vmem:[#allocation4 + $0x598] sm:$0xff]
    %v499 = vld [vmem:[#allocation4 + $0x5a0] sm:$0xff]
    %v500 = vld [vmem:[#allocation4 + $0x5a8] sm:$0xff]
    %v501 = vld [vmem:[#allocation4 + $0x5b0] sm:$0xff]
    %v502 = vld [vmem:[#allocation4 + $0x5b8] sm:$0xff]
    %v503 = vld [vmem:[#allocation4 + $0x5c0] sm:$0xff]
    %v504 = vld [vmem:[#allocation4 + $0x5c8] sm:$0xff]
    %v505 = vld [vmem:[#allocation4 + $0x5d0] sm:$0xff]
    %v506 = vld [vmem:[#allocation4 + $0x5d8] sm:$0xff]
    %v507 = vld [vmem:[#allocation4 + $0x5e0] sm:$0xff]
    %v508 = vld [vmem:[#allocation4 + $0x5e8] sm:$0xff]
    %v509 = vld [vmem:[#allocation4 + $0x5f0] sm:$0xff]
    %v510 = vld [vmem:[#allocation4 + $0x5f8] sm:$0xff]
    %v511 = vld [vmem:[#allocation4 + $0x600] sm:$0xff]
    %v512 = vld [vmem:[#allocation4 + $0x608] sm:$0xff]
    %v513 = vld [vmem:[#allocation4 + $0x610] sm:$0xff]
    %v514 = vld [vmem:[#allocation4 + $0x618] sm:$0xff]
    %v515 = vld [vmem:[#allocation4 + $0x620] sm:$0xff]
    %v516 = vld [vmem:[#allocation4 + $0x628] sm:$0xff]
    %v517 = vld [vmem:[#allocation4 + $0x630] sm:$0xff]
    %v518 = vld [vmem:[#allocation4 + $0x638] sm:$0xff]
    %v519 = vld [vmem:[#allocation4 + $0x640] sm:$0xff]
    %v520 = vld [vmem:[#allocation4 + $0x648] sm:$0xff]
    %v521 = vld [vmem:[#allocation4 + $0x650] sm:$0xff]
    %v522 = vld [vmem:[#allocation4 + $0x658] sm:$0xff]
    %v523 = vld [vmem:[#allocation4 + $0x660] sm:$0xff]
    %v524 = vld [vmem:[#allocation4 + $0x668] sm:$0xff]
    %v525 = vld [vmem:[#allocation4 + $0x670] sm:$0xff]
    %v526 = vld [vmem:[#allocation4 + $0x678] sm:$0xff]
    %v527 = vld [vmem:[#allocation4 + $0x680] sm:$0xff]
    %v528 = vld [vmem:[#allocation4 + $0x688] sm:$0xff]
    %v529 = vld [vmem:[#allocation4 + $0x690] sm:$0xff]
    %v530 = vld [vmem:[#allocation4 + $0x698] sm:$0xff]
    %v531 = vld [vmem:[#allocation4 + $0x6a0] sm:$0xff]
    %v532 = vld [vmem:[#allocation4 + $0x6a8] sm:$0xff]
    %v533 = vld [vmem:[#allocation4 + $0x6b0] sm:$0xff]
    %v534 = vld [vmem:[#allocation4 + $0x6b8] sm:$0xff]
    %v535 = vld [vmem:[#allocation4 + $0x6c0] sm:$0xff]
    %v536 = vld [vmem:[#allocation4 + $0x6c8] sm:$0xff]
    %v537 = vld [vmem:[#allocation4 + $0x6d0] sm:$0xff]
    %v538 = vld [vmem:[#allocation4 + $0x6d8] sm:$0xff]
    %v539 = vld [vmem:[#allocation4 + $0x6e0] sm:$0xff]
    %v540 = vld [vmem:[#allocation4 + $0x6e8] sm:$0xff]
    %v541 = vld [vmem:[#allocation4 + $0x6f0] sm:$0xff]
    %v542 = vld [vmem:[#allocation4 + $0x6f8] sm:$0xff]
    %v543 = vld [vmem:[#allocation4 + $0x700] sm:$0xff]
    %v544 = vld [vmem:[#allocation4 + $0x708] sm:$0xff]
    %v545 = vld [vmem:[#allocation4 + $0x710] sm:$0xff]
    %v546 = vld [vmem:[#allocation4 + $0x718] sm:$0xff]
    %v547 = vld [vmem:[#allocation4 + $0x720] sm:$0xff]
    %v548 = vld [vmem:[#allocation4 + $0x728] sm:$0xff]
    %v549 = vld [vmem:[#allocation4 + $0x730] sm:$0xff]
    %v550 = vld [vmem:[#allocation4 + $0x738] sm:$0xff]
    %v551 = vld [vmem:[#allocation4 + $0x740] sm:$0xff]
    %v552 = vld [vmem:[#allocation4 + $0x748] sm:$0xff]
    %v553 = vld [vmem:[#allocation4 + $0x750] sm:$0xff]
    %v554 = vld [vmem:[#allocation4 + $0x758] sm:$0xff]
    %v555 = vld [vmem:[#allocation4 + $0x760] sm:$0xff]
    %v556 = vld [vmem:[#allocation4 + $0x768] sm:$0xff]
    %v557 = vld [vmem:[#allocation4 + $0x770] sm:$0xff]
    %v558 = vld [vmem:[#allocation4 + $0x778] sm:$0xff]
    %v559 = vld [vmem:[#allocation4 + $0x780] sm:$0xff]
    %v560 = vld [vmem:[#allocation4 + $0x788] sm:$0xff]
    %v561 = vld [vmem:[#allocation4 + $0x790] sm:$0xff]
    %v562 = vld [vmem:[#allocation4 + $0x798] sm:$0xff]
    %v563 = vld [vmem:[#allocation4 + $0x7a0] sm:$0xff]
    %v564 = vld [vmem:[#allocation4 + $0x7a8] sm:$0xff]
    %v565 = vld [vmem:[#allocation4 + $0x7b0] sm:$0xff]
    %v566 = vld [vmem:[#allocation4 + $0x7b8] sm:$0xff]
    %v567 = vld [vmem:[#allocation4 + $0x7c0] sm:$0xff]
    %v568 = vld [vmem:[#allocation4 + $0x7c8] sm:$0xff]
    %v569 = vld [vmem:[#allocation4 + $0x7d0] sm:$0xff]
    %v570 = vld [vmem:[#allocation4 + $0x7d8] sm:$0xff]
    %v571 = vld [vmem:[#allocation4 + $0x7e0] sm:$0xff]
    %v572 = vld [vmem:[#allocation4 + $0x7e8] sm:$0xff]
    %v573 = vld [vmem:[#allocation4 + $0x7f0] sm:$0xff]
    %v574 = vld [vmem:[#allocation4 + $0x7f8] sm:$0xff]
    %v575 = vld [vmem:[#allocation4 + $0x800] sm:$0xff]
    %v576 = vld [vmem:[#allocation4 + $0x808] sm:$0xff]
    %v577 = vld [vmem:[#allocation4 + $0x810] sm:$0xff]
    %v578 = vld [vmem:[#allocation4 + $0x818] sm:$0xff]
    %v579 = vld [vmem:[#allocation4 + $0x820] sm:$0xff]
    %v580 = vld [vmem:[#allocation4 + $0x828] sm:$0xff]
    %v581 = vld [vmem:[#allocation4 + $0x830] sm:$0xff]
    %v582 = vld [vmem:[#allocation4 + $0x838] sm:$0xff]
    %v583 = vld [vmem:[#allocation4 + $0x840] sm:$0xff]
    %v584 = vld [vmem:[#allocation4 + $0x848] sm:$0xff]
    %v585 = vld [vmem:[#allocation4 + $0x850] sm:$0xff]
    %v586 = vld [vmem:[#allocation4 + $0x858] sm:$0xff]
    %v587 = vld [vmem:[#allocation4 + $0x860] sm:$0xff]
    %v588 = vld [vmem:[#allocation4 + $0x868] sm:$0xff]
    %v589 = vld [vmem:[#allocation4 + $0x870] sm:$0xff]
    %v590 = vld [vmem:[#allocation4 + $0x878] sm:$0xff]
    %v591 = vld [vmem:[#allocation4 + $0x880] sm:$0xff]
    %v592 = vld [vmem:[#allocation4 + $0x888] sm:$0xff]
    %v593 = vld [vmem:[#allocation4 + $0x890] sm:$0xff]
    %v594 = vld [vmem:[#allocation4 + $0x898] sm:$0xff]
    %v595 = vld [vmem:[#allocation4 + $0x8a0] sm:$0xff]
    %v596 = vld [vmem:[#allocation4 + $0x8a8] sm:$0xff]
    %v597 = vld [vmem:[#allocation4 + $0x8b0] sm:$0xff]
    %v598 = vld [vmem:[#allocation4 + $0x8b8] sm:$0xff]
    %v599 = vld [vmem:[#allocation4 + $0x8c0] sm:$0xff]
    %v600 = vld [vmem:[#allocation4 + $0x8c8] sm:$0xff]
    %v601 = vld [vmem:[#allocation4 + $0x8d0] sm:$0xff]
    %v602 = vld [vmem:[#allocation4 + $0x8d8] sm:$0xff]
    %v603 = vld [vmem:[#allocation4 + $0x8e0] sm:$0xff]
    %v604 = vld [vmem:[#allocation4 + $0x8e8] sm:$0xff]
    %v605 = vld [vmem:[#allocation4 + $0x8f0] sm:$0xff]
    %v606 = vld [vmem:[#allocation4 + $0x8f8] sm:$0xff]
    %v607 = vld [vmem:[#allocation4 + $0x900] sm:$0xff]
    %v608 = vld [vmem:[#allocation4 + $0x908] sm:$0xff]
    %v609 = vld [vmem:[#allocation4 + $0x910] sm:$0xff]
    %v610 = vld [vmem:[#allocation4 + $0x918] sm:$0xff]
    %v611 = vld [vmem:[#allocation4 + $0x920] sm:$0xff]
    %v612 = vld [vmem:[#allocation4 + $0x928] sm:$0xff]
    %v613 = vld [vmem:[#allocation4 + $0x930] sm:$0xff]
    %v614 = vld [vmem:[#allocation4 + $0x938] sm:$0xff]
    %v615 = vld [vmem:[#allocation4 + $0x940] sm:$0xff]
    %v616 = vld [vmem:[#allocation4 + $0x948] sm:$0xff]
    %v617 = vld [vmem:[#allocation4 + $0x950] sm:$0xff]
    %v618 = vld [vmem:[#allocation4 + $0x958] sm:$0xff]
    %v619 = vld [vmem:[#allocation4 + $0x960] sm:$0xff]
    %v620 = vld [vmem:[#allocation4 + $0x968] sm:$0xff]
    %v621 = vld [vmem:[#allocation4 + $0x970] sm:$0xff]
    %v622 = vld [vmem:[#allocation4 + $0x978] sm:$0xff]
    %v623 = vld [vmem:[#allocation4 + $0x980] sm:$0xff]
    %v624 = vld [vmem:[#allocation4 + $0x988] sm:$0xff]
    %v625 = vld [vmem:[#allocation4 + $0x990] sm:$0xff]
    %v626 = vld [vmem:[#allocation4 + $0x998] sm:$0xff]
    %v627 = vld [vmem:[#allocation4 + $0x9a0] sm:$0xff]
    %v628 = vld [vmem:[#allocation4 + $0x9a8] sm:$0xff]
    %v629 = vld [vmem:[#allocation4 + $0x9b0] sm:$0xff]
    %v630 = vld [vmem:[#allocation4 + $0x9b8] sm:$0xff]
    %v631 = vld [vmem:[#allocation4 + $0x9c0] sm:$0xff]
    %v632 = vld [vmem:[#allocation4 + $0x9c8] sm:$0xff]
    %v633 = vld [vmem:[#allocation4 + $0x9d0] sm:$0xff]
    %v634 = vld [vmem:[#allocation4 + $0x9d8] sm:$0xff]
    %v635 = vld [vmem:[#allocation4 + $0x9e0] sm:$0xff]
    %v636 = vld [vmem:[#allocation4 + $0x9e8] sm:$0xff]
    %v637 = vld [vmem:[#allocation4 + $0x9f0] sm:$0xff]
    %v638 = vld [vmem:[#allocation4 + $0x9f8] sm:$0xff]
    %v639 = vld [vmem:[#allocation4 + $0xa00] sm:$0xff]
    %v640 = vld [vmem:[#allocation4 + $0xa08] sm:$0xff]
    %v641 = vld [vmem:[#allocation4 + $0xa10] sm:$0xff]
    %v642 = vld [vmem:[#allocation4 + $0xa18] sm:$0xff]
    %v643 = vld [vmem:[#allocation4 + $0xa20] sm:$0xff]
    %v644 = vld [vmem:[#allocation4 + $0xa28] sm:$0xff]
    %v645 = vld [vmem:[#allocation4 + $0xa30] sm:$0xff]
    %v646 = vld [vmem:[#allocation4 + $0xa38] sm:$0xff]
    %v647 = vld [vmem:[#allocation4 + $0xa40] sm:$0xff]
    %v648 = vld [vmem:[#allocation4 + $0xa48] sm:$0xff]
    %v649 = vld [vmem:[#allocation4 + $0xa50] sm:$0xff]
    %v650 = vld [vmem:[#allocation4 + $0xa58] sm:$0xff]
    %v651 = vld [vmem:[#allocation4 + $0xa60] sm:$0xff]
    %v652 = vld [vmem:[#allocation4 + $0xa68] sm:$0xff]
    %v653 = vld [vmem:[#allocation4 + $0xa70] sm:$0xff]
    %v654 = vld [vmem:[#allocation4 + $0xa78] sm:$0xff]
    %v655 = vld [vmem:[#allocation4 + $0xa80] sm:$0xff]
    %v656 = vld [vmem:[#allocation4 + $0xa88] sm:$0xff]
    %v657 = vld [vmem:[#allocation4 + $0xa90] sm:$0xff]
    %v658 = vld [vmem:[#allocation4 + $0xa98] sm:$0xff]
    %v659 = vld [vmem:[#allocation4 + $0xaa0] sm:$0xff]
    %v660 = vld [vmem:[#allocation4 + $0xaa8] sm:$0xff]
    %v661 = vld [vmem:[#allocation4 + $0xab0] sm:$0xff]
    %v662 = vld [vmem:[#allocation4 + $0xab8] sm:$0xff]
    %v663 = vld [vmem:[#allocation4 + $0xac0] sm:$0xff]
    %v664 = vld [vmem:[#allocation4 + $0xac8] sm:$0xff]
    %v665 = vld [vmem:[#allocation4 + $0xad0] sm:$0xff]
    %v666 = vld [vmem:[#allocation4 + $0xad8] sm:$0xff]
    %v667 = vld [vmem:[#allocation4 + $0xae0] sm:$0xff]
    %v668 = vld [vmem:[#allocation4 + $0xae8] sm:$0xff]
    %v669 = vld [vmem:[#allocation4 + $0xaf0] sm:$0xff]
    %v670 = vld [vmem:[#allocation4 + $0xaf8] sm:$0xff]
    %v671 = vld [vmem:[#allocation4 + $0xb00] sm:$0xff]
    %v672 = vld [vmem:[#allocation4 + $0xb08] sm:$0xff]
    %v673 = vld [vmem:[#allocation4 + $0xb10] sm:$0xff]
    %v674 = vld [vmem:[#allocation4 + $0xb18] sm:$0xff]
    %v675 = vld [vmem:[#allocation4 + $0xb20] sm:$0xff]
    %v676 = vld [vmem:[#allocation4 + $0xb28] sm:$0xff]
    %v677 = vld [vmem:[#allocation4 + $0xb30] sm:$0xff]
    %v678 = vld [vmem:[#allocation4 + $0xb38] sm:$0xff]
    %v679 = vld [vmem:[#allocation4 + $0xb40] sm:$0xff]
    %v680 = vld [vmem:[#allocation4 + $0xb48] sm:$0xff]
    %v681 = vld [vmem:[#allocation4 + $0xb50] sm:$0xff]
    %v682 = vld [vmem:[#allocation4 + $0xb58] sm:$0xff]
    %v683 = vld [vmem:[#allocation4 + $0xb60] sm:$0xff]
    %v684 = vld [vmem:[#allocation4 + $0xb68] sm:$0xff]
    %v685 = vld [vmem:[#allocation4 + $0xb70] sm:$0xff]
    %v686 = vld [vmem:[#allocation4 + $0xb78] sm:$0xff]
    %v687 = vld [vmem:[#allocation4 + $0xb80] sm:$0xff]
    %v688 = vld [vmem:[#allocation4 + $0xb88] sm:$0xff]
    %v689 = vld [vmem:[#allocation4 + $0xb90] sm:$0xff]
    %v690 = vld [vmem:[#allocation4 + $0xb98] sm:$0xff]
    %v691 = vld [vmem:[#allocation4 + $0xba0] sm:$0xff]
    %v692 = vld [vmem:[#allocation4 + $0xba8] sm:$0xff]
    %v693 = vld [vmem:[#allocation4 + $0xbb0] sm:$0xff]
    %v694 = vld [vmem:[#allocation4 + $0xbb8] sm:$0xff]
    %v695 = vld [vmem:[#allocation4 + $0xbc0] sm:$0xff]
    %v696 = vld [vmem:[#allocation4 + $0xbc8] sm:$0xff]
    %v697 = vld [vmem:[#allocation4 + $0xbd0] sm:$0xff]
    %v698 = vld [vmem:[#allocation4 + $0xbd8] sm:$0xff]
    %v699 = vld [vmem:[#allocation4 + $0xbe0] sm:$0xff]
    %v700 = vld [vmem:[#allocation4 + $0xbe8] sm:$0xff]
    %v701 = vld [vmem:[#allocation4 + $0xbf0] sm:$0xff]
    %v702 = vld [vmem:[#allocation4 + $0xbf8] sm:$0xff]
    %v703 = vld [vmem:[#allocation4 + $0xc00] sm:$0xff]
    %v704 = vld [vmem:[#allocation4 + $0xc08] sm:$0xff]
    %v705 = vld [vmem:[#allocation4 + $0xc10] sm:$0xff]
    %v706 = vld [vmem:[#allocation4 + $0xc18] sm:$0xff]
    %v707 = vld [vmem:[#allocation4 + $0xc20] sm:$0xff]
    %v708 = vld [vmem:[#allocation4 + $0xc28] sm:$0xff]
    %v709 = vld [vmem:[#allocation4 + $0xc30] sm:$0xff]
    %v710 = vld [vmem:[#allocation4 + $0xc38] sm:$0xff]
    %v711 = vld [vmem:[#allocation4 + $0xc40] sm:$0xff]
    %v712 = vld [vmem:[#allocation4 + $0xc48] sm:$0xff]
    %v713 = vld [vmem:[#allocation4 + $0xc50] sm:$0xff]
    %v714 = vld [vmem:[#allocation4 + $0xc58] sm:$0xff]
    %v715 = vld [vmem:[#allocation4 + $0xc60] sm:$0xff]
    %v716 = vld [vmem:[#allocation4 + $0xc68] sm:$0xff]
    %v717 = vld [vmem:[#allocation4 + $0xc70] sm:$0xff]
    %v718 = vld [vmem:[#allocation4 + $0xc78] sm:$0xff]
    %v719 = vld [vmem:[#allocation4 + $0xc80] sm:$0xff]
    %v720 = vld [vmem:[#allocation4 + $0xc88] sm:$0xff]
    %v721 = vld [vmem:[#allocation4 + $0xc90] sm:$0xff]
    %v722 = vld [vmem:[#allocation4 + $0xc98] sm:$0xff]
    %v723 = vld [vmem:[#allocation4 + $0xca0] sm:$0xff]
    %v724 = vld [vmem:[#allocation4 + $0xca8] sm:$0xff]
    %v725 = vld [vmem:[#allocation4 + $0xcb0] sm:$0xff]
    %v726 = vld [vmem:[#allocation4 + $0xcb8] sm:$0xff]
    %v727 = vld [vmem:[#allocation4 + $0xcc0] sm:$0xff]
    %v728 = vld [vmem:[#allocation4 + $0xcc8] sm:$0xff]
    %v729 = vld [vmem:[#allocation4 + $0xcd0] sm:$0xff]
    %v730 = vld [vmem:[#allocation4 + $0xcd8] sm:$0xff]
    %v731 = vld [vmem:[#allocation4 + $0xce0] sm:$0xff]
    %v732 = vld [vmem:[#allocation4 + $0xce8] sm:$0xff]
    %v733 = vld [vmem:[#allocation4 + $0xcf0] sm:$0xff]
    %v734 = vld [vmem:[#allocation4 + $0xcf8] sm:$0xff]
    %v735 = vld [vmem:[#allocation4 + $0xd00] sm:$0xff]
    %v736 = vld [vmem:[#allocation4 + $0xd08] sm:$0xff]
    %v737 = vld [vmem:[#allocation4 + $0xd10] sm:$0xff]
    %v738 = vld [vmem:[#allocation4 + $0xd18] sm:$0xff]
    %v739 = vld [vmem:[#allocation4 + $0xd20] sm:$0xff]
    %v740 = vld [vmem:[#allocation4 + $0xd28] sm:$0xff]
    %v741 = vld [vmem:[#allocation4 + $0xd30] sm:$0xff]
    %v742 = vld [vmem:[#allocation4 + $0xd38] sm:$0xff]
    %v743 = vld [vmem:[#allocation4 + $0xd40] sm:$0xff]
    %v744 = vld [vmem:[#allocation4 + $0xd48] sm:$0xff]
    %v745 = vld [vmem:[#allocation4 + $0xd50] sm:$0xff]
    %v746 = vld [vmem:[#allocation4 + $0xd58] sm:$0xff]
    %v747 = vld [vmem:[#allocation4 + $0xd60] sm:$0xff]
    %v748 = vld [vmem:[#allocation4 + $0xd68] sm:$0xff]
    %v749 = vld [vmem:[#allocation4 + $0xd70] sm:$0xff]
    %v750 = vld [vmem:[#allocation4 + $0xd78] sm:$0xff]
    %v751 = vld [vmem:[#allocation4 + $0xd80] sm:$0xff]
    %v752 = vld [vmem:[#allocation4 + $0xd88] sm:$0xff]
    %v753 = vld [vmem:[#allocation4 + $0xd90] sm:$0xff]
    %v754 = vld [vmem:[#allocation4 + $0xd98] sm:$0xff]
    %v755 = vld [vmem:[#allocation4 + $0xda0] sm:$0xff]
    %v756 = vld [vmem:[#allocation4 + $0xda8] sm:$0xff]
    %v757 = vld [vmem:[#allocation4 + $0xdb0] sm:$0xff]
    %v758 = vld [vmem:[#allocation4 + $0xdb8] sm:$0xff]
    %v759 = vld [vmem:[#allocation4 + $0xdc0] sm:$0xff]
    %v760 = vld [vmem:[#allocation4 + $0xdc8] sm:$0xff]
    %v761 = vld [vmem:[#allocation4 + $0xdd0] sm:$0xff]
    %v762 = vld [vmem:[#allocation4 + $0xdd8] sm:$0xff]
    %v763 = vld [vmem:[#allocation4 + $0xde0] sm:$0xff]
    %v764 = vld [vmem:[#allocation4 + $0xde8] sm:$0xff]
    %v765 = vld [vmem:[#allocation4 + $0xdf0] sm:$0xff]
    %v766 = vld [vmem:[#allocation4 + $0xdf8] sm:$0xff]
    %v767 = vld [vmem:[#allocation4 + $0xe00] sm:$0xff]
    %v768 = vld [vmem:[#allocation4 + $0xe08] sm:$0xff]
    %v769 = vld [vmem:[#allocation4 + $0xe10] sm:$0xff]
    %v770 = vld [vmem:[#allocation4 + $0xe18] sm:$0xff]
    %v771 = vld [vmem:[#allocation4 + $0xe20] sm:$0xff]
    %v772 = vld [vmem:[#allocation4 + $0xe28] sm:$0xff]
    %v773 = vld [vmem:[#allocation4 + $0xe30] sm:$0xff]
    %v774 = vld [vmem:[#allocation4 + $0xe38] sm:$0xff]
    %v775 = vld [vmem:[#allocation4 + $0xe40] sm:$0xff]
    %v776 = vld [vmem:[#allocation4 + $0xe48] sm:$0xff]
    %v777 = vld [vmem:[#allocation4 + $0xe50] sm:$0xff]
    %v778 = vld [vmem:[#allocation4 + $0xe58] sm:$0xff]
    %v779 = vld [vmem:[#allocation4 + $0xe60] sm:$0xff]
    %v780 = vld [vmem:[#allocation4 + $0xe68] sm:$0xff]
    %v781 = vld [vmem:[#allocation4 + $0xe70] sm:$0xff]
    %v782 = vld [vmem:[#allocation4 + $0xe78] sm:$0xff]
    %v783 = vld [vmem:[#allocation4 + $0xe80] sm:$0xff]
    %v784 = vld [vmem:[#allocation4 + $0xe88] sm:$0xff]
    %v785 = vld [vmem:[#allocation4 + $0xe90] sm:$0xff]
    %v786 = vld [vmem:[#allocation4 + $0xe98] sm:$0xff]
    %v787 = vld [vmem:[#allocation4 + $0xea0] sm:$0xff]
    %v788 = vld [vmem:[#allocation4 + $0xea8] sm:$0xff]
    %v789 = vld [vmem:[#allocation4 + $0xeb0] sm:$0xff]
    %v790 = vld [vmem:[#allocation4 + $0xeb8] sm:$0xff]
    %v791 = vld [vmem:[#allocation4 + $0xec0] sm:$0xff]
    %v792 = vld [vmem:[#allocation4 + $0xec8] sm:$0xff]
    %v793 = vld [vmem:[#allocation4 + $0xed0] sm:$0xff]
    %v794 = vld [vmem:[#allocation4 + $0xed8] sm:$0xff]
    %v795 = vld [vmem:[#allocation4 + $0xee0] sm:$0xff]
    %v796 = vld [vmem:[#allocation4 + $0xee8] sm:$0xff]
    %v797 = vld [vmem:[#allocation4 + $0xef0] sm:$0xff]
    %v798 = vld [vmem:[#allocation4 + $0xef8] sm:$0xff]
    %v799 = vld [vmem:[#allocation4 + $0xf00] sm:$0xff]
    %v800 = vld [vmem:[#allocation4 + $0xf08] sm:$0xff]
    %v801 = vld [vmem:[#allocation4 + $0xf10] sm:$0xff]
    %v802 = vld [vmem:[#allocation4 + $0xf18] sm:$0xff]
    %v803 = vld [vmem:[#allocation4 + $0xf20] sm:$0xff]
    %v804 = vld [vmem:[#allocation4 + $0xf28] sm:$0xff]
    %v805 = vld [vmem:[#allocation4 + $0xf30] sm:$0xff]
    %v806 = vld [vmem:[#allocation4 + $0xf38] sm:$0xff]
    %v807 = vld [vmem:[#allocation4 + $0xf40] sm:$0xff]
    %v808 = vld [vmem:[#allocation4 + $0xf48] sm:$0xff]
    %v809 = vld [vmem:[#allocation4 + $0xf50] sm:$0xff]
    %v810 = vld [vmem:[#allocation4 + $0xf58] sm:$0xff]
    %v811 = vld [vmem:[#allocation4 + $0xf60] sm:$0xff]
    %v812 = vld [vmem:[#allocation4 + $0xf68] sm:$0xff]
    %v813 = vld [vmem:[#allocation4 + $0xf70] sm:$0xff]
    %v814 = vld [vmem:[#allocation4 + $0xf78] sm:$0xff]
    %v815 = vld [vmem:[#allocation4 + $0xf80] sm:$0xff]
    %v816 = vld [vmem:[#allocation4 + $0xf88] sm:$0xff]
    %v817 = vld [vmem:[#allocation4 + $0xf90] sm:$0xff]
    %v818 = vld [vmem:[#allocation4 + $0xf98] sm:$0xff]
    %v819 = vld [vmem:[#allocation4 + $0xfa0] sm:$0xff]
    %v820 = vld [vmem:[#allocation4 + $0xfa8] sm:$0xff]
    %v821 = vld [vmem:[#allocation4 + $0xfb0] sm:$0xff]
    %v822 = vld [vmem:[#allocation4 + $0xfb8] sm:$0xff]
    %v823 = vld [vmem:[#allocation4 + $0xfc0] sm:$0xff]
    %v824 = vld [vmem:[#allocation4 + $0xfc8] sm:$0xff]
    %v825 = vld [vmem:[#allocation4 + $0xfd0] sm:$0xff]
    %v826 = vld [vmem:[#allocation4 + $0xfd8] sm:$0xff]
    %v827 = vld [vmem:[#allocation4 + $0xfe0] sm:$0xff]
    %v828 = vld [vmem:[#allocation4 + $0xfe8] sm:$0xff]
    %v829 = vld [vmem:[#allocation4 + $0xff0] sm:$0xff]
    %v830 = vld [vmem:[#allocation4 + $0xff8] sm:$0xff]
    %v835 = vlaneseq
    %v836 = vshrl.u32 %v835, 7
    %v837 = vsub.s32 0, %v836
    %v838 = vrot.slane %v263, %v837
    %v839 = vlaneseq
    %v840 = vshrl.u32 %v839, 7
    %v841 = vsub.s32 4, %v840
    %v842 = vrot.slane %v263, %v841
    %v843 = vlaneseq
    %v844 = vshrl.u32 %v843, 7
    %v845 = vsub.s32 0, %v844
    %v846 = vrot.slane %v264, %v845
    %v847 = vlaneseq
    %v848 = vshrl.u32 %v847, 7
    %v849 = vsub.s32 4, %v848
    %v850 = vrot.slane %v264, %v849
    %v851 = vlaneseq
    %v852 = vshrl.u32 %v851, 7
    %v853 = vsub.s32 0, %v852
    %v854 = vrot.slane %v265, %v853
    %v855 = vlaneseq
    %v856 = vshrl.u32 %v855, 7
    %v857 = vsub.s32 4, %v856
    %v858 = vrot.slane %v265, %v857
    %v859 = vlaneseq
    %v860 = vshrl.u32 %v859, 7
    %v861 = vsub.s32 0, %v860
    %v862 = vrot.slane %v266, %v861
    %v863 = vlaneseq
    %v864 = vshrl.u32 %v863, 7
    %v865 = vsub.s32 4, %v864
    %v866 = vrot.slane %v266, %v865
    %v875 = vlaneseq
    %v876 = vshrl.u32 %v875, 7
    %v877 = vsub.s32 0, %v876
    %v878 = vrot.slane %v838, %v877
    %v879 = vlaneseq
    %v880 = vshrl.u32 %v879, 7
    %v881 = vsub.s32 0, %v880
    %v882 = vrot.slane %v842, %v881
    %v883 = vlaneseq
    %v884 = vshrl.u32 %v883, 7
    %v885 = vsub.s32 0, %v884
    %v886 = vrot.slane %v846, %v885
    %v887 = vlaneseq
    %v888 = vshrl.u32 %v887, 7
    %v889 = vsub.s32 0, %v888
    %v890 = vrot.slane %v850, %v889
    %v891 = vlaneseq
    %v892 = vshrl.u32 %v891, 7
    %v893 = vsub.s32 0, %v892
    %v894 = vrot.slane %v854, %v893
    %v895 = vlaneseq
    %v896 = vshrl.u32 %v895, 7
    %v897 = vsub.s32 0, %v896
    %v898 = vrot.slane %v858, %v897
    %v899 = vlaneseq
    %v900 = vshrl.u32 %v899, 7
    %v901 = vsub.s32 0, %v900
    %v902 = vrot.slane %v862, %v901
    %v903 = vlaneseq
    %v904 = vshrl.u32 %v903, 7
    %v905 = vsub.s32 0, %v904
    %v906 = vrot.slane %v866, %v905
    %v1419 = vunpack.c.l.b16 %v319
    %v1420 = vunpack.c.h.b16 %v319
    %v1421 = vunpack.c.l.b16 %v320
    %v1422 = vunpack.c.h.b16 %v320
    %v1423 = vunpack.c.l.b16 %v321
    %v1424 = vunpack.c.h.b16 %v321
    %v1425 = vunpack.c.l.b16 %v322
    %v1426 = vunpack.c.h.b16 %v322
    %v1427 = vunpack.c.l.b16 %v323
    %v1428 = vunpack.c.h.b16 %v323
    %v1429 = vunpack.c.l.b16 %v324
    %v1430 = vunpack.c.h.b16 %v324
    %v1431 = vunpack.c.l.b16 %v325
    %v1432 = vunpack.c.h.b16 %v325
    %v1433 = vunpack.c.l.b16 %v326
    %v1434 = vunpack.c.h.b16 %v326
    %v1435 = vunpack.c.l.b16 %v327
    %v1436 = vunpack.c.h.b16 %v327
    %v1437 = vunpack.c.l.b16 %v328
    %v1438 = vunpack.c.h.b16 %v328
    %v1439 = vunpack.c.l.b16 %v329
    %v1440 = vunpack.c.h.b16 %v329
    %v1441 = vunpack.c.l.b16 %v330
    %v1442 = vunpack.c.h.b16 %v330
    %v1443 = vunpack.c.l.b16 %v331
    %v1444 = vunpack.c.h.b16 %v331
    %v1445 = vunpack.c.l.b16 %v332
    %v1446 = vunpack.c.h.b16 %v332
    %v1447 = vunpack.c.l.b16 %v333
    %v1448 = vunpack.c.h.b16 %v333
    %v1449 = vunpack.c.l.b16 %v334
    %v1450 = vunpack.c.h.b16 %v334
    %v1451 = vunpack.c.l.b16 %v335
    %v1452 = vunpack.c.h.b16 %v335
    %v1453 = vunpack.c.l.b16 %v336
    %v1454 = vunpack.c.h.b16 %v336
    %v1455 = vunpack.c.l.b16 %v337
    %v1456 = vunpack.c.h.b16 %v337
    %v1457 = vunpack.c.l.b16 %v338
    %v1458 = vunpack.c.h.b16 %v338
    %v1459 = vunpack.c.l.b16 %v339
    %v1460 = vunpack.c.h.b16 %v339
    %v1461 = vunpack.c.l.b16 %v340
    %v1462 = vunpack.c.h.b16 %v340
    %v1463 = vunpack.c.l.b16 %v341
    %v1464 = vunpack.c.h.b16 %v341
    %v1465 = vunpack.c.l.b16 %v342
    %v1466 = vunpack.c.h.b16 %v342
    %v1467 = vunpack.c.l.b16 %v343
    %v1468 = vunpack.c.h.b16 %v343
    %v1469 = vunpack.c.l.b16 %v344
    %v1470 = vunpack.c.h.b16 %v344
    %v1471 = vunpack.c.l.b16 %v345
    %v1472 = vunpack.c.h.b16 %v345
    %v1473 = vunpack.c.l.b16 %v346
    %v1474 = vunpack.c.h.b16 %v346
    %v1475 = vunpack.c.l.b16 %v347
    %v1476 = vunpack.c.h.b16 %v347
    %v1477 = vunpack.c.l.b16 %v348
    %v1478 = vunpack.c.h.b16 %v348
    %v1479 = vunpack.c.l.b16 %v349
    %v1480 = vunpack.c.h.b16 %v349
    %v1481 = vunpack.c.l.b16 %v350
    %v1482 = vunpack.c.h.b16 %v350
    %v1483 = vunpack.c.l.b16 %v351
    %v1484 = vunpack.c.h.b16 %v351
    %v1485 = vunpack.c.l.b16 %v352
    %v1486 = vunpack.c.h.b16 %v352
    %v1487 = vunpack.c.l.b16 %v353
    %v1488 = vunpack.c.h.b16 %v353
    %v1489 = vunpack.c.l.b16 %v354
    %v1490 = vunpack.c.h.b16 %v354
    %v1491 = vunpack.c.l.b16 %v355
    %v1492 = vunpack.c.h.b16 %v355
    %v1493 = vunpack.c.l.b16 %v356
    %v1494 = vunpack.c.h.b16 %v356
    %v1495 = vunpack.c.l.b16 %v357
    %v1496 = vunpack.c.h.b16 %v357
    %v1497 = vunpack.c.l.b16 %v358
    %v1498 = vunpack.c.h.b16 %v358
    %v1499 = vunpack.c.l.b16 %v359
    %v1500 = vunpack.c.h.b16 %v359
    %v1501 = vunpack.c.l.b16 %v360
    %v1502 = vunpack.c.h.b16 %v360
    %v1503 = vunpack.c.l.b16 %v361
    %v1504 = vunpack.c.h.b16 %v361
    %v1505 = vunpack.c.l.b16 %v362
    %v1506 = vunpack.c.h.b16 %v362
    %v1507 = vunpack.c.l.b16 %v363
    %v1508 = vunpack.c.h.b16 %v363
    %v1509 = vunpack.c.l.b16 %v364
    %v1510 = vunpack.c.h.b16 %v364
    %v1511 = vunpack.c.l.b16 %v365
    %v1512 = vunpack.c.h.b16 %v365
    %v1513 = vunpack.c.l.b16 %v366
    %v1514 = vunpack.c.h.b16 %v366
    %v1515 = vunpack.c.l.b16 %v367
    %v1516 = vunpack.c.h.b16 %v367
    %v1517 = vunpack.c.l.b16 %v368
    %v1518 = vunpack.c.h.b16 %v368
    %v1519 = vunpack.c.l.b16 %v369
    %v1520 = vunpack.c.h.b16 %v369
    %v1521 = vunpack.c.l.b16 %v370
    %v1522 = vunpack.c.h.b16 %v370
    %v1523 = vunpack.c.l.b16 %v371
    %v1524 = vunpack.c.h.b16 %v371
    %v1525 = vunpack.c.l.b16 %v372
    %v1526 = vunpack.c.h.b16 %v372
    %v1527 = vunpack.c.l.b16 %v373
    %v1528 = vunpack.c.h.b16 %v373
    %v1529 = vunpack.c.l.b16 %v374
    %v1530 = vunpack.c.h.b16 %v374
    %v1531 = vunpack.c.l.b16 %v375
    %v1532 = vunpack.c.h.b16 %v375
    %v1533 = vunpack.c.l.b16 %v376
    %v1534 = vunpack.c.h.b16 %v376
    %v1535 = vunpack.c.l.b16 %v377
    %v1536 = vunpack.c.h.b16 %v377
    %v1537 = vunpack.c.l.b16 %v378
    %v1538 = vunpack.c.h.b16 %v378
    %v1539 = vunpack.c.l.b16 %v379
    %v1540 = vunpack.c.h.b16 %v379
    %v1541 = vunpack.c.l.b16 %v380
    %v1542 = vunpack.c.h.b16 %v380
    %v1543 = vunpack.c.l.b16 %v381
    %v1544 = vunpack.c.h.b16 %v381
    %v1545 = vunpack.c.l.b16 %v382
    %v1546 = vunpack.c.h.b16 %v382
    %v1547 = vunpack.c.l.b16 %v383
    %v1548 = vunpack.c.h.b16 %v383
    %v1549 = vunpack.c.l.b16 %v384
    %v1550 = vunpack.c.h.b16 %v384
    %v1551 = vunpack.c.l.b16 %v385
    %v1552 = vunpack.c.h.b16 %v385
    %v1553 = vunpack.c.l.b16 %v386
    %v1554 = vunpack.c.h.b16 %v386
    %v1555 = vunpack.c.l.b16 %v387
    %v1556 = vunpack.c.h.b16 %v387
    %v1557 = vunpack.c.l.b16 %v388
    %v1558 = vunpack.c.h.b16 %v388
    %v1559 = vunpack.c.l.b16 %v389
    %v1560 = vunpack.c.h.b16 %v389
    %v1561 = vunpack.c.l.b16 %v390
    %v1562 = vunpack.c.h.b16 %v390
    %v1563 = vunpack.c.l.b16 %v391
    %v1564 = vunpack.c.h.b16 %v391
    %v1565 = vunpack.c.l.b16 %v392
    %v1566 = vunpack.c.h.b16 %v392
    %v1567 = vunpack.c.l.b16 %v393
    %v1568 = vunpack.c.h.b16 %v393
    %v1569 = vunpack.c.l.b16 %v394
    %v1570 = vunpack.c.h.b16 %v394
    %v1571 = vunpack.c.l.b16 %v395
    %v1572 = vunpack.c.h.b16 %v395
    %v1573 = vunpack.c.l.b16 %v396
    %v1574 = vunpack.c.h.b16 %v396
    %v1575 = vunpack.c.l.b16 %v397
    %v1576 = vunpack.c.h.b16 %v397
    %v1577 = vunpack.c.l.b16 %v398
    %v1578 = vunpack.c.h.b16 %v398
    %v1579 = vunpack.c.l.b16 %v399
    %v1580 = vunpack.c.h.b16 %v399
    %v1581 = vunpack.c.l.b16 %v400
    %v1582 = vunpack.c.h.b16 %v400
    %v1583 = vunpack.c.l.b16 %v401
    %v1584 = vunpack.c.h.b16 %v401
    %v1585 = vunpack.c.l.b16 %v402
    %v1586 = vunpack.c.h.b16 %v402
    %v1587 = vunpack.c.l.b16 %v403
    %v1588 = vunpack.c.h.b16 %v403
    %v1589 = vunpack.c.l.b16 %v404
    %v1590 = vunpack.c.h.b16 %v404
    %v1591 = vunpack.c.l.b16 %v405
    %v1592 = vunpack.c.h.b16 %v405
    %v1593 = vunpack.c.l.b16 %v406
    %v1594 = vunpack.c.h.b16 %v406
    %v1595 = vunpack.c.l.b16 %v407
    %v1596 = vunpack.c.h.b16 %v407
    %v1597 = vunpack.c.l.b16 %v408
    %v1598 = vunpack.c.h.b16 %v408
    %v1599 = vunpack.c.l.b16 %v409
    %v1600 = vunpack.c.h.b16 %v409
    %v1601 = vunpack.c.l.b16 %v410
    %v1602 = vunpack.c.h.b16 %v410
    %v1603 = vunpack.c.l.b16 %v411
    %v1604 = vunpack.c.h.b16 %v411
    %v1605 = vunpack.c.l.b16 %v412
    %v1606 = vunpack.c.h.b16 %v412
    %v1607 = vunpack.c.l.b16 %v413
    %v1608 = vunpack.c.h.b16 %v413
    %v1609 = vunpack.c.l.b16 %v414
    %v1610 = vunpack.c.h.b16 %v414
    %v1611 = vunpack.c.l.b16 %v415
    %v1612 = vunpack.c.h.b16 %v415
    %v1613 = vunpack.c.l.b16 %v416
    %v1614 = vunpack.c.h.b16 %v416
    %v1615 = vunpack.c.l.b16 %v417
    %v1616 = vunpack.c.h.b16 %v417
    %v1617 = vunpack.c.l.b16 %v418
    %v1618 = vunpack.c.h.b16 %v418
    %v1619 = vunpack.c.l.b16 %v419
    %v1620 = vunpack.c.h.b16 %v419
    %v1621 = vunpack.c.l.b16 %v420
    %v1622 = vunpack.c.h.b16 %v420
    %v1623 = vunpack.c.l.b16 %v421
    %v1624 = vunpack.c.h.b16 %v421
    %v1625 = vunpack.c.l.b16 %v422
    %v1626 = vunpack.c.h.b16 %v422
    %v1627 = vunpack.c.l.b16 %v423
    %v1628 = vunpack.c.h.b16 %v423
    %v1629 = vunpack.c.l.b16 %v424
    %v1630 = vunpack.c.h.b16 %v424
    %v1631 = vunpack.c.l.b16 %v425
    %v1632 = vunpack.c.h.b16 %v425
    %v1633 = vunpack.c.l.b16 %v426
    %v1634 = vunpack.c.h.b16 %v426
    %v1635 = vunpack.c.l.b16 %v427
    %v1636 = vunpack.c.h.b16 %v427
    %v1637 = vunpack.c.l.b16 %v428
    %v1638 = vunpack.c.h.b16 %v428
    %v1639 = vunpack.c.l.b16 %v429
    %v1640 = vunpack.c.h.b16 %v429
    %v1641 = vunpack.c.l.b16 %v430
    %v1642 = vunpack.c.h.b16 %v430
    %v1643 = vunpack.c.l.b16 %v431
    %v1644 = vunpack.c.h.b16 %v431
    %v1645 = vunpack.c.l.b16 %v432
    %v1646 = vunpack.c.h.b16 %v432
    %v1647 = vunpack.c.l.b16 %v433
    %v1648 = vunpack.c.h.b16 %v433
    %v1649 = vunpack.c.l.b16 %v434
    %v1650 = vunpack.c.h.b16 %v434
    %v1651 = vunpack.c.l.b16 %v435
    %v1652 = vunpack.c.h.b16 %v435
    %v1653 = vunpack.c.l.b16 %v436
    %v1654 = vunpack.c.h.b16 %v436
    %v1655 = vunpack.c.l.b16 %v437
    %v1656 = vunpack.c.h.b16 %v437
    %v1657 = vunpack.c.l.b16 %v438
    %v1658 = vunpack.c.h.b16 %v438
    %v1659 = vunpack.c.l.b16 %v439
    %v1660 = vunpack.c.h.b16 %v439
    %v1661 = vunpack.c.l.b16 %v440
    %v1662 = vunpack.c.h.b16 %v440
    %v1663 = vunpack.c.l.b16 %v441
    %v1664 = vunpack.c.h.b16 %v441
    %v1665 = vunpack.c.l.b16 %v442
    %v1666 = vunpack.c.h.b16 %v442
    %v1667 = vunpack.c.l.b16 %v443
    %v1668 = vunpack.c.h.b16 %v443
    %v1669 = vunpack.c.l.b16 %v444
    %v1670 = vunpack.c.h.b16 %v444
    %v1671 = vunpack.c.l.b16 %v445
    %v1672 = vunpack.c.h.b16 %v445
    %v1673 = vunpack.c.l.b16 %v446
    %v1674 = vunpack.c.h.b16 %v446
    %v1675 = vunpack.c.l.b16 %v447
    %v1676 = vunpack.c.h.b16 %v447
    %v1677 = vunpack.c.l.b16 %v448
    %v1678 = vunpack.c.h.b16 %v448
    %v1679 = vunpack.c.l.b16 %v449
    %v1680 = vunpack.c.h.b16 %v449
    %v1681 = vunpack.c.l.b16 %v450
    %v1682 = vunpack.c.h.b16 %v450
    %v1683 = vunpack.c.l.b16 %v451
    %v1684 = vunpack.c.h.b16 %v451
    %v1685 = vunpack.c.l.b16 %v452
    %v1686 = vunpack.c.h.b16 %v452
    %v1687 = vunpack.c.l.b16 %v453
    %v1688 = vunpack.c.h.b16 %v453
    %v1689 = vunpack.c.l.b16 %v454
    %v1690 = vunpack.c.h.b16 %v454
    %v1691 = vunpack.c.l.b16 %v455
    %v1692 = vunpack.c.h.b16 %v455
    %v1693 = vunpack.c.l.b16 %v456
    %v1694 = vunpack.c.h.b16 %v456
    %v1695 = vunpack.c.l.b16 %v457
    %v1696 = vunpack.c.h.b16 %v457
    %v1697 = vunpack.c.l.b16 %v458
    %v1698 = vunpack.c.h.b16 %v458
    %v1699 = vunpack.c.l.b16 %v459
    %v1700 = vunpack.c.h.b16 %v459
    %v1701 = vunpack.c.l.b16 %v460
    %v1702 = vunpack.c.h.b16 %v460
    %v1703 = vunpack.c.l.b16 %v461
    %v1704 = vunpack.c.h.b16 %v461
    %v1705 = vunpack.c.l.b16 %v462
    %v1706 = vunpack.c.h.b16 %v462
    %v1707 = vunpack.c.l.b16 %v463
    %v1708 = vunpack.c.h.b16 %v463
    %v1709 = vunpack.c.l.b16 %v464
    %v1710 = vunpack.c.h.b16 %v464
    %v1711 = vunpack.c.l.b16 %v465
    %v1712 = vunpack.c.h.b16 %v465
    %v1713 = vunpack.c.l.b16 %v466
    %v1714 = vunpack.c.h.b16 %v466
    %v1715 = vunpack.c.l.b16 %v467
    %v1716 = vunpack.c.h.b16 %v467
    %v1717 = vunpack.c.l.b16 %v468
    %v1718 = vunpack.c.h.b16 %v468
    %v1719 = vunpack.c.l.b16 %v469
    %v1720 = vunpack.c.h.b16 %v469
    %v1721 = vunpack.c.l.b16 %v470
    %v1722 = vunpack.c.h.b16 %v470
    %v1723 = vunpack.c.l.b16 %v471
    %v1724 = vunpack.c.h.b16 %v471
    %v1725 = vunpack.c.l.b16 %v472
    %v1726 = vunpack.c.h.b16 %v472
    %v1727 = vunpack.c.l.b16 %v473
    %v1728 = vunpack.c.h.b16 %v473
    %v1729 = vunpack.c.l.b16 %v474
    %v1730 = vunpack.c.h.b16 %v474
    %v1731 = vunpack.c.l.b16 %v475
    %v1732 = vunpack.c.h.b16 %v475
    %v1733 = vunpack.c.l.b16 %v476
    %v1734 = vunpack.c.h.b16 %v476
    %v1735 = vunpack.c.l.b16 %v477
    %v1736 = vunpack.c.h.b16 %v477
    %v1737 = vunpack.c.l.b16 %v478
    %v1738 = vunpack.c.h.b16 %v478
    %v1739 = vunpack.c.l.b16 %v479
    %v1740 = vunpack.c.h.b16 %v479
    %v1741 = vunpack.c.l.b16 %v480
    %v1742 = vunpack.c.h.b16 %v480
    %v1743 = vunpack.c.l.b16 %v481
    %v1744 = vunpack.c.h.b16 %v481
    %v1745 = vunpack.c.l.b16 %v482
    %v1746 = vunpack.c.h.b16 %v482
    %v1747 = vunpack.c.l.b16 %v483
    %v1748 = vunpack.c.h.b16 %v483
    %v1749 = vunpack.c.l.b16 %v484
    %v1750 = vunpack.c.h.b16 %v484
    %v1751 = vunpack.c.l.b16 %v485
    %v1752 = vunpack.c.h.b16 %v485
    %v1753 = vunpack.c.l.b16 %v486
    %v1754 = vunpack.c.h.b16 %v486
    %v1755 = vunpack.c.l.b16 %v487
    %v1756 = vunpack.c.h.b16 %v487
    %v1757 = vunpack.c.l.b16 %v488
    %v1758 = vunpack.c.h.b16 %v488
    %v1759 = vunpack.c.l.b16 %v489
    %v1760 = vunpack.c.h.b16 %v489
    %v1761 = vunpack.c.l.b16 %v490
    %v1762 = vunpack.c.h.b16 %v490
    %v1763 = vunpack.c.l.b16 %v491
    %v1764 = vunpack.c.h.b16 %v491
    %v1765 = vunpack.c.l.b16 %v492
    %v1766 = vunpack.c.h.b16 %v492
    %v1767 = vunpack.c.l.b16 %v493
    %v1768 = vunpack.c.h.b16 %v493
    %v1769 = vunpack.c.l.b16 %v494
    %v1770 = vunpack.c.h.b16 %v494
    %v1771 = vunpack.c.l.b16 %v495
    %v1772 = vunpack.c.h.b16 %v495
    %v1773 = vunpack.c.l.b16 %v496
    %v1774 = vunpack.c.h.b16 %v496
    %v1775 = vunpack.c.l.b16 %v497
    %v1776 = vunpack.c.h.b16 %v497
    %v1777 = vunpack.c.l.b16 %v498
    %v1778 = vunpack.c.h.b16 %v498
    %v1779 = vunpack.c.l.b16 %v499
    %v1780 = vunpack.c.h.b16 %v499
    %v1781 = vunpack.c.l.b16 %v500
    %v1782 = vunpack.c.h.b16 %v500
    %v1783 = vunpack.c.l.b16 %v501
    %v1784 = vunpack.c.h.b16 %v501
    %v1785 = vunpack.c.l.b16 %v502
    %v1786 = vunpack.c.h.b16 %v502
    %v1787 = vunpack.c.l.b16 %v503
    %v1788 = vunpack.c.h.b16 %v503
    %v1789 = vunpack.c.l.b16 %v504
    %v1790 = vunpack.c.h.b16 %v504
    %v1791 = vunpack.c.l.b16 %v505
    %v1792 = vunpack.c.h.b16 %v505
    %v1793 = vunpack.c.l.b16 %v506
    %v1794 = vunpack.c.h.b16 %v506
    %v1795 = vunpack.c.l.b16 %v507
    %v1796 = vunpack.c.h.b16 %v507
    %v1797 = vunpack.c.l.b16 %v508
    %v1798 = vunpack.c.h.b16 %v508
    %v1799 = vunpack.c.l.b16 %v509
    %v1800 = vunpack.c.h.b16 %v509
    %v1801 = vunpack.c.l.b16 %v510
    %v1802 = vunpack.c.h.b16 %v510
    %v1803 = vunpack.c.l.b16 %v511
    %v1804 = vunpack.c.h.b16 %v511
    %v1805 = vunpack.c.l.b16 %v512
    %v1806 = vunpack.c.h.b16 %v512
    %v1807 = vunpack.c.l.b16 %v513
    %v1808 = vunpack.c.h.b16 %v513
    %v1809 = vunpack.c.l.b16 %v514
    %v1810 = vunpack.c.h.b16 %v514
    %v1811 = vunpack.c.l.b16 %v515
    %v1812 = vunpack.c.h.b16 %v515
    %v1813 = vunpack.c.l.b16 %v516
    %v1814 = vunpack.c.h.b16 %v516
    %v1815 = vunpack.c.l.b16 %v517
    %v1816 = vunpack.c.h.b16 %v517
    %v1817 = vunpack.c.l.b16 %v518
    %v1818 = vunpack.c.h.b16 %v518
    %v1819 = vunpack.c.l.b16 %v519
    %v1820 = vunpack.c.h.b16 %v519
    %v1821 = vunpack.c.l.b16 %v520
    %v1822 = vunpack.c.h.b16 %v520
    %v1823 = vunpack.c.l.b16 %v521
    %v1824 = vunpack.c.h.b16 %v521
    %v1825 = vunpack.c.l.b16 %v522
    %v1826 = vunpack.c.h.b16 %v522
    %v1827 = vunpack.c.l.b16 %v523
    %v1828 = vunpack.c.h.b16 %v523
    %v1829 = vunpack.c.l.b16 %v524
    %v1830 = vunpack.c.h.b16 %v524
    %v1831 = vunpack.c.l.b16 %v525
    %v1832 = vunpack.c.h.b16 %v525
    %v1833 = vunpack.c.l.b16 %v526
    %v1834 = vunpack.c.h.b16 %v526
    %v1835 = vunpack.c.l.b16 %v527
    %v1836 = vunpack.c.h.b16 %v527
    %v1837 = vunpack.c.l.b16 %v528
    %v1838 = vunpack.c.h.b16 %v528
    %v1839 = vunpack.c.l.b16 %v529
    %v1840 = vunpack.c.h.b16 %v529
    %v1841 = vunpack.c.l.b16 %v530
    %v1842 = vunpack.c.h.b16 %v530
    %v1843 = vunpack.c.l.b16 %v531
    %v1844 = vunpack.c.h.b16 %v531
    %v1845 = vunpack.c.l.b16 %v532
    %v1846 = vunpack.c.h.b16 %v532
    %v1847 = vunpack.c.l.b16 %v533
    %v1848 = vunpack.c.h.b16 %v533
    %v1849 = vunpack.c.l.b16 %v534
    %v1850 = vunpack.c.h.b16 %v534
    %v1851 = vunpack.c.l.b16 %v535
    %v1852 = vunpack.c.h.b16 %v535
    %v1853 = vunpack.c.l.b16 %v536
    %v1854 = vunpack.c.h.b16 %v536
    %v1855 = vunpack.c.l.b16 %v537
    %v1856 = vunpack.c.h.b16 %v537
    %v1857 = vunpack.c.l.b16 %v538
    %v1858 = vunpack.c.h.b16 %v538
    %v1859 = vunpack.c.l.b16 %v539
    %v1860 = vunpack.c.h.b16 %v539
    %v1861 = vunpack.c.l.b16 %v540
    %v1862 = vunpack.c.h.b16 %v540
    %v1863 = vunpack.c.l.b16 %v541
    %v1864 = vunpack.c.h.b16 %v541
    %v1865 = vunpack.c.l.b16 %v542
    %v1866 = vunpack.c.h.b16 %v542
    %v1867 = vunpack.c.l.b16 %v543
    %v1868 = vunpack.c.h.b16 %v543
    %v1869 = vunpack.c.l.b16 %v544
    %v1870 = vunpack.c.h.b16 %v544
    %v1871 = vunpack.c.l.b16 %v545
    %v1872 = vunpack.c.h.b16 %v545
    %v1873 = vunpack.c.l.b16 %v546
    %v1874 = vunpack.c.h.b16 %v546
    %v1875 = vunpack.c.l.b16 %v547
    %v1876 = vunpack.c.h.b16 %v547
    %v1877 = vunpack.c.l.b16 %v548
    %v1878 = vunpack.c.h.b16 %v548
    %v1879 = vunpack.c.l.b16 %v549
    %v1880 = vunpack.c.h.b16 %v549
    %v1881 = vunpack.c.l.b16 %v550
    %v1882 = vunpack.c.h.b16 %v550
    %v1883 = vunpack.c.l.b16 %v551
    %v1884 = vunpack.c.h.b16 %v551
    %v1885 = vunpack.c.l.b16 %v552
    %v1886 = vunpack.c.h.b16 %v552
    %v1887 = vunpack.c.l.b16 %v553
    %v1888 = vunpack.c.h.b16 %v553
    %v1889 = vunpack.c.l.b16 %v554
    %v1890 = vunpack.c.h.b16 %v554
    %v1891 = vunpack.c.l.b16 %v555
    %v1892 = vunpack.c.h.b16 %v555
    %v1893 = vunpack.c.l.b16 %v556
    %v1894 = vunpack.c.h.b16 %v556
    %v1895 = vunpack.c.l.b16 %v557
    %v1896 = vunpack.c.h.b16 %v557
    %v1897 = vunpack.c.l.b16 %v558
    %v1898 = vunpack.c.h.b16 %v558
    %v1899 = vunpack.c.l.b16 %v559
    %v1900 = vunpack.c.h.b16 %v559
    %v1901 = vunpack.c.l.b16 %v560
    %v1902 = vunpack.c.h.b16 %v560
    %v1903 = vunpack.c.l.b16 %v561
    %v1904 = vunpack.c.h.b16 %v561
    %v1905 = vunpack.c.l.b16 %v562
    %v1906 = vunpack.c.h.b16 %v562
    %v1907 = vunpack.c.l.b16 %v563
    %v1908 = vunpack.c.h.b16 %v563
    %v1909 = vunpack.c.l.b16 %v564
    %v1910 = vunpack.c.h.b16 %v564
    %v1911 = vunpack.c.l.b16 %v565
    %v1912 = vunpack.c.h.b16 %v565
    %v1913 = vunpack.c.l.b16 %v566
    %v1914 = vunpack.c.h.b16 %v566
    %v1915 = vunpack.c.l.b16 %v567
    %v1916 = vunpack.c.h.b16 %v567
    %v1917 = vunpack.c.l.b16 %v568
    %v1918 = vunpack.c.h.b16 %v568
    %v1919 = vunpack.c.l.b16 %v569
    %v1920 = vunpack.c.h.b16 %v569
    %v1921 = vunpack.c.l.b16 %v570
    %v1922 = vunpack.c.h.b16 %v570
    %v1923 = vunpack.c.l.b16 %v571
    %v1924 = vunpack.c.h.b16 %v571
    %v1925 = vunpack.c.l.b16 %v572
    %v1926 = vunpack.c.h.b16 %v572
    %v1927 = vunpack.c.l.b16 %v573
    %v1928 = vunpack.c.h.b16 %v573
    %v1929 = vunpack.c.l.b16 %v574
    %v1930 = vunpack.c.h.b16 %v574
    %v1931 = vunpack.c.l.b16 %v575
    %v1932 = vunpack.c.h.b16 %v575
    %v1933 = vunpack.c.l.b16 %v576
    %v1934 = vunpack.c.h.b16 %v576
    %v1935 = vunpack.c.l.b16 %v577
    %v1936 = vunpack.c.h.b16 %v577
    %v1937 = vunpack.c.l.b16 %v578
    %v1938 = vunpack.c.h.b16 %v578
    %v1939 = vunpack.c.l.b16 %v579
    %v1940 = vunpack.c.h.b16 %v579
    %v1941 = vunpack.c.l.b16 %v580
    %v1942 = vunpack.c.h.b16 %v580
    %v1943 = vunpack.c.l.b16 %v581
    %v1944 = vunpack.c.h.b16 %v581
    %v1945 = vunpack.c.l.b16 %v582
    %v1946 = vunpack.c.h.b16 %v582
    %v1947 = vunpack.c.l.b16 %v583
    %v1948 = vunpack.c.h.b16 %v583
    %v1949 = vunpack.c.l.b16 %v584
    %v1950 = vunpack.c.h.b16 %v584
    %v1951 = vunpack.c.l.b16 %v585
    %v1952 = vunpack.c.h.b16 %v585
    %v1953 = vunpack.c.l.b16 %v586
    %v1954 = vunpack.c.h.b16 %v586
    %v1955 = vunpack.c.l.b16 %v587
    %v1956 = vunpack.c.h.b16 %v587
    %v1957 = vunpack.c.l.b16 %v588
    %v1958 = vunpack.c.h.b16 %v588
    %v1959 = vunpack.c.l.b16 %v589
    %v1960 = vunpack.c.h.b16 %v589
    %v1961 = vunpack.c.l.b16 %v590
    %v1962 = vunpack.c.h.b16 %v590
    %v1963 = vunpack.c.l.b16 %v591
    %v1964 = vunpack.c.h.b16 %v591
    %v1965 = vunpack.c.l.b16 %v592
    %v1966 = vunpack.c.h.b16 %v592
    %v1967 = vunpack.c.l.b16 %v593
    %v1968 = vunpack.c.h.b16 %v593
    %v1969 = vunpack.c.l.b16 %v594
    %v1970 = vunpack.c.h.b16 %v594
    %v1971 = vunpack.c.l.b16 %v595
    %v1972 = vunpack.c.h.b16 %v595
    %v1973 = vunpack.c.l.b16 %v596
    %v1974 = vunpack.c.h.b16 %v596
    %v1975 = vunpack.c.l.b16 %v597
    %v1976 = vunpack.c.h.b16 %v597
    %v1977 = vunpack.c.l.b16 %v598
    %v1978 = vunpack.c.h.b16 %v598
    %v1979 = vunpack.c.l.b16 %v599
    %v1980 = vunpack.c.h.b16 %v599
    %v1981 = vunpack.c.l.b16 %v600
    %v1982 = vunpack.c.h.b16 %v600
    %v1983 = vunpack.c.l.b16 %v601
    %v1984 = vunpack.c.h.b16 %v601
    %v1985 = vunpack.c.l.b16 %v602
    %v1986 = vunpack.c.h.b16 %v602
    %v1987 = vunpack.c.l.b16 %v603
    %v1988 = vunpack.c.h.b16 %v603
    %v1989 = vunpack.c.l.b16 %v604
    %v1990 = vunpack.c.h.b16 %v604
    %v1991 = vunpack.c.l.b16 %v605
    %v1992 = vunpack.c.h.b16 %v605
    %v1993 = vunpack.c.l.b16 %v606
    %v1994 = vunpack.c.h.b16 %v606
    %v1995 = vunpack.c.l.b16 %v607
    %v1996 = vunpack.c.h.b16 %v607
    %v1997 = vunpack.c.l.b16 %v608
    %v1998 = vunpack.c.h.b16 %v608
    %v1999 = vunpack.c.l.b16 %v609
    %v2000 = vunpack.c.h.b16 %v609
    %v2001 = vunpack.c.l.b16 %v610
    %v2002 = vunpack.c.h.b16 %v610
    %v2003 = vunpack.c.l.b16 %v611
    %v2004 = vunpack.c.h.b16 %v611
    %v2005 = vunpack.c.l.b16 %v612
    %v2006 = vunpack.c.h.b16 %v612
    %v2007 = vunpack.c.l.b16 %v613
    %v2008 = vunpack.c.h.b16 %v613
    %v2009 = vunpack.c.l.b16 %v614
    %v2010 = vunpack.c.h.b16 %v614
    %v2011 = vunpack.c.l.b16 %v615
    %v2012 = vunpack.c.h.b16 %v615
    %v2013 = vunpack.c.l.b16 %v616
    %v2014 = vunpack.c.h.b16 %v616
    %v2015 = vunpack.c.l.b16 %v617
    %v2016 = vunpack.c.h.b16 %v617
    %v2017 = vunpack.c.l.b16 %v618
    %v2018 = vunpack.c.h.b16 %v618
    %v2019 = vunpack.c.l.b16 %v619
    %v2020 = vunpack.c.h.b16 %v619
    %v2021 = vunpack.c.l.b16 %v620
    %v2022 = vunpack.c.h.b16 %v620
    %v2023 = vunpack.c.l.b16 %v621
    %v2024 = vunpack.c.h.b16 %v621
    %v2025 = vunpack.c.l.b16 %v622
    %v2026 = vunpack.c.h.b16 %v622
    %v2027 = vunpack.c.l.b16 %v623
    %v2028 = vunpack.c.h.b16 %v623
    %v2029 = vunpack.c.l.b16 %v624
    %v2030 = vunpack.c.h.b16 %v624
    %v2031 = vunpack.c.l.b16 %v625
    %v2032 = vunpack.c.h.b16 %v625
    %v2033 = vunpack.c.l.b16 %v626
    %v2034 = vunpack.c.h.b16 %v626
    %v2035 = vunpack.c.l.b16 %v627
    %v2036 = vunpack.c.h.b16 %v627
    %v2037 = vunpack.c.l.b16 %v628
    %v2038 = vunpack.c.h.b16 %v628
    %v2039 = vunpack.c.l.b16 %v629
    %v2040 = vunpack.c.h.b16 %v629
    %v2041 = vunpack.c.l.b16 %v630
    %v2042 = vunpack.c.h.b16 %v630
    %v2043 = vunpack.c.l.b16 %v631
    %v2044 = vunpack.c.h.b16 %v631
    %v2045 = vunpack.c.l.b16 %v632
    %v2046 = vunpack.c.h.b16 %v632
    %v2047 = vunpack.c.l.b16 %v633
    %v2048 = vunpack.c.h.b16 %v633
    %v2049 = vunpack.c.l.b16 %v634
    %v2050 = vunpack.c.h.b16 %v634
    %v2051 = vunpack.c.l.b16 %v635
    %v2052 = vunpack.c.h.b16 %v635
    %v2053 = vunpack.c.l.b16 %v636
    %v2054 = vunpack.c.h.b16 %v636
    %v2055 = vunpack.c.l.b16 %v637
    %v2056 = vunpack.c.h.b16 %v637
    %v2057 = vunpack.c.l.b16 %v638
    %v2058 = vunpack.c.h.b16 %v638
    %v2059 = vunpack.c.l.b16 %v639
    %v2060 = vunpack.c.h.b16 %v639
    %v2061 = vunpack.c.l.b16 %v640
    %v2062 = vunpack.c.h.b16 %v640
    %v2063 = vunpack.c.l.b16 %v641
    %v2064 = vunpack.c.h.b16 %v641
    %v2065 = vunpack.c.l.b16 %v642
    %v2066 = vunpack.c.h.b16 %v642
    %v2067 = vunpack.c.l.b16 %v643
    %v2068 = vunpack.c.h.b16 %v643
    %v2069 = vunpack.c.l.b16 %v644
    %v2070 = vunpack.c.h.b16 %v644
    %v2071 = vunpack.c.l.b16 %v645
    %v2072 = vunpack.c.h.b16 %v645
    %v2073 = vunpack.c.l.b16 %v646
    %v2074 = vunpack.c.h.b16 %v646
    %v2075 = vunpack.c.l.b16 %v647
    %v2076 = vunpack.c.h.b16 %v647
    %v2077 = vunpack.c.l.b16 %v648
    %v2078 = vunpack.c.h.b16 %v648
    %v2079 = vunpack.c.l.b16 %v649
    %v2080 = vunpack.c.h.b16 %v649
    %v2081 = vunpack.c.l.b16 %v650
    %v2082 = vunpack.c.h.b16 %v650
    %v2083 = vunpack.c.l.b16 %v651
    %v2084 = vunpack.c.h.b16 %v651
    %v2085 = vunpack.c.l.b16 %v652
    %v2086 = vunpack.c.h.b16 %v652
    %v2087 = vunpack.c.l.b16 %v653
    %v2088 = vunpack.c.h.b16 %v653
    %v2089 = vunpack.c.l.b16 %v654
    %v2090 = vunpack.c.h.b16 %v654
    %v2091 = vunpack.c.l.b16 %v655
    %v2092 = vunpack.c.h.b16 %v655
    %v2093 = vunpack.c.l.b16 %v656
    %v2094 = vunpack.c.h.b16 %v656
    %v2095 = vunpack.c.l.b16 %v657
    %v2096 = vunpack.c.h.b16 %v657
    %v2097 = vunpack.c.l.b16 %v658
    %v2098 = vunpack.c.h.b16 %v658
    %v2099 = vunpack.c.l.b16 %v659
    %v2100 = vunpack.c.h.b16 %v659
    %v2101 = vunpack.c.l.b16 %v660
    %v2102 = vunpack.c.h.b16 %v660
    %v2103 = vunpack.c.l.b16 %v661
    %v2104 = vunpack.c.h.b16 %v661
    %v2105 = vunpack.c.l.b16 %v662
    %v2106 = vunpack.c.h.b16 %v662
    %v2107 = vunpack.c.l.b16 %v663
    %v2108 = vunpack.c.h.b16 %v663
    %v2109 = vunpack.c.l.b16 %v664
    %v2110 = vunpack.c.h.b16 %v664
    %v2111 = vunpack.c.l.b16 %v665
    %v2112 = vunpack.c.h.b16 %v665
    %v2113 = vunpack.c.l.b16 %v666
    %v2114 = vunpack.c.h.b16 %v666
    %v2115 = vunpack.c.l.b16 %v667
    %v2116 = vunpack.c.h.b16 %v667
    %v2117 = vunpack.c.l.b16 %v668
    %v2118 = vunpack.c.h.b16 %v668
    %v2119 = vunpack.c.l.b16 %v669
    %v2120 = vunpack.c.h.b16 %v669
    %v2121 = vunpack.c.l.b16 %v670
    %v2122 = vunpack.c.h.b16 %v670
    %v2123 = vunpack.c.l.b16 %v671
    %v2124 = vunpack.c.h.b16 %v671
    %v2125 = vunpack.c.l.b16 %v672
    %v2126 = vunpack.c.h.b16 %v672
    %v2127 = vunpack.c.l.b16 %v673
    %v2128 = vunpack.c.h.b16 %v673
    %v2129 = vunpack.c.l.b16 %v674
    %v2130 = vunpack.c.h.b16 %v674
    %v2131 = vunpack.c.l.b16 %v675
    %v2132 = vunpack.c.h.b16 %v675
    %v2133 = vunpack.c.l.b16 %v676
    %v2134 = vunpack.c.h.b16 %v676
    %v2135 = vunpack.c.l.b16 %v677
    %v2136 = vunpack.c.h.b16 %v677
    %v2137 = vunpack.c.l.b16 %v678
    %v2138 = vunpack.c.h.b16 %v678
    %v2139 = vunpack.c.l.b16 %v679
    %v2140 = vunpack.c.h.b16 %v679
    %v2141 = vunpack.c.l.b16 %v680
    %v2142 = vunpack.c.h.b16 %v680
    %v2143 = vunpack.c.l.b16 %v681
    %v2144 = vunpack.c.h.b16 %v681
    %v2145 = vunpack.c.l.b16 %v682
    %v2146 = vunpack.c.h.b16 %v682
    %v2147 = vunpack.c.l.b16 %v683
    %v2148 = vunpack.c.h.b16 %v683
    %v2149 = vunpack.c.l.b16 %v684
    %v2150 = vunpack.c.h.b16 %v684
    %v2151 = vunpack.c.l.b16 %v685
    %v2152 = vunpack.c.h.b16 %v685
    %v2153 = vunpack.c.l.b16 %v686
    %v2154 = vunpack.c.h.b16 %v686
    %v2155 = vunpack.c.l.b16 %v687
    %v2156 = vunpack.c.h.b16 %v687
    %v2157 = vunpack.c.l.b16 %v688
    %v2158 = vunpack.c.h.b16 %v688
    %v2159 = vunpack.c.l.b16 %v689
    %v2160 = vunpack.c.h.b16 %v689
    %v2161 = vunpack.c.l.b16 %v690
    %v2162 = vunpack.c.h.b16 %v690
    %v2163 = vunpack.c.l.b16 %v691
    %v2164 = vunpack.c.h.b16 %v691
    %v2165 = vunpack.c.l.b16 %v692
    %v2166 = vunpack.c.h.b16 %v692
    %v2167 = vunpack.c.l.b16 %v693
    %v2168 = vunpack.c.h.b16 %v693
    %v2169 = vunpack.c.l.b16 %v694
    %v2170 = vunpack.c.h.b16 %v694
    %v2171 = vunpack.c.l.b16 %v695
    %v2172 = vunpack.c.h.b16 %v695
    %v2173 = vunpack.c.l.b16 %v696
    %v2174 = vunpack.c.h.b16 %v696
    %v2175 = vunpack.c.l.b16 %v697
    %v2176 = vunpack.c.h.b16 %v697
    %v2177 = vunpack.c.l.b16 %v698
    %v2178 = vunpack.c.h.b16 %v698
    %v2179 = vunpack.c.l.b16 %v699
    %v2180 = vunpack.c.h.b16 %v699
    %v2181 = vunpack.c.l.b16 %v700
    %v2182 = vunpack.c.h.b16 %v700
    %v2183 = vunpack.c.l.b16 %v701
    %v2184 = vunpack.c.h.b16 %v701
    %v2185 = vunpack.c.l.b16 %v702
    %v2186 = vunpack.c.h.b16 %v702
    %v2187 = vunpack.c.l.b16 %v703
    %v2188 = vunpack.c.h.b16 %v703
    %v2189 = vunpack.c.l.b16 %v704
    %v2190 = vunpack.c.h.b16 %v704
    %v2191 = vunpack.c.l.b16 %v705
    %v2192 = vunpack.c.h.b16 %v705
    %v2193 = vunpack.c.l.b16 %v706
    %v2194 = vunpack.c.h.b16 %v706
    %v2195 = vunpack.c.l.b16 %v707
    %v2196 = vunpack.c.h.b16 %v707
    %v2197 = vunpack.c.l.b16 %v708
    %v2198 = vunpack.c.h.b16 %v708
    %v2199 = vunpack.c.l.b16 %v709
    %v2200 = vunpack.c.h.b16 %v709
    %v2201 = vunpack.c.l.b16 %v710
    %v2202 = vunpack.c.h.b16 %v710
    %v2203 = vunpack.c.l.b16 %v711
    %v2204 = vunpack.c.h.b16 %v711
    %v2205 = vunpack.c.l.b16 %v712
    %v2206 = vunpack.c.h.b16 %v712
    %v2207 = vunpack.c.l.b16 %v713
    %v2208 = vunpack.c.h.b16 %v713
    %v2209 = vunpack.c.l.b16 %v714
    %v2210 = vunpack.c.h.b16 %v714
    %v2211 = vunpack.c.l.b16 %v715
    %v2212 = vunpack.c.h.b16 %v715
    %v2213 = vunpack.c.l.b16 %v716
    %v2214 = vunpack.c.h.b16 %v716
    %v2215 = vunpack.c.l.b16 %v717
    %v2216 = vunpack.c.h.b16 %v717
    %v2217 = vunpack.c.l.b16 %v718
    %v2218 = vunpack.c.h.b16 %v718
    %v2219 = vunpack.c.l.b16 %v719
    %v2220 = vunpack.c.h.b16 %v719
    %v2221 = vunpack.c.l.b16 %v720
    %v2222 = vunpack.c.h.b16 %v720
    %v2223 = vunpack.c.l.b16 %v721
    %v2224 = vunpack.c.h.b16 %v721
    %v2225 = vunpack.c.l.b16 %v722
    %v2226 = vunpack.c.h.b16 %v722
    %v2227 = vunpack.c.l.b16 %v723
    %v2228 = vunpack.c.h.b16 %v723
    %v2229 = vunpack.c.l.b16 %v724
    %v2230 = vunpack.c.h.b16 %v724
    %v2231 = vunpack.c.l.b16 %v725
    %v2232 = vunpack.c.h.b16 %v725
    %v2233 = vunpack.c.l.b16 %v726
    %v2234 = vunpack.c.h.b16 %v726
    %v2235 = vunpack.c.l.b16 %v727
    %v2236 = vunpack.c.h.b16 %v727
    %v2237 = vunpack.c.l.b16 %v728
    %v2238 = vunpack.c.h.b16 %v728
    %v2239 = vunpack.c.l.b16 %v729
    %v2240 = vunpack.c.h.b16 %v729
    %v2241 = vunpack.c.l.b16 %v730
    %v2242 = vunpack.c.h.b16 %v730
    %v2243 = vunpack.c.l.b16 %v731
    %v2244 = vunpack.c.h.b16 %v731
    %v2245 = vunpack.c.l.b16 %v732
    %v2246 = vunpack.c.h.b16 %v732
    %v2247 = vunpack.c.l.b16 %v733
    %v2248 = vunpack.c.h.b16 %v733
    %v2249 = vunpack.c.l.b16 %v734
    %v2250 = vunpack.c.h.b16 %v734
    %v2251 = vunpack.c.l.b16 %v735
    %v2252 = vunpack.c.h.b16 %v735
    %v2253 = vunpack.c.l.b16 %v736
    %v2254 = vunpack.c.h.b16 %v736
    %v2255 = vunpack.c.l.b16 %v737
    %v2256 = vunpack.c.h.b16 %v737
    %v2257 = vunpack.c.l.b16 %v738
    %v2258 = vunpack.c.h.b16 %v738
    %v2259 = vunpack.c.l.b16 %v739
    %v2260 = vunpack.c.h.b16 %v739
    %v2261 = vunpack.c.l.b16 %v740
    %v2262 = vunpack.c.h.b16 %v740
    %v2263 = vunpack.c.l.b16 %v741
    %v2264 = vunpack.c.h.b16 %v741
    %v2265 = vunpack.c.l.b16 %v742
    %v2266 = vunpack.c.h.b16 %v742
    %v2267 = vunpack.c.l.b16 %v743
    %v2268 = vunpack.c.h.b16 %v743
    %v2269 = vunpack.c.l.b16 %v744
    %v2270 = vunpack.c.h.b16 %v744
    %v2271 = vunpack.c.l.b16 %v745
    %v2272 = vunpack.c.h.b16 %v745
    %v2273 = vunpack.c.l.b16 %v746
    %v2274 = vunpack.c.h.b16 %v746
    %v2275 = vunpack.c.l.b16 %v747
    %v2276 = vunpack.c.h.b16 %v747
    %v2277 = vunpack.c.l.b16 %v748
    %v2278 = vunpack.c.h.b16 %v748
    %v2279 = vunpack.c.l.b16 %v749
    %v2280 = vunpack.c.h.b16 %v749
    %v2281 = vunpack.c.l.b16 %v750
    %v2282 = vunpack.c.h.b16 %v750
    %v2283 = vunpack.c.l.b16 %v751
    %v2284 = vunpack.c.h.b16 %v751
    %v2285 = vunpack.c.l.b16 %v752
    %v2286 = vunpack.c.h.b16 %v752
    %v2287 = vunpack.c.l.b16 %v753
    %v2288 = vunpack.c.h.b16 %v753
    %v2289 = vunpack.c.l.b16 %v754
    %v2290 = vunpack.c.h.b16 %v754
    %v2291 = vunpack.c.l.b16 %v755
    %v2292 = vunpack.c.h.b16 %v755
    %v2293 = vunpack.c.l.b16 %v756
    %v2294 = vunpack.c.h.b16 %v756
    %v2295 = vunpack.c.l.b16 %v757
    %v2296 = vunpack.c.h.b16 %v757
    %v2297 = vunpack.c.l.b16 %v758
    %v2298 = vunpack.c.h.b16 %v758
    %v2299 = vunpack.c.l.b16 %v759
    %v2300 = vunpack.c.h.b16 %v759
    %v2301 = vunpack.c.l.b16 %v760
    %v2302 = vunpack.c.h.b16 %v760
    %v2303 = vunpack.c.l.b16 %v761
    %v2304 = vunpack.c.h.b16 %v761
    %v2305 = vunpack.c.l.b16 %v762
    %v2306 = vunpack.c.h.b16 %v762
    %v2307 = vunpack.c.l.b16 %v763
    %v2308 = vunpack.c.h.b16 %v763
    %v2309 = vunpack.c.l.b16 %v764
    %v2310 = vunpack.c.h.b16 %v764
    %v2311 = vunpack.c.l.b16 %v765
    %v2312 = vunpack.c.h.b16 %v765
    %v2313 = vunpack.c.l.b16 %v766
    %v2314 = vunpack.c.h.b16 %v766
    %v2315 = vunpack.c.l.b16 %v767
    %v2316 = vunpack.c.h.b16 %v767
    %v2317 = vunpack.c.l.b16 %v768
    %v2318 = vunpack.c.h.b16 %v768
    %v2319 = vunpack.c.l.b16 %v769
    %v2320 = vunpack.c.h.b16 %v769
    %v2321 = vunpack.c.l.b16 %v770
    %v2322 = vunpack.c.h.b16 %v770
    %v2323 = vunpack.c.l.b16 %v771
    %v2324 = vunpack.c.h.b16 %v771
    %v2325 = vunpack.c.l.b16 %v772
    %v2326 = vunpack.c.h.b16 %v772
    %v2327 = vunpack.c.l.b16 %v773
    %v2328 = vunpack.c.h.b16 %v773
    %v2329 = vunpack.c.l.b16 %v774
    %v2330 = vunpack.c.h.b16 %v774
    %v2331 = vunpack.c.l.b16 %v775
    %v2332 = vunpack.c.h.b16 %v775
    %v2333 = vunpack.c.l.b16 %v776
    %v2334 = vunpack.c.h.b16 %v776
    %v2335 = vunpack.c.l.b16 %v777
    %v2336 = vunpack.c.h.b16 %v777
    %v2337 = vunpack.c.l.b16 %v778
    %v2338 = vunpack.c.h.b16 %v778
    %v2339 = vunpack.c.l.b16 %v779
    %v2340 = vunpack.c.h.b16 %v779
    %v2341 = vunpack.c.l.b16 %v780
    %v2342 = vunpack.c.h.b16 %v780
    %v2343 = vunpack.c.l.b16 %v781
    %v2344 = vunpack.c.h.b16 %v781
    %v2345 = vunpack.c.l.b16 %v782
    %v2346 = vunpack.c.h.b16 %v782
    %v2347 = vunpack.c.l.b16 %v783
    %v2348 = vunpack.c.h.b16 %v783
    %v2349 = vunpack.c.l.b16 %v784
    %v2350 = vunpack.c.h.b16 %v784
    %v2351 = vunpack.c.l.b16 %v785
    %v2352 = vunpack.c.h.b16 %v785
    %v2353 = vunpack.c.l.b16 %v786
    %v2354 = vunpack.c.h.b16 %v786
    %v2355 = vunpack.c.l.b16 %v787
    %v2356 = vunpack.c.h.b16 %v787
    %v2357 = vunpack.c.l.b16 %v788
    %v2358 = vunpack.c.h.b16 %v788
    %v2359 = vunpack.c.l.b16 %v789
    %v2360 = vunpack.c.h.b16 %v789
    %v2361 = vunpack.c.l.b16 %v790
    %v2362 = vunpack.c.h.b16 %v790
    %v2363 = vunpack.c.l.b16 %v791
    %v2364 = vunpack.c.h.b16 %v791
    %v2365 = vunpack.c.l.b16 %v792
    %v2366 = vunpack.c.h.b16 %v792
    %v2367 = vunpack.c.l.b16 %v793
    %v2368 = vunpack.c.h.b16 %v793
    %v2369 = vunpack.c.l.b16 %v794
    %v2370 = vunpack.c.h.b16 %v794
    %v2371 = vunpack.c.l.b16 %v795
    %v2372 = vunpack.c.h.b16 %v795
    %v2373 = vunpack.c.l.b16 %v796
    %v2374 = vunpack.c.h.b16 %v796
    %v2375 = vunpack.c.l.b16 %v797
    %v2376 = vunpack.c.h.b16 %v797
    %v2377 = vunpack.c.l.b16 %v798
    %v2378 = vunpack.c.h.b16 %v798
    %v2379 = vunpack.c.l.b16 %v799
    %v2380 = vunpack.c.h.b16 %v799
    %v2381 = vunpack.c.l.b16 %v800
    %v2382 = vunpack.c.h.b16 %v800
    %v2383 = vunpack.c.l.b16 %v801
    %v2384 = vunpack.c.h.b16 %v801
    %v2385 = vunpack.c.l.b16 %v802
    %v2386 = vunpack.c.h.b16 %v802
    %v2387 = vunpack.c.l.b16 %v803
    %v2388 = vunpack.c.h.b16 %v803
    %v2389 = vunpack.c.l.b16 %v804
    %v2390 = vunpack.c.h.b16 %v804
    %v2391 = vunpack.c.l.b16 %v805
    %v2392 = vunpack.c.h.b16 %v805
    %v2393 = vunpack.c.l.b16 %v806
    %v2394 = vunpack.c.h.b16 %v806
    %v2395 = vunpack.c.l.b16 %v807
    %v2396 = vunpack.c.h.b16 %v807
    %v2397 = vunpack.c.l.b16 %v808
    %v2398 = vunpack.c.h.b16 %v808
    %v2399 = vunpack.c.l.b16 %v809
    %v2400 = vunpack.c.h.b16 %v809
    %v2401 = vunpack.c.l.b16 %v810
    %v2402 = vunpack.c.h.b16 %v810
    %v2403 = vunpack.c.l.b16 %v811
    %v2404 = vunpack.c.h.b16 %v811
    %v2405 = vunpack.c.l.b16 %v812
    %v2406 = vunpack.c.h.b16 %v812
    %v2407 = vunpack.c.l.b16 %v813
    %v2408 = vunpack.c.h.b16 %v813
    %v2409 = vunpack.c.l.b16 %v814
    %v2410 = vunpack.c.h.b16 %v814
    %v2411 = vunpack.c.l.b16 %v815
    %v2412 = vunpack.c.h.b16 %v815
    %v2413 = vunpack.c.l.b16 %v816
    %v2414 = vunpack.c.h.b16 %v816
    %v2415 = vunpack.c.l.b16 %v817
    %v2416 = vunpack.c.h.b16 %v817
    %v2417 = vunpack.c.l.b16 %v818
    %v2418 = vunpack.c.h.b16 %v818
    %v2419 = vunpack.c.l.b16 %v819
    %v2420 = vunpack.c.h.b16 %v819
    %v2421 = vunpack.c.l.b16 %v820
    %v2422 = vunpack.c.h.b16 %v820
    %v2423 = vunpack.c.l.b16 %v821
    %v2424 = vunpack.c.h.b16 %v821
    %v2425 = vunpack.c.l.b16 %v822
    %v2426 = vunpack.c.h.b16 %v822
    %v2427 = vunpack.c.l.b16 %v823
    %v2428 = vunpack.c.h.b16 %v823
    %v2429 = vunpack.c.l.b16 %v824
    %v2430 = vunpack.c.h.b16 %v824
    %v2431 = vunpack.c.l.b16 %v825
    %v2432 = vunpack.c.h.b16 %v825
    %v2433 = vunpack.c.l.b16 %v826
    %v2434 = vunpack.c.h.b16 %v826
    %v2435 = vunpack.c.l.b16 %v827
    %v2436 = vunpack.c.h.b16 %v827
    %v2437 = vunpack.c.l.b16 %v828
    %v2438 = vunpack.c.h.b16 %v828
    %v2439 = vunpack.c.l.b16 %v829
    %v2440 = vunpack.c.h.b16 %v829
    %v2441 = vunpack.c.l.b16 %v830
    %v2442 = vunpack.c.h.b16 %v830
    %v2443 = vpack.c.b16 %v1427, %v1419
    %v2444 = vpack.c.b16 %v1428, %v1420
    %v2445 = vpack.c.b16 %v1429, %v1421
    %v2446 = vpack.c.b16 %v1430, %v1422
    %v2447 = vpack.c.b16 %v1431, %v1423
    %v2448 = vpack.c.b16 %v1432, %v1424
    %v2449 = vpack.c.b16 %v1433, %v1425
    %v2450 = vpack.c.b16 %v1434, %v1426
    %v2451 = vpack.c.b16 %v1443, %v1435
    %v2452 = vpack.c.b16 %v1444, %v1436
    %v2453 = vpack.c.b16 %v1445, %v1437
    %v2454 = vpack.c.b16 %v1446, %v1438
    %v2455 = vpack.c.b16 %v1447, %v1439
    %v2456 = vpack.c.b16 %v1448, %v1440
    %v2457 = vpack.c.b16 %v1449, %v1441
    %v2458 = vpack.c.b16 %v1450, %v1442
    %v2459 = vpack.c.b16 %v1459, %v1451
    %v2460 = vpack.c.b16 %v1460, %v1452
    %v2461 = vpack.c.b16 %v1461, %v1453
    %v2462 = vpack.c.b16 %v1462, %v1454
    %v2463 = vpack.c.b16 %v1463, %v1455
    %v2464 = vpack.c.b16 %v1464, %v1456
    %v2465 = vpack.c.b16 %v1465, %v1457
    %v2466 = vpack.c.b16 %v1466, %v1458
    %v2467 = vpack.c.b16 %v1475, %v1467
    %v2468 = vpack.c.b16 %v1476, %v1468
    %v2469 = vpack.c.b16 %v1477, %v1469
    %v2470 = vpack.c.b16 %v1478, %v1470
    %v2471 = vpack.c.b16 %v1479, %v1471
    %v2472 = vpack.c.b16 %v1480, %v1472
    %v2473 = vpack.c.b16 %v1481, %v1473
    %v2474 = vpack.c.b16 %v1482, %v1474
    %v2475 = vpack.c.b16 %v1491, %v1483
    %v2476 = vpack.c.b16 %v1492, %v1484
    %v2477 = vpack.c.b16 %v1493, %v1485
    %v2478 = vpack.c.b16 %v1494, %v1486
    %v2479 = vpack.c.b16 %v1495, %v1487
    %v2480 = vpack.c.b16 %v1496, %v1488
    %v2481 = vpack.c.b16 %v1497, %v1489
    %v2482 = vpack.c.b16 %v1498, %v1490
    %v2483 = vpack.c.b16 %v1507, %v1499
    %v2484 = vpack.c.b16 %v1508, %v1500
    %v2485 = vpack.c.b16 %v1509, %v1501
    %v2486 = vpack.c.b16 %v1510, %v1502
    %v2487 = vpack.c.b16 %v1511, %v1503
    %v2488 = vpack.c.b16 %v1512, %v1504
    %v2489 = vpack.c.b16 %v1513, %v1505
    %v2490 = vpack.c.b16 %v1514, %v1506
    %v2491 = vpack.c.b16 %v1523, %v1515
    %v2492 = vpack.c.b16 %v1524, %v1516
    %v2493 = vpack.c.b16 %v1525, %v1517
    %v2494 = vpack.c.b16 %v1526, %v1518
    %v2495 = vpack.c.b16 %v1527, %v1519
    %v2496 = vpack.c.b16 %v1528, %v1520
    %v2497 = vpack.c.b16 %v1529, %v1521
    %v2498 = vpack.c.b16 %v1530, %v1522
    %v2499 = vpack.c.b16 %v1539, %v1531
    %v2500 = vpack.c.b16 %v1540, %v1532
    %v2501 = vpack.c.b16 %v1541, %v1533
    %v2502 = vpack.c.b16 %v1542, %v1534
    %v2503 = vpack.c.b16 %v1543, %v1535
    %v2504 = vpack.c.b16 %v1544, %v1536
    %v2505 = vpack.c.b16 %v1545, %v1537
    %v2506 = vpack.c.b16 %v1546, %v1538
    %v2507 = vpack.c.b16 %v1555, %v1547
    %v2508 = vpack.c.b16 %v1556, %v1548
    %v2509 = vpack.c.b16 %v1557, %v1549
    %v2510 = vpack.c.b16 %v1558, %v1550
    %v2511 = vpack.c.b16 %v1559, %v1551
    %v2512 = vpack.c.b16 %v1560, %v1552
    %v2513 = vpack.c.b16 %v1561, %v1553
    %v2514 = vpack.c.b16 %v1562, %v1554
    %v2515 = vpack.c.b16 %v1571, %v1563
    %v2516 = vpack.c.b16 %v1572, %v1564
    %v2517 = vpack.c.b16 %v1573, %v1565
    %v2518 = vpack.c.b16 %v1574, %v1566
    %v2519 = vpack.c.b16 %v1575, %v1567
    %v2520 = vpack.c.b16 %v1576, %v1568
    %v2521 = vpack.c.b16 %v1577, %v1569
    %v2522 = vpack.c.b16 %v1578, %v1570
    %v2523 = vpack.c.b16 %v1587, %v1579
    %v2524 = vpack.c.b16 %v1588, %v1580
    %v2525 = vpack.c.b16 %v1589, %v1581
    %v2526 = vpack.c.b16 %v1590, %v1582
    %v2527 = vpack.c.b16 %v1591, %v1583
    %v2528 = vpack.c.b16 %v1592, %v1584
    %v2529 = vpack.c.b16 %v1593, %v1585
    %v2530 = vpack.c.b16 %v1594, %v1586
    %v2531 = vpack.c.b16 %v1603, %v1595
    %v2532 = vpack.c.b16 %v1604, %v1596
    %v2533 = vpack.c.b16 %v1605, %v1597
    %v2534 = vpack.c.b16 %v1606, %v1598
    %v2535 = vpack.c.b16 %v1607, %v1599
    %v2536 = vpack.c.b16 %v1608, %v1600
    %v2537 = vpack.c.b16 %v1609, %v1601
    %v2538 = vpack.c.b16 %v1610, %v1602
    %v2539 = vpack.c.b16 %v1619, %v1611
    %v2540 = vpack.c.b16 %v1620, %v1612
    %v2541 = vpack.c.b16 %v1621, %v1613
    %v2542 = vpack.c.b16 %v1622, %v1614
    %v2543 = vpack.c.b16 %v1623, %v1615
    %v2544 = vpack.c.b16 %v1624, %v1616
    %v2545 = vpack.c.b16 %v1625, %v1617
    %v2546 = vpack.c.b16 %v1626, %v1618
    %v2547 = vpack.c.b16 %v1635, %v1627
    %v2548 = vpack.c.b16 %v1636, %v1628
    %v2549 = vpack.c.b16 %v1637, %v1629
    %v2550 = vpack.c.b16 %v1638, %v1630
    %v2551 = vpack.c.b16 %v1639, %v1631
    %v2552 = vpack.c.b16 %v1640, %v1632
    %v2553 = vpack.c.b16 %v1641, %v1633
    %v2554 = vpack.c.b16 %v1642, %v1634
    %v2555 = vpack.c.b16 %v1651, %v1643
    %v2556 = vpack.c.b16 %v1652, %v1644
    %v2557 = vpack.c.b16 %v1653, %v1645
    %v2558 = vpack.c.b16 %v1654, %v1646
    %v2559 = vpack.c.b16 %v1655, %v1647
    %v2560 = vpack.c.b16 %v1656, %v1648
    %v2561 = vpack.c.b16 %v1657, %v1649
    %v2562 = vpack.c.b16 %v1658, %v1650
    %v2563 = vpack.c.b16 %v1667, %v1659
    %v2564 = vpack.c.b16 %v1668, %v1660
    %v2565 = vpack.c.b16 %v1669, %v1661
    %v2566 = vpack.c.b16 %v1670, %v1662
    %v2567 = vpack.c.b16 %v1671, %v1663
    %v2568 = vpack.c.b16 %v1672, %v1664
    %v2569 = vpack.c.b16 %v1673, %v1665
    %v2570 = vpack.c.b16 %v1674, %v1666
    %v2571 = vpack.c.b16 %v1683, %v1675
    %v2572 = vpack.c.b16 %v1684, %v1676
    %v2573 = vpack.c.b16 %v1685, %v1677
    %v2574 = vpack.c.b16 %v1686, %v1678
    %v2575 = vpack.c.b16 %v1687, %v1679
    %v2576 = vpack.c.b16 %v1688, %v1680
    %v2577 = vpack.c.b16 %v1689, %v1681
    %v2578 = vpack.c.b16 %v1690, %v1682
    %v2579 = vpack.c.b16 %v1699, %v1691
    %v2580 = vpack.c.b16 %v1700, %v1692
    %v2581 = vpack.c.b16 %v1701, %v1693
    %v2582 = vpack.c.b16 %v1702, %v1694
    %v2583 = vpack.c.b16 %v1703, %v1695
    %v2584 = vpack.c.b16 %v1704, %v1696
    %v2585 = vpack.c.b16 %v1705, %v1697
    %v2586 = vpack.c.b16 %v1706, %v1698
    %v2587 = vpack.c.b16 %v1715, %v1707
    %v2588 = vpack.c.b16 %v1716, %v1708
    %v2589 = vpack.c.b16 %v1717, %v1709
    %v2590 = vpack.c.b16 %v1718, %v1710
    %v2591 = vpack.c.b16 %v1719, %v1711
    %v2592 = vpack.c.b16 %v1720, %v1712
    %v2593 = vpack.c.b16 %v1721, %v1713
    %v2594 = vpack.c.b16 %v1722, %v1714
    %v2595 = vpack.c.b16 %v1731, %v1723
    %v2596 = vpack.c.b16 %v1732, %v1724
    %v2597 = vpack.c.b16 %v1733, %v1725
    %v2598 = vpack.c.b16 %v1734, %v1726
    %v2599 = vpack.c.b16 %v1735, %v1727
    %v2600 = vpack.c.b16 %v1736, %v1728
    %v2601 = vpack.c.b16 %v1737, %v1729
    %v2602 = vpack.c.b16 %v1738, %v1730
    %v2603 = vpack.c.b16 %v1747, %v1739
    %v2604 = vpack.c.b16 %v1748, %v1740
    %v2605 = vpack.c.b16 %v1749, %v1741
    %v2606 = vpack.c.b16 %v1750, %v1742
    %v2607 = vpack.c.b16 %v1751, %v1743
    %v2608 = vpack.c.b16 %v1752, %v1744
    %v2609 = vpack.c.b16 %v1753, %v1745
    %v2610 = vpack.c.b16 %v1754, %v1746
    %v2611 = vpack.c.b16 %v1763, %v1755
    %v2612 = vpack.c.b16 %v1764, %v1756
    %v2613 = vpack.c.b16 %v1765, %v1757
    %v2614 = vpack.c.b16 %v1766, %v1758
    %v2615 = vpack.c.b16 %v1767, %v1759
    %v2616 = vpack.c.b16 %v1768, %v1760
    %v2617 = vpack.c.b16 %v1769, %v1761
    %v2618 = vpack.c.b16 %v1770, %v1762
    %v2619 = vpack.c.b16 %v1779, %v1771
    %v2620 = vpack.c.b16 %v1780, %v1772
    %v2621 = vpack.c.b16 %v1781, %v1773
    %v2622 = vpack.c.b16 %v1782, %v1774
    %v2623 = vpack.c.b16 %v1783, %v1775
    %v2624 = vpack.c.b16 %v1784, %v1776
    %v2625 = vpack.c.b16 %v1785, %v1777
    %v2626 = vpack.c.b16 %v1786, %v1778
    %v2627 = vpack.c.b16 %v1795, %v1787
    %v2628 = vpack.c.b16 %v1796, %v1788
    %v2629 = vpack.c.b16 %v1797, %v1789
    %v2630 = vpack.c.b16 %v1798, %v1790
    %v2631 = vpack.c.b16 %v1799, %v1791
    %v2632 = vpack.c.b16 %v1800, %v1792
    %v2633 = vpack.c.b16 %v1801, %v1793
    %v2634 = vpack.c.b16 %v1802, %v1794
    %v2635 = vpack.c.b16 %v1811, %v1803
    %v2636 = vpack.c.b16 %v1812, %v1804
    %v2637 = vpack.c.b16 %v1813, %v1805
    %v2638 = vpack.c.b16 %v1814, %v1806
    %v2639 = vpack.c.b16 %v1815, %v1807
    %v2640 = vpack.c.b16 %v1816, %v1808
    %v2641 = vpack.c.b16 %v1817, %v1809
    %v2642 = vpack.c.b16 %v1818, %v1810
    %v2643 = vpack.c.b16 %v1827, %v1819
    %v2644 = vpack.c.b16 %v1828, %v1820
    %v2645 = vpack.c.b16 %v1829, %v1821
    %v2646 = vpack.c.b16 %v1830, %v1822
    %v2647 = vpack.c.b16 %v1831, %v1823
    %v2648 = vpack.c.b16 %v1832, %v1824
    %v2649 = vpack.c.b16 %v1833, %v1825
    %v2650 = vpack.c.b16 %v1834, %v1826
    %v2651 = vpack.c.b16 %v1843, %v1835
    %v2652 = vpack.c.b16 %v1844, %v1836
    %v2653 = vpack.c.b16 %v1845, %v1837
    %v2654 = vpack.c.b16 %v1846, %v1838
    %v2655 = vpack.c.b16 %v1847, %v1839
    %v2656 = vpack.c.b16 %v1848, %v1840
    %v2657 = vpack.c.b16 %v1849, %v1841
    %v2658 = vpack.c.b16 %v1850, %v1842
    %v2659 = vpack.c.b16 %v1859, %v1851
    %v2660 = vpack.c.b16 %v1860, %v1852
    %v2661 = vpack.c.b16 %v1861, %v1853
    %v2662 = vpack.c.b16 %v1862, %v1854
    %v2663 = vpack.c.b16 %v1863, %v1855
    %v2664 = vpack.c.b16 %v1864, %v1856
    %v2665 = vpack.c.b16 %v1865, %v1857
    %v2666 = vpack.c.b16 %v1866, %v1858
    %v2667 = vpack.c.b16 %v1875, %v1867
    %v2668 = vpack.c.b16 %v1876, %v1868
    %v2669 = vpack.c.b16 %v1877, %v1869
    %v2670 = vpack.c.b16 %v1878, %v1870
    %v2671 = vpack.c.b16 %v1879, %v1871
    %v2672 = vpack.c.b16 %v1880, %v1872
    %v2673 = vpack.c.b16 %v1881, %v1873
    %v2674 = vpack.c.b16 %v1882, %v1874
    %v2675 = vpack.c.b16 %v1891, %v1883
    %v2676 = vpack.c.b16 %v1892, %v1884
    %v2677 = vpack.c.b16 %v1893, %v1885
    %v2678 = vpack.c.b16 %v1894, %v1886
    %v2679 = vpack.c.b16 %v1895, %v1887
    %v2680 = vpack.c.b16 %v1896, %v1888
    %v2681 = vpack.c.b16 %v1897, %v1889
    %v2682 = vpack.c.b16 %v1898, %v1890
    %v2683 = vpack.c.b16 %v1907, %v1899
    %v2684 = vpack.c.b16 %v1908, %v1900
    %v2685 = vpack.c.b16 %v1909, %v1901
    %v2686 = vpack.c.b16 %v1910, %v1902
    %v2687 = vpack.c.b16 %v1911, %v1903
    %v2688 = vpack.c.b16 %v1912, %v1904
    %v2689 = vpack.c.b16 %v1913, %v1905
    %v2690 = vpack.c.b16 %v1914, %v1906
    %v2691 = vpack.c.b16 %v1923, %v1915
    %v2692 = vpack.c.b16 %v1924, %v1916
    %v2693 = vpack.c.b16 %v1925, %v1917
    %v2694 = vpack.c.b16 %v1926, %v1918
    %v2695 = vpack.c.b16 %v1927, %v1919
    %v2696 = vpack.c.b16 %v1928, %v1920
    %v2697 = vpack.c.b16 %v1929, %v1921
    %v2698 = vpack.c.b16 %v1930, %v1922
    %v2699 = vpack.c.b16 %v1939, %v1931
    %v2700 = vpack.c.b16 %v1940, %v1932
    %v2701 = vpack.c.b16 %v1941, %v1933
    %v2702 = vpack.c.b16 %v1942, %v1934
    %v2703 = vpack.c.b16 %v1943, %v1935
    %v2704 = vpack.c.b16 %v1944, %v1936
    %v2705 = vpack.c.b16 %v1945, %v1937
    %v2706 = vpack.c.b16 %v1946, %v1938
    %v2707 = vpack.c.b16 %v1955, %v1947
    %v2708 = vpack.c.b16 %v1956, %v1948
    %v2709 = vpack.c.b16 %v1957, %v1949
    %v2710 = vpack.c.b16 %v1958, %v1950
    %v2711 = vpack.c.b16 %v1959, %v1951
    %v2712 = vpack.c.b16 %v1960, %v1952
    %v2713 = vpack.c.b16 %v1961, %v1953
    %v2714 = vpack.c.b16 %v1962, %v1954
    %v2715 = vpack.c.b16 %v1971, %v1963
    %v2716 = vpack.c.b16 %v1972, %v1964
    %v2717 = vpack.c.b16 %v1973, %v1965
    %v2718 = vpack.c.b16 %v1974, %v1966
    %v2719 = vpack.c.b16 %v1975, %v1967
    %v2720 = vpack.c.b16 %v1976, %v1968
    %v2721 = vpack.c.b16 %v1977, %v1969
    %v2722 = vpack.c.b16 %v1978, %v1970
    %v2723 = vpack.c.b16 %v1987, %v1979
    %v2724 = vpack.c.b16 %v1988, %v1980
    %v2725 = vpack.c.b16 %v1989, %v1981
    %v2726 = vpack.c.b16 %v1990, %v1982
    %v2727 = vpack.c.b16 %v1991, %v1983
    %v2728 = vpack.c.b16 %v1992, %v1984
    %v2729 = vpack.c.b16 %v1993, %v1985
    %v2730 = vpack.c.b16 %v1994, %v1986
    %v2731 = vpack.c.b16 %v2003, %v1995
    %v2732 = vpack.c.b16 %v2004, %v1996
    %v2733 = vpack.c.b16 %v2005, %v1997
    %v2734 = vpack.c.b16 %v2006, %v1998
    %v2735 = vpack.c.b16 %v2007, %v1999
    %v2736 = vpack.c.b16 %v2008, %v2000
    %v2737 = vpack.c.b16 %v2009, %v2001
    %v2738 = vpack.c.b16 %v2010, %v2002
    %v2739 = vpack.c.b16 %v2019, %v2011
    %v2740 = vpack.c.b16 %v2020, %v2012
    %v2741 = vpack.c.b16 %v2021, %v2013
    %v2742 = vpack.c.b16 %v2022, %v2014
    %v2743 = vpack.c.b16 %v2023, %v2015
    %v2744 = vpack.c.b16 %v2024, %v2016
    %v2745 = vpack.c.b16 %v2025, %v2017
    %v2746 = vpack.c.b16 %v2026, %v2018
    %v2747 = vpack.c.b16 %v2035, %v2027
    %v2748 = vpack.c.b16 %v2036, %v2028
    %v2749 = vpack.c.b16 %v2037, %v2029
    %v2750 = vpack.c.b16 %v2038, %v2030
    %v2751 = vpack.c.b16 %v2039, %v2031
    %v2752 = vpack.c.b16 %v2040, %v2032
    %v2753 = vpack.c.b16 %v2041, %v2033
    %v2754 = vpack.c.b16 %v2042, %v2034
    %v2755 = vpack.c.b16 %v2051, %v2043
    %v2756 = vpack.c.b16 %v2052, %v2044
    %v2757 = vpack.c.b16 %v2053, %v2045
    %v2758 = vpack.c.b16 %v2054, %v2046
    %v2759 = vpack.c.b16 %v2055, %v2047
    %v2760 = vpack.c.b16 %v2056, %v2048
    %v2761 = vpack.c.b16 %v2057, %v2049
    %v2762 = vpack.c.b16 %v2058, %v2050
    %v2763 = vpack.c.b16 %v2067, %v2059
    %v2764 = vpack.c.b16 %v2068, %v2060
    %v2765 = vpack.c.b16 %v2069, %v2061
    %v2766 = vpack.c.b16 %v2070, %v2062
    %v2767 = vpack.c.b16 %v2071, %v2063
    %v2768 = vpack.c.b16 %v2072, %v2064
    %v2769 = vpack.c.b16 %v2073, %v2065
    %v2770 = vpack.c.b16 %v2074, %v2066
    %v2771 = vpack.c.b16 %v2083, %v2075
    %v2772 = vpack.c.b16 %v2084, %v2076
    %v2773 = vpack.c.b16 %v2085, %v2077
    %v2774 = vpack.c.b16 %v2086, %v2078
    %v2775 = vpack.c.b16 %v2087, %v2079
    %v2776 = vpack.c.b16 %v2088, %v2080
    %v2777 = vpack.c.b16 %v2089, %v2081
    %v2778 = vpack.c.b16 %v2090, %v2082
    %v2779 = vpack.c.b16 %v2099, %v2091
    %v2780 = vpack.c.b16 %v2100, %v2092
    %v2781 = vpack.c.b16 %v2101, %v2093
    %v2782 = vpack.c.b16 %v2102, %v2094
    %v2783 = vpack.c.b16 %v2103, %v2095
    %v2784 = vpack.c.b16 %v2104, %v2096
    %v2785 = vpack.c.b16 %v2105, %v2097
    %v2786 = vpack.c.b16 %v2106, %v2098
    %v2787 = vpack.c.b16 %v2115, %v2107
    %v2788 = vpack.c.b16 %v2116, %v2108
    %v2789 = vpack.c.b16 %v2117, %v2109
    %v2790 = vpack.c.b16 %v2118, %v2110
    %v2791 = vpack.c.b16 %v2119, %v2111
    %v2792 = vpack.c.b16 %v2120, %v2112
    %v2793 = vpack.c.b16 %v2121, %v2113
    %v2794 = vpack.c.b16 %v2122, %v2114
    %v2795 = vpack.c.b16 %v2131, %v2123
    %v2796 = vpack.c.b16 %v2132, %v2124
    %v2797 = vpack.c.b16 %v2133, %v2125
    %v2798 = vpack.c.b16 %v2134, %v2126
    %v2799 = vpack.c.b16 %v2135, %v2127
    %v2800 = vpack.c.b16 %v2136, %v2128
    %v2801 = vpack.c.b16 %v2137, %v2129
    %v2802 = vpack.c.b16 %v2138, %v2130
    %v2803 = vpack.c.b16 %v2147, %v2139
    %v2804 = vpack.c.b16 %v2148, %v2140
    %v2805 = vpack.c.b16 %v2149, %v2141
    %v2806 = vpack.c.b16 %v2150, %v2142
    %v2807 = vpack.c.b16 %v2151, %v2143
    %v2808 = vpack.c.b16 %v2152, %v2144
    %v2809 = vpack.c.b16 %v2153, %v2145
    %v2810 = vpack.c.b16 %v2154, %v2146
    %v2811 = vpack.c.b16 %v2163, %v2155
    %v2812 = vpack.c.b16 %v2164, %v2156
    %v2813 = vpack.c.b16 %v2165, %v2157
    %v2814 = vpack.c.b16 %v2166, %v2158
    %v2815 = vpack.c.b16 %v2167, %v2159
    %v2816 = vpack.c.b16 %v2168, %v2160
    %v2817 = vpack.c.b16 %v2169, %v2161
    %v2818 = vpack.c.b16 %v2170, %v2162
    %v2819 = vpack.c.b16 %v2179, %v2171
    %v2820 = vpack.c.b16 %v2180, %v2172
    %v2821 = vpack.c.b16 %v2181, %v2173
    %v2822 = vpack.c.b16 %v2182, %v2174
    %v2823 = vpack.c.b16 %v2183, %v2175
    %v2824 = vpack.c.b16 %v2184, %v2176
    %v2825 = vpack.c.b16 %v2185, %v2177
    %v2826 = vpack.c.b16 %v2186, %v2178
    %v2827 = vpack.c.b16 %v2195, %v2187
    %v2828 = vpack.c.b16 %v2196, %v2188
    %v2829 = vpack.c.b16 %v2197, %v2189
    %v2830 = vpack.c.b16 %v2198, %v2190
    %v2831 = vpack.c.b16 %v2199, %v2191
    %v2832 = vpack.c.b16 %v2200, %v2192
    %v2833 = vpack.c.b16 %v2201, %v2193
    %v2834 = vpack.c.b16 %v2202, %v2194
    %v2835 = vpack.c.b16 %v2211, %v2203
    %v2836 = vpack.c.b16 %v2212, %v2204
    %v2837 = vpack.c.b16 %v2213, %v2205
    %v2838 = vpack.c.b16 %v2214, %v2206
    %v2839 = vpack.c.b16 %v2215, %v2207
    %v2840 = vpack.c.b16 %v2216, %v2208
    %v2841 = vpack.c.b16 %v2217, %v2209
    %v2842 = vpack.c.b16 %v2218, %v2210
    %v2843 = vpack.c.b16 %v2227, %v2219
    %v2844 = vpack.c.b16 %v2228, %v2220
    %v2845 = vpack.c.b16 %v2229, %v2221
    %v2846 = vpack.c.b16 %v2230, %v2222
    %v2847 = vpack.c.b16 %v2231, %v2223
    %v2848 = vpack.c.b16 %v2232, %v2224
    %v2849 = vpack.c.b16 %v2233, %v2225
    %v2850 = vpack.c.b16 %v2234, %v2226
    %v2851 = vpack.c.b16 %v2243, %v2235
    %v2852 = vpack.c.b16 %v2244, %v2236
    %v2853 = vpack.c.b16 %v2245, %v2237
    %v2854 = vpack.c.b16 %v2246, %v2238
    %v2855 = vpack.c.b16 %v2247, %v2239
    %v2856 = vpack.c.b16 %v2248, %v2240
    %v2857 = vpack.c.b16 %v2249, %v2241
    %v2858 = vpack.c.b16 %v2250, %v2242
    %v2859 = vpack.c.b16 %v2259, %v2251
    %v2860 = vpack.c.b16 %v2260, %v2252
    %v2861 = vpack.c.b16 %v2261, %v2253
    %v2862 = vpack.c.b16 %v2262, %v2254
    %v2863 = vpack.c.b16 %v2263, %v2255
    %v2864 = vpack.c.b16 %v2264, %v2256
    %v2865 = vpack.c.b16 %v2265, %v2257
    %v2866 = vpack.c.b16 %v2266, %v2258
    %v2867 = vpack.c.b16 %v2275, %v2267
    %v2868 = vpack.c.b16 %v2276, %v2268
    %v2869 = vpack.c.b16 %v2277, %v2269
    %v2870 = vpack.c.b16 %v2278, %v2270
    %v2871 = vpack.c.b16 %v2279, %v2271
    %v2872 = vpack.c.b16 %v2280, %v2272
    %v2873 = vpack.c.b16 %v2281, %v2273
    %v2874 = vpack.c.b16 %v2282, %v2274
    %v2875 = vpack.c.b16 %v2291, %v2283
    %v2876 = vpack.c.b16 %v2292, %v2284
    %v2877 = vpack.c.b16 %v2293, %v2285
    %v2878 = vpack.c.b16 %v2294, %v2286
    %v2879 = vpack.c.b16 %v2295, %v2287
    %v2880 = vpack.c.b16 %v2296, %v2288
    %v2881 = vpack.c.b16 %v2297, %v2289
    %v2882 = vpack.c.b16 %v2298, %v2290
    %v2883 = vpack.c.b16 %v2307, %v2299
    %v2884 = vpack.c.b16 %v2308, %v2300
    %v2885 = vpack.c.b16 %v2309, %v2301
    %v2886 = vpack.c.b16 %v2310, %v2302
    %v2887 = vpack.c.b16 %v2311, %v2303
    %v2888 = vpack.c.b16 %v2312, %v2304
    %v2889 = vpack.c.b16 %v2313, %v2305
    %v2890 = vpack.c.b16 %v2314, %v2306
    %v2891 = vpack.c.b16 %v2323, %v2315
    %v2892 = vpack.c.b16 %v2324, %v2316
    %v2893 = vpack.c.b16 %v2325, %v2317
    %v2894 = vpack.c.b16 %v2326, %v2318
    %v2895 = vpack.c.b16 %v2327, %v2319
    %v2896 = vpack.c.b16 %v2328, %v2320
    %v2897 = vpack.c.b16 %v2329, %v2321
    %v2898 = vpack.c.b16 %v2330, %v2322
    %v2899 = vpack.c.b16 %v2339, %v2331
    %v2900 = vpack.c.b16 %v2340, %v2332
    %v2901 = vpack.c.b16 %v2341, %v2333
    %v2902 = vpack.c.b16 %v2342, %v2334
    %v2903 = vpack.c.b16 %v2343, %v2335
    %v2904 = vpack.c.b16 %v2344, %v2336
    %v2905 = vpack.c.b16 %v2345, %v2337
    %v2906 = vpack.c.b16 %v2346, %v2338
    %v2907 = vpack.c.b16 %v2355, %v2347
    %v2908 = vpack.c.b16 %v2356, %v2348
    %v2909 = vpack.c.b16 %v2357, %v2349
    %v2910 = vpack.c.b16 %v2358, %v2350
    %v2911 = vpack.c.b16 %v2359, %v2351
    %v2912 = vpack.c.b16 %v2360, %v2352
    %v2913 = vpack.c.b16 %v2361, %v2353
    %v2914 = vpack.c.b16 %v2362, %v2354
    %v2915 = vpack.c.b16 %v2371, %v2363
    %v2916 = vpack.c.b16 %v2372, %v2364
    %v2917 = vpack.c.b16 %v2373, %v2365
    %v2918 = vpack.c.b16 %v2374, %v2366
    %v2919 = vpack.c.b16 %v2375, %v2367
    %v2920 = vpack.c.b16 %v2376, %v2368
    %v2921 = vpack.c.b16 %v2377, %v2369
    %v2922 = vpack.c.b16 %v2378, %v2370
    %v2923 = vpack.c.b16 %v2387, %v2379
    %v2924 = vpack.c.b16 %v2388, %v2380
    %v2925 = vpack.c.b16 %v2389, %v2381
    %v2926 = vpack.c.b16 %v2390, %v2382
    %v2927 = vpack.c.b16 %v2391, %v2383
    %v2928 = vpack.c.b16 %v2392, %v2384
    %v2929 = vpack.c.b16 %v2393, %v2385
    %v2930 = vpack.c.b16 %v2394, %v2386
    %v2931 = vpack.c.b16 %v2403, %v2395
    %v2932 = vpack.c.b16 %v2404, %v2396
    %v2933 = vpack.c.b16 %v2405, %v2397
    %v2934 = vpack.c.b16 %v2406, %v2398
    %v2935 = vpack.c.b16 %v2407, %v2399
    %v2936 = vpack.c.b16 %v2408, %v2400
    %v2937 = vpack.c.b16 %v2409, %v2401
    %v2938 = vpack.c.b16 %v2410, %v2402
    %v2939 = vpack.c.b16 %v2419, %v2411
    %v2940 = vpack.c.b16 %v2420, %v2412
    %v2941 = vpack.c.b16 %v2421, %v2413
    %v2942 = vpack.c.b16 %v2422, %v2414
    %v2943 = vpack.c.b16 %v2423, %v2415
    %v2944 = vpack.c.b16 %v2424, %v2416
    %v2945 = vpack.c.b16 %v2425, %v2417
    %v2946 = vpack.c.b16 %v2426, %v2418
    %v2947 = vpack.c.b16 %v2435, %v2427
    %v2948 = vpack.c.b16 %v2436, %v2428
    %v2949 = vpack.c.b16 %v2437, %v2429
    %v2950 = vpack.c.b16 %v2438, %v2430
    %v2951 = vpack.c.b16 %v2439, %v2431
    %v2952 = vpack.c.b16 %v2440, %v2432
    %v2953 = vpack.c.b16 %v2441, %v2433
    %v2954 = vpack.c.b16 %v2442, %v2434
    %3467 = vmatprep.subr.bf16.mxu0 %v2500
    %3468 = vmatpush1.bf16.msra.mxu0 %v2499
    %3469 = vmatprep.subr.bf16.mxu0 %v2492
    %3470 = vmatpush1.bf16.msra.mxu0 %v2491
    %3471 = vmatprep.subr.bf16.mxu0 %v2484
    %3472 = vmatpush1.bf16.msra.mxu0 %v2483
    %3473 = vmatprep.subr.bf16.mxu0 %v2476
    %3474 = vmatpush1.bf16.msra.mxu0 %v2475
    %3475 = vmatprep.subr.bf16.mxu0 %v2468
    %3476 = vmatpush1.bf16.msra.mxu0 %v2467
    %3477 = vmatprep.subr.bf16.mxu0 %v2460
    %3478 = vmatpush1.bf16.msra.mxu0 %v2459
    %3479 = vmatprep.subr.bf16.mxu0 %v2452
    %3480 = vmatpush1.bf16.msra.mxu0 %v2451
    %3481 = vmatprep.subr.bf16.mxu0 %v2444
    %3482 = vmatpush1.bf16.msra.mxu0 %v2443
    %3483 = vmatprep.subr.bf16.mxu0 %v2564
    %3484 = vmatpush2.bf16.msra.mxu0 %v2563
    %3485 = vmatprep.subr.bf16.mxu0 %v2556
    %3486 = vmatpush2.bf16.msra.mxu0 %v2555
    %3487 = vmatprep.subr.bf16.mxu0 %v2548
    %3488 = vmatpush2.bf16.msra.mxu0 %v2547
    %3489 = vmatprep.subr.bf16.mxu0 %v2540
    %3490 = vmatpush2.bf16.msra.mxu0 %v2539
    %3491 = vmatprep.subr.bf16.mxu0 %v2532
    %3492 = vmatpush2.bf16.msra.mxu0 %v2531
    %3493 = vmatprep.subr.bf16.mxu0 %v2524
    %3494 = vmatpush2.bf16.msra.mxu0 %v2523
    %3495 = vmatprep.subr.bf16.mxu0 %v2516
    %3496 = vmatpush2.bf16.msra.mxu0 %v2515
    %3497 = vmatprep.subr.bf16.mxu0 %v2508
    %3498 = vmatpush2.bf16.msra.mxu0 %v2507
    %3499 = vmatprep.mubr.bf16.mxu0 %v312
    %3500 = vmatmul.mubr.bf16.gmra.mxu0 %v311
    %v3501 = vpop.f32.mrf.mxu0
    %v3502 = vadd.f32 %v878, %v3501
    %v3503 = vpop.f32.mrf.mxu0
    %v3504 = vadd.f32 %v882, %v3503
    %v3505 = vpop.f32.mrf.mxu0
    %v3506 = vpop.f32.mrf.mxu0
    %3507 = vdwg.mxu0
    %3508 = vmatprep.subr.bf16.mxu0 %v2628
    %3509 = vmatpush1.bf16.msra.mxu0 %v2627
    %3510 = vmatprep.subr.bf16.mxu0 %v2620
    %3511 = vmatpush1.bf16.msra.mxu0 %v2619
    %3512 = vmatprep.subr.bf16.mxu0 %v2612
    %3513 = vmatpush1.bf16.msra.mxu0 %v2611
    %3514 = vmatprep.subr.bf16.mxu0 %v2604
    %3515 = vmatpush1.bf16.msra.mxu0 %v2603
    %3516 = vmatprep.subr.bf16.mxu0 %v2596
    %3517 = vmatpush1.bf16.msra.mxu0 %v2595
    %3518 = vmatprep.subr.bf16.mxu0 %v2588
    %3519 = vmatpush1.bf16.msra.mxu0 %v2587
    %3520 = vmatprep.subr.bf16.mxu0 %v2580
    %3521 = vmatpush1.bf16.msra.mxu0 %v2579
    %3522 = vmatprep.subr.bf16.mxu0 %v2572
    %3523 = vmatpush1.bf16.msra.mxu0 %v2571
    %3524 = vmatprep.subr.bf16.mxu0 %v2692
    %3525 = vmatpush2.bf16.msra.mxu0 %v2691
    %3526 = vmatprep.subr.bf16.mxu0 %v2684
    %3527 = vmatpush2.bf16.msra.mxu0 %v2683
    %3528 = vmatprep.subr.bf16.mxu0 %v2676
    %3529 = vmatpush2.bf16.msra.mxu0 %v2675
    %3530 = vmatprep.subr.bf16.mxu0 %v2668
    %3531 = vmatpush2.bf16.msra.mxu0 %v2667
    %3532 = vmatprep.subr.bf16.mxu0 %v2660
    %3533 = vmatpush2.bf16.msra.mxu0 %v2659
    %3534 = vmatprep.subr.bf16.mxu0 %v2652
    %3535 = vmatpush2.bf16.msra.mxu0 %v2651
    %3536 = vmatprep.subr.bf16.mxu0 %v2644
    %3537 = vmatpush2.bf16.msra.mxu0 %v2643
    %3538 = vmatprep.subr.bf16.mxu0 %v2636
    %3539 = vmatpush2.bf16.msra.mxu0 %v2635
    %3540 = vmatprep.mubr.bf16.mxu0 %v314
    %3541 = vmatmul.mubr.bf16.gmra.mxu0 %v313
    %v3542 = vpop.f32.mrf.mxu0
    %v3543 = vadd.f32 %v3502, %v3542
    %v3544 = vpop.f32.mrf.mxu0
    %v3545 = vadd.f32 %v3504, %v3544
    %v3546 = vpop.f32.mrf.mxu0
    %v3547 = vpop.f32.mrf.mxu0
    %3548 = vdwg.mxu0
    %3549 = vmatprep.subr.bf16.mxu0 %v2756
    %3550 = vmatpush1.bf16.msra.mxu0 %v2755
    %3551 = vmatprep.subr.bf16.mxu0 %v2748
    %3552 = vmatpush1.bf16.msra.mxu0 %v2747
    %3553 = vmatprep.subr.bf16.mxu0 %v2740
    %3554 = vmatpush1.bf16.msra.mxu0 %v2739
    %3555 = vmatprep.subr.bf16.mxu0 %v2732
    %3556 = vmatpush1.bf16.msra.mxu0 %v2731
    %3557 = vmatprep.subr.bf16.mxu0 %v2724
    %3558 = vmatpush1.bf16.msra.mxu0 %v2723
    %3559 = vmatprep.subr.bf16.mxu0 %v2716
    %3560 = vmatpush1.bf16.msra.mxu0 %v2715
    %3561 = vmatprep.subr.bf16.mxu0 %v2708
    %3562 = vmatpush1.bf16.msra.mxu0 %v2707
    %3563 = vmatprep.subr.bf16.mxu0 %v2700
    %3564 = vmatpush1.bf16.msra.mxu0 %v2699
    %3565 = vmatprep.subr.bf16.mxu0 %v2820
    %3566 = vmatpush2.bf16.msra.mxu0 %v2819
    %3567 = vmatprep.subr.bf16.mxu0 %v2812
    %3568 = vmatpush2.bf16.msra.mxu0 %v2811
    %3569 = vmatprep.subr.bf16.mxu0 %v2804
    %3570 = vmatpush2.bf16.msra.mxu0 %v2803
    %3571 = vmatprep.subr.bf16.mxu0 %v2796
    %3572 = vmatpush2.bf16.msra.mxu0 %v2795
    %3573 = vmatprep.subr.bf16.mxu0 %v2788
    %3574 = vmatpush2.bf16.msra.mxu0 %v2787
    %3575 = vmatprep.subr.bf16.mxu0 %v2780
    %3576 = vmatpush2.bf16.msra.mxu0 %v2779
    %3577 = vmatprep.subr.bf16.mxu0 %v2772
    %3578 = vmatpush2.bf16.msra.mxu0 %v2771
    %3579 = vmatprep.subr.bf16.mxu0 %v2764
    %3580 = vmatpush2.bf16.msra.mxu0 %v2763
    %3581 = vmatprep.mubr.bf16.mxu0 %v316
    %3582 = vmatmul.mubr.bf16.gmra.mxu0 %v315
    %v3583 = vpop.f32.mrf.mxu0
    %v3584 = vadd.f32 %v3543, %v3583
    %v3585 = vpop.f32.mrf.mxu0
    %v3586 = vadd.f32 %v3545, %v3585
    %v3587 = vpop.f32.mrf.mxu0
    %v3588 = vpop.f32.mrf.mxu0
    %3589 = vdwg.mxu0
    %3590 = vmatprep.subr.bf16.mxu0 %v2884
    %3591 = vmatpush1.bf16.msra.mxu0 %v2883
    %3592 = vmatprep.subr.bf16.mxu0 %v2876
    %3593 = vmatpush1.bf16.msra.mxu0 %v2875
    %3594 = vmatprep.subr.bf16.mxu0 %v2868
    %3595 = vmatpush1.bf16.msra.mxu0 %v2867
    %3596 = vmatprep.subr.bf16.mxu0 %v2860
    %3597 = vmatpush1.bf16.msra.mxu0 %v2859
    %3598 = vmatprep.subr.bf16.mxu0 %v2852
    %3599 = vmatpush1.bf16.msra.mxu0 %v2851
    %3600 = vmatprep.subr.bf16.mxu0 %v2844
    %3601 = vmatpush1.bf16.msra.mxu0 %v2843
    %3602 = vmatprep.subr.bf16.mxu0 %v2836
    %3603 = vmatpush1.bf16.msra.mxu0 %v2835
    %3604 = vmatprep.subr.bf16.mxu0 %v2828
    %3605 = vmatpush1.bf16.msra.mxu0 %v2827
    %3606 = vmatprep.subr.bf16.mxu0 %v2948
    %3607 = vmatpush2.bf16.msra.mxu0 %v2947
    %3608 = vmatprep.subr.bf16.mxu0 %v2940
    %3609 = vmatpush2.bf16.msra.mxu0 %v2939
    %3610 = vmatprep.subr.bf16.mxu0 %v2932
    %3611 = vmatpush2.bf16.msra.mxu0 %v2931
    %3612 = vmatprep.subr.bf16.mxu0 %v2924
    %3613 = vmatpush2.bf16.msra.mxu0 %v2923
    %3614 = vmatprep.subr.bf16.mxu0 %v2916
    %3615 = vmatpush2.bf16.msra.mxu0 %v2915
    %3616 = vmatprep.subr.bf16.mxu0 %v2908
    %3617 = vmatpush2.bf16.msra.mxu0 %v2907
    %3618 = vmatprep.subr.bf16.mxu0 %v2900
    %3619 = vmatpush2.bf16.msra.mxu0 %v2899
    %3620 = vmatprep.subr.bf16.mxu0 %v2892
    %3621 = vmatpush2.bf16.msra.mxu0 %v2891
    %3622 = vmatprep.mubr.bf16.mxu0 %v318
    %3623 = vmatmul.mubr.bf16.gmra.mxu0 %v317
    %v3624 = vpop.f32.mrf.mxu0
    %v3625 = vadd.f32 %v3584, %v3624
    %v3626 = vpop.f32.mrf.mxu0
    %v3627 = vadd.f32 %v3586, %v3626
    %v3628 = vpop.f32.mrf.mxu0
    %v3629 = vpop.f32.mrf.mxu0
    %3630 = vdwg.mxu0
    %3631 = vmatprep.subr.bf16.mxu0 %v2502
    %3632 = vmatpush1.bf16.msra.mxu0 %v2501
    %3633 = vmatprep.subr.bf16.mxu0 %v2494
    %3634 = vmatpush1.bf16.msra.mxu0 %v2493
    %3635 = vmatprep.subr.bf16.mxu0 %v2486
    %3636 = vmatpush1.bf16.msra.mxu0 %v2485
    %3637 = vmatprep.subr.bf16.mxu0 %v2478
    %3638 = vmatpush1.bf16.msra.mxu0 %v2477
    %3639 = vmatprep.subr.bf16.mxu0 %v2470
    %3640 = vmatpush1.bf16.msra.mxu0 %v2469
    %3641 = vmatprep.subr.bf16.mxu0 %v2462
    %3642 = vmatpush1.bf16.msra.mxu0 %v2461
    %3643 = vmatprep.subr.bf16.mxu0 %v2454
    %3644 = vmatpush1.bf16.msra.mxu0 %v2453
    %3645 = vmatprep.subr.bf16.mxu0 %v2446
    %3646 = vmatpush1.bf16.msra.mxu0 %v2445
    %3647 = vmatprep.subr.bf16.mxu0 %v2566
    %3648 = vmatpush2.bf16.msra.mxu0 %v2565
    %3649 = vmatprep.subr.bf16.mxu0 %v2558
    %3650 = vmatpush2.bf16.msra.mxu0 %v2557
    %3651 = vmatprep.subr.bf16.mxu0 %v2550
    %3652 = vmatpush2.bf16.msra.mxu0 %v2549
    %3653 = vmatprep.subr.bf16.mxu0 %v2542
    %3654 = vmatpush2.bf16.msra.mxu0 %v2541
    %3655 = vmatprep.subr.bf16.mxu0 %v2534
    %3656 = vmatpush2.bf16.msra.mxu0 %v2533
    %3657 = vmatprep.subr.bf16.mxu0 %v2526
    %3658 = vmatpush2.bf16.msra.mxu0 %v2525
    %3659 = vmatprep.subr.bf16.mxu0 %v2518
    %3660 = vmatpush2.bf16.msra.mxu0 %v2517
    %3661 = vmatprep.subr.bf16.mxu0 %v2510
    %3662 = vmatpush2.bf16.msra.mxu0 %v2509
    %3663 = vmatprep.mubr.bf16.mxu0 %v312
    %3664 = vmatmul.mubr.bf16.gmra.mxu0 %v311
    %v3665 = vpop.f32.mrf.mxu0
    %v3666 = vadd.f32 %v886, %v3665
    %v3667 = vpop.f32.mrf.mxu0
    %v3668 = vadd.f32 %v890, %v3667
    %v3669 = vpop.f32.mrf.mxu0
    %v3670 = vpop.f32.mrf.mxu0
    %3671 = vdwg.mxu0
    %3672 = vmatprep.subr.bf16.mxu0 %v2630
    %3673 = vmatpush1.bf16.msra.mxu0 %v2629
    %3674 = vmatprep.subr.bf16.mxu0 %v2622
    %3675 = vmatpush1.bf16.msra.mxu0 %v2621
    %3676 = vmatprep.subr.bf16.mxu0 %v2614
    %3677 = vmatpush1.bf16.msra.mxu0 %v2613
    %3678 = vmatprep.subr.bf16.mxu0 %v2606
    %3679 = vmatpush1.bf16.msra.mxu0 %v2605
    %3680 = vmatprep.subr.bf16.mxu0 %v2598
    %3681 = vmatpush1.bf16.msra.mxu0 %v2597
    %3682 = vmatprep.subr.bf16.mxu0 %v2590
    %3683 = vmatpush1.bf16.msra.mxu0 %v2589
    %3684 = vmatprep.subr.bf16.mxu0 %v2582
    %3685 = vmatpush1.bf16.msra.mxu0 %v2581
    %3686 = vmatprep.subr.bf16.mxu0 %v2574
    %3687 = vmatpush1.bf16.msra.mxu0 %v2573
    %3688 = vmatprep.subr.bf16.mxu0 %v2694
    %3689 = vmatpush2.bf16.msra.mxu0 %v2693
    %3690 = vmatprep.subr.bf16.mxu0 %v2686
    %3691 = vmatpush2.bf16.msra.mxu0 %v2685
    %3692 = vmatprep.subr.bf16.mxu0 %v2678
    %3693 = vmatpush2.bf16.msra.mxu0 %v2677
    %3694 = vmatprep.subr.bf16.mxu0 %v2670
    %3695 = vmatpush2.bf16.msra.mxu0 %v2669
    %3696 = vmatprep.subr.bf16.mxu0 %v2662
    %3697 = vmatpush2.bf16.msra.mxu0 %v2661
    %3698 = vmatprep.subr.bf16.mxu0 %v2654
    %3699 = vmatpush2.bf16.msra.mxu0 %v2653
    %3700 = vmatprep.subr.bf16.mxu0 %v2646
    %3701 = vmatpush2.bf16.msra.mxu0 %v2645
    %3702 = vmatprep.subr.bf16.mxu0 %v2638
    %3703 = vmatpush2.bf16.msra.mxu0 %v2637
    %3704 = vmatprep.mubr.bf16.mxu0 %v314
    %3705 = vmatmul.mubr.bf16.gmra.mxu0 %v313
    %v3706 = vpop.f32.mrf.mxu0
    %v3707 = vadd.f32 %v3666, %v3706
    %v3708 = vpop.f32.mrf.mxu0
    %v3709 = vadd.f32 %v3668, %v3708
    %v3710 = vpop.f32.mrf.mxu0
    %v3711 = vpop.f32.mrf.mxu0
    %3712 = vdwg.mxu0
    %3713 = vmatprep.subr.bf16.mxu0 %v2758
    %3714 = vmatpush1.bf16.msra.mxu0 %v2757
    %3715 = vmatprep.subr.bf16.mxu0 %v2750
    %3716 = vmatpush1.bf16.msra.mxu0 %v2749
    %3717 = vmatprep.subr.bf16.mxu0 %v2742
    %3718 = vmatpush1.bf16.msra.mxu0 %v2741
    %3719 = vmatprep.subr.bf16.mxu0 %v2734
    %3720 = vmatpush1.bf16.msra.mxu0 %v2733
    %3721 = vmatprep.subr.bf16.mxu0 %v2726
    %3722 = vmatpush1.bf16.msra.mxu0 %v2725
    %3723 = vmatprep.subr.bf16.mxu0 %v2718
    %3724 = vmatpush1.bf16.msra.mxu0 %v2717
    %3725 = vmatprep.subr.bf16.mxu0 %v2710
    %3726 = vmatpush1.bf16.msra.mxu0 %v2709
    %3727 = vmatprep.subr.bf16.mxu0 %v2702
    %3728 = vmatpush1.bf16.msra.mxu0 %v2701
    %3729 = vmatprep.subr.bf16.mxu0 %v2822
    %3730 = vmatpush2.bf16.msra.mxu0 %v2821
    %3731 = vmatprep.subr.bf16.mxu0 %v2814
    %3732 = vmatpush2.bf16.msra.mxu0 %v2813
    %3733 = vmatprep.subr.bf16.mxu0 %v2806
    %3734 = vmatpush2.bf16.msra.mxu0 %v2805
    %3735 = vmatprep.subr.bf16.mxu0 %v2798
    %3736 = vmatpush2.bf16.msra.mxu0 %v2797
    %3737 = vmatprep.subr.bf16.mxu0 %v2790
    %3738 = vmatpush2.bf16.msra.mxu0 %v2789
    %3739 = vmatprep.subr.bf16.mxu0 %v2782
    %3740 = vmatpush2.bf16.msra.mxu0 %v2781
    %3741 = vmatprep.subr.bf16.mxu0 %v2774
    %3742 = vmatpush2.bf16.msra.mxu0 %v2773
    %3743 = vmatprep.subr.bf16.mxu0 %v2766
    %3744 = vmatpush2.bf16.msra.mxu0 %v2765
    %3745 = vmatprep.mubr.bf16.mxu0 %v316
    %3746 = vmatmul.mubr.bf16.gmra.mxu0 %v315
    %v3747 = vpop.f32.mrf.mxu0
    %v3748 = vadd.f32 %v3707, %v3747
    %v3749 = vpop.f32.mrf.mxu0
    %v3750 = vadd.f32 %v3709, %v3749
    %v3751 = vpop.f32.mrf.mxu0
    %v3752 = vpop.f32.mrf.mxu0
    %3753 = vdwg.mxu0
    %3754 = vmatprep.subr.bf16.mxu0 %v2886
    %3755 = vmatpush1.bf16.msra.mxu0 %v2885
    %3756 = vmatprep.subr.bf16.mxu0 %v2878
    %3757 = vmatpush1.bf16.msra.mxu0 %v2877
    %3758 = vmatprep.subr.bf16.mxu0 %v2870
    %3759 = vmatpush1.bf16.msra.mxu0 %v2869
    %3760 = vmatprep.subr.bf16.mxu0 %v2862
    %3761 = vmatpush1.bf16.msra.mxu0 %v2861
    %3762 = vmatprep.subr.bf16.mxu0 %v2854
    %3763 = vmatpush1.bf16.msra.mxu0 %v2853
    %3764 = vmatprep.subr.bf16.mxu0 %v2846
    %3765 = vmatpush1.bf16.msra.mxu0 %v2845
    %3766 = vmatprep.subr.bf16.mxu0 %v2838
    %3767 = vmatpush1.bf16.msra.mxu0 %v2837
    %3768 = vmatprep.subr.bf16.mxu0 %v2830
    %3769 = vmatpush1.bf16.msra.mxu0 %v2829
    %3770 = vmatprep.subr.bf16.mxu0 %v2950
    %3771 = vmatpush2.bf16.msra.mxu0 %v2949
    %3772 = vmatprep.subr.bf16.mxu0 %v2942
    %3773 = vmatpush2.bf16.msra.mxu0 %v2941
    %3774 = vmatprep.subr.bf16.mxu0 %v2934
    %3775 = vmatpush2.bf16.msra.mxu0 %v2933
    %3776 = vmatprep.subr.bf16.mxu0 %v2926
    %3777 = vmatpush2.bf16.msra.mxu0 %v2925
    %3778 = vmatprep.subr.bf16.mxu0 %v2918
    %3779 = vmatpush2.bf16.msra.mxu0 %v2917
    %3780 = vmatprep.subr.bf16.mxu0 %v2910
    %3781 = vmatpush2.bf16.msra.mxu0 %v2909
    %3782 = vmatprep.subr.bf16.mxu0 %v2902
    %3783 = vmatpush2.bf16.msra.mxu0 %v2901
    %3784 = vmatprep.subr.bf16.mxu0 %v2894
    %3785 = vmatpush2.bf16.msra.mxu0 %v2893
    %3786 = vmatprep.mubr.bf16.mxu0 %v318
    %3787 = vmatmul.mubr.bf16.gmra.mxu0 %v317
    %v3788 = vpop.f32.mrf.mxu0
    %v3789 = vadd.f32 %v3748, %v3788
    %v3790 = vpop.f32.mrf.mxu0
    %v3791 = vadd.f32 %v3750, %v3790
    %v3792 = vpop.f32.mrf.mxu0
    %v3793 = vpop.f32.mrf.mxu0
    %3794 = vdwg.mxu0
    %3795 = vmatprep.subr.bf16.mxu0 %v2504
    %3796 = vmatpush1.bf16.msra.mxu0 %v2503
    %3797 = vmatprep.subr.bf16.mxu0 %v2496
    %3798 = vmatpush1.bf16.msra.mxu0 %v2495
    %3799 = vmatprep.subr.bf16.mxu0 %v2488
    %3800 = vmatpush1.bf16.msra.mxu0 %v2487
    %3801 = vmatprep.subr.bf16.mxu0 %v2480
    %3802 = vmatpush1.bf16.msra.mxu0 %v2479
    %3803 = vmatprep.subr.bf16.mxu0 %v2472
    %3804 = vmatpush1.bf16.msra.mxu0 %v2471
    %3805 = vmatprep.subr.bf16.mxu0 %v2464
    %3806 = vmatpush1.bf16.msra.mxu0 %v2463
    %3807 = vmatprep.subr.bf16.mxu0 %v2456
    %3808 = vmatpush1.bf16.msra.mxu0 %v2455
    %3809 = vmatprep.subr.bf16.mxu0 %v2448
    %3810 = vmatpush1.bf16.msra.mxu0 %v2447
    %3811 = vmatprep.subr.bf16.mxu0 %v2568
    %3812 = vmatpush2.bf16.msra.mxu0 %v2567
    %3813 = vmatprep.subr.bf16.mxu0 %v2560
    %3814 = vmatpush2.bf16.msra.mxu0 %v2559
    %3815 = vmatprep.subr.bf16.mxu0 %v2552
    %3816 = vmatpush2.bf16.msra.mxu0 %v2551
    %3817 = vmatprep.subr.bf16.mxu0 %v2544
    %3818 = vmatpush2.bf16.msra.mxu0 %v2543
    %3819 = vmatprep.subr.bf16.mxu0 %v2536
    %3820 = vmatpush2.bf16.msra.mxu0 %v2535
    %3821 = vmatprep.subr.bf16.mxu0 %v2528
    %3822 = vmatpush2.bf16.msra.mxu0 %v2527
    %3823 = vmatprep.subr.bf16.mxu0 %v2520
    %3824 = vmatpush2.bf16.msra.mxu0 %v2519
    %3825 = vmatprep.subr.bf16.mxu0 %v2512
    %3826 = vmatpush2.bf16.msra.mxu0 %v2511
    %3827 = vmatprep.mubr.bf16.mxu0 %v312
    %3828 = vmatmul.mubr.bf16.gmra.mxu0 %v311
    %v3829 = vpop.f32.mrf.mxu0
    %v3830 = vadd.f32 %v894, %v3829
    %v3831 = vpop.f32.mrf.mxu0
    %v3832 = vadd.f32 %v898, %v3831
    %v3833 = vpop.f32.mrf.mxu0
    %v3834 = vpop.f32.mrf.mxu0
    %3835 = vdwg.mxu0
    %3836 = vmatprep.subr.bf16.mxu0 %v2632
    %3837 = vmatpush1.bf16.msra.mxu0 %v2631
    %3838 = vmatprep.subr.bf16.mxu0 %v2624
    %3839 = vmatpush1.bf16.msra.mxu0 %v2623
    %3840 = vmatprep.subr.bf16.mxu0 %v2616
    %3841 = vmatpush1.bf16.msra.mxu0 %v2615
    %3842 = vmatprep.subr.bf16.mxu0 %v2608
    %3843 = vmatpush1.bf16.msra.mxu0 %v2607
    %3844 = vmatprep.subr.bf16.mxu0 %v2600
    %3845 = vmatpush1.bf16.msra.mxu0 %v2599
    %3846 = vmatprep.subr.bf16.mxu0 %v2592
    %3847 = vmatpush1.bf16.msra.mxu0 %v2591
    %3848 = vmatprep.subr.bf16.mxu0 %v2584
    %3849 = vmatpush1.bf16.msra.mxu0 %v2583
    %3850 = vmatprep.subr.bf16.mxu0 %v2576
    %3851 = vmatpush1.bf16.msra.mxu0 %v2575
    %3852 = vmatprep.subr.bf16.mxu0 %v2696
    %3853 = vmatpush2.bf16.msra.mxu0 %v2695
    %3854 = vmatprep.subr.bf16.mxu0 %v2688
    %3855 = vmatpush2.bf16.msra.mxu0 %v2687
    %3856 = vmatprep.subr.bf16.mxu0 %v2680
    %3857 = vmatpush2.bf16.msra.mxu0 %v2679
    %3858 = vmatprep.subr.bf16.mxu0 %v2672
    %3859 = vmatpush2.bf16.msra.mxu0 %v2671
    %3860 = vmatprep.subr.bf16.mxu0 %v2664
    %3861 = vmatpush2.bf16.msra.mxu0 %v2663
    %3862 = vmatprep.subr.bf16.mxu0 %v2656
    %3863 = vmatpush2.bf16.msra.mxu0 %v2655
    %3864 = vmatprep.subr.bf16.mxu0 %v2648
    %3865 = vmatpush2.bf16.msra.mxu0 %v2647
    %3866 = vmatprep.subr.bf16.mxu0 %v2640
    %3867 = vmatpush2.bf16.msra.mxu0 %v2639
    %3868 = vmatprep.mubr.bf16.mxu0 %v314
    %3869 = vmatmul.mubr.bf16.gmra.mxu0 %v313
    %v3870 = vpop.f32.mrf.mxu0
    %v3871 = vadd.f32 %v3830, %v3870
    %v3872 = vpop.f32.mrf.mxu0
    %v3873 = vadd.f32 %v3832, %v3872
    %v3874 = vpop.f32.mrf.mxu0
    %v3875 = vpop.f32.mrf.mxu0
    %3876 = vdwg.mxu0
    %3877 = vmatprep.subr.bf16.mxu0 %v2760
    %3878 = vmatpush1.bf16.msra.mxu0 %v2759
    %3879 = vmatprep.subr.bf16.mxu0 %v2752
    %3880 = vmatpush1.bf16.msra.mxu0 %v2751
    %3881 = vmatprep.subr.bf16.mxu0 %v2744
    %3882 = vmatpush1.bf16.msra.mxu0 %v2743
    %3883 = vmatprep.subr.bf16.mxu0 %v2736
    %3884 = vmatpush1.bf16.msra.mxu0 %v2735
    %3885 = vmatprep.subr.bf16.mxu0 %v2728
    %3886 = vmatpush1.bf16.msra.mxu0 %v2727
    %3887 = vmatprep.subr.bf16.mxu0 %v2720
    %3888 = vmatpush1.bf16.msra.mxu0 %v2719
    %3889 = vmatprep.subr.bf16.mxu0 %v2712
    %3890 = vmatpush1.bf16.msra.mxu0 %v2711
    %3891 = vmatprep.subr.bf16.mxu0 %v2704
    %3892 = vmatpush1.bf16.msra.mxu0 %v2703
    %3893 = vmatprep.subr.bf16.mxu0 %v2824
    %3894 = vmatpush2.bf16.msra.mxu0 %v2823
    %3895 = vmatprep.subr.bf16.mxu0 %v2816
    %3896 = vmatpush2.bf16.msra.mxu0 %v2815
    %3897 = vmatprep.subr.bf16.mxu0 %v2808
    %3898 = vmatpush2.bf16.msra.mxu0 %v2807
    %3899 = vmatprep.subr.bf16.mxu0 %v2800
    %3900 = vmatpush2.bf16.msra.mxu0 %v2799
    %3901 = vmatprep.subr.bf16.mxu0 %v2792
    %3902 = vmatpush2.bf16.msra.mxu0 %v2791
    %3903 = vmatprep.subr.bf16.mxu0 %v2784
    %3904 = vmatpush2.bf16.msra.mxu0 %v2783
    %3905 = vmatprep.subr.bf16.mxu0 %v2776
    %3906 = vmatpush2.bf16.msra.mxu0 %v2775
    %3907 = vmatprep.subr.bf16.mxu0 %v2768
    %3908 = vmatpush2.bf16.msra.mxu0 %v2767
    %3909 = vmatprep.mubr.bf16.mxu0 %v316
    %3910 = vmatmul.mubr.bf16.gmra.mxu0 %v315
    %v3911 = vpop.f32.mrf.mxu0
    %v3912 = vadd.f32 %v3871, %v3911
    %v3913 = vpop.f32.mrf.mxu0
    %v3914 = vadd.f32 %v3873, %v3913
    %v3915 = vpop.f32.mrf.mxu0
    %v3916 = vpop.f32.mrf.mxu0
    %3917 = vdwg.mxu0
    %3918 = vmatprep.subr.bf16.mxu0 %v2888
    %3919 = vmatpush1.bf16.msra.mxu0 %v2887
    %3920 = vmatprep.subr.bf16.mxu0 %v2880
    %3921 = vmatpush1.bf16.msra.mxu0 %v2879
    %3922 = vmatprep.subr.bf16.mxu0 %v2872
    %3923 = vmatpush1.bf16.msra.mxu0 %v2871
    %3924 = vmatprep.subr.bf16.mxu0 %v2864
    %3925 = vmatpush1.bf16.msra.mxu0 %v2863
    %3926 = vmatprep.subr.bf16.mxu0 %v2856
    %3927 = vmatpush1.bf16.msra.mxu0 %v2855
    %3928 = vmatprep.subr.bf16.mxu0 %v2848
    %3929 = vmatpush1.bf16.msra.mxu0 %v2847
    %3930 = vmatprep.subr.bf16.mxu0 %v2840
    %3931 = vmatpush1.bf16.msra.mxu0 %v2839
    %3932 = vmatprep.subr.bf16.mxu0 %v2832
    %3933 = vmatpush1.bf16.msra.mxu0 %v2831
    %3934 = vmatprep.subr.bf16.mxu0 %v2952
    %3935 = vmatpush2.bf16.msra.mxu0 %v2951
    %3936 = vmatprep.subr.bf16.mxu0 %v2944
    %3937 = vmatpush2.bf16.msra.mxu0 %v2943
    %3938 = vmatprep.subr.bf16.mxu0 %v2936
    %3939 = vmatpush2.bf16.msra.mxu0 %v2935
    %3940 = vmatprep.subr.bf16.mxu0 %v2928
    %3941 = vmatpush2.bf16.msra.mxu0 %v2927
    %3942 = vmatprep.subr.bf16.mxu0 %v2920
    %3943 = vmatpush2.bf16.msra.mxu0 %v2919
    %3944 = vmatprep.subr.bf16.mxu0 %v2912
    %3945 = vmatpush2.bf16.msra.mxu0 %v2911
    %3946 = vmatprep.subr.bf16.mxu0 %v2904
    %3947 = vmatpush2.bf16.msra.mxu0 %v2903
    %3948 = vmatprep.subr.bf16.mxu0 %v2896
    %3949 = vmatpush2.bf16.msra.mxu0 %v2895
    %3950 = vmatprep.mubr.bf16.mxu0 %v318
    %3951 = vmatmul.mubr.bf16.gmra.mxu0 %v317
    %v3952 = vpop.f32.mrf.mxu0
    %v3953 = vadd.f32 %v3912, %v3952
    %v3954 = vpop.f32.mrf.mxu0
    %v3955 = vadd.f32 %v3914, %v3954
    %v3956 = vpop.f32.mrf.mxu0
    %v3957 = vpop.f32.mrf.mxu0
    %3958 = vdwg.mxu0
    %3959 = vmatprep.subr.bf16.mxu0 %v2506
    %3960 = vmatpush1.bf16.msra.mxu0 %v2505
    %3961 = vmatprep.subr.bf16.mxu0 %v2498
    %3962 = vmatpush1.bf16.msra.mxu0 %v2497
    %3963 = vmatprep.subr.bf16.mxu0 %v2490
    %3964 = vmatpush1.bf16.msra.mxu0 %v2489
    %3965 = vmatprep.subr.bf16.mxu0 %v2482
    %3966 = vmatpush1.bf16.msra.mxu0 %v2481
    %3967 = vmatprep.subr.bf16.mxu0 %v2474
    %3968 = vmatpush1.bf16.msra.mxu0 %v2473
    %3969 = vmatprep.subr.bf16.mxu0 %v2466
    %3970 = vmatpush1.bf16.msra.mxu0 %v2465
    %3971 = vmatprep.subr.bf16.mxu0 %v2458
    %3972 = vmatpush1.bf16.msra.mxu0 %v2457
    %3973 = vmatprep.subr.bf16.mxu0 %v2450
    %3974 = vmatpush1.bf16.msra.mxu0 %v2449
    %3975 = vmatprep.subr.bf16.mxu0 %v2570
    %3976 = vmatpush2.bf16.msra.mxu0 %v2569
    %3977 = vmatprep.subr.bf16.mxu0 %v2562
    %3978 = vmatpush2.bf16.msra.mxu0 %v2561
    %3979 = vmatprep.subr.bf16.mxu0 %v2554
    %3980 = vmatpush2.bf16.msra.mxu0 %v2553
    %3981 = vmatprep.subr.bf16.mxu0 %v2546
    %3982 = vmatpush2.bf16.msra.mxu0 %v2545
    %3983 = vmatprep.subr.bf16.mxu0 %v2538
    %3984 = vmatpush2.bf16.msra.mxu0 %v2537
    %3985 = vmatprep.subr.bf16.mxu0 %v2530
    %3986 = vmatpush2.bf16.msra.mxu0 %v2529
    %3987 = vmatprep.subr.bf16.mxu0 %v2522
    %3988 = vmatpush2.bf16.msra.mxu0 %v2521
    %3989 = vmatprep.subr.bf16.mxu0 %v2514
    %3990 = vmatpush2.bf16.msra.mxu0 %v2513
    %3991 = vmatprep.mubr.bf16.mxu0 %v312
    %3992 = vmatmul.mubr.bf16.gmra.mxu0 %v311
    %v3993 = vpop.f32.mrf.mxu0
    %v3994 = vadd.f32 %v902, %v3993
    %v3995 = vpop.f32.mrf.mxu0
    %v3996 = vadd.f32 %v906, %v3995
    %v3997 = vpop.f32.mrf.mxu0
    %v3998 = vpop.f32.mrf.mxu0
    %3999 = vdwg.mxu0
    %4000 = vmatprep.subr.bf16.mxu0 %v2634
    %4001 = vmatpush1.bf16.msra.mxu0 %v2633
    %4002 = vmatprep.subr.bf16.mxu0 %v2626
    %4003 = vmatpush1.bf16.msra.mxu0 %v2625
    %4004 = vmatprep.subr.bf16.mxu0 %v2618
    %4005 = vmatpush1.bf16.msra.mxu0 %v2617
    %4006 = vmatprep.subr.bf16.mxu0 %v2610
    %4007 = vmatpush1.bf16.msra.mxu0 %v2609
    %4008 = vmatprep.subr.bf16.mxu0 %v2602
    %4009 = vmatpush1.bf16.msra.mxu0 %v2601
    %4010 = vmatprep.subr.bf16.mxu0 %v2594
    %4011 = vmatpush1.bf16.msra.mxu0 %v2593
    %4012 = vmatprep.subr.bf16.mxu0 %v2586
    %4013 = vmatpush1.bf16.msra.mxu0 %v2585
    %4014 = vmatprep.subr.bf16.mxu0 %v2578
    %4015 = vmatpush1.bf16.msra.mxu0 %v2577
    %4016 = vmatprep.subr.bf16.mxu0 %v2698
    %4017 = vmatpush2.bf16.msra.mxu0 %v2697
    %4018 = vmatprep.subr.bf16.mxu0 %v2690
    %4019 = vmatpush2.bf16.msra.mxu0 %v2689
    %4020 = vmatprep.subr.bf16.mxu0 %v2682
    %4021 = vmatpush2.bf16.msra.mxu0 %v2681
    %4022 = vmatprep.subr.bf16.mxu0 %v2674
    %4023 = vmatpush2.bf16.msra.mxu0 %v2673
    %4024 = vmatprep.subr.bf16.mxu0 %v2666
    %4025 = vmatpush2.bf16.msra.mxu0 %v2665
    %4026 = vmatprep.subr.bf16.mxu0 %v2658
    %4027 = vmatpush2.bf16.msra.mxu0 %v2657
    %4028 = vmatprep.subr.bf16.mxu0 %v2650
    %4029 = vmatpush2.bf16.msra.mxu0 %v2649
    %4030 = vmatprep.subr.bf16.mxu0 %v2642
    %4031 = vmatpush2.bf16.msra.mxu0 %v2641
    %4032 = vmatprep.mubr.bf16.mxu0 %v314
    %4033 = vmatmul.mubr.bf16.gmra.mxu0 %v313
    %v4034 = vpop.f32.mrf.mxu0
    %v4035 = vadd.f32 %v3994, %v4034
    %v4036 = vpop.f32.mrf.mxu0
    %v4037 = vadd.f32 %v3996, %v4036
    %v4038 = vpop.f32.mrf.mxu0
    %v4039 = vpop.f32.mrf.mxu0
    %4040 = vdwg.mxu0
    %4041 = vmatprep.subr.bf16.mxu0 %v2762
    %4042 = vmatpush1.bf16.msra.mxu0 %v2761
    %4043 = vmatprep.subr.bf16.mxu0 %v2754
    %4044 = vmatpush1.bf16.msra.mxu0 %v2753
    %4045 = vmatprep.subr.bf16.mxu0 %v2746
    %4046 = vmatpush1.bf16.msra.mxu0 %v2745
    %4047 = vmatprep.subr.bf16.mxu0 %v2738
    %4048 = vmatpush1.bf16.msra.mxu0 %v2737
    %4049 = vmatprep.subr.bf16.mxu0 %v2730
    %4050 = vmatpush1.bf16.msra.mxu0 %v2729
    %4051 = vmatprep.subr.bf16.mxu0 %v2722
    %4052 = vmatpush1.bf16.msra.mxu0 %v2721
    %4053 = vmatprep.subr.bf16.mxu0 %v2714
    %4054 = vmatpush1.bf16.msra.mxu0 %v2713
    %4055 = vmatprep.subr.bf16.mxu0 %v2706
    %4056 = vmatpush1.bf16.msra.mxu0 %v2705
    %4057 = vmatprep.subr.bf16.mxu0 %v2826
    %4058 = vmatpush2.bf16.msra.mxu0 %v2825
    %4059 = vmatprep.subr.bf16.mxu0 %v2818
    %4060 = vmatpush2.bf16.msra.mxu0 %v2817
    %4061 = vmatprep.subr.bf16.mxu0 %v2810
    %4062 = vmatpush2.bf16.msra.mxu0 %v2809
    %4063 = vmatprep.subr.bf16.mxu0 %v2802
    %4064 = vmatpush2.bf16.msra.mxu0 %v2801
    %4065 = vmatprep.subr.bf16.mxu0 %v2794
    %4066 = vmatpush2.bf16.msra.mxu0 %v2793
    %4067 = vmatprep.subr.bf16.mxu0 %v2786
    %4068 = vmatpush2.bf16.msra.mxu0 %v2785
    %4069 = vmatprep.subr.bf16.mxu0 %v2778
    %4070 = vmatpush2.bf16.msra.mxu0 %v2777
    %4071 = vmatprep.subr.bf16.mxu0 %v2770
    %4072 = vmatpush2.bf16.msra.mxu0 %v2769
    %4073 = vmatprep.mubr.bf16.mxu0 %v316
    %4074 = vmatmul.mubr.bf16.gmra.mxu0 %v315
    %v4075 = vpop.f32.mrf.mxu0
    %v4076 = vadd.f32 %v4035, %v4075
    %v4077 = vpop.f32.mrf.mxu0
    %v4078 = vadd.f32 %v4037, %v4077
    %v4079 = vpop.f32.mrf.mxu0
    %v4080 = vpop.f32.mrf.mxu0
    %4081 = vdwg.mxu0
    %4082 = vmatprep.subr.bf16.mxu0 %v2890
    %4083 = vmatpush1.bf16.msra.mxu0 %v2889
    %4084 = vmatprep.subr.bf16.mxu0 %v2882
    %4085 = vmatpush1.bf16.msra.mxu0 %v2881
    %4086 = vmatprep.subr.bf16.mxu0 %v2874
    %4087 = vmatpush1.bf16.msra.mxu0 %v2873
    %4088 = vmatprep.subr.bf16.mxu0 %v2866
    %4089 = vmatpush1.bf16.msra.mxu0 %v2865
    %4090 = vmatprep.subr.bf16.mxu0 %v2858
    %4091 = vmatpush1.bf16.msra.mxu0 %v2857
    %4092 = vmatprep.subr.bf16.mxu0 %v2850
    %4093 = vmatpush1.bf16.msra.mxu0 %v2849
    %4094 = vmatprep.subr.bf16.mxu0 %v2842
    %4095 = vmatpush1.bf16.msra.mxu0 %v2841
    %4096 = vmatprep.subr.bf16.mxu0 %v2834
    %4097 = vmatpush1.bf16.msra.mxu0 %v2833
    %4098 = vmatprep.subr.bf16.mxu0 %v2954
    %4099 = vmatpush2.bf16.msra.mxu0 %v2953
    %4100 = vmatprep.subr.bf16.mxu0 %v2946
    %4101 = vmatpush2.bf16.msra.mxu0 %v2945
    %4102 = vmatprep.subr.bf16.mxu0 %v2938
    %4103 = vmatpush2.bf16.msra.mxu0 %v2937
    %4104 = vmatprep.subr.bf16.mxu0 %v2930
    %4105 = vmatpush2.bf16.msra.mxu0 %v2929
    %4106 = vmatprep.subr.bf16.mxu0 %v2922
    %4107 = vmatpush2.bf16.msra.mxu0 %v2921
    %4108 = vmatprep.subr.bf16.mxu0 %v2914
    %4109 = vmatpush2.bf16.msra.mxu0 %v2913
    %4110 = vmatprep.subr.bf16.mxu0 %v2906
    %4111 = vmatpush2.bf16.msra.mxu0 %v2905
    %4112 = vmatprep.subr.bf16.mxu0 %v2898
    %4113 = vmatpush2.bf16.msra.mxu0 %v2897
    %4114 = vmatprep.mubr.bf16.mxu0 %v318
    %4115 = vmatmul.mubr.bf16.gmra.mxu0 %v317
    %v4116 = vpop.f32.mrf.mxu0
    %v4117 = vadd.f32 %v4076, %v4116
    %v4118 = vpop.f32.mrf.mxu0
    %v4119 = vadd.f32 %v4078, %v4118
    %v4120 = vpop.f32.mrf.mxu0
    %v4121 = vpop.f32.mrf.mxu0
    %4122 = vdwg.mxu0
    %v4123 = vmax.f32 %v3625, 0.0
    %v4124 = vmax.f32 %v3627, 0.0
    %v4125 = vmax.f32 %v3789, 0.0
    %v4126 = vmax.f32 %v3791, 0.0
    %v4127 = vmax.f32 %v3953, 0.0
    %v4128 = vmax.f32 %v3955, 0.0
    %v4129 = vmax.f32 %v4117, 0.0
    %v4130 = vmax.f32 %v4119, 0.0
    %v4131 = vlaneseq
    %v4132 = vshrl.u32 %v4131, 7
    %v4133 = vsub.s32 1, %v4132
    %v4134 = vrot.slane %v263, %v4133
    %v4135 = vlaneseq
    %v4136 = vshrl.u32 %v4135, 7
    %v4137 = vsub.s32 5, %v4136
    %v4138 = vrot.slane %v263, %v4137
    %v4139 = vlaneseq
    %v4140 = vshrl.u32 %v4139, 7
    %v4141 = vsub.s32 1, %v4140
    %v4142 = vrot.slane %v264, %v4141
    %v4143 = vlaneseq
    %v4144 = vshrl.u32 %v4143, 7
    %v4145 = vsub.s32 5, %v4144
    %v4146 = vrot.slane %v264, %v4145
    %v4147 = vlaneseq
    %v4148 = vshrl.u32 %v4147, 7
    %v4149 = vsub.s32 1, %v4148
    %v4150 = vrot.slane %v265, %v4149
    %v4151 = vlaneseq
    %v4152 = vshrl.u32 %v4151, 7
    %v4153 = vsub.s32 5, %v4152
    %v4154 = vrot.slane %v265, %v4153
    %v4155 = vlaneseq
    %v4156 = vshrl.u32 %v4155, 7
    %v4157 = vsub.s32 1, %v4156
    %v4158 = vrot.slane %v266, %v4157
    %v4159 = vlaneseq
    %v4160 = vshrl.u32 %v4159, 7
    %v4161 = vsub.s32 5, %v4160
    %v4162 = vrot.slane %v266, %v4161
    %v4171 = vlaneseq
    %v4172 = vshrl.u32 %v4171, 7
    %v4173 = vsub.s32 1, %v4172
    %v4174 = vrot.slane %v4134, %v4173
    %v4175 = vlaneseq
    %v4176 = vshrl.u32 %v4175, 7
    %v4177 = vsub.s32 1, %v4176
    %v4178 = vrot.slane %v4138, %v4177
    %v4179 = vlaneseq
    %v4180 = vshrl.u32 %v4179, 7
    %v4181 = vsub.s32 1, %v4180
    %v4182 = vrot.slane %v4142, %v4181
    %v4183 = vlaneseq
    %v4184 = vshrl.u32 %v4183, 7
    %v4185 = vsub.s32 1, %v4184
    %v4186 = vrot.slane %v4146, %v4185
    %v4187 = vlaneseq
    %v4188 = vshrl.u32 %v4187, 7
    %v4189 = vsub.s32 1, %v4188
    %v4190 = vrot.slane %v4150, %v4189
    %v4191 = vlaneseq
    %v4192 = vshrl.u32 %v4191, 7
    %v4193 = vsub.s32 1, %v4192
    %v4194 = vrot.slane %v4154, %v4193
    %v4195 = vlaneseq
    %v4196 = vshrl.u32 %v4195, 7
    %v4197 = vsub.s32 1, %v4196
    %v4198 = vrot.slane %v4158, %v4197
    %v4199 = vlaneseq
    %v4200 = vshrl.u32 %v4199, 7
    %v4201 = vsub.s32 1, %v4200
    %v4202 = vrot.slane %v4162, %v4201
    %v4203 = vmul.f32 %v4123, %v4174
    %v4204 = vmul.f32 %v4124, %v4178
    %v4205 = vmul.f32 %v4125, %v4182
    %v4206 = vmul.f32 %v4126, %v4186
    %v4207 = vmul.f32 %v4127, %v4190
    %v4208 = vmul.f32 %v4128, %v4194
    %v4209 = vmul.f32 %v4129, %v4198
    %v4210 = vmul.f32 %v4130, %v4202
    %v4211 = vlaneseq
    %v4212 = vshrl.u32 %v4211, 7
    %v4213 = vsub.s32 2, %v4212
    %v4214 = vrot.slane %v263, %v4213
    %v4215 = vlaneseq
    %v4216 = vshrl.u32 %v4215, 7
    %v4217 = vsub.s32 6, %v4216
    %v4218 = vrot.slane %v263, %v4217
    %v4219 = vlaneseq
    %v4220 = vshrl.u32 %v4219, 7
    %v4221 = vsub.s32 2, %v4220
    %v4222 = vrot.slane %v264, %v4221
    %v4223 = vlaneseq
    %v4224 = vshrl.u32 %v4223, 7
    %v4225 = vsub.s32 6, %v4224
    %v4226 = vrot.slane %v264, %v4225
    %v4227 = vlaneseq
    %v4228 = vshrl.u32 %v4227, 7
    %v4229 = vsub.s32 2, %v4228
    %v4230 = vrot.slane %v265, %v4229
    %v4231 = vlaneseq
    %v4232 = vshrl.u32 %v4231, 7
    %v4233 = vsub.s32 6, %v4232
    %v4234 = vrot.slane %v265, %v4233
    %v4235 = vlaneseq
    %v4236 = vshrl.u32 %v4235, 7
    %v4237 = vsub.s32 2, %v4236
    %v4238 = vrot.slane %v266, %v4237
    %v4239 = vlaneseq
    %v4240 = vshrl.u32 %v4239, 7
    %v4241 = vsub.s32 6, %v4240
    %v4242 = vrot.slane %v266, %v4241
    %v4251 = vlaneseq
    %v4252 = vshrl.u32 %v4251, 7
    %v4253 = vsub.s32 2, %v4252
    %v4254 = vrot.slane %v4214, %v4253
    %v4255 = vlaneseq
    %v4256 = vshrl.u32 %v4255, 7
    %v4257 = vsub.s32 2, %v4256
    %v4258 = vrot.slane %v4218, %v4257
    %v4259 = vlaneseq
    %v4260 = vshrl.u32 %v4259, 7
    %v4261 = vsub.s32 2, %v4260
    %v4262 = vrot.slane %v4222, %v4261
    %v4263 = vlaneseq
    %v4264 = vshrl.u32 %v4263, 7
    %v4265 = vsub.s32 2, %v4264
    %v4266 = vrot.slane %v4226, %v4265
    %v4267 = vlaneseq
    %v4268 = vshrl.u32 %v4267, 7
    %v4269 = vsub.s32 2, %v4268
    %v4270 = vrot.slane %v4230, %v4269
    %v4271 = vlaneseq
    %v4272 = vshrl.u32 %v4271, 7
    %v4273 = vsub.s32 2, %v4272
    %v4274 = vrot.slane %v4234, %v4273
    %v4275 = vlaneseq
    %v4276 = vshrl.u32 %v4275, 7
    %v4277 = vsub.s32 2, %v4276
    %v4278 = vrot.slane %v4238, %v4277
    %v4279 = vlaneseq
    %v4280 = vshrl.u32 %v4279, 7
    %v4281 = vsub.s32 2, %v4280
    %v4282 = vrot.slane %v4242, %v4281
    %v4283 = vadd.f32 %v4203, %v4254
    %v4284 = vadd.f32 %v4204, %v4258
    %v4285 = vadd.f32 %v4205, %v4262
    %v4286 = vadd.f32 %v4206, %v4266
    %v4287 = vadd.f32 %v4207, %v4270
    %v4288 = vadd.f32 %v4208, %v4274
    %v4289 = vadd.f32 %v4209, %v4278
    %v4290 = vadd.f32 %v4210, %v4282
    %v4291 = vld [vmem:[#allocation9] sm:$0x77]
    %v4292 = vld [vmem:[#allocation9 + $0x8] sm:$0x77]
    %v4293 = vpack.c.bf16 %v4283, %v4283
    %v4294 = vpack.c.bf16 %v4284, %v4284
    %v4295 = vpack.c.bf16 %v4285, %v4285
    %v4296 = vpack.c.bf16 %v4286, %v4286
    %v4297 = vpack.c.bf16 %v4287, %v4287
    %v4298 = vpack.c.bf16 %v4288, %v4288
    %v4299 = vpack.c.bf16 %v4289, %v4289
    %v4300 = vpack.c.bf16 %v4290, %v4290
    %v4301 = vld [vmem:[#allocation7] sm:$0xff]
    %v4302 = vld [vmem:[#allocation7 + $0x8] sm:$0xff]
    %v4303 = vld [vmem:[#allocation7 + $0x10] sm:$0xff]
    %v4304 = vld [vmem:[#allocation7 + $0x18] sm:$0xff]
    %v4305 = vld [vmem:[#allocation7 + $0x20] sm:$0xff]
    %v4306 = vld [vmem:[#allocation7 + $0x28] sm:$0xff]
    %v4307 = vld [vmem:[#allocation7 + $0x30] sm:$0xff]
    %v4308 = vld [vmem:[#allocation7 + $0x38] sm:$0xff]
    %v4309 = vld [vmem:[#allocation7 + $0x40] sm:$0xff]
    %v4310 = vld [vmem:[#allocation7 + $0x48] sm:$0xff]
    %v4311 = vld [vmem:[#allocation7 + $0x50] sm:$0xff]
    %v4312 = vld [vmem:[#allocation7 + $0x58] sm:$0xff]
    %v4313 = vld [vmem:[#allocation7 + $0x60] sm:$0xff]
    %v4314 = vld [vmem:[#allocation7 + $0x68] sm:$0xff]
    %v4315 = vld [vmem:[#allocation7 + $0x70] sm:$0xff]
    %v4316 = vld [vmem:[#allocation7 + $0x78] sm:$0xff]
    %v4317 = vld [vmem:[#allocation7 + $0x80] sm:$0xff]
    %v4318 = vld [vmem:[#allocation7 + $0x88] sm:$0xff]
    %v4319 = vld [vmem:[#allocation7 + $0x90] sm:$0xff]
    %v4320 = vld [vmem:[#allocation7 + $0x98] sm:$0xff]
    %v4321 = vld [vmem:[#allocation7 + $0xa0] sm:$0xff]
    %v4322 = vld [vmem:[#allocation7 + $0xa8] sm:$0xff]
    %v4323 = vld [vmem:[#allocation7 + $0xb0] sm:$0xff]
    %v4324 = vld [vmem:[#allocation7 + $0xb8] sm:$0xff]
    %v4325 = vld [vmem:[#allocation7 + $0xc0] sm:$0xff]
    %v4326 = vld [vmem:[#allocation7 + $0xc8] sm:$0xff]
    %v4327 = vld [vmem:[#allocation7 + $0xd0] sm:$0xff]
    %v4328 = vld [vmem:[#allocation7 + $0xd8] sm:$0xff]
    %v4329 = vld [vmem:[#allocation7 + $0xe0] sm:$0xff]
    %v4330 = vld [vmem:[#allocation7 + $0xe8] sm:$0xff]
    %v4331 = vld [vmem:[#allocation7 + $0xf0] sm:$0xff]
    %v4332 = vld [vmem:[#allocation7 + $0xf8] sm:$0xff]
    %v4333 = vld [vmem:[#allocation7 + $0x100] sm:$0xff]
    %v4334 = vld [vmem:[#allocation7 + $0x108] sm:$0xff]
    %v4335 = vld [vmem:[#allocation7 + $0x110] sm:$0xff]
    %v4336 = vld [vmem:[#allocation7 + $0x118] sm:$0xff]
    %v4337 = vld [vmem:[#allocation7 + $0x120] sm:$0xff]
    %v4338 = vld [vmem:[#allocation7 + $0x128] sm:$0xff]
    %v4339 = vld [vmem:[#allocation7 + $0x130] sm:$0xff]
    %v4340 = vld [vmem:[#allocation7 + $0x138] sm:$0xff]
    %v4341 = vld [vmem:[#allocation7 + $0x140] sm:$0xff]
    %v4342 = vld [vmem:[#allocation7 + $0x148] sm:$0xff]
    %v4343 = vld [vmem:[#allocation7 + $0x150] sm:$0xff]
    %v4344 = vld [vmem:[#allocation7 + $0x158] sm:$0xff]
    %v4345 = vld [vmem:[#allocation7 + $0x160] sm:$0xff]
    %v4346 = vld [vmem:[#allocation7 + $0x168] sm:$0xff]
    %v4347 = vld [vmem:[#allocation7 + $0x170] sm:$0xff]
    %v4348 = vld [vmem:[#allocation7 + $0x178] sm:$0xff]
    %v4349 = vld [vmem:[#allocation7 + $0x180] sm:$0xff]
    %v4350 = vld [vmem:[#allocation7 + $0x188] sm:$0xff]
    %v4351 = vld [vmem:[#allocation7 + $0x190] sm:$0xff]
    %v4352 = vld [vmem:[#allocation7 + $0x198] sm:$0xff]
    %v4353 = vld [vmem:[#allocation7 + $0x1a0] sm:$0xff]
    %v4354 = vld [vmem:[#allocation7 + $0x1a8] sm:$0xff]
    %v4355 = vld [vmem:[#allocation7 + $0x1b0] sm:$0xff]
    %v4356 = vld [vmem:[#allocation7 + $0x1b8] sm:$0xff]
    %v4357 = vld [vmem:[#allocation7 + $0x1c0] sm:$0xff]
    %v4358 = vld [vmem:[#allocation7 + $0x1c8] sm:$0xff]
    %v4359 = vld [vmem:[#allocation7 + $0x1d0] sm:$0xff]
    %v4360 = vld [vmem:[#allocation7 + $0x1d8] sm:$0xff]
    %v4361 = vld [vmem:[#allocation7 + $0x1e0] sm:$0xff]
    %v4362 = vld [vmem:[#allocation7 + $0x1e8] sm:$0xff]
    %v4363 = vld [vmem:[#allocation7 + $0x1f0] sm:$0xff]
    %v4364 = vld [vmem:[#allocation7 + $0x1f8] sm:$0xff]
    %v4365 = vld [vmem:[#allocation7 + $0x200] sm:$0xff]
    %v4366 = vld [vmem:[#allocation7 + $0x208] sm:$0xff]
    %v4367 = vld [vmem:[#allocation7 + $0x210] sm:$0xff]
    %v4368 = vld [vmem:[#allocation7 + $0x218] sm:$0xff]
    %v4369 = vld [vmem:[#allocation7 + $0x220] sm:$0xff]
    %v4370 = vld [vmem:[#allocation7 + $0x228] sm:$0xff]
    %v4371 = vld [vmem:[#allocation7 + $0x230] sm:$0xff]
    %v4372 = vld [vmem:[#allocation7 + $0x238] sm:$0xff]
    %v4373 = vld [vmem:[#allocation7 + $0x240] sm:$0xff]
    %v4374 = vld [vmem:[#allocation7 + $0x248] sm:$0xff]
    %v4375 = vld [vmem:[#allocation7 + $0x250] sm:$0xff]
    %v4376 = vld [vmem:[#allocation7 + $0x258] sm:$0xff]
    %v4377 = vld [vmem:[#allocation7 + $0x260] sm:$0xff]
    %v4378 = vld [vmem:[#allocation7 + $0x268] sm:$0xff]
    %v4379 = vld [vmem:[#allocation7 + $0x270] sm:$0xff]
    %v4380 = vld [vmem:[#allocation7 + $0x278] sm:$0xff]
    %v4381 = vld [vmem:[#allocation7 + $0x280] sm:$0xff]
    %v4382 = vld [vmem:[#allocation7 + $0x288] sm:$0xff]
    %v4383 = vld [vmem:[#allocation7 + $0x290] sm:$0xff]
    %v4384 = vld [vmem:[#allocation7 + $0x298] sm:$0xff]
    %v4385 = vld [vmem:[#allocation7 + $0x2a0] sm:$0xff]
    %v4386 = vld [vmem:[#allocation7 + $0x2a8] sm:$0xff]
    %v4387 = vld [vmem:[#allocation7 + $0x2b0] sm:$0xff]
    %v4388 = vld [vmem:[#allocation7 + $0x2b8] sm:$0xff]
    %v4389 = vld [vmem:[#allocation7 + $0x2c0] sm:$0xff]
    %v4390 = vld [vmem:[#allocation7 + $0x2c8] sm:$0xff]
    %v4391 = vld [vmem:[#allocation7 + $0x2d0] sm:$0xff]
    %v4392 = vld [vmem:[#allocation7 + $0x2d8] sm:$0xff]
    %v4393 = vld [vmem:[#allocation7 + $0x2e0] sm:$0xff]
    %v4394 = vld [vmem:[#allocation7 + $0x2e8] sm:$0xff]
    %v4395 = vld [vmem:[#allocation7 + $0x2f0] sm:$0xff]
    %v4396 = vld [vmem:[#allocation7 + $0x2f8] sm:$0xff]
    %v4397 = vld [vmem:[#allocation7 + $0x300] sm:$0xff]
    %v4398 = vld [vmem:[#allocation7 + $0x308] sm:$0xff]
    %v4399 = vld [vmem:[#allocation7 + $0x310] sm:$0xff]
    %v4400 = vld [vmem:[#allocation7 + $0x318] sm:$0xff]
    %v4401 = vld [vmem:[#allocation7 + $0x320] sm:$0xff]
    %v4402 = vld [vmem:[#allocation7 + $0x328] sm:$0xff]
    %v4403 = vld [vmem:[#allocation7 + $0x330] sm:$0xff]
    %v4404 = vld [vmem:[#allocation7 + $0x338] sm:$0xff]
    %v4405 = vld [vmem:[#allocation7 + $0x340] sm:$0xff]
    %v4406 = vld [vmem:[#allocation7 + $0x348] sm:$0xff]
    %v4407 = vld [vmem:[#allocation7 + $0x350] sm:$0xff]
    %v4408 = vld [vmem:[#allocation7 + $0x358] sm:$0xff]
    %v4409 = vld [vmem:[#allocation7 + $0x360] sm:$0xff]
    %v4410 = vld [vmem:[#allocation7 + $0x368] sm:$0xff]
    %v4411 = vld [vmem:[#allocation7 + $0x370] sm:$0xff]
    %v4412 = vld [vmem:[#allocation7 + $0x378] sm:$0xff]
    %v4413 = vld [vmem:[#allocation7 + $0x380] sm:$0xff]
    %v4414 = vld [vmem:[#allocation7 + $0x388] sm:$0xff]
    %v4415 = vld [vmem:[#allocation7 + $0x390] sm:$0xff]
    %v4416 = vld [vmem:[#allocation7 + $0x398] sm:$0xff]
    %v4417 = vld [vmem:[#allocation7 + $0x3a0] sm:$0xff]
    %v4418 = vld [vmem:[#allocation7 + $0x3a8] sm:$0xff]
    %v4419 = vld [vmem:[#allocation7 + $0x3b0] sm:$0xff]
    %v4420 = vld [vmem:[#allocation7 + $0x3b8] sm:$0xff]
    %v4421 = vld [vmem:[#allocation7 + $0x3c0] sm:$0xff]
    %v4422 = vld [vmem:[#allocation7 + $0x3c8] sm:$0xff]
    %v4423 = vld [vmem:[#allocation7 + $0x3d0] sm:$0xff]
    %v4424 = vld [vmem:[#allocation7 + $0x3d8] sm:$0xff]
    %v4425 = vld [vmem:[#allocation7 + $0x3e0] sm:$0xff]
    %v4426 = vld [vmem:[#allocation7 + $0x3e8] sm:$0xff]
    %v4427 = vld [vmem:[#allocation7 + $0x3f0] sm:$0xff]
    %v4428 = vld [vmem:[#allocation7 + $0x3f8] sm:$0xff]
    %v4429 = vld [vmem:[#allocation7 + $0x400] sm:$0xff]
    %v4430 = vld [vmem:[#allocation7 + $0x408] sm:$0xff]
    %v4431 = vld [vmem:[#allocation7 + $0x410] sm:$0xff]
    %v4432 = vld [vmem:[#allocation7 + $0x418] sm:$0xff]
    %v4433 = vld [vmem:[#allocation7 + $0x420] sm:$0xff]
    %v4434 = vld [vmem:[#allocation7 + $0x428] sm:$0xff]
    %v4435 = vld [vmem:[#allocation7 + $0x430] sm:$0xff]
    %v4436 = vld [vmem:[#allocation7 + $0x438] sm:$0xff]
    %v4437 = vld [vmem:[#allocation7 + $0x440] sm:$0xff]
    %v4438 = vld [vmem:[#allocation7 + $0x448] sm:$0xff]
    %v4439 = vld [vmem:[#allocation7 + $0x450] sm:$0xff]
    %v4440 = vld [vmem:[#allocation7 + $0x458] sm:$0xff]
    %v4441 = vld [vmem:[#allocation7 + $0x460] sm:$0xff]
    %v4442 = vld [vmem:[#allocation7 + $0x468] sm:$0xff]
    %v4443 = vld [vmem:[#allocation7 + $0x470] sm:$0xff]
    %v4444 = vld [vmem:[#allocation7 + $0x478] sm:$0xff]
    %v4445 = vld [vmem:[#allocation7 + $0x480] sm:$0xff]
    %v4446 = vld [vmem:[#allocation7 + $0x488] sm:$0xff]
    %v4447 = vld [vmem:[#allocation7 + $0x490] sm:$0xff]
    %v4448 = vld [vmem:[#allocation7 + $0x498] sm:$0xff]
    %v4449 = vld [vmem:[#allocation7 + $0x4a0] sm:$0xff]
    %v4450 = vld [vmem:[#allocation7 + $0x4a8] sm:$0xff]
    %v4451 = vld [vmem:[#allocation7 + $0x4b0] sm:$0xff]
    %v4452 = vld [vmem:[#allocation7 + $0x4b8] sm:$0xff]
    %v4453 = vld [vmem:[#allocation7 + $0x4c0] sm:$0xff]
    %v4454 = vld [vmem:[#allocation7 + $0x4c8] sm:$0xff]
    %v4455 = vld [vmem:[#allocation7 + $0x4d0] sm:$0xff]
    %v4456 = vld [vmem:[#allocation7 + $0x4d8] sm:$0xff]
    %v4457 = vld [vmem:[#allocation7 + $0x4e0] sm:$0xff]
    %v4458 = vld [vmem:[#allocation7 + $0x4e8] sm:$0xff]
    %v4459 = vld [vmem:[#allocation7 + $0x4f0] sm:$0xff]
    %v4460 = vld [vmem:[#allocation7 + $0x4f8] sm:$0xff]
    %v4461 = vld [vmem:[#allocation7 + $0x500] sm:$0xff]
    %v4462 = vld [vmem:[#allocation7 + $0x508] sm:$0xff]
    %v4463 = vld [vmem:[#allocation7 + $0x510] sm:$0xff]
    %v4464 = vld [vmem:[#allocation7 + $0x518] sm:$0xff]
    %v4465 = vld [vmem:[#allocation7 + $0x520] sm:$0xff]
    %v4466 = vld [vmem:[#allocation7 + $0x528] sm:$0xff]
    %v4467 = vld [vmem:[#allocation7 + $0x530] sm:$0xff]
    %v4468 = vld [vmem:[#allocation7 + $0x538] sm:$0xff]
    %v4469 = vld [vmem:[#allocation7 + $0x540] sm:$0xff]
    %v4470 = vld [vmem:[#allocation7 + $0x548] sm:$0xff]
    %v4471 = vld [vmem:[#allocation7 + $0x550] sm:$0xff]
    %v4472 = vld [vmem:[#allocation7 + $0x558] sm:$0xff]
    %v4473 = vld [vmem:[#allocation7 + $0x560] sm:$0xff]
    %v4474 = vld [vmem:[#allocation7 + $0x568] sm:$0xff]
    %v4475 = vld [vmem:[#allocation7 + $0x570] sm:$0xff]
    %v4476 = vld [vmem:[#allocation7 + $0x578] sm:$0xff]
    %v4477 = vld [vmem:[#allocation7 + $0x580] sm:$0xff]
    %v4478 = vld [vmem:[#allocation7 + $0x588] sm:$0xff]
    %v4479 = vld [vmem:[#allocation7 + $0x590] sm:$0xff]
    %v4480 = vld [vmem:[#allocation7 + $0x598] sm:$0xff]
    %v4481 = vld [vmem:[#allocation7 + $0x5a0] sm:$0xff]
    %v4482 = vld [vmem:[#allocation7 + $0x5a8] sm:$0xff]
    %v4483 = vld [vmem:[#allocation7 + $0x5b0] sm:$0xff]
    %v4484 = vld [vmem:[#allocation7 + $0x5b8] sm:$0xff]
    %v4485 = vld [vmem:[#allocation7 + $0x5c0] sm:$0xff]
    %v4486 = vld [vmem:[#allocation7 + $0x5c8] sm:$0xff]
    %v4487 = vld [vmem:[#allocation7 + $0x5d0] sm:$0xff]
    %v4488 = vld [vmem:[#allocation7 + $0x5d8] sm:$0xff]
    %v4489 = vld [vmem:[#allocation7 + $0x5e0] sm:$0xff]
    %v4490 = vld [vmem:[#allocation7 + $0x5e8] sm:$0xff]
    %v4491 = vld [vmem:[#allocation7 + $0x5f0] sm:$0xff]
    %v4492 = vld [vmem:[#allocation7 + $0x5f8] sm:$0xff]
    %v4493 = vld [vmem:[#allocation7 + $0x600] sm:$0xff]
    %v4494 = vld [vmem:[#allocation7 + $0x608] sm:$0xff]
    %v4495 = vld [vmem:[#allocation7 + $0x610] sm:$0xff]
    %v4496 = vld [vmem:[#allocation7 + $0x618] sm:$0xff]
    %v4497 = vld [vmem:[#allocation7 + $0x620] sm:$0xff]
    %v4498 = vld [vmem:[#allocation7 + $0x628] sm:$0xff]
    %v4499 = vld [vmem:[#allocation7 + $0x630] sm:$0xff]
    %v4500 = vld [vmem:[#allocation7 + $0x638] sm:$0xff]
    %v4501 = vld [vmem:[#allocation7 + $0x640] sm:$0xff]
    %v4502 = vld [vmem:[#allocation7 + $0x648] sm:$0xff]
    %v4503 = vld [vmem:[#allocation7 + $0x650] sm:$0xff]
    %v4504 = vld [vmem:[#allocation7 + $0x658] sm:$0xff]
    %v4505 = vld [vmem:[#allocation7 + $0x660] sm:$0xff]
    %v4506 = vld [vmem:[#allocation7 + $0x668] sm:$0xff]
    %v4507 = vld [vmem:[#allocation7 + $0x670] sm:$0xff]
    %v4508 = vld [vmem:[#allocation7 + $0x678] sm:$0xff]
    %v4509 = vld [vmem:[#allocation7 + $0x680] sm:$0xff]
    %v4510 = vld [vmem:[#allocation7 + $0x688] sm:$0xff]
    %v4511 = vld [vmem:[#allocation7 + $0x690] sm:$0xff]
    %v4512 = vld [vmem:[#allocation7 + $0x698] sm:$0xff]
    %v4513 = vld [vmem:[#allocation7 + $0x6a0] sm:$0xff]
    %v4514 = vld [vmem:[#allocation7 + $0x6a8] sm:$0xff]
    %v4515 = vld [vmem:[#allocation7 + $0x6b0] sm:$0xff]
    %v4516 = vld [vmem:[#allocation7 + $0x6b8] sm:$0xff]
    %v4517 = vld [vmem:[#allocation7 + $0x6c0] sm:$0xff]
    %v4518 = vld [vmem:[#allocation7 + $0x6c8] sm:$0xff]
    %v4519 = vld [vmem:[#allocation7 + $0x6d0] sm:$0xff]
    %v4520 = vld [vmem:[#allocation7 + $0x6d8] sm:$0xff]
    %v4521 = vld [vmem:[#allocation7 + $0x6e0] sm:$0xff]
    %v4522 = vld [vmem:[#allocation7 + $0x6e8] sm:$0xff]
    %v4523 = vld [vmem:[#allocation7 + $0x6f0] sm:$0xff]
    %v4524 = vld [vmem:[#allocation7 + $0x6f8] sm:$0xff]
    %v4525 = vld [vmem:[#allocation7 + $0x700] sm:$0xff]
    %v4526 = vld [vmem:[#allocation7 + $0x708] sm:$0xff]
    %v4527 = vld [vmem:[#allocation7 + $0x710] sm:$0xff]
    %v4528 = vld [vmem:[#allocation7 + $0x718] sm:$0xff]
    %v4529 = vld [vmem:[#allocation7 + $0x720] sm:$0xff]
    %v4530 = vld [vmem:[#allocation7 + $0x728] sm:$0xff]
    %v4531 = vld [vmem:[#allocation7 + $0x730] sm:$0xff]
    %v4532 = vld [vmem:[#allocation7 + $0x738] sm:$0xff]
    %v4533 = vld [vmem:[#allocation7 + $0x740] sm:$0xff]
    %v4534 = vld [vmem:[#allocation7 + $0x748] sm:$0xff]
    %v4535 = vld [vmem:[#allocation7 + $0x750] sm:$0xff]
    %v4536 = vld [vmem:[#allocation7 + $0x758] sm:$0xff]
    %v4537 = vld [vmem:[#allocation7 + $0x760] sm:$0xff]
    %v4538 = vld [vmem:[#allocation7 + $0x768] sm:$0xff]
    %v4539 = vld [vmem:[#allocation7 + $0x770] sm:$0xff]
    %v4540 = vld [vmem:[#allocation7 + $0x778] sm:$0xff]
    %v4541 = vld [vmem:[#allocation7 + $0x780] sm:$0xff]
    %v4542 = vld [vmem:[#allocation7 + $0x788] sm:$0xff]
    %v4543 = vld [vmem:[#allocation7 + $0x790] sm:$0xff]
    %v4544 = vld [vmem:[#allocation7 + $0x798] sm:$0xff]
    %v4545 = vld [vmem:[#allocation7 + $0x7a0] sm:$0xff]
    %v4546 = vld [vmem:[#allocation7 + $0x7a8] sm:$0xff]
    %v4547 = vld [vmem:[#allocation7 + $0x7b0] sm:$0xff]
    %v4548 = vld [vmem:[#allocation7 + $0x7b8] sm:$0xff]
    %v4549 = vld [vmem:[#allocation7 + $0x7c0] sm:$0xff]
    %v4550 = vld [vmem:[#allocation7 + $0x7c8] sm:$0xff]
    %v4551 = vld [vmem:[#allocation7 + $0x7d0] sm:$0xff]
    %v4552 = vld [vmem:[#allocation7 + $0x7d8] sm:$0xff]
    %v4553 = vld [vmem:[#allocation7 + $0x7e0] sm:$0xff]
    %v4554 = vld [vmem:[#allocation7 + $0x7e8] sm:$0xff]
    %v4555 = vld [vmem:[#allocation7 + $0x7f0] sm:$0xff]
    %v4556 = vld [vmem:[#allocation7 + $0x7f8] sm:$0xff]
    %v4559 = vlaneseq
    %v4560 = vshrl.u32 %v4559, 7
    %v4561 = vsub.s32 0, %v4560
    %v4562 = vrot.slane %v4291, %v4561
    %v4563 = vlaneseq
    %v4564 = vshrl.u32 %v4563, 7
    %v4565 = vsub.s32 4, %v4564
    %v4566 = vrot.slane %v4291, %v4565
    %v4567 = vlaneseq
    %v4568 = vshrl.u32 %v4567, 7
    %v4569 = vsub.s32 0, %v4568
    %v4570 = vrot.slane %v4292, %v4569
    %v4571 = vlaneseq
    %v4572 = vshrl.u32 %v4571, 7
    %v4573 = vsub.s32 4, %v4572
    %v4574 = vrot.slane %v4292, %v4573
    %v4579 = vlaneseq
    %v4580 = vshrl.u32 %v4579, 7
    %v4581 = vsub.s32 0, %v4580
    %v4582 = vrot.slane %v4562, %v4581
    %v4583 = vlaneseq
    %v4584 = vshrl.u32 %v4583, 7
    %v4585 = vsub.s32 0, %v4584
    %v4586 = vrot.slane %v4566, %v4585
    %v4587 = vlaneseq
    %v4588 = vshrl.u32 %v4587, 7
    %v4589 = vsub.s32 0, %v4588
    %v4590 = vrot.slane %v4570, %v4589
    %v4591 = vlaneseq
    %v4592 = vshrl.u32 %v4591, 7
    %v4593 = vsub.s32 0, %v4592
    %v4594 = vrot.slane %v4574, %v4593
    %v4851 = vunpack.c.l.b16 %v4301
    %v4852 = vunpack.c.h.b16 %v4301
    %v4853 = vunpack.c.l.b16 %v4302
    %v4854 = vunpack.c.h.b16 %v4302
    %v4855 = vunpack.c.l.b16 %v4303
    %v4856 = vunpack.c.h.b16 %v4303
    %v4857 = vunpack.c.l.b16 %v4304
    %v4858 = vunpack.c.h.b16 %v4304
    %v4859 = vunpack.c.l.b16 %v4305
    %v4860 = vunpack.c.h.b16 %v4305
    %v4861 = vunpack.c.l.b16 %v4306
    %v4862 = vunpack.c.h.b16 %v4306
    %v4863 = vunpack.c.l.b16 %v4307
    %v4864 = vunpack.c.h.b16 %v4307
    %v4865 = vunpack.c.l.b16 %v4308
    %v4866 = vunpack.c.h.b16 %v4308
    %v4867 = vunpack.c.l.b16 %v4309
    %v4868 = vunpack.c.h.b16 %v4309
    %v4869 = vunpack.c.l.b16 %v4310
    %v4870 = vunpack.c.h.b16 %v4310
    %v4871 = vunpack.c.l.b16 %v4311
    %v4872 = vunpack.c.h.b16 %v4311
    %v4873 = vunpack.c.l.b16 %v4312
    %v4874 = vunpack.c.h.b16 %v4312
    %v4875 = vunpack.c.l.b16 %v4313
    %v4876 = vunpack.c.h.b16 %v4313
    %v4877 = vunpack.c.l.b16 %v4314
    %v4878 = vunpack.c.h.b16 %v4314
    %v4879 = vunpack.c.l.b16 %v4315
    %v4880 = vunpack.c.h.b16 %v4315
    %v4881 = vunpack.c.l.b16 %v4316
    %v4882 = vunpack.c.h.b16 %v4316
    %v4883 = vunpack.c.l.b16 %v4317
    %v4884 = vunpack.c.h.b16 %v4317
    %v4885 = vunpack.c.l.b16 %v4318
    %v4886 = vunpack.c.h.b16 %v4318
    %v4887 = vunpack.c.l.b16 %v4319
    %v4888 = vunpack.c.h.b16 %v4319
    %v4889 = vunpack.c.l.b16 %v4320
    %v4890 = vunpack.c.h.b16 %v4320
    %v4891 = vunpack.c.l.b16 %v4321
    %v4892 = vunpack.c.h.b16 %v4321
    %v4893 = vunpack.c.l.b16 %v4322
    %v4894 = vunpack.c.h.b16 %v4322
    %v4895 = vunpack.c.l.b16 %v4323
    %v4896 = vunpack.c.h.b16 %v4323
    %v4897 = vunpack.c.l.b16 %v4324
    %v4898 = vunpack.c.h.b16 %v4324
    %v4899 = vunpack.c.l.b16 %v4325
    %v4900 = vunpack.c.h.b16 %v4325
    %v4901 = vunpack.c.l.b16 %v4326
    %v4902 = vunpack.c.h.b16 %v4326
    %v4903 = vunpack.c.l.b16 %v4327
    %v4904 = vunpack.c.h.b16 %v4327
    %v4905 = vunpack.c.l.b16 %v4328
    %v4906 = vunpack.c.h.b16 %v4328
    %v4907 = vunpack.c.l.b16 %v4329
    %v4908 = vunpack.c.h.b16 %v4329
    %v4909 = vunpack.c.l.b16 %v4330
    %v4910 = vunpack.c.h.b16 %v4330
    %v4911 = vunpack.c.l.b16 %v4331
    %v4912 = vunpack.c.h.b16 %v4331
    %v4913 = vunpack.c.l.b16 %v4332
    %v4914 = vunpack.c.h.b16 %v4332
    %v4915 = vunpack.c.l.b16 %v4333
    %v4916 = vunpack.c.h.b16 %v4333
    %v4917 = vunpack.c.l.b16 %v4334
    %v4918 = vunpack.c.h.b16 %v4334
    %v4919 = vunpack.c.l.b16 %v4335
    %v4920 = vunpack.c.h.b16 %v4335
    %v4921 = vunpack.c.l.b16 %v4336
    %v4922 = vunpack.c.h.b16 %v4336
    %v4923 = vunpack.c.l.b16 %v4337
    %v4924 = vunpack.c.h.b16 %v4337
    %v4925 = vunpack.c.l.b16 %v4338
    %v4926 = vunpack.c.h.b16 %v4338
    %v4927 = vunpack.c.l.b16 %v4339
    %v4928 = vunpack.c.h.b16 %v4339
    %v4929 = vunpack.c.l.b16 %v4340
    %v4930 = vunpack.c.h.b16 %v4340
    %v4931 = vunpack.c.l.b16 %v4341
    %v4932 = vunpack.c.h.b16 %v4341
    %v4933 = vunpack.c.l.b16 %v4342
    %v4934 = vunpack.c.h.b16 %v4342
    %v4935 = vunpack.c.l.b16 %v4343
    %v4936 = vunpack.c.h.b16 %v4343
    %v4937 = vunpack.c.l.b16 %v4344
    %v4938 = vunpack.c.h.b16 %v4344
    %v4939 = vunpack.c.l.b16 %v4345
    %v4940 = vunpack.c.h.b16 %v4345
    %v4941 = vunpack.c.l.b16 %v4346
    %v4942 = vunpack.c.h.b16 %v4346
    %v4943 = vunpack.c.l.b16 %v4347
    %v4944 = vunpack.c.h.b16 %v4347
    %v4945 = vunpack.c.l.b16 %v4348
    %v4946 = vunpack.c.h.b16 %v4348
    %v4947 = vunpack.c.l.b16 %v4349
    %v4948 = vunpack.c.h.b16 %v4349
    %v4949 = vunpack.c.l.b16 %v4350
    %v4950 = vunpack.c.h.b16 %v4350
    %v4951 = vunpack.c.l.b16 %v4351
    %v4952 = vunpack.c.h.b16 %v4351
    %v4953 = vunpack.c.l.b16 %v4352
    %v4954 = vunpack.c.h.b16 %v4352
    %v4955 = vunpack.c.l.b16 %v4353
    %v4956 = vunpack.c.h.b16 %v4353
    %v4957 = vunpack.c.l.b16 %v4354
    %v4958 = vunpack.c.h.b16 %v4354
    %v4959 = vunpack.c.l.b16 %v4355
    %v4960 = vunpack.c.h.b16 %v4355
    %v4961 = vunpack.c.l.b16 %v4356
    %v4962 = vunpack.c.h.b16 %v4356
    %v4963 = vunpack.c.l.b16 %v4357
    %v4964 = vunpack.c.h.b16 %v4357
    %v4965 = vunpack.c.l.b16 %v4358
    %v4966 = vunpack.c.h.b16 %v4358
    %v4967 = vunpack.c.l.b16 %v4359
    %v4968 = vunpack.c.h.b16 %v4359
    %v4969 = vunpack.c.l.b16 %v4360
    %v4970 = vunpack.c.h.b16 %v4360
    %v4971 = vunpack.c.l.b16 %v4361
    %v4972 = vunpack.c.h.b16 %v4361
    %v4973 = vunpack.c.l.b16 %v4362
    %v4974 = vunpack.c.h.b16 %v4362
    %v4975 = vunpack.c.l.b16 %v4363
    %v4976 = vunpack.c.h.b16 %v4363
    %v4977 = vunpack.c.l.b16 %v4364
    %v4978 = vunpack.c.h.b16 %v4364
    %v4979 = vunpack.c.l.b16 %v4365
    %v4980 = vunpack.c.h.b16 %v4365
    %v4981 = vunpack.c.l.b16 %v4366
    %v4982 = vunpack.c.h.b16 %v4366
    %v4983 = vunpack.c.l.b16 %v4367
    %v4984 = vunpack.c.h.b16 %v4367
    %v4985 = vunpack.c.l.b16 %v4368
    %v4986 = vunpack.c.h.b16 %v4368
    %v4987 = vunpack.c.l.b16 %v4369
    %v4988 = vunpack.c.h.b16 %v4369
    %v4989 = vunpack.c.l.b16 %v4370
    %v4990 = vunpack.c.h.b16 %v4370
    %v4991 = vunpack.c.l.b16 %v4371
    %v4992 = vunpack.c.h.b16 %v4371
    %v4993 = vunpack.c.l.b16 %v4372
    %v4994 = vunpack.c.h.b16 %v4372
    %v4995 = vunpack.c.l.b16 %v4373
    %v4996 = vunpack.c.h.b16 %v4373
    %v4997 = vunpack.c.l.b16 %v4374
    %v4998 = vunpack.c.h.b16 %v4374
    %v4999 = vunpack.c.l.b16 %v4375
    %v5000 = vunpack.c.h.b16 %v4375
    %v5001 = vunpack.c.l.b16 %v4376
    %v5002 = vunpack.c.h.b16 %v4376
    %v5003 = vunpack.c.l.b16 %v4377
    %v5004 = vunpack.c.h.b16 %v4377
    %v5005 = vunpack.c.l.b16 %v4378
    %v5006 = vunpack.c.h.b16 %v4378
    %v5007 = vunpack.c.l.b16 %v4379
    %v5008 = vunpack.c.h.b16 %v4379
    %v5009 = vunpack.c.l.b16 %v4380
    %v5010 = vunpack.c.h.b16 %v4380
    %v5011 = vunpack.c.l.b16 %v4381
    %v5012 = vunpack.c.h.b16 %v4381
    %v5013 = vunpack.c.l.b16 %v4382
    %v5014 = vunpack.c.h.b16 %v4382
    %v5015 = vunpack.c.l.b16 %v4383
    %v5016 = vunpack.c.h.b16 %v4383
    %v5017 = vunpack.c.l.b16 %v4384
    %v5018 = vunpack.c.h.b16 %v4384
    %v5019 = vunpack.c.l.b16 %v4385
    %v5020 = vunpack.c.h.b16 %v4385
    %v5021 = vunpack.c.l.b16 %v4386
    %v5022 = vunpack.c.h.b16 %v4386
    %v5023 = vunpack.c.l.b16 %v4387
    %v5024 = vunpack.c.h.b16 %v4387
    %v5025 = vunpack.c.l.b16 %v4388
    %v5026 = vunpack.c.h.b16 %v4388
    %v5027 = vunpack.c.l.b16 %v4389
    %v5028 = vunpack.c.h.b16 %v4389
    %v5029 = vunpack.c.l.b16 %v4390
    %v5030 = vunpack.c.h.b16 %v4390
    %v5031 = vunpack.c.l.b16 %v4391
    %v5032 = vunpack.c.h.b16 %v4391
    %v5033 = vunpack.c.l.b16 %v4392
    %v5034 = vunpack.c.h.b16 %v4392
    %v5035 = vunpack.c.l.b16 %v4393
    %v5036 = vunpack.c.h.b16 %v4393
    %v5037 = vunpack.c.l.b16 %v4394
    %v5038 = vunpack.c.h.b16 %v4394
    %v5039 = vunpack.c.l.b16 %v4395
    %v5040 = vunpack.c.h.b16 %v4395
    %v5041 = vunpack.c.l.b16 %v4396
    %v5042 = vunpack.c.h.b16 %v4396
    %v5043 = vunpack.c.l.b16 %v4397
    %v5044 = vunpack.c.h.b16 %v4397
    %v5045 = vunpack.c.l.b16 %v4398
    %v5046 = vunpack.c.h.b16 %v4398
    %v5047 = vunpack.c.l.b16 %v4399
    %v5048 = vunpack.c.h.b16 %v4399
    %v5049 = vunpack.c.l.b16 %v4400
    %v5050 = vunpack.c.h.b16 %v4400
    %v5051 = vunpack.c.l.b16 %v4401
    %v5052 = vunpack.c.h.b16 %v4401
    %v5053 = vunpack.c.l.b16 %v4402
    %v5054 = vunpack.c.h.b16 %v4402
    %v5055 = vunpack.c.l.b16 %v4403
    %v5056 = vunpack.c.h.b16 %v4403
    %v5057 = vunpack.c.l.b16 %v4404
    %v5058 = vunpack.c.h.b16 %v4404
    %v5059 = vunpack.c.l.b16 %v4405
    %v5060 = vunpack.c.h.b16 %v4405
    %v5061 = vunpack.c.l.b16 %v4406
    %v5062 = vunpack.c.h.b16 %v4406
    %v5063 = vunpack.c.l.b16 %v4407
    %v5064 = vunpack.c.h.b16 %v4407
    %v5065 = vunpack.c.l.b16 %v4408
    %v5066 = vunpack.c.h.b16 %v4408
    %v5067 = vunpack.c.l.b16 %v4409
    %v5068 = vunpack.c.h.b16 %v4409
    %v5069 = vunpack.c.l.b16 %v4410
    %v5070 = vunpack.c.h.b16 %v4410
    %v5071 = vunpack.c.l.b16 %v4411
    %v5072 = vunpack.c.h.b16 %v4411
    %v5073 = vunpack.c.l.b16 %v4412
    %v5074 = vunpack.c.h.b16 %v4412
    %v5075 = vunpack.c.l.b16 %v4413
    %v5076 = vunpack.c.h.b16 %v4413
    %v5077 = vunpack.c.l.b16 %v4414
    %v5078 = vunpack.c.h.b16 %v4414
    %v5079 = vunpack.c.l.b16 %v4415
    %v5080 = vunpack.c.h.b16 %v4415
    %v5081 = vunpack.c.l.b16 %v4416
    %v5082 = vunpack.c.h.b16 %v4416
    %v5083 = vunpack.c.l.b16 %v4417
    %v5084 = vunpack.c.h.b16 %v4417
    %v5085 = vunpack.c.l.b16 %v4418
    %v5086 = vunpack.c.h.b16 %v4418
    %v5087 = vunpack.c.l.b16 %v4419
    %v5088 = vunpack.c.h.b16 %v4419
    %v5089 = vunpack.c.l.b16 %v4420
    %v5090 = vunpack.c.h.b16 %v4420
    %v5091 = vunpack.c.l.b16 %v4421
    %v5092 = vunpack.c.h.b16 %v4421
    %v5093 = vunpack.c.l.b16 %v4422
    %v5094 = vunpack.c.h.b16 %v4422
    %v5095 = vunpack.c.l.b16 %v4423
    %v5096 = vunpack.c.h.b16 %v4423
    %v5097 = vunpack.c.l.b16 %v4424
    %v5098 = vunpack.c.h.b16 %v4424
    %v5099 = vunpack.c.l.b16 %v4425
    %v5100 = vunpack.c.h.b16 %v4425
    %v5101 = vunpack.c.l.b16 %v4426
    %v5102 = vunpack.c.h.b16 %v4426
    %v5103 = vunpack.c.l.b16 %v4427
    %v5104 = vunpack.c.h.b16 %v4427
    %v5105 = vunpack.c.l.b16 %v4428
    %v5106 = vunpack.c.h.b16 %v4428
    %v5107 = vunpack.c.l.b16 %v4429
    %v5108 = vunpack.c.h.b16 %v4429
    %v5109 = vunpack.c.l.b16 %v4430
    %v5110 = vunpack.c.h.b16 %v4430
    %v5111 = vunpack.c.l.b16 %v4431
    %v5112 = vunpack.c.h.b16 %v4431
    %v5113 = vunpack.c.l.b16 %v4432
    %v5114 = vunpack.c.h.b16 %v4432
    %v5115 = vunpack.c.l.b16 %v4433
    %v5116 = vunpack.c.h.b16 %v4433
    %v5117 = vunpack.c.l.b16 %v4434
    %v5118 = vunpack.c.h.b16 %v4434
    %v5119 = vunpack.c.l.b16 %v4435
    %v5120 = vunpack.c.h.b16 %v4435
    %v5121 = vunpack.c.l.b16 %v4436
    %v5122 = vunpack.c.h.b16 %v4436
    %v5123 = vunpack.c.l.b16 %v4437
    %v5124 = vunpack.c.h.b16 %v4437
    %v5125 = vunpack.c.l.b16 %v4438
    %v5126 = vunpack.c.h.b16 %v4438
    %v5127 = vunpack.c.l.b16 %v4439
    %v5128 = vunpack.c.h.b16 %v4439
    %v5129 = vunpack.c.l.b16 %v4440
    %v5130 = vunpack.c.h.b16 %v4440
    %v5131 = vunpack.c.l.b16 %v4441
    %v5132 = vunpack.c.h.b16 %v4441
    %v5133 = vunpack.c.l.b16 %v4442
    %v5134 = vunpack.c.h.b16 %v4442
    %v5135 = vunpack.c.l.b16 %v4443
    %v5136 = vunpack.c.h.b16 %v4443
    %v5137 = vunpack.c.l.b16 %v4444
    %v5138 = vunpack.c.h.b16 %v4444
    %v5139 = vunpack.c.l.b16 %v4445
    %v5140 = vunpack.c.h.b16 %v4445
    %v5141 = vunpack.c.l.b16 %v4446
    %v5142 = vunpack.c.h.b16 %v4446
    %v5143 = vunpack.c.l.b16 %v4447
    %v5144 = vunpack.c.h.b16 %v4447
    %v5145 = vunpack.c.l.b16 %v4448
    %v5146 = vunpack.c.h.b16 %v4448
    %v5147 = vunpack.c.l.b16 %v4449
    %v5148 = vunpack.c.h.b16 %v4449
    %v5149 = vunpack.c.l.b16 %v4450
    %v5150 = vunpack.c.h.b16 %v4450
    %v5151 = vunpack.c.l.b16 %v4451
    %v5152 = vunpack.c.h.b16 %v4451
    %v5153 = vunpack.c.l.b16 %v4452
    %v5154 = vunpack.c.h.b16 %v4452
    %v5155 = vunpack.c.l.b16 %v4453
    %v5156 = vunpack.c.h.b16 %v4453
    %v5157 = vunpack.c.l.b16 %v4454
    %v5158 = vunpack.c.h.b16 %v4454
    %v5159 = vunpack.c.l.b16 %v4455
    %v5160 = vunpack.c.h.b16 %v4455
    %v5161 = vunpack.c.l.b16 %v4456
    %v5162 = vunpack.c.h.b16 %v4456
    %v5163 = vunpack.c.l.b16 %v4457
    %v5164 = vunpack.c.h.b16 %v4457
    %v5165 = vunpack.c.l.b16 %v4458
    %v5166 = vunpack.c.h.b16 %v4458
    %v5167 = vunpack.c.l.b16 %v4459
    %v5168 = vunpack.c.h.b16 %v4459
    %v5169 = vunpack.c.l.b16 %v4460
    %v5170 = vunpack.c.h.b16 %v4460
    %v5171 = vunpack.c.l.b16 %v4461
    %v5172 = vunpack.c.h.b16 %v4461
    %v5173 = vunpack.c.l.b16 %v4462
    %v5174 = vunpack.c.h.b16 %v4462
    %v5175 = vunpack.c.l.b16 %v4463
    %v5176 = vunpack.c.h.b16 %v4463
    %v5177 = vunpack.c.l.b16 %v4464
    %v5178 = vunpack.c.h.b16 %v4464
    %v5179 = vunpack.c.l.b16 %v4465
    %v5180 = vunpack.c.h.b16 %v4465
    %v5181 = vunpack.c.l.b16 %v4466
    %v5182 = vunpack.c.h.b16 %v4466
    %v5183 = vunpack.c.l.b16 %v4467
    %v5184 = vunpack.c.h.b16 %v4467
    %v5185 = vunpack.c.l.b16 %v4468
    %v5186 = vunpack.c.h.b16 %v4468
    %v5187 = vunpack.c.l.b16 %v4469
    %v5188 = vunpack.c.h.b16 %v4469
    %v5189 = vunpack.c.l.b16 %v4470
    %v5190 = vunpack.c.h.b16 %v4470
    %v5191 = vunpack.c.l.b16 %v4471
    %v5192 = vunpack.c.h.b16 %v4471
    %v5193 = vunpack.c.l.b16 %v4472
    %v5194 = vunpack.c.h.b16 %v4472
    %v5195 = vunpack.c.l.b16 %v4473
    %v5196 = vunpack.c.h.b16 %v4473
    %v5197 = vunpack.c.l.b16 %v4474
    %v5198 = vunpack.c.h.b16 %v4474
    %v5199 = vunpack.c.l.b16 %v4475
    %v5200 = vunpack.c.h.b16 %v4475
    %v5201 = vunpack.c.l.b16 %v4476
    %v5202 = vunpack.c.h.b16 %v4476
    %v5203 = vunpack.c.l.b16 %v4477
    %v5204 = vunpack.c.h.b16 %v4477
    %v5205 = vunpack.c.l.b16 %v4478
    %v5206 = vunpack.c.h.b16 %v4478
    %v5207 = vunpack.c.l.b16 %v4479
    %v5208 = vunpack.c.h.b16 %v4479
    %v5209 = vunpack.c.l.b16 %v4480
    %v5210 = vunpack.c.h.b16 %v4480
    %v5211 = vunpack.c.l.b16 %v4481
    %v5212 = vunpack.c.h.b16 %v4481
    %v5213 = vunpack.c.l.b16 %v4482
    %v5214 = vunpack.c.h.b16 %v4482
    %v5215 = vunpack.c.l.b16 %v4483
    %v5216 = vunpack.c.h.b16 %v4483
    %v5217 = vunpack.c.l.b16 %v4484
    %v5218 = vunpack.c.h.b16 %v4484
    %v5219 = vunpack.c.l.b16 %v4485
    %v5220 = vunpack.c.h.b16 %v4485
    %v5221 = vunpack.c.l.b16 %v4486
    %v5222 = vunpack.c.h.b16 %v4486
    %v5223 = vunpack.c.l.b16 %v4487
    %v5224 = vunpack.c.h.b16 %v4487
    %v5225 = vunpack.c.l.b16 %v4488
    %v5226 = vunpack.c.h.b16 %v4488
    %v5227 = vunpack.c.l.b16 %v4489
    %v5228 = vunpack.c.h.b16 %v4489
    %v5229 = vunpack.c.l.b16 %v4490
    %v5230 = vunpack.c.h.b16 %v4490
    %v5231 = vunpack.c.l.b16 %v4491
    %v5232 = vunpack.c.h.b16 %v4491
    %v5233 = vunpack.c.l.b16 %v4492
    %v5234 = vunpack.c.h.b16 %v4492
    %v5235 = vunpack.c.l.b16 %v4493
    %v5236 = vunpack.c.h.b16 %v4493
    %v5237 = vunpack.c.l.b16 %v4494
    %v5238 = vunpack.c.h.b16 %v4494
    %v5239 = vunpack.c.l.b16 %v4495
    %v5240 = vunpack.c.h.b16 %v4495
    %v5241 = vunpack.c.l.b16 %v4496
    %v5242 = vunpack.c.h.b16 %v4496
    %v5243 = vunpack.c.l.b16 %v4497
    %v5244 = vunpack.c.h.b16 %v4497
    %v5245 = vunpack.c.l.b16 %v4498
    %v5246 = vunpack.c.h.b16 %v4498
    %v5247 = vunpack.c.l.b16 %v4499
    %v5248 = vunpack.c.h.b16 %v4499
    %v5249 = vunpack.c.l.b16 %v4500
    %v5250 = vunpack.c.h.b16 %v4500
    %v5251 = vunpack.c.l.b16 %v4501
    %v5252 = vunpack.c.h.b16 %v4501
    %v5253 = vunpack.c.l.b16 %v4502
    %v5254 = vunpack.c.h.b16 %v4502
    %v5255 = vunpack.c.l.b16 %v4503
    %v5256 = vunpack.c.h.b16 %v4503
    %v5257 = vunpack.c.l.b16 %v4504
    %v5258 = vunpack.c.h.b16 %v4504
    %v5259 = vunpack.c.l.b16 %v4505
    %v5260 = vunpack.c.h.b16 %v4505
    %v5261 = vunpack.c.l.b16 %v4506
    %v5262 = vunpack.c.h.b16 %v4506
    %v5263 = vunpack.c.l.b16 %v4507
    %v5264 = vunpack.c.h.b16 %v4507
    %v5265 = vunpack.c.l.b16 %v4508
    %v5266 = vunpack.c.h.b16 %v4508
    %v5267 = vunpack.c.l.b16 %v4509
    %v5268 = vunpack.c.h.b16 %v4509
    %v5269 = vunpack.c.l.b16 %v4510
    %v5270 = vunpack.c.h.b16 %v4510
    %v5271 = vunpack.c.l.b16 %v4511
    %v5272 = vunpack.c.h.b16 %v4511
    %v5273 = vunpack.c.l.b16 %v4512
    %v5274 = vunpack.c.h.b16 %v4512
    %v5275 = vunpack.c.l.b16 %v4513
    %v5276 = vunpack.c.h.b16 %v4513
    %v5277 = vunpack.c.l.b16 %v4514
    %v5278 = vunpack.c.h.b16 %v4514
    %v5279 = vunpack.c.l.b16 %v4515
    %v5280 = vunpack.c.h.b16 %v4515
    %v5281 = vunpack.c.l.b16 %v4516
    %v5282 = vunpack.c.h.b16 %v4516
    %v5283 = vunpack.c.l.b16 %v4517
    %v5284 = vunpack.c.h.b16 %v4517
    %v5285 = vunpack.c.l.b16 %v4518
    %v5286 = vunpack.c.h.b16 %v4518
    %v5287 = vunpack.c.l.b16 %v4519
    %v5288 = vunpack.c.h.b16 %v4519
    %v5289 = vunpack.c.l.b16 %v4520
    %v5290 = vunpack.c.h.b16 %v4520
    %v5291 = vunpack.c.l.b16 %v4521
    %v5292 = vunpack.c.h.b16 %v4521
    %v5293 = vunpack.c.l.b16 %v4522
    %v5294 = vunpack.c.h.b16 %v4522
    %v5295 = vunpack.c.l.b16 %v4523
    %v5296 = vunpack.c.h.b16 %v4523
    %v5297 = vunpack.c.l.b16 %v4524
    %v5298 = vunpack.c.h.b16 %v4524
    %v5299 = vunpack.c.l.b16 %v4525
    %v5300 = vunpack.c.h.b16 %v4525
    %v5301 = vunpack.c.l.b16 %v4526
    %v5302 = vunpack.c.h.b16 %v4526
    %v5303 = vunpack.c.l.b16 %v4527
    %v5304 = vunpack.c.h.b16 %v4527
    %v5305 = vunpack.c.l.b16 %v4528
    %v5306 = vunpack.c.h.b16 %v4528
    %v5307 = vunpack.c.l.b16 %v4529
    %v5308 = vunpack.c.h.b16 %v4529
    %v5309 = vunpack.c.l.b16 %v4530
    %v5310 = vunpack.c.h.b16 %v4530
    %v5311 = vunpack.c.l.b16 %v4531
    %v5312 = vunpack.c.h.b16 %v4531
    %v5313 = vunpack.c.l.b16 %v4532
    %v5314 = vunpack.c.h.b16 %v4532
    %v5315 = vunpack.c.l.b16 %v4533
    %v5316 = vunpack.c.h.b16 %v4533
    %v5317 = vunpack.c.l.b16 %v4534
    %v5318 = vunpack.c.h.b16 %v4534
    %v5319 = vunpack.c.l.b16 %v4535
    %v5320 = vunpack.c.h.b16 %v4535
    %v5321 = vunpack.c.l.b16 %v4536
    %v5322 = vunpack.c.h.b16 %v4536
    %v5323 = vunpack.c.l.b16 %v4537
    %v5324 = vunpack.c.h.b16 %v4537
    %v5325 = vunpack.c.l.b16 %v4538
    %v5326 = vunpack.c.h.b16 %v4538
    %v5327 = vunpack.c.l.b16 %v4539
    %v5328 = vunpack.c.h.b16 %v4539
    %v5329 = vunpack.c.l.b16 %v4540
    %v5330 = vunpack.c.h.b16 %v4540
    %v5331 = vunpack.c.l.b16 %v4541
    %v5332 = vunpack.c.h.b16 %v4541
    %v5333 = vunpack.c.l.b16 %v4542
    %v5334 = vunpack.c.h.b16 %v4542
    %v5335 = vunpack.c.l.b16 %v4543
    %v5336 = vunpack.c.h.b16 %v4543
    %v5337 = vunpack.c.l.b16 %v4544
    %v5338 = vunpack.c.h.b16 %v4544
    %v5339 = vunpack.c.l.b16 %v4545
    %v5340 = vunpack.c.h.b16 %v4545
    %v5341 = vunpack.c.l.b16 %v4546
    %v5342 = vunpack.c.h.b16 %v4546
    %v5343 = vunpack.c.l.b16 %v4547
    %v5344 = vunpack.c.h.b16 %v4547
    %v5345 = vunpack.c.l.b16 %v4548
    %v5346 = vunpack.c.h.b16 %v4548
    %v5347 = vunpack.c.l.b16 %v4549
    %v5348 = vunpack.c.h.b16 %v4549
    %v5349 = vunpack.c.l.b16 %v4550
    %v5350 = vunpack.c.h.b16 %v4550
    %v5351 = vunpack.c.l.b16 %v4551
    %v5352 = vunpack.c.h.b16 %v4551
    %v5353 = vunpack.c.l.b16 %v4552
    %v5354 = vunpack.c.h.b16 %v4552
    %v5355 = vunpack.c.l.b16 %v4553
    %v5356 = vunpack.c.h.b16 %v4553
    %v5357 = vunpack.c.l.b16 %v4554
    %v5358 = vunpack.c.h.b16 %v4554
    %v5359 = vunpack.c.l.b16 %v4555
    %v5360 = vunpack.c.h.b16 %v4555
    %v5361 = vunpack.c.l.b16 %v4556
    %v5362 = vunpack.c.h.b16 %v4556
    %v5363 = vpack.c.b16 %v4855, %v4851
    %v5364 = vpack.c.b16 %v4856, %v4852
    %v5365 = vpack.c.b16 %v4857, %v4853
    %v5366 = vpack.c.b16 %v4858, %v4854
    %v5367 = vpack.c.b16 %v4863, %v4859
    %v5368 = vpack.c.b16 %v4864, %v4860
    %v5369 = vpack.c.b16 %v4865, %v4861
    %v5370 = vpack.c.b16 %v4866, %v4862
    %v5371 = vpack.c.b16 %v4871, %v4867
    %v5372 = vpack.c.b16 %v4872, %v4868
    %v5373 = vpack.c.b16 %v4873, %v4869
    %v5374 = vpack.c.b16 %v4874, %v4870
    %v5375 = vpack.c.b16 %v4879, %v4875
    %v5376 = vpack.c.b16 %v4880, %v4876
    %v5377 = vpack.c.b16 %v4881, %v4877
    %v5378 = vpack.c.b16 %v4882, %v4878
    %v5379 = vpack.c.b16 %v4887, %v4883
    %v5380 = vpack.c.b16 %v4888, %v4884
    %v5381 = vpack.c.b16 %v4889, %v4885
    %v5382 = vpack.c.b16 %v4890, %v4886
    %v5383 = vpack.c.b16 %v4895, %v4891
    %v5384 = vpack.c.b16 %v4896, %v4892
    %v5385 = vpack.c.b16 %v4897, %v4893
    %v5386 = vpack.c.b16 %v4898, %v4894
    %v5387 = vpack.c.b16 %v4903, %v4899
    %v5388 = vpack.c.b16 %v4904, %v4900
    %v5389 = vpack.c.b16 %v4905, %v4901
    %v5390 = vpack.c.b16 %v4906, %v4902
    %v5391 = vpack.c.b16 %v4911, %v4907
    %v5392 = vpack.c.b16 %v4912, %v4908
    %v5393 = vpack.c.b16 %v4913, %v4909
    %v5394 = vpack.c.b16 %v4914, %v4910
    %v5395 = vpack.c.b16 %v4919, %v4915
    %v5396 = vpack.c.b16 %v4920, %v4916
    %v5397 = vpack.c.b16 %v4921, %v4917
    %v5398 = vpack.c.b16 %v4922, %v4918
    %v5399 = vpack.c.b16 %v4927, %v4923
    %v5400 = vpack.c.b16 %v4928, %v4924
    %v5401 = vpack.c.b16 %v4929, %v4925
    %v5402 = vpack.c.b16 %v4930, %v4926
    %v5403 = vpack.c.b16 %v4935, %v4931
    %v5404 = vpack.c.b16 %v4936, %v4932
    %v5405 = vpack.c.b16 %v4937, %v4933
    %v5406 = vpack.c.b16 %v4938, %v4934
    %v5407 = vpack.c.b16 %v4943, %v4939
    %v5408 = vpack.c.b16 %v4944, %v4940
    %v5409 = vpack.c.b16 %v4945, %v4941
    %v5410 = vpack.c.b16 %v4946, %v4942
    %v5411 = vpack.c.b16 %v4951, %v4947
    %v5412 = vpack.c.b16 %v4952, %v4948
    %v5413 = vpack.c.b16 %v4953, %v4949
    %v5414 = vpack.c.b16 %v4954, %v4950
    %v5415 = vpack.c.b16 %v4959, %v4955
    %v5416 = vpack.c.b16 %v4960, %v4956
    %v5417 = vpack.c.b16 %v4961, %v4957
    %v5418 = vpack.c.b16 %v4962, %v4958
    %v5419 = vpack.c.b16 %v4967, %v4963
    %v5420 = vpack.c.b16 %v4968, %v4964
    %v5421 = vpack.c.b16 %v4969, %v4965
    %v5422 = vpack.c.b16 %v4970, %v4966
    %v5423 = vpack.c.b16 %v4975, %v4971
    %v5424 = vpack.c.b16 %v4976, %v4972
    %v5425 = vpack.c.b16 %v4977, %v4973
    %v5426 = vpack.c.b16 %v4978, %v4974
    %v5427 = vpack.c.b16 %v4983, %v4979
    %v5428 = vpack.c.b16 %v4984, %v4980
    %v5429 = vpack.c.b16 %v4985, %v4981
    %v5430 = vpack.c.b16 %v4986, %v4982
    %v5431 = vpack.c.b16 %v4991, %v4987
    %v5432 = vpack.c.b16 %v4992, %v4988
    %v5433 = vpack.c.b16 %v4993, %v4989
    %v5434 = vpack.c.b16 %v4994, %v4990
    %v5435 = vpack.c.b16 %v4999, %v4995
    %v5436 = vpack.c.b16 %v5000, %v4996
    %v5437 = vpack.c.b16 %v5001, %v4997
    %v5438 = vpack.c.b16 %v5002, %v4998
    %v5439 = vpack.c.b16 %v5007, %v5003
    %v5440 = vpack.c.b16 %v5008, %v5004
    %v5441 = vpack.c.b16 %v5009, %v5005
    %v5442 = vpack.c.b16 %v5010, %v5006
    %v5443 = vpack.c.b16 %v5015, %v5011
    %v5444 = vpack.c.b16 %v5016, %v5012
    %v5445 = vpack.c.b16 %v5017, %v5013
    %v5446 = vpack.c.b16 %v5018, %v5014
    %v5447 = vpack.c.b16 %v5023, %v5019
    %v5448 = vpack.c.b16 %v5024, %v5020
    %v5449 = vpack.c.b16 %v5025, %v5021
    %v5450 = vpack.c.b16 %v5026, %v5022
    %v5451 = vpack.c.b16 %v5031, %v5027
    %v5452 = vpack.c.b16 %v5032, %v5028
    %v5453 = vpack.c.b16 %v5033, %v5029
    %v5454 = vpack.c.b16 %v5034, %v5030
    %v5455 = vpack.c.b16 %v5039, %v5035
    %v5456 = vpack.c.b16 %v5040, %v5036
    %v5457 = vpack.c.b16 %v5041, %v5037
    %v5458 = vpack.c.b16 %v5042, %v5038
    %v5459 = vpack.c.b16 %v5047, %v5043
    %v5460 = vpack.c.b16 %v5048, %v5044
    %v5461 = vpack.c.b16 %v5049, %v5045
    %v5462 = vpack.c.b16 %v5050, %v5046
    %v5463 = vpack.c.b16 %v5055, %v5051
    %v5464 = vpack.c.b16 %v5056, %v5052
    %v5465 = vpack.c.b16 %v5057, %v5053
    %v5466 = vpack.c.b16 %v5058, %v5054
    %v5467 = vpack.c.b16 %v5063, %v5059
    %v5468 = vpack.c.b16 %v5064, %v5060
    %v5469 = vpack.c.b16 %v5065, %v5061
    %v5470 = vpack.c.b16 %v5066, %v5062
    %v5471 = vpack.c.b16 %v5071, %v5067
    %v5472 = vpack.c.b16 %v5072, %v5068
    %v5473 = vpack.c.b16 %v5073, %v5069
    %v5474 = vpack.c.b16 %v5074, %v5070
    %v5475 = vpack.c.b16 %v5079, %v5075
    %v5476 = vpack.c.b16 %v5080, %v5076
    %v5477 = vpack.c.b16 %v5081, %v5077
    %v5478 = vpack.c.b16 %v5082, %v5078
    %v5479 = vpack.c.b16 %v5087, %v5083
    %v5480 = vpack.c.b16 %v5088, %v5084
    %v5481 = vpack.c.b16 %v5089, %v5085
    %v5482 = vpack.c.b16 %v5090, %v5086
    %v5483 = vpack.c.b16 %v5095, %v5091
    %v5484 = vpack.c.b16 %v5096, %v5092
    %v5485 = vpack.c.b16 %v5097, %v5093
    %v5486 = vpack.c.b16 %v5098, %v5094
    %v5487 = vpack.c.b16 %v5103, %v5099
    %v5488 = vpack.c.b16 %v5104, %v5100
    %v5489 = vpack.c.b16 %v5105, %v5101
    %v5490 = vpack.c.b16 %v5106, %v5102
    %v5491 = vpack.c.b16 %v5111, %v5107
    %v5492 = vpack.c.b16 %v5112, %v5108
    %v5493 = vpack.c.b16 %v5113, %v5109
    %v5494 = vpack.c.b16 %v5114, %v5110
    %v5495 = vpack.c.b16 %v5119, %v5115
    %v5496 = vpack.c.b16 %v5120, %v5116
    %v5497 = vpack.c.b16 %v5121, %v5117
    %v5498 = vpack.c.b16 %v5122, %v5118
    %v5499 = vpack.c.b16 %v5127, %v5123
    %v5500 = vpack.c.b16 %v5128, %v5124
    %v5501 = vpack.c.b16 %v5129, %v5125
    %v5502 = vpack.c.b16 %v5130, %v5126
    %v5503 = vpack.c.b16 %v5135, %v5131
    %v5504 = vpack.c.b16 %v5136, %v5132
    %v5505 = vpack.c.b16 %v5137, %v5133
    %v5506 = vpack.c.b16 %v5138, %v5134
    %v5507 = vpack.c.b16 %v5143, %v5139
    %v5508 = vpack.c.b16 %v5144, %v5140
    %v5509 = vpack.c.b16 %v5145, %v5141
    %v5510 = vpack.c.b16 %v5146, %v5142
    %v5511 = vpack.c.b16 %v5151, %v5147
    %v5512 = vpack.c.b16 %v5152, %v5148
    %v5513 = vpack.c.b16 %v5153, %v5149
    %v5514 = vpack.c.b16 %v5154, %v5150
    %v5515 = vpack.c.b16 %v5159, %v5155
    %v5516 = vpack.c.b16 %v5160, %v5156
    %v5517 = vpack.c.b16 %v5161, %v5157
    %v5518 = vpack.c.b16 %v5162, %v5158
    %v5519 = vpack.c.b16 %v5167, %v5163
    %v5520 = vpack.c.b16 %v5168, %v5164
    %v5521 = vpack.c.b16 %v5169, %v5165
    %v5522 = vpack.c.b16 %v5170, %v5166
    %v5523 = vpack.c.b16 %v5175, %v5171
    %v5524 = vpack.c.b16 %v5176, %v5172
    %v5525 = vpack.c.b16 %v5177, %v5173
    %v5526 = vpack.c.b16 %v5178, %v5174
    %v5527 = vpack.c.b16 %v5183, %v5179
    %v5528 = vpack.c.b16 %v5184, %v5180
    %v5529 = vpack.c.b16 %v5185, %v5181
    %v5530 = vpack.c.b16 %v5186, %v5182
    %v5531 = vpack.c.b16 %v5191, %v5187
    %v5532 = vpack.c.b16 %v5192, %v5188
    %v5533 = vpack.c.b16 %v5193, %v5189
    %v5534 = vpack.c.b16 %v5194, %v5190
    %v5535 = vpack.c.b16 %v5199, %v5195
    %v5536 = vpack.c.b16 %v5200, %v5196
    %v5537 = vpack.c.b16 %v5201, %v5197
    %v5538 = vpack.c.b16 %v5202, %v5198
    %v5539 = vpack.c.b16 %v5207, %v5203
    %v5540 = vpack.c.b16 %v5208, %v5204
    %v5541 = vpack.c.b16 %v5209, %v5205
    %v5542 = vpack.c.b16 %v5210, %v5206
    %v5543 = vpack.c.b16 %v5215, %v5211
    %v5544 = vpack.c.b16 %v5216, %v5212
    %v5545 = vpack.c.b16 %v5217, %v5213
    %v5546 = vpack.c.b16 %v5218, %v5214
    %v5547 = vpack.c.b16 %v5223, %v5219
    %v5548 = vpack.c.b16 %v5224, %v5220
    %v5549 = vpack.c.b16 %v5225, %v5221
    %v5550 = vpack.c.b16 %v5226, %v5222
    %v5551 = vpack.c.b16 %v5231, %v5227
    %v5552 = vpack.c.b16 %v5232, %v5228
    %v5553 = vpack.c.b16 %v5233, %v5229
    %v5554 = vpack.c.b16 %v5234, %v5230
    %v5555 = vpack.c.b16 %v5239, %v5235
    %v5556 = vpack.c.b16 %v5240, %v5236
    %v5557 = vpack.c.b16 %v5241, %v5237
    %v5558 = vpack.c.b16 %v5242, %v5238
    %v5559 = vpack.c.b16 %v5247, %v5243
    %v5560 = vpack.c.b16 %v5248, %v5244
    %v5561 = vpack.c.b16 %v5249, %v5245
    %v5562 = vpack.c.b16 %v5250, %v5246
    %v5563 = vpack.c.b16 %v5255, %v5251
    %v5564 = vpack.c.b16 %v5256, %v5252
    %v5565 = vpack.c.b16 %v5257, %v5253
    %v5566 = vpack.c.b16 %v5258, %v5254
    %v5567 = vpack.c.b16 %v5263, %v5259
    %v5568 = vpack.c.b16 %v5264, %v5260
    %v5569 = vpack.c.b16 %v5265, %v5261
    %v5570 = vpack.c.b16 %v5266, %v5262
    %v5571 = vpack.c.b16 %v5271, %v5267
    %v5572 = vpack.c.b16 %v5272, %v5268
    %v5573 = vpack.c.b16 %v5273, %v5269
    %v5574 = vpack.c.b16 %v5274, %v5270
    %v5575 = vpack.c.b16 %v5279, %v5275
    %v5576 = vpack.c.b16 %v5280, %v5276
    %v5577 = vpack.c.b16 %v5281, %v5277
    %v5578 = vpack.c.b16 %v5282, %v5278
    %v5579 = vpack.c.b16 %v5287, %v5283
    %v5580 = vpack.c.b16 %v5288, %v5284
    %v5581 = vpack.c.b16 %v5289, %v5285
    %v5582 = vpack.c.b16 %v5290, %v5286
    %v5583 = vpack.c.b16 %v5295, %v5291
    %v5584 = vpack.c.b16 %v5296, %v5292
    %v5585 = vpack.c.b16 %v5297, %v5293
    %v5586 = vpack.c.b16 %v5298, %v5294
    %v5587 = vpack.c.b16 %v5303, %v5299
    %v5588 = vpack.c.b16 %v5304, %v5300
    %v5589 = vpack.c.b16 %v5305, %v5301
    %v5590 = vpack.c.b16 %v5306, %v5302
    %v5591 = vpack.c.b16 %v5311, %v5307
    %v5592 = vpack.c.b16 %v5312, %v5308
    %v5593 = vpack.c.b16 %v5313, %v5309
    %v5594 = vpack.c.b16 %v5314, %v5310
    %v5595 = vpack.c.b16 %v5319, %v5315
    %v5596 = vpack.c.b16 %v5320, %v5316
    %v5597 = vpack.c.b16 %v5321, %v5317
    %v5598 = vpack.c.b16 %v5322, %v5318
    %v5599 = vpack.c.b16 %v5327, %v5323
    %v5600 = vpack.c.b16 %v5328, %v5324
    %v5601 = vpack.c.b16 %v5329, %v5325
    %v5602 = vpack.c.b16 %v5330, %v5326
    %v5603 = vpack.c.b16 %v5335, %v5331
    %v5604 = vpack.c.b16 %v5336, %v5332
    %v5605 = vpack.c.b16 %v5337, %v5333
    %v5606 = vpack.c.b16 %v5338, %v5334
    %v5607 = vpack.c.b16 %v5343, %v5339
    %v5608 = vpack.c.b16 %v5344, %v5340
    %v5609 = vpack.c.b16 %v5345, %v5341
    %v5610 = vpack.c.b16 %v5346, %v5342
    %v5611 = vpack.c.b16 %v5351, %v5347
    %v5612 = vpack.c.b16 %v5352, %v5348
    %v5613 = vpack.c.b16 %v5353, %v5349
    %v5614 = vpack.c.b16 %v5354, %v5350
    %v5615 = vpack.c.b16 %v5359, %v5355
    %v5616 = vpack.c.b16 %v5360, %v5356
    %v5617 = vpack.c.b16 %v5361, %v5357
    %v5618 = vpack.c.b16 %v5362, %v5358
    %5875 = vmatprep.subr.bf16.mxu0 %v5392
    %5876 = vmatpush1.bf16.msra.mxu0 %v5391
    %5877 = vmatprep.subr.bf16.mxu0 %v5388
    %5878 = vmatpush1.bf16.msra.mxu0 %v5387
    %5879 = vmatprep.subr.bf16.mxu0 %v5384
    %5880 = vmatpush1.bf16.msra.mxu0 %v5383
    %5881 = vmatprep.subr.bf16.mxu0 %v5380
    %5882 = vmatpush1.bf16.msra.mxu0 %v5379
    %5883 = vmatprep.subr.bf16.mxu0 %v5376
    %5884 = vmatpush1.bf16.msra.mxu0 %v5375
    %5885 = vmatprep.subr.bf16.mxu0 %v5372
    %5886 = vmatpush1.bf16.msra.mxu0 %v5371
    %5887 = vmatprep.subr.bf16.mxu0 %v5368
    %5888 = vmatpush1.bf16.msra.mxu0 %v5367
    %5889 = vmatprep.subr.bf16.mxu0 %v5364
    %5890 = vmatpush1.bf16.msra.mxu0 %v5363
    %5891 = vmatprep.subr.bf16.mxu0 %v5424
    %5892 = vmatpush2.bf16.msra.mxu0 %v5423
    %5893 = vmatprep.subr.bf16.mxu0 %v5420
    %5894 = vmatpush2.bf16.msra.mxu0 %v5419
    %5895 = vmatprep.subr.bf16.mxu0 %v5416
    %5896 = vmatpush2.bf16.msra.mxu0 %v5415
    %5897 = vmatprep.subr.bf16.mxu0 %v5412
    %5898 = vmatpush2.bf16.msra.mxu0 %v5411
    %5899 = vmatprep.subr.bf16.mxu0 %v5408
    %5900 = vmatpush2.bf16.msra.mxu0 %v5407
    %5901 = vmatprep.subr.bf16.mxu0 %v5404
    %5902 = vmatpush2.bf16.msra.mxu0 %v5403
    %5903 = vmatprep.subr.bf16.mxu0 %v5400
    %5904 = vmatpush2.bf16.msra.mxu0 %v5399
    %5905 = vmatprep.subr.bf16.mxu0 %v5396
    %5906 = vmatpush2.bf16.msra.mxu0 %v5395
    %5907 = vmatprep.mubr.bf16.mxu0 %v4294
    %5908 = vmatmul.mubr.bf16.gmra.mxu0 %v4293
    %v5909 = vpop.f32.mrf.mxu0
    %v5910 = vadd.f32 %v4582, %v5909
    %v5911 = vpop.f32.mrf.mxu0
    %v5912 = vadd.f32 %v4586, %v5911
    %v5913 = vpop.f32.mrf.mxu0
    %v5914 = vpop.f32.mrf.mxu0
    %5915 = vdwg.mxu0
    %5916 = vmatprep.subr.bf16.mxu0 %v5456
    %5917 = vmatpush1.bf16.msra.mxu0 %v5455
    %5918 = vmatprep.subr.bf16.mxu0 %v5452
    %5919 = vmatpush1.bf16.msra.mxu0 %v5451
    %5920 = vmatprep.subr.bf16.mxu0 %v5448
    %5921 = vmatpush1.bf16.msra.mxu0 %v5447
    %5922 = vmatprep.subr.bf16.mxu0 %v5444
    %5923 = vmatpush1.bf16.msra.mxu0 %v5443
    %5924 = vmatprep.subr.bf16.mxu0 %v5440
    %5925 = vmatpush1.bf16.msra.mxu0 %v5439
    %5926 = vmatprep.subr.bf16.mxu0 %v5436
    %5927 = vmatpush1.bf16.msra.mxu0 %v5435
    %5928 = vmatprep.subr.bf16.mxu0 %v5432
    %5929 = vmatpush1.bf16.msra.mxu0 %v5431
    %5930 = vmatprep.subr.bf16.mxu0 %v5428
    %5931 = vmatpush1.bf16.msra.mxu0 %v5427
    %5932 = vmatprep.subr.bf16.mxu0 %v5488
    %5933 = vmatpush2.bf16.msra.mxu0 %v5487
    %5934 = vmatprep.subr.bf16.mxu0 %v5484
    %5935 = vmatpush2.bf16.msra.mxu0 %v5483
    %5936 = vmatprep.subr.bf16.mxu0 %v5480
    %5937 = vmatpush2.bf16.msra.mxu0 %v5479
    %5938 = vmatprep.subr.bf16.mxu0 %v5476
    %5939 = vmatpush2.bf16.msra.mxu0 %v5475
    %5940 = vmatprep.subr.bf16.mxu0 %v5472
    %5941 = vmatpush2.bf16.msra.mxu0 %v5471
    %5942 = vmatprep.subr.bf16.mxu0 %v5468
    %5943 = vmatpush2.bf16.msra.mxu0 %v5467
    %5944 = vmatprep.subr.bf16.mxu0 %v5464
    %5945 = vmatpush2.bf16.msra.mxu0 %v5463
    %5946 = vmatprep.subr.bf16.mxu0 %v5460
    %5947 = vmatpush2.bf16.msra.mxu0 %v5459
    %5948 = vmatprep.mubr.bf16.mxu0 %v4296
    %5949 = vmatmul.mubr.bf16.gmra.mxu0 %v4295
    %v5950 = vpop.f32.mrf.mxu0
    %v5951 = vadd.f32 %v5910, %v5950
    %v5952 = vpop.f32.mrf.mxu0
    %v5953 = vadd.f32 %v5912, %v5952
    %v5954 = vpop.f32.mrf.mxu0
    %v5955 = vpop.f32.mrf.mxu0
    %5956 = vdwg.mxu0
    %5957 = vmatprep.subr.bf16.mxu0 %v5520
    %5958 = vmatpush1.bf16.msra.mxu0 %v5519
    %5959 = vmatprep.subr.bf16.mxu0 %v5516
    %5960 = vmatpush1.bf16.msra.mxu0 %v5515
    %5961 = vmatprep.subr.bf16.mxu0 %v5512
    %5962 = vmatpush1.bf16.msra.mxu0 %v5511
    %5963 = vmatprep.subr.bf16.mxu0 %v5508
    %5964 = vmatpush1.bf16.msra.mxu0 %v5507
    %5965 = vmatprep.subr.bf16.mxu0 %v5504
    %5966 = vmatpush1.bf16.msra.mxu0 %v5503
    %5967 = vmatprep.subr.bf16.mxu0 %v5500
    %5968 = vmatpush1.bf16.msra.mxu0 %v5499
    %5969 = vmatprep.subr.bf16.mxu0 %v5496
    %5970 = vmatpush1.bf16.msra.mxu0 %v5495
    %5971 = vmatprep.subr.bf16.mxu0 %v5492
    %5972 = vmatpush1.bf16.msra.mxu0 %v5491
    %5973 = vmatprep.subr.bf16.mxu0 %v5552
    %5974 = vmatpush2.bf16.msra.mxu0 %v5551
    %5975 = vmatprep.subr.bf16.mxu0 %v5548
    %5976 = vmatpush2.bf16.msra.mxu0 %v5547
    %5977 = vmatprep.subr.bf16.mxu0 %v5544
    %5978 = vmatpush2.bf16.msra.mxu0 %v5543
    %5979 = vmatprep.subr.bf16.mxu0 %v5540
    %5980 = vmatpush2.bf16.msra.mxu0 %v5539
    %5981 = vmatprep.subr.bf16.mxu0 %v5536
    %5982 = vmatpush2.bf16.msra.mxu0 %v5535
    %5983 = vmatprep.subr.bf16.mxu0 %v5532
    %5984 = vmatpush2.bf16.msra.mxu0 %v5531
    %5985 = vmatprep.subr.bf16.mxu0 %v5528
    %5986 = vmatpush2.bf16.msra.mxu0 %v5527
    %5987 = vmatprep.subr.bf16.mxu0 %v5524
    %5988 = vmatpush2.bf16.msra.mxu0 %v5523
    %5989 = vmatprep.mubr.bf16.mxu0 %v4298
    %5990 = vmatmul.mubr.bf16.gmra.mxu0 %v4297
    %v5991 = vpop.f32.mrf.mxu0
    %v5992 = vadd.f32 %v5951, %v5991
    %v5993 = vpop.f32.mrf.mxu0
    %v5994 = vadd.f32 %v5953, %v5993
    %v5995 = vpop.f32.mrf.mxu0
    %v5996 = vpop.f32.mrf.mxu0
    %5997 = vdwg.mxu0
    %5998 = vmatprep.subr.bf16.mxu0 %v5584
    %5999 = vmatpush1.bf16.msra.mxu0 %v5583
    %6000 = vmatprep.subr.bf16.mxu0 %v5580
    %6001 = vmatpush1.bf16.msra.mxu0 %v5579
    %6002 = vmatprep.subr.bf16.mxu0 %v5576
    %6003 = vmatpush1.bf16.msra.mxu0 %v5575
    %6004 = vmatprep.subr.bf16.mxu0 %v5572
    %6005 = vmatpush1.bf16.msra.mxu0 %v5571
    %6006 = vmatprep.subr.bf16.mxu0 %v5568
    %6007 = vmatpush1.bf16.msra.mxu0 %v5567
    %6008 = vmatprep.subr.bf16.mxu0 %v5564
    %6009 = vmatpush1.bf16.msra.mxu0 %v5563
    %6010 = vmatprep.subr.bf16.mxu0 %v5560
    %6011 = vmatpush1.bf16.msra.mxu0 %v5559
    %6012 = vmatprep.subr.bf16.mxu0 %v5556
    %6013 = vmatpush1.bf16.msra.mxu0 %v5555
    %6014 = vmatprep.subr.bf16.mxu0 %v5616
    %6015 = vmatpush2.bf16.msra.mxu0 %v5615
    %6016 = vmatprep.subr.bf16.mxu0 %v5612
    %6017 = vmatpush2.bf16.msra.mxu0 %v5611
    %6018 = vmatprep.subr.bf16.mxu0 %v5608
    %6019 = vmatpush2.bf16.msra.mxu0 %v5607
    %6020 = vmatprep.subr.bf16.mxu0 %v5604
    %6021 = vmatpush2.bf16.msra.mxu0 %v5603
    %6022 = vmatprep.subr.bf16.mxu0 %v5600
    %6023 = vmatpush2.bf16.msra.mxu0 %v5599
    %6024 = vmatprep.subr.bf16.mxu0 %v5596
    %6025 = vmatpush2.bf16.msra.mxu0 %v5595
    %6026 = vmatprep.subr.bf16.mxu0 %v5592
    %6027 = vmatpush2.bf16.msra.mxu0 %v5591
    %6028 = vmatprep.subr.bf16.mxu0 %v5588
    %6029 = vmatpush2.bf16.msra.mxu0 %v5587
    %6030 = vmatprep.mubr.bf16.mxu0 %v4300
    %6031 = vmatmul.mubr.bf16.gmra.mxu0 %v4299
    %v6032 = vpop.f32.mrf.mxu0
    %v6033 = vadd.f32 %v5992, %v6032
    %v6034 = vpop.f32.mrf.mxu0
    %v6035 = vadd.f32 %v5994, %v6034
    %v6036 = vpop.f32.mrf.mxu0
    %v6037 = vpop.f32.mrf.mxu0
    %6038 = vdwg.mxu0
    %6039 = vmatprep.subr.bf16.mxu0 %v5394
    %6040 = vmatpush1.bf16.msra.mxu0 %v5393
    %6041 = vmatprep.subr.bf16.mxu0 %v5390
    %6042 = vmatpush1.bf16.msra.mxu0 %v5389
    %6043 = vmatprep.subr.bf16.mxu0 %v5386
    %6044 = vmatpush1.bf16.msra.mxu0 %v5385
    %6045 = vmatprep.subr.bf16.mxu0 %v5382
    %6046 = vmatpush1.bf16.msra.mxu0 %v5381
    %6047 = vmatprep.subr.bf16.mxu0 %v5378
    %6048 = vmatpush1.bf16.msra.mxu0 %v5377
    %6049 = vmatprep.subr.bf16.mxu0 %v5374
    %6050 = vmatpush1.bf16.msra.mxu0 %v5373
    %6051 = vmatprep.subr.bf16.mxu0 %v5370
    %6052 = vmatpush1.bf16.msra.mxu0 %v5369
    %6053 = vmatprep.subr.bf16.mxu0 %v5366
    %6054 = vmatpush1.bf16.msra.mxu0 %v5365
    %6055 = vmatprep.subr.bf16.mxu0 %v5426
    %6056 = vmatpush2.bf16.msra.mxu0 %v5425
    %6057 = vmatprep.subr.bf16.mxu0 %v5422
    %6058 = vmatpush2.bf16.msra.mxu0 %v5421
    %6059 = vmatprep.subr.bf16.mxu0 %v5418
    %6060 = vmatpush2.bf16.msra.mxu0 %v5417
    %6061 = vmatprep.subr.bf16.mxu0 %v5414
    %6062 = vmatpush2.bf16.msra.mxu0 %v5413
    %6063 = vmatprep.subr.bf16.mxu0 %v5410
    %6064 = vmatpush2.bf16.msra.mxu0 %v5409
    %6065 = vmatprep.subr.bf16.mxu0 %v5406
    %6066 = vmatpush2.bf16.msra.mxu0 %v5405
    %6067 = vmatprep.subr.bf16.mxu0 %v5402
    %6068 = vmatpush2.bf16.msra.mxu0 %v5401
    %6069 = vmatprep.subr.bf16.mxu0 %v5398
    %6070 = vmatpush2.bf16.msra.mxu0 %v5397
    %6071 = vmatprep.mubr.bf16.mxu0 %v4294
    %6072 = vmatmul.mubr.bf16.gmra.mxu0 %v4293
    %v6073 = vpop.f32.mrf.mxu0
    %v6074 = vadd.f32 %v4590, %v6073
    %v6075 = vpop.f32.mrf.mxu0
    %v6076 = vadd.f32 %v4594, %v6075
    %v6077 = vpop.f32.mrf.mxu0
    %v6078 = vpop.f32.mrf.mxu0
    %6079 = vdwg.mxu0
    %6080 = vmatprep.subr.bf16.mxu0 %v5458
    %6081 = vmatpush1.bf16.msra.mxu0 %v5457
    %6082 = vmatprep.subr.bf16.mxu0 %v5454
    %6083 = vmatpush1.bf16.msra.mxu0 %v5453
    %6084 = vmatprep.subr.bf16.mxu0 %v5450
    %6085 = vmatpush1.bf16.msra.mxu0 %v5449
    %6086 = vmatprep.subr.bf16.mxu0 %v5446
    %6087 = vmatpush1.bf16.msra.mxu0 %v5445
    %6088 = vmatprep.subr.bf16.mxu0 %v5442
    %6089 = vmatpush1.bf16.msra.mxu0 %v5441
    %6090 = vmatprep.subr.bf16.mxu0 %v5438
    %6091 = vmatpush1.bf16.msra.mxu0 %v5437
    %6092 = vmatprep.subr.bf16.mxu0 %v5434
    %6093 = vmatpush1.bf16.msra.mxu0 %v5433
    %6094 = vmatprep.subr.bf16.mxu0 %v5430
    %6095 = vmatpush1.bf16.msra.mxu0 %v5429
    %6096 = vmatprep.subr.bf16.mxu0 %v5490
    %6097 = vmatpush2.bf16.msra.mxu0 %v5489
    %6098 = vmatprep.subr.bf16.mxu0 %v5486
    %6099 = vmatpush2.bf16.msra.mxu0 %v5485
    %6100 = vmatprep.subr.bf16.mxu0 %v5482
    %6101 = vmatpush2.bf16.msra.mxu0 %v5481
    %6102 = vmatprep.subr.bf16.mxu0 %v5478
    %6103 = vmatpush2.bf16.msra.mxu0 %v5477
    %6104 = vmatprep.subr.bf16.mxu0 %v5474
    %6105 = vmatpush2.bf16.msra.mxu0 %v5473
    %6106 = vmatprep.subr.bf16.mxu0 %v5470
    %6107 = vmatpush2.bf16.msra.mxu0 %v5469
    %6108 = vmatprep.subr.bf16.mxu0 %v5466
    %6109 = vmatpush2.bf16.msra.mxu0 %v5465
    %6110 = vmatprep.subr.bf16.mxu0 %v5462
    %6111 = vmatpush2.bf16.msra.mxu0 %v5461
    %6112 = vmatprep.mubr.bf16.mxu0 %v4296
    %6113 = vmatmul.mubr.bf16.gmra.mxu0 %v4295
    %v6114 = vpop.f32.mrf.mxu0
    %v6115 = vadd.f32 %v6074, %v6114
    %v6116 = vpop.f32.mrf.mxu0
    %v6117 = vadd.f32 %v6076, %v6116
    %v6118 = vpop.f32.mrf.mxu0
    %v6119 = vpop.f32.mrf.mxu0
    %6120 = vdwg.mxu0
    %6121 = vmatprep.subr.bf16.mxu0 %v5522
    %6122 = vmatpush1.bf16.msra.mxu0 %v5521
    %6123 = vmatprep.subr.bf16.mxu0 %v5518
    %6124 = vmatpush1.bf16.msra.mxu0 %v5517
    %6125 = vmatprep.subr.bf16.mxu0 %v5514
    %6126 = vmatpush1.bf16.msra.mxu0 %v5513
    %6127 = vmatprep.subr.bf16.mxu0 %v5510
    %6128 = vmatpush1.bf16.msra.mxu0 %v5509
    %6129 = vmatprep.subr.bf16.mxu0 %v5506
    %6130 = vmatpush1.bf16.msra.mxu0 %v5505
    %6131 = vmatprep.subr.bf16.mxu0 %v5502
    %6132 = vmatpush1.bf16.msra.mxu0 %v5501
    %6133 = vmatprep.subr.bf16.mxu0 %v5498
    %6134 = vmatpush1.bf16.msra.mxu0 %v5497
    %6135 = vmatprep.subr.bf16.mxu0 %v5494
    %6136 = vmatpush1.bf16.msra.mxu0 %v5493
    %6137 = vmatprep.subr.bf16.mxu0 %v5554
    %6138 = vmatpush2.bf16.msra.mxu0 %v5553
    %6139 = vmatprep.subr.bf16.mxu0 %v5550
    %6140 = vmatpush2.bf16.msra.mxu0 %v5549
    %6141 = vmatprep.subr.bf16.mxu0 %v5546
    %6142 = vmatpush2.bf16.msra.mxu0 %v5545
    %6143 = vmatprep.subr.bf16.mxu0 %v5542
    %6144 = vmatpush2.bf16.msra.mxu0 %v5541
    %6145 = vmatprep.subr.bf16.mxu0 %v5538
    %6146 = vmatpush2.bf16.msra.mxu0 %v5537
    %6147 = vmatprep.subr.bf16.mxu0 %v5534
    %6148 = vmatpush2.bf16.msra.mxu0 %v5533
    %6149 = vmatprep.subr.bf16.mxu0 %v5530
    %6150 = vmatpush2.bf16.msra.mxu0 %v5529
    %6151 = vmatprep.subr.bf16.mxu0 %v5526
    %6152 = vmatpush2.bf16.msra.mxu0 %v5525
    %6153 = vmatprep.mubr.bf16.mxu0 %v4298
    %6154 = vmatmul.mubr.bf16.gmra.mxu0 %v4297
    %v6155 = vpop.f32.mrf.mxu0
    %v6156 = vadd.f32 %v6115, %v6155
    %v6157 = vpop.f32.mrf.mxu0
    %v6158 = vadd.f32 %v6117, %v6157
    %v6159 = vpop.f32.mrf.mxu0
    %v6160 = vpop.f32.mrf.mxu0
    %6161 = vdwg.mxu0
    %6162 = vmatprep.subr.bf16.mxu0 %v5586
    %6163 = vmatpush1.bf16.msra.mxu0 %v5585
    %6164 = vmatprep.subr.bf16.mxu0 %v5582
    %6165 = vmatpush1.bf16.msra.mxu0 %v5581
    %6166 = vmatprep.subr.bf16.mxu0 %v5578
    %6167 = vmatpush1.bf16.msra.mxu0 %v5577
    %6168 = vmatprep.subr.bf16.mxu0 %v5574
    %6169 = vmatpush1.bf16.msra.mxu0 %v5573
    %6170 = vmatprep.subr.bf16.mxu0 %v5570
    %6171 = vmatpush1.bf16.msra.mxu0 %v5569
    %6172 = vmatprep.subr.bf16.mxu0 %v5566
    %6173 = vmatpush1.bf16.msra.mxu0 %v5565
    %6174 = vmatprep.subr.bf16.mxu0 %v5562
    %6175 = vmatpush1.bf16.msra.mxu0 %v5561
    %6176 = vmatprep.subr.bf16.mxu0 %v5558
    %6177 = vmatpush1.bf16.msra.mxu0 %v5557
    %6178 = vmatprep.subr.bf16.mxu0 %v5618
    %6179 = vmatpush2.bf16.msra.mxu0 %v5617
    %6180 = vmatprep.subr.bf16.mxu0 %v5614
    %6181 = vmatpush2.bf16.msra.mxu0 %v5613
    %6182 = vmatprep.subr.bf16.mxu0 %v5610
    %6183 = vmatpush2.bf16.msra.mxu0 %v5609
    %6184 = vmatprep.subr.bf16.mxu0 %v5606
    %6185 = vmatpush2.bf16.msra.mxu0 %v5605
    %6186 = vmatprep.subr.bf16.mxu0 %v5602
    %6187 = vmatpush2.bf16.msra.mxu0 %v5601
    %6188 = vmatprep.subr.bf16.mxu0 %v5598
    %6189 = vmatpush2.bf16.msra.mxu0 %v5597
    %6190 = vmatprep.subr.bf16.mxu0 %v5594
    %6191 = vmatpush2.bf16.msra.mxu0 %v5593
    %6192 = vmatprep.subr.bf16.mxu0 %v5590
    %6193 = vmatpush2.bf16.msra.mxu0 %v5589
    %6194 = vmatprep.mubr.bf16.mxu0 %v4300
    %6195 = vmatmul.mubr.bf16.gmra.mxu0 %v4299
    %v6196 = vpop.f32.mrf.mxu0
    %v6197 = vadd.f32 %v6156, %v6196
    %v6198 = vpop.f32.mrf.mxu0
    %v6199 = vadd.f32 %v6158, %v6198
    %v6200 = vpop.f32.mrf.mxu0
    %v6201 = vpop.f32.mrf.mxu0
    %6202 = vdwg.mxu0
    %v6203 = vmax.f32 %v6033, 0.0
    %v6204 = vmax.f32 %v6035, 0.0
    %v6205 = vmax.f32 %v6197, 0.0
    %v6206 = vmax.f32 %v6199, 0.0
    %v6207 = vlaneseq
    %v6208 = vshrl.u32 %v6207, 7
    %v6209 = vsub.s32 1, %v6208
    %v6210 = vrot.slane %v4291, %v6209
    %v6211 = vlaneseq
    %v6212 = vshrl.u32 %v6211, 7
    %v6213 = vsub.s32 5, %v6212
    %v6214 = vrot.slane %v4291, %v6213
    %v6215 = vlaneseq
    %v6216 = vshrl.u32 %v6215, 7
    %v6217 = vsub.s32 1, %v6216
    %v6218 = vrot.slane %v4292, %v6217
    %v6219 = vlaneseq
    %v6220 = vshrl.u32 %v6219, 7
    %v6221 = vsub.s32 5, %v6220
    %v6222 = vrot.slane %v4292, %v6221
    %v6227 = vlaneseq
    %v6228 = vshrl.u32 %v6227, 7
    %v6229 = vsub.s32 1, %v6228
    %v6230 = vrot.slane %v6210, %v6229
    %v6231 = vlaneseq
    %v6232 = vshrl.u32 %v6231, 7
    %v6233 = vsub.s32 1, %v6232
    %v6234 = vrot.slane %v6214, %v6233
    %v6235 = vlaneseq
    %v6236 = vshrl.u32 %v6235, 7
    %v6237 = vsub.s32 1, %v6236
    %v6238 = vrot.slane %v6218, %v6237
    %v6239 = vlaneseq
    %v6240 = vshrl.u32 %v6239, 7
    %v6241 = vsub.s32 1, %v6240
    %v6242 = vrot.slane %v6222, %v6241
    %v6243 = vmul.f32 %v6203, %v6230
    %v6244 = vmul.f32 %v6204, %v6234
    %v6245 = vmul.f32 %v6205, %v6238
    %v6246 = vmul.f32 %v6206, %v6242
    %v6247 = vlaneseq
    %v6248 = vshrl.u32 %v6247, 7
    %v6249 = vsub.s32 2, %v6248
    %v6250 = vrot.slane %v4291, %v6249
    %v6251 = vlaneseq
    %v6252 = vshrl.u32 %v6251, 7
    %v6253 = vsub.s32 6, %v6252
    %v6254 = vrot.slane %v4291, %v6253
    %v6255 = vlaneseq
    %v6256 = vshrl.u32 %v6255, 7
    %v6257 = vsub.s32 2, %v6256
    %v6258 = vrot.slane %v4292, %v6257
    %v6259 = vlaneseq
    %v6260 = vshrl.u32 %v6259, 7
    %v6261 = vsub.s32 6, %v6260
    %v6262 = vrot.slane %v4292, %v6261
    %v6267 = vlaneseq
    %v6268 = vshrl.u32 %v6267, 7
    %v6269 = vsub.s32 2, %v6268
    %v6270 = vrot.slane %v6250, %v6269
    %v6271 = vlaneseq
    %v6272 = vshrl.u32 %v6271, 7
    %v6273 = vsub.s32 2, %v6272
    %v6274 = vrot.slane %v6254, %v6273
    %v6275 = vlaneseq
    %v6276 = vshrl.u32 %v6275, 7
    %v6277 = vsub.s32 2, %v6276
    %v6278 = vrot.slane %v6258, %v6277
    %v6279 = vlaneseq
    %v6280 = vshrl.u32 %v6279, 7
    %v6281 = vsub.s32 2, %v6280
    %v6282 = vrot.slane %v6262, %v6281
    %v6283 = vadd.f32 %v6243, %v6270
    %v6284 = vadd.f32 %v6244, %v6274
    %v6285 = vadd.f32 %v6245, %v6278
    %v6286 = vadd.f32 %v6246, %v6282
    %v6287 = vld [vmem:[#allocation12] sm:$0x77]
    %v6288 = vpack.c.bf16 %v6283, %v6283
    %v6289 = vpack.c.bf16 %v6284, %v6284
    %v6290 = vpack.c.bf16 %v6285, %v6285
    %v6291 = vpack.c.bf16 %v6286, %v6286
    %v6292 = vld [vmem:[#allocation10] sm:$0xff]
    %v6293 = vld [vmem:[#allocation10 + $0x8] sm:$0xff]
    %v6294 = vld [vmem:[#allocation10 + $0x10] sm:$0xff]
    %v6295 = vld [vmem:[#allocation10 + $0x18] sm:$0xff]
    %v6296 = vld [vmem:[#allocation10 + $0x20] sm:$0xff]
    %v6297 = vld [vmem:[#allocation10 + $0x28] sm:$0xff]
    %v6298 = vld [vmem:[#allocation10 + $0x30] sm:$0xff]
    %v6299 = vld [vmem:[#allocation10 + $0x38] sm:$0xff]
    %v6300 = vld [vmem:[#allocation10 + $0x40] sm:$0xff]
    %v6301 = vld [vmem:[#allocation10 + $0x48] sm:$0xff]
    %v6302 = vld [vmem:[#allocation10 + $0x50] sm:$0xff]
    %v6303 = vld [vmem:[#allocation10 + $0x58] sm:$0xff]
    %v6304 = vld [vmem:[#allocation10 + $0x60] sm:$0xff]
    %v6305 = vld [vmem:[#allocation10 + $0x68] sm:$0xff]
    %v6306 = vld [vmem:[#allocation10 + $0x70] sm:$0xff]
    %v6307 = vld [vmem:[#allocation10 + $0x78] sm:$0xff]
    %v6308 = vld [vmem:[#allocation10 + $0x80] sm:$0xff]
    %v6309 = vld [vmem:[#allocation10 + $0x88] sm:$0xff]
    %v6310 = vld [vmem:[#allocation10 + $0x90] sm:$0xff]
    %v6311 = vld [vmem:[#allocation10 + $0x98] sm:$0xff]
    %v6312 = vld [vmem:[#allocation10 + $0xa0] sm:$0xff]
    %v6313 = vld [vmem:[#allocation10 + $0xa8] sm:$0xff]
    %v6314 = vld [vmem:[#allocation10 + $0xb0] sm:$0xff]
    %v6315 = vld [vmem:[#allocation10 + $0xb8] sm:$0xff]
    %v6316 = vld [vmem:[#allocation10 + $0xc0] sm:$0xff]
    %v6317 = vld [vmem:[#allocation10 + $0xc8] sm:$0xff]
    %v6318 = vld [vmem:[#allocation10 + $0xd0] sm:$0xff]
    %v6319 = vld [vmem:[#allocation10 + $0xd8] sm:$0xff]
    %v6320 = vld [vmem:[#allocation10 + $0xe0] sm:$0xff]
    %v6321 = vld [vmem:[#allocation10 + $0xe8] sm:$0xff]
    %v6322 = vld [vmem:[#allocation10 + $0xf0] sm:$0xff]
    %v6323 = vld [vmem:[#allocation10 + $0xf8] sm:$0xff]
    %v6324 = vld [vmem:[#allocation10 + $0x100] sm:$0xff]
    %v6325 = vld [vmem:[#allocation10 + $0x108] sm:$0xff]
    %v6326 = vld [vmem:[#allocation10 + $0x110] sm:$0xff]
    %v6327 = vld [vmem:[#allocation10 + $0x118] sm:$0xff]
    %v6328 = vld [vmem:[#allocation10 + $0x120] sm:$0xff]
    %v6329 = vld [vmem:[#allocation10 + $0x128] sm:$0xff]
    %v6330 = vld [vmem:[#allocation10 + $0x130] sm:$0xff]
    %v6331 = vld [vmem:[#allocation10 + $0x138] sm:$0xff]
    %v6332 = vld [vmem:[#allocation10 + $0x140] sm:$0xff]
    %v6333 = vld [vmem:[#allocation10 + $0x148] sm:$0xff]
    %v6334 = vld [vmem:[#allocation10 + $0x150] sm:$0xff]
    %v6335 = vld [vmem:[#allocation10 + $0x158] sm:$0xff]
    %v6336 = vld [vmem:[#allocation10 + $0x160] sm:$0xff]
    %v6337 = vld [vmem:[#allocation10 + $0x168] sm:$0xff]
    %v6338 = vld [vmem:[#allocation10 + $0x170] sm:$0xff]
    %v6339 = vld [vmem:[#allocation10 + $0x178] sm:$0xff]
    %v6340 = vld [vmem:[#allocation10 + $0x180] sm:$0xff]
    %v6341 = vld [vmem:[#allocation10 + $0x188] sm:$0xff]
    %v6342 = vld [vmem:[#allocation10 + $0x190] sm:$0xff]
    %v6343 = vld [vmem:[#allocation10 + $0x198] sm:$0xff]
    %v6344 = vld [vmem:[#allocation10 + $0x1a0] sm:$0xff]
    %v6345 = vld [vmem:[#allocation10 + $0x1a8] sm:$0xff]
    %v6346 = vld [vmem:[#allocation10 + $0x1b0] sm:$0xff]
    %v6347 = vld [vmem:[#allocation10 + $0x1b8] sm:$0xff]
    %v6348 = vld [vmem:[#allocation10 + $0x1c0] sm:$0xff]
    %v6349 = vld [vmem:[#allocation10 + $0x1c8] sm:$0xff]
    %v6350 = vld [vmem:[#allocation10 + $0x1d0] sm:$0xff]
    %v6351 = vld [vmem:[#allocation10 + $0x1d8] sm:$0xff]
    %v6352 = vld [vmem:[#allocation10 + $0x1e0] sm:$0xff]
    %v6353 = vld [vmem:[#allocation10 + $0x1e8] sm:$0xff]
    %v6354 = vld [vmem:[#allocation10 + $0x1f0] sm:$0xff]
    %v6355 = vld [vmem:[#allocation10 + $0x1f8] sm:$0xff]
    %v6357 = vlaneseq
    %v6358 = vshrl.u32 %v6357, 7
    %v6359 = vsub.s32 0, %v6358
    %v6360 = vrot.slane %v6287, %v6359
    %v6361 = vlaneseq
    %v6362 = vshrl.u32 %v6361, 7
    %v6363 = vsub.s32 4, %v6362
    %v6364 = vrot.slane %v6287, %v6363
    %v6367 = vlaneseq
    %v6368 = vshrl.u32 %v6367, 7
    %v6369 = vsub.s32 0, %v6368
    %v6370 = vrot.slane %v6360, %v6369
    %v6371 = vlaneseq
    %v6372 = vshrl.u32 %v6371, 7
    %v6373 = vsub.s32 0, %v6372
    %v6374 = vrot.slane %v6364, %v6373
    %v6439 = vunpack.c.l.b16 %v6292
    %v6440 = vunpack.c.h.b16 %v6292
    %v6441 = vunpack.c.l.b16 %v6293
    %v6442 = vunpack.c.h.b16 %v6293
    %v6443 = vunpack.c.l.b16 %v6294
    %v6444 = vunpack.c.h.b16 %v6294
    %v6445 = vunpack.c.l.b16 %v6295
    %v6446 = vunpack.c.h.b16 %v6295
    %v6447 = vunpack.c.l.b16 %v6296
    %v6448 = vunpack.c.h.b16 %v6296
    %v6449 = vunpack.c.l.b16 %v6297
    %v6450 = vunpack.c.h.b16 %v6297
    %v6451 = vunpack.c.l.b16 %v6298
    %v6452 = vunpack.c.h.b16 %v6298
    %v6453 = vunpack.c.l.b16 %v6299
    %v6454 = vunpack.c.h.b16 %v6299
    %v6455 = vunpack.c.l.b16 %v6300
    %v6456 = vunpack.c.h.b16 %v6300
    %v6457 = vunpack.c.l.b16 %v6301
    %v6458 = vunpack.c.h.b16 %v6301
    %v6459 = vunpack.c.l.b16 %v6302
    %v6460 = vunpack.c.h.b16 %v6302
    %v6461 = vunpack.c.l.b16 %v6303
    %v6462 = vunpack.c.h.b16 %v6303
    %v6463 = vunpack.c.l.b16 %v6304
    %v6464 = vunpack.c.h.b16 %v6304
    %v6465 = vunpack.c.l.b16 %v6305
    %v6466 = vunpack.c.h.b16 %v6305
    %v6467 = vunpack.c.l.b16 %v6306
    %v6468 = vunpack.c.h.b16 %v6306
    %v6469 = vunpack.c.l.b16 %v6307
    %v6470 = vunpack.c.h.b16 %v6307
    %v6471 = vunpack.c.l.b16 %v6308
    %v6472 = vunpack.c.h.b16 %v6308
    %v6473 = vunpack.c.l.b16 %v6309
    %v6474 = vunpack.c.h.b16 %v6309
    %v6475 = vunpack.c.l.b16 %v6310
    %v6476 = vunpack.c.h.b16 %v6310
    %v6477 = vunpack.c.l.b16 %v6311
    %v6478 = vunpack.c.h.b16 %v6311
    %v6479 = vunpack.c.l.b16 %v6312
    %v6480 = vunpack.c.h.b16 %v6312
    %v6481 = vunpack.c.l.b16 %v6313
    %v6482 = vunpack.c.h.b16 %v6313
    %v6483 = vunpack.c.l.b16 %v6314
    %v6484 = vunpack.c.h.b16 %v6314
    %v6485 = vunpack.c.l.b16 %v6315
    %v6486 = vunpack.c.h.b16 %v6315
    %v6487 = vunpack.c.l.b16 %v6316
    %v6488 = vunpack.c.h.b16 %v6316
    %v6489 = vunpack.c.l.b16 %v6317
    %v6490 = vunpack.c.h.b16 %v6317
    %v6491 = vunpack.c.l.b16 %v6318
    %v6492 = vunpack.c.h.b16 %v6318
    %v6493 = vunpack.c.l.b16 %v6319
    %v6494 = vunpack.c.h.b16 %v6319
    %v6495 = vunpack.c.l.b16 %v6320
    %v6496 = vunpack.c.h.b16 %v6320
    %v6497 = vunpack.c.l.b16 %v6321
    %v6498 = vunpack.c.h.b16 %v6321
    %v6499 = vunpack.c.l.b16 %v6322
    %v6500 = vunpack.c.h.b16 %v6322
    %v6501 = vunpack.c.l.b16 %v6323
    %v6502 = vunpack.c.h.b16 %v6323
    %v6503 = vunpack.c.l.b16 %v6324
    %v6504 = vunpack.c.h.b16 %v6324
    %v6505 = vunpack.c.l.b16 %v6325
    %v6506 = vunpack.c.h.b16 %v6325
    %v6507 = vunpack.c.l.b16 %v6326
    %v6508 = vunpack.c.h.b16 %v6326
    %v6509 = vunpack.c.l.b16 %v6327
    %v6510 = vunpack.c.h.b16 %v6327
    %v6511 = vunpack.c.l.b16 %v6328
    %v6512 = vunpack.c.h.b16 %v6328
    %v6513 = vunpack.c.l.b16 %v6329
    %v6514 = vunpack.c.h.b16 %v6329
    %v6515 = vunpack.c.l.b16 %v6330
    %v6516 = vunpack.c.h.b16 %v6330
    %v6517 = vunpack.c.l.b16 %v6331
    %v6518 = vunpack.c.h.b16 %v6331
    %v6519 = vunpack.c.l.b16 %v6332
    %v6520 = vunpack.c.h.b16 %v6332
    %v6521 = vunpack.c.l.b16 %v6333
    %v6522 = vunpack.c.h.b16 %v6333
    %v6523 = vunpack.c.l.b16 %v6334
    %v6524 = vunpack.c.h.b16 %v6334
    %v6525 = vunpack.c.l.b16 %v6335
    %v6526 = vunpack.c.h.b16 %v6335
    %v6527 = vunpack.c.l.b16 %v6336
    %v6528 = vunpack.c.h.b16 %v6336
    %v6529 = vunpack.c.l.b16 %v6337
    %v6530 = vunpack.c.h.b16 %v6337
    %v6531 = vunpack.c.l.b16 %v6338
    %v6532 = vunpack.c.h.b16 %v6338
    %v6533 = vunpack.c.l.b16 %v6339
    %v6534 = vunpack.c.h.b16 %v6339
    %v6535 = vunpack.c.l.b16 %v6340
    %v6536 = vunpack.c.h.b16 %v6340
    %v6537 = vunpack.c.l.b16 %v6341
    %v6538 = vunpack.c.h.b16 %v6341
    %v6539 = vunpack.c.l.b16 %v6342
    %v6540 = vunpack.c.h.b16 %v6342
    %v6541 = vunpack.c.l.b16 %v6343
    %v6542 = vunpack.c.h.b16 %v6343
    %v6543 = vunpack.c.l.b16 %v6344
    %v6544 = vunpack.c.h.b16 %v6344
    %v6545 = vunpack.c.l.b16 %v6345
    %v6546 = vunpack.c.h.b16 %v6345
    %v6547 = vunpack.c.l.b16 %v6346
    %v6548 = vunpack.c.h.b16 %v6346
    %v6549 = vunpack.c.l.b16 %v6347
    %v6550 = vunpack.c.h.b16 %v6347
    %v6551 = vunpack.c.l.b16 %v6348
    %v6552 = vunpack.c.h.b16 %v6348
    %v6553 = vunpack.c.l.b16 %v6349
    %v6554 = vunpack.c.h.b16 %v6349
    %v6555 = vunpack.c.l.b16 %v6350
    %v6556 = vunpack.c.h.b16 %v6350
    %v6557 = vunpack.c.l.b16 %v6351
    %v6558 = vunpack.c.h.b16 %v6351
    %v6559 = vunpack.c.l.b16 %v6352
    %v6560 = vunpack.c.h.b16 %v6352
    %v6561 = vunpack.c.l.b16 %v6353
    %v6562 = vunpack.c.h.b16 %v6353
    %v6563 = vunpack.c.l.b16 %v6354
    %v6564 = vunpack.c.h.b16 %v6354
    %v6565 = vunpack.c.l.b16 %v6355
    %v6566 = vunpack.c.h.b16 %v6355
    %v6567 = vpack.c.b16 %v6441, %v6439
    %v6568 = vpack.c.b16 %v6442, %v6440
    %v6569 = vpack.c.b16 %v6445, %v6443
    %v6570 = vpack.c.b16 %v6446, %v6444
    %v6571 = vpack.c.b16 %v6449, %v6447
    %v6572 = vpack.c.b16 %v6450, %v6448
    %v6573 = vpack.c.b16 %v6453, %v6451
    %v6574 = vpack.c.b16 %v6454, %v6452
    %v6575 = vpack.c.b16 %v6457, %v6455
    %v6576 = vpack.c.b16 %v6458, %v6456
    %v6577 = vpack.c.b16 %v6461, %v6459
    %v6578 = vpack.c.b16 %v6462, %v6460
    %v6579 = vpack.c.b16 %v6465, %v6463
    %v6580 = vpack.c.b16 %v6466, %v6464
    %v6581 = vpack.c.b16 %v6469, %v6467
    %v6582 = vpack.c.b16 %v6470, %v6468
    %v6583 = vpack.c.b16 %v6473, %v6471
    %v6584 = vpack.c.b16 %v6474, %v6472
    %v6585 = vpack.c.b16 %v6477, %v6475
    %v6586 = vpack.c.b16 %v6478, %v6476
    %v6587 = vpack.c.b16 %v6481, %v6479
    %v6588 = vpack.c.b16 %v6482, %v6480
    %v6589 = vpack.c.b16 %v6485, %v6483
    %v6590 = vpack.c.b16 %v6486, %v6484
    %v6591 = vpack.c.b16 %v6489, %v6487
    %v6592 = vpack.c.b16 %v6490, %v6488
    %v6593 = vpack.c.b16 %v6493, %v6491
    %v6594 = vpack.c.b16 %v6494, %v6492
    %v6595 = vpack.c.b16 %v6497, %v6495
    %v6596 = vpack.c.b16 %v6498, %v6496
    %v6597 = vpack.c.b16 %v6501, %v6499
    %v6598 = vpack.c.b16 %v6502, %v6500
    %v6599 = vpack.c.b16 %v6505, %v6503
    %v6600 = vpack.c.b16 %v6506, %v6504
    %v6601 = vpack.c.b16 %v6509, %v6507
    %v6602 = vpack.c.b16 %v6510, %v6508
    %v6603 = vpack.c.b16 %v6513, %v6511
    %v6604 = vpack.c.b16 %v6514, %v6512
    %v6605 = vpack.c.b16 %v6517, %v6515
    %v6606 = vpack.c.b16 %v6518, %v6516
    %v6607 = vpack.c.b16 %v6521, %v6519
    %v6608 = vpack.c.b16 %v6522, %v6520
    %v6609 = vpack.c.b16 %v6525, %v6523
    %v6610 = vpack.c.b16 %v6526, %v6524
    %v6611 = vpack.c.b16 %v6529, %v6527
    %v6612 = vpack.c.b16 %v6530, %v6528
    %v6613 = vpack.c.b16 %v6533, %v6531
    %v6614 = vpack.c.b16 %v6534, %v6532
    %v6615 = vpack.c.b16 %v6537, %v6535
    %v6616 = vpack.c.b16 %v6538, %v6536
    %v6617 = vpack.c.b16 %v6541, %v6539
    %v6618 = vpack.c.b16 %v6542, %v6540
    %v6619 = vpack.c.b16 %v6545, %v6543
    %v6620 = vpack.c.b16 %v6546, %v6544
    %v6621 = vpack.c.b16 %v6549, %v6547
    %v6622 = vpack.c.b16 %v6550, %v6548
    %v6623 = vpack.c.b16 %v6553, %v6551
    %v6624 = vpack.c.b16 %v6554, %v6552
    %v6625 = vpack.c.b16 %v6557, %v6555
    %v6626 = vpack.c.b16 %v6558, %v6556
    %v6627 = vpack.c.b16 %v6561, %v6559
    %v6628 = vpack.c.b16 %v6562, %v6560
    %v6629 = vpack.c.b16 %v6565, %v6563
    %v6630 = vpack.c.b16 %v6566, %v6564
    %6695 = vmatprep.subr.bf16.mxu0 %v6582
    %6696 = vmatpush1.bf16.msra.mxu0 %v6581
    %6697 = vmatprep.subr.bf16.mxu0 %v6580
    %6698 = vmatpush1.bf16.msra.mxu0 %v6579
    %6699 = vmatprep.subr.bf16.mxu0 %v6578
    %6700 = vmatpush1.bf16.msra.mxu0 %v6577
    %6701 = vmatprep.subr.bf16.mxu0 %v6576
    %6702 = vmatpush1.bf16.msra.mxu0 %v6575
    %6703 = vmatprep.subr.bf16.mxu0 %v6574
    %6704 = vmatpush1.bf16.msra.mxu0 %v6573
    %6705 = vmatprep.subr.bf16.mxu0 %v6572
    %6706 = vmatpush1.bf16.msra.mxu0 %v6571
    %6707 = vmatprep.subr.bf16.mxu0 %v6570
    %6708 = vmatpush1.bf16.msra.mxu0 %v6569
    %6709 = vmatprep.subr.bf16.mxu0 %v6568
    %6710 = vmatpush1.bf16.msra.mxu0 %v6567
    %6711 = vmatprep.subr.bf16.mxu0 %v6598
    %6712 = vmatpush2.bf16.msra.mxu0 %v6597
    %6713 = vmatprep.subr.bf16.mxu0 %v6596
    %6714 = vmatpush2.bf16.msra.mxu0 %v6595
    %6715 = vmatprep.subr.bf16.mxu0 %v6594
    %6716 = vmatpush2.bf16.msra.mxu0 %v6593
    %6717 = vmatprep.subr.bf16.mxu0 %v6592
    %6718 = vmatpush2.bf16.msra.mxu0 %v6591
    %6719 = vmatprep.subr.bf16.mxu0 %v6590
    %6720 = vmatpush2.bf16.msra.mxu0 %v6589
    %6721 = vmatprep.subr.bf16.mxu0 %v6588
    %6722 = vmatpush2.bf16.msra.mxu0 %v6587
    %6723 = vmatprep.subr.bf16.mxu0 %v6586
    %6724 = vmatpush2.bf16.msra.mxu0 %v6585
    %6725 = vmatprep.subr.bf16.mxu0 %v6584
    %6726 = vmatpush2.bf16.msra.mxu0 %v6583
    %6727 = vmatprep.mubr.bf16.mxu0 %v6289
    %6728 = vmatmul.mubr.bf16.gmra.mxu0 %v6288
    %v6729 = vpop.f32.mrf.mxu0
    %v6730 = vadd.f32 %v6370, %v6729
    %v6731 = vpop.f32.mrf.mxu0
    %v6732 = vadd.f32 %v6374, %v6731
    %v6733 = vpop.f32.mrf.mxu0
    %v6734 = vpop.f32.mrf.mxu0
    %6735 = vdwg.mxu0
    %6736 = vmatprep.subr.bf16.mxu0 %v6614
    %6737 = vmatpush1.bf16.msra.mxu0 %v6613
    %6738 = vmatprep.subr.bf16.mxu0 %v6612
    %6739 = vmatpush1.bf16.msra.mxu0 %v6611
    %6740 = vmatprep.subr.bf16.mxu0 %v6610
    %6741 = vmatpush1.bf16.msra.mxu0 %v6609
    %6742 = vmatprep.subr.bf16.mxu0 %v6608
    %6743 = vmatpush1.bf16.msra.mxu0 %v6607
    %6744 = vmatprep.subr.bf16.mxu0 %v6606
    %6745 = vmatpush1.bf16.msra.mxu0 %v6605
    %6746 = vmatprep.subr.bf16.mxu0 %v6604
    %6747 = vmatpush1.bf16.msra.mxu0 %v6603
    %6748 = vmatprep.subr.bf16.mxu0 %v6602
    %6749 = vmatpush1.bf16.msra.mxu0 %v6601
    %6750 = vmatprep.subr.bf16.mxu0 %v6600
    %6751 = vmatpush1.bf16.msra.mxu0 %v6599
    %6752 = vmatprep.subr.bf16.mxu0 %v6630
    %6753 = vmatpush2.bf16.msra.mxu0 %v6629
    %6754 = vmatprep.subr.bf16.mxu0 %v6628
    %6755 = vmatpush2.bf16.msra.mxu0 %v6627
    %6756 = vmatprep.subr.bf16.mxu0 %v6626
    %6757 = vmatpush2.bf16.msra.mxu0 %v6625
    %6758 = vmatprep.subr.bf16.mxu0 %v6624
    %6759 = vmatpush2.bf16.msra.mxu0 %v6623
    %6760 = vmatprep.subr.bf16.mxu0 %v6622
    %6761 = vmatpush2.bf16.msra.mxu0 %v6621
    %6762 = vmatprep.subr.bf16.mxu0 %v6620
    %6763 = vmatpush2.bf16.msra.mxu0 %v6619
    %6764 = vmatprep.subr.bf16.mxu0 %v6618
    %6765 = vmatpush2.bf16.msra.mxu0 %v6617
    %6766 = vmatprep.subr.bf16.mxu0 %v6616
    %6767 = vmatpush2.bf16.msra.mxu0 %v6615
    %6768 = vmatprep.mubr.bf16.mxu0 %v6291
    %6769 = vmatmul.mubr.bf16.gmra.mxu0 %v6290
    %v6770 = vpop.f32.mrf.mxu0
    %v6771 = vadd.f32 %v6730, %v6770
    %v6772 = vpop.f32.mrf.mxu0
    %v6773 = vadd.f32 %v6732, %v6772
    %v6774 = vpop.f32.mrf.mxu0
    %v6775 = vpop.f32.mrf.mxu0
    %6776 = vdwg.mxu0
    %v6777 = vmax.f32 %v6771, 0.0
    %v6778 = vmax.f32 %v6773, 0.0
    %v6779 = vlaneseq
    %v6780 = vshrl.u32 %v6779, 7
    %v6781 = vsub.s32 1, %v6780
    %v6782 = vrot.slane %v6287, %v6781
    %v6783 = vlaneseq
    %v6784 = vshrl.u32 %v6783, 7
    %v6785 = vsub.s32 5, %v6784
    %v6786 = vrot.slane %v6287, %v6785
    %v6789 = vlaneseq
    %v6790 = vshrl.u32 %v6789, 7
    %v6791 = vsub.s32 1, %v6790
    %v6792 = vrot.slane %v6782, %v6791
    %v6793 = vlaneseq
    %v6794 = vshrl.u32 %v6793, 7
    %v6795 = vsub.s32 1, %v6794
    %v6796 = vrot.slane %v6786, %v6795
    %v6797 = vmul.f32 %v6777, %v6792
    %v6798 = vmul.f32 %v6778, %v6796
    %v6799 = vlaneseq
    %v6800 = vshrl.u32 %v6799, 7
    %v6801 = vsub.s32 2, %v6800
    %v6802 = vrot.slane %v6287, %v6801
    %v6803 = vlaneseq
    %v6804 = vshrl.u32 %v6803, 7
    %v6805 = vsub.s32 6, %v6804
    %v6806 = vrot.slane %v6287, %v6805
    %v6809 = vlaneseq
    %v6810 = vshrl.u32 %v6809, 7
    %v6811 = vsub.s32 2, %v6810
    %v6812 = vrot.slane %v6802, %v6811
    %v6813 = vlaneseq
    %v6814 = vshrl.u32 %v6813, 7
    %v6815 = vsub.s32 2, %v6814
    %v6816 = vrot.slane %v6806, %v6815
    %v6817 = vadd.f32 %v6797, %v6812
    %v6818 = vadd.f32 %v6798, %v6816
    %v6819 = vld [vmem:[#allocation13] sm:$0x7]
    %v6820 = vpack.c.bf16 %v6817, %v6817
    %v6821 = vpack.c.bf16 %v6818, %v6818
    %v6822 = vld [vmem:[%s8] sm:$0xf]
    %v6823 = vld [vmem:[%s8 + $0x4] sm:$0xf]
    %v6824 = vld [vmem:[%s8 + $0x8] sm:$0xf]
    %v6825 = vld [vmem:[%s8 + $0xc] sm:$0xf]
    %v6826 = vld [vmem:[%s8 + $0x10] sm:$0xf]
    %v6827 = vld [vmem:[%s8 + $0x14] sm:$0xf]
    %v6828 = vld [vmem:[%s8 + $0x18] sm:$0xf]
    %v6829 = vld [vmem:[%s8 + $0x1c] sm:$0xf]
    %v6830 = vld [vmem:[%s8 + $0x20] sm:$0xf]
    %v6831 = vld [vmem:[%s8 + $0x24] sm:$0xf]
    %v6832 = vld [vmem:[%s8 + $0x28] sm:$0xf]
    %v6833 = vld [vmem:[%s8 + $0x2c] sm:$0xf]
    %v6834 = vld [vmem:[%s8 + $0x30] sm:$0xf]
    %v6835 = vld [vmem:[%s8 + $0x34] sm:$0xf]
    %v6836 = vld [vmem:[%s8 + $0x38] sm:$0xf]
    %v6837 = vld [vmem:[%s8 + $0x3c] sm:$0xf]
    %v6838 = vld [vmem:[%s8 + $0x40] sm:$0xf]
    %v6839 = vld [vmem:[%s8 + $0x44] sm:$0xf]
    %v6840 = vld [vmem:[%s8 + $0x48] sm:$0xf]
    %v6841 = vld [vmem:[%s8 + $0x4c] sm:$0xf]
    %v6842 = vld [vmem:[%s8 + $0x50] sm:$0xf]
    %v6843 = vld [vmem:[%s8 + $0x54] sm:$0xf]
    %v6844 = vld [vmem:[%s8 + $0x58] sm:$0xf]
    %v6845 = vld [vmem:[%s8 + $0x5c] sm:$0xf]
    %v6846 = vld [vmem:[%s8 + $0x60] sm:$0xf]
    %v6847 = vld [vmem:[%s8 + $0x64] sm:$0xf]
    %v6848 = vld [vmem:[%s8 + $0x68] sm:$0xf]
    %v6849 = vld [vmem:[%s8 + $0x6c] sm:$0xf]
    %v6850 = vld [vmem:[%s8 + $0x70] sm:$0xf]
    %v6851 = vld [vmem:[%s8 + $0x74] sm:$0xf]
    %v6852 = vld [vmem:[%s8 + $0x78] sm:$0xf]
    %v6853 = vld [vmem:[%s8 + $0x7c] sm:$0xf]
    %v6854 = vlaneseq
    %v6855 = vshrl.u32 %v6854, 7
    %v6856 = vsub.s32 0, %v6855
    %v6857 = vrot.slane %v6819, %v6856
    %v6890 = vunpack.c.l.b16 %v6822
    %v6891 = vunpack.c.l.b16 %v6823
    %v6892 = vunpack.c.l.b16 %v6824
    %v6893 = vunpack.c.l.b16 %v6825
    %v6894 = vunpack.c.l.b16 %v6826
    %v6895 = vunpack.c.l.b16 %v6827
    %v6896 = vunpack.c.l.b16 %v6828
    %v6897 = vunpack.c.l.b16 %v6829
    %v6898 = vunpack.c.l.b16 %v6830
    %v6899 = vunpack.c.l.b16 %v6831
    %v6900 = vunpack.c.l.b16 %v6832
    %v6901 = vunpack.c.l.b16 %v6833
    %v6902 = vunpack.c.l.b16 %v6834
    %v6903 = vunpack.c.l.b16 %v6835
    %v6904 = vunpack.c.l.b16 %v6836
    %v6905 = vunpack.c.l.b16 %v6837
    %v6906 = vunpack.c.l.b16 %v6838
    %v6907 = vunpack.c.l.b16 %v6839
    %v6908 = vunpack.c.l.b16 %v6840
    %v6909 = vunpack.c.l.b16 %v6841
    %v6910 = vunpack.c.l.b16 %v6842
    %v6911 = vunpack.c.l.b16 %v6843
    %v6912 = vunpack.c.l.b16 %v6844
    %v6913 = vunpack.c.l.b16 %v6845
    %v6914 = vunpack.c.l.b16 %v6846
    %v6915 = vunpack.c.l.b16 %v6847
    %v6916 = vunpack.c.l.b16 %v6848
    %v6917 = vunpack.c.l.b16 %v6849
    %v6918 = vunpack.c.l.b16 %v6850
    %v6919 = vunpack.c.l.b16 %v6851
    %v6920 = vunpack.c.l.b16 %v6852
    %v6921 = vunpack.c.l.b16 %v6853
    %v6922 = vpack.c.b16 %v6891, %v6890
    %v6923 = vpack.c.b16 %v6893, %v6892
    %v6924 = vpack.c.b16 %v6895, %v6894
    %v6925 = vpack.c.b16 %v6897, %v6896
    %v6926 = vpack.c.b16 %v6899, %v6898
    %v6927 = vpack.c.b16 %v6901, %v6900
    %v6928 = vpack.c.b16 %v6903, %v6902
    %v6929 = vpack.c.b16 %v6905, %v6904
    %v6930 = vpack.c.b16 %v6907, %v6906
    %v6931 = vpack.c.b16 %v6909, %v6908
    %v6932 = vpack.c.b16 %v6911, %v6910
    %v6933 = vpack.c.b16 %v6913, %v6912
    %v6934 = vpack.c.b16 %v6915, %v6914
    %v6935 = vpack.c.b16 %v6917, %v6916
    %v6936 = vpack.c.b16 %v6919, %v6918
    %v6937 = vpack.c.b16 %v6921, %v6920
    %6954 = vmatprep.subr.bf16.mxu0 0
    %6955 = vmatpush1.bf16.msra.mxu0 %v6929
    %6956 = vmatprep.subr.bf16.mxu0 0
    %6957 = vmatpush1.bf16.msra.mxu0 %v6928
    %6958 = vmatprep.subr.bf16.mxu0 0
    %6959 = vmatpush1.bf16.msra.mxu0 %v6927
    %6960 = vmatprep.subr.bf16.mxu0 0
    %6961 = vmatpush1.bf16.msra.mxu0 %v6926
    %6962 = vmatprep.subr.bf16.mxu0 0
    %6963 = vmatpush1.bf16.msra.mxu0 %v6925
    %6964 = vmatprep.subr.bf16.mxu0 0
    %6965 = vmatpush1.bf16.msra.mxu0 %v6924
    %6966 = vmatprep.subr.bf16.mxu0 0
    %6967 = vmatpush1.bf16.msra.mxu0 %v6923
    %6968 = vmatprep.subr.bf16.mxu0 0
    %6969 = vmatpush1.bf16.msra.mxu0 %v6922
    %6970 = vmatprep.subr.bf16.mxu0 0
    %6971 = vmatpush2.bf16.msra.mxu0 %v6937
    %6972 = vmatprep.subr.bf16.mxu0 0
    %6973 = vmatpush2.bf16.msra.mxu0 %v6936
    %6974 = vmatprep.subr.bf16.mxu0 0
    %6975 = vmatpush2.bf16.msra.mxu0 %v6935
    %6976 = vmatprep.subr.bf16.mxu0 0
    %6977 = vmatpush2.bf16.msra.mxu0 %v6934
    %6978 = vmatprep.subr.bf16.mxu0 0
    %6979 = vmatpush2.bf16.msra.mxu0 %v6933
    %6980 = vmatprep.subr.bf16.mxu0 0
    %6981 = vmatpush2.bf16.msra.mxu0 %v6932
    %6982 = vmatprep.subr.bf16.mxu0 0
    %6983 = vmatpush2.bf16.msra.mxu0 %v6931
    %6984 = vmatprep.subr.bf16.mxu0 0
    %6985 = vmatpush2.bf16.msra.mxu0 %v6930
    %6986 = vmatprep.mubr.bf16.mxu0 %v6821
    %6987 = vmatmul.mubr.bf16.gmra.mxu0 %v6820
    %v6988 = vpop.f32.mrf.mxu0
    %v6989 = vadd.f32 %v6857, %v6988
    %v6990 = vpop.f32.mrf.mxu0
    %v6991 = vpop.f32.mrf.mxu0
    %v6992 = vpop.f32.mrf.mxu0
    %6993 = vdwg.mxu0
    %v6994 = vlaneseq
    %v6995 = vshrl.u32 %v6994, 7
    %v6996 = vsub.s32 1, %v6995
    %v6997 = vrot.slane %v6819, %v6996
    %v6998 = vmul.f32 %v6989, %v6997
    %v6999 = vlaneseq
    %v7000 = vshrl.u32 %v6999, 7
    %v7001 = vsub.s32 2, %v7000
    %v7002 = vrot.slane %v6819, %v7001
    %v7003 = vadd.f32 %v6998, %v7002
    %vm7004 = vcmask 517120
    %7005 = vst.msk [vmem:[%s19] sm:$0x3] %vm7004, %v7003
    %v7006 = vld [vmem:[#allocation2] sm:$0x3]
    %v7007 = vmul.f32 %v7003, 0.5
    %v7008 = vmul.f32 %v7007, 1.442695
    %v7009 = vpow.pop %v7008
    %7011 = vrot.lane.b32.xlu0 %v7009, 96
    %v7012 = vpop.permute.xlu0 %7011
    %v7014 = vmul.f32 %v7006, %v7012
    %v7015 = vadd.f32 %v7003, %v7014
    %v7016 = vld [vmem:[#allocation16] sm:$0x77]
    %v7017 = vpack.c.bf16 %v7015, %v7015
    %v7018 = vld [vmem:[#allocation15] sm:$0xff]
    %v7019 = vld [vmem:[#allocation15 + $0x8] sm:$0xff]
    %v7020 = vld [vmem:[#allocation15 + $0x10] sm:$0xff]
    %v7021 = vld [vmem:[#allocation15 + $0x18] sm:$0xff]
    %v7023 = vlaneseq
    %v7024 = vshrl.u32 %v7023, 7
    %v7025 = vsub.s32 0, %v7024
    %v7026 = vrot.slane %v7016, %v7025
    %v7027 = vlaneseq
    %v7028 = vshrl.u32 %v7027, 7
    %v7029 = vsub.s32 4, %v7028
    %v7030 = vrot.slane %v7016, %v7029
    %v7033 = vlaneseq
    %v7034 = vshrl.u32 %v7033, 7
    %v7035 = vsub.s32 0, %v7034
    %v7036 = vrot.slane %v7026, %v7035
    %v7037 = vlaneseq
    %v7038 = vshrl.u32 %v7037, 7
    %v7039 = vsub.s32 0, %v7038
    %v7040 = vrot.slane %v7030, %v7039
    %v7045 = vunpack.c.l.b16 %v7018
    %v7046 = vunpack.c.h.b16 %v7018
    %v7047 = vunpack.c.l.b16 %v7019
    %v7048 = vunpack.c.h.b16 %v7019
    %v7049 = vunpack.c.l.b16 %v7020
    %v7050 = vunpack.c.h.b16 %v7020
    %v7051 = vunpack.c.l.b16 %v7021
    %v7052 = vunpack.c.h.b16 %v7021
    %v7053 = vpack.c.b16 %v7047, %v7045
    %v7054 = vpack.c.b16 %v7048, %v7046
    %v7055 = vpack.c.b16 %v7051, %v7049
    %v7056 = vpack.c.b16 %v7052, %v7050
    %vm7061 = vcmask 261120
    %v7063 = vsel %vm7061, %v7017, 0
    %7065 = vmatprep.subr.bf16.mxu0 0
    %7066 = vmatpush1.bf16.msra.mxu0 0
    %7067 = vmatprep.subr.bf16.mxu0 0
    %7068 = vmatpush1.bf16.msra.mxu0 0
    %7069 = vmatprep.subr.bf16.mxu0 0
    %7070 = vmatpush1.bf16.msra.mxu0 0
    %7071 = vmatprep.subr.bf16.mxu0 0
    %7072 = vmatpush1.bf16.msra.mxu0 0
    %7073 = vmatprep.subr.bf16.mxu0 0
    %7074 = vmatpush1.bf16.msra.mxu0 0
    %7075 = vmatprep.subr.bf16.mxu0 0
    %7076 = vmatpush1.bf16.msra.mxu0 0
    %7077 = vmatprep.subr.bf16.mxu0 %v7056
    %7078 = vmatpush1.bf16.msra.mxu0 %v7055
    %7079 = vmatprep.subr.bf16.mxu0 %v7054
    %7080 = vmatpush1.bf16.msra.mxu0 %v7053
    %7081 = vmatprep.subr.bf16.mxu0 0
    %7082 = vmatpush2.bf16.msra.mxu0 0
    %7083 = vmatprep.subr.bf16.mxu0 0
    %7084 = vmatpush2.bf16.msra.mxu0 0
    %7085 = vmatprep.subr.bf16.mxu0 0
    %7086 = vmatpush2.bf16.msra.mxu0 0
    %7087 = vmatprep.subr.bf16.mxu0 0
    %7088 = vmatpush2.bf16.msra.mxu0 0
    %7089 = vmatprep.subr.bf16.mxu0 0
    %7090 = vmatpush2.bf16.msra.mxu0 0
    %7091 = vmatprep.subr.bf16.mxu0 0
    %7092 = vmatpush2.bf16.msra.mxu0 0
    %7093 = vmatprep.subr.bf16.mxu0 0
    %7094 = vmatpush2.bf16.msra.mxu0 0
    %7095 = vmatprep.subr.bf16.mxu0 0
    %7096 = vmatpush2.bf16.msra.mxu0 0
    %7097 = vmatprep.mubr.bf16.mxu0 0
    %7098 = vmatmul.mubr.bf16.gmra.mxu0 %v7063
    %v7099 = vpop.f32.mrf.mxu0
    %v7100 = vadd.f32 %v7036, %v7099
    %v7101 = vpop.f32.mrf.mxu0
    %v7102 = vadd.f32 %v7040, %v7101
    %v7103 = vpop.f32.mrf.mxu0
    %v7104 = vpop.f32.mrf.mxu0
    %7105 = vdwg.mxu0
    %v7106 = vlaneseq
    %v7107 = vshrl.u32 %v7106, 7
    %v7108 = vsub.s32 1, %v7107
    %v7109 = vrot.slane %v7016, %v7108
    %v7110 = vlaneseq
    %v7111 = vshrl.u32 %v7110, 7
    %v7112 = vsub.s32 5, %v7111
    %v7113 = vrot.slane %v7016, %v7112
    %v7116 = vlaneseq
    %v7117 = vshrl.u32 %v7116, 7
    %v7118 = vsub.s32 1, %v7117
    %v7119 = vrot.slane %v7109, %v7118
    %v7120 = vlaneseq
    %v7121 = vshrl.u32 %v7120, 7
    %v7122 = vsub.s32 1, %v7121
    %v7123 = vrot.slane %v7113, %v7122
    %v7124 = vmul.f32 %v7100, %v7119
    %v7125 = vmul.f32 %v7102, %v7123
    %v7126 = vlaneseq
    %v7127 = vshrl.u32 %v7126, 7
    %v7128 = vsub.s32 2, %v7127
    %v7129 = vrot.slane %v7016, %v7128
    %v7130 = vlaneseq
    %v7131 = vshrl.u32 %v7130, 7
    %v7132 = vsub.s32 6, %v7131
    %v7133 = vrot.slane %v7016, %v7132
    %v7136 = vlaneseq
    %v7137 = vshrl.u32 %v7136, 7
    %v7138 = vsub.s32 2, %v7137
    %v7139 = vrot.slane %v7129, %v7138
    %v7140 = vlaneseq
    %v7141 = vshrl.u32 %v7140, 7
    %v7142 = vsub.s32 2, %v7141
    %v7143 = vrot.slane %v7133, %v7142
    %v7144 = vadd.f32 %v7124, %v7139
    %v7145 = vadd.f32 %v7125, %v7143
    %v7146 = vld [vmem:[#allocation19] sm:$0x77]
    %v7147 = vld [vmem:[#allocation19 + $0x8] sm:$0x77]
    %v7148 = vpack.c.bf16 %v7144, %v7144
    %v7149 = vpack.c.bf16 %v7145, %v7145
    %v7150 = vld [vmem:[#allocation18] sm:$0xff]
    %v7151 = vld [vmem:[#allocation18 + $0x8] sm:$0xff]
    %v7152 = vld [vmem:[#allocation18 + $0x10] sm:$0xff]
    %v7153 = vld [vmem:[#allocation18 + $0x18] sm:$0xff]
    %v7154 = vld [vmem:[#allocation18 + $0x20] sm:$0xff]
    %v7155 = vld [vmem:[#allocation18 + $0x28] sm:$0xff]
    %v7156 = vld [vmem:[#allocation18 + $0x30] sm:$0xff]
    %v7157 = vld [vmem:[#allocation18 + $0x38] sm:$0xff]
    %v7158 = vld [vmem:[#allocation18 + $0x40] sm:$0xff]
    %v7159 = vld [vmem:[#allocation18 + $0x48] sm:$0xff]
    %v7160 = vld [vmem:[#allocation18 + $0x50] sm:$0xff]
    %v7161 = vld [vmem:[#allocation18 + $0x58] sm:$0xff]
    %v7162 = vld [vmem:[#allocation18 + $0x60] sm:$0xff]
    %v7163 = vld [vmem:[#allocation18 + $0x68] sm:$0xff]
    %v7164 = vld [vmem:[#allocation18 + $0x70] sm:$0xff]
    %v7165 = vld [vmem:[#allocation18 + $0x78] sm:$0xff]
    %v7166 = vld [vmem:[#allocation18 + $0x80] sm:$0xff]
    %v7167 = vld [vmem:[#allocation18 + $0x88] sm:$0xff]
    %v7168 = vld [vmem:[#allocation18 + $0x90] sm:$0xff]
    %v7169 = vld [vmem:[#allocation18 + $0x98] sm:$0xff]
    %v7170 = vld [vmem:[#allocation18 + $0xa0] sm:$0xff]
    %v7171 = vld [vmem:[#allocation18 + $0xa8] sm:$0xff]
    %v7172 = vld [vmem:[#allocation18 + $0xb0] sm:$0xff]
    %v7173 = vld [vmem:[#allocation18 + $0xb8] sm:$0xff]
    %v7174 = vld [vmem:[#allocation18 + $0xc0] sm:$0xff]
    %v7175 = vld [vmem:[#allocation18 + $0xc8] sm:$0xff]
    %v7176 = vld [vmem:[#allocation18 + $0xd0] sm:$0xff]
    %v7177 = vld [vmem:[#allocation18 + $0xd8] sm:$0xff]
    %v7178 = vld [vmem:[#allocation18 + $0xe0] sm:$0xff]
    %v7179 = vld [vmem:[#allocation18 + $0xe8] sm:$0xff]
    %v7180 = vld [vmem:[#allocation18 + $0xf0] sm:$0xff]
    %v7181 = vld [vmem:[#allocation18 + $0xf8] sm:$0xff]
    %v7182 = vld [vmem:[#allocation18 + $0x100] sm:$0xff]
    %v7183 = vld [vmem:[#allocation18 + $0x108] sm:$0xff]
    %v7184 = vld [vmem:[#allocation18 + $0x110] sm:$0xff]
    %v7185 = vld [vmem:[#allocation18 + $0x118] sm:$0xff]
    %v7186 = vld [vmem:[#allocation18 + $0x120] sm:$0xff]
    %v7187 = vld [vmem:[#allocation18 + $0x128] sm:$0xff]
    %v7188 = vld [vmem:[#allocation18 + $0x130] sm:$0xff]
    %v7189 = vld [vmem:[#allocation18 + $0x138] sm:$0xff]
    %v7190 = vld [vmem:[#allocation18 + $0x140] sm:$0xff]
    %v7191 = vld [vmem:[#allocation18 + $0x148] sm:$0xff]
    %v7192 = vld [vmem:[#allocation18 + $0x150] sm:$0xff]
    %v7193 = vld [vmem:[#allocation18 + $0x158] sm:$0xff]
    %v7194 = vld [vmem:[#allocation18 + $0x160] sm:$0xff]
    %v7195 = vld [vmem:[#allocation18 + $0x168] sm:$0xff]
    %v7196 = vld [vmem:[#allocation18 + $0x170] sm:$0xff]
    %v7197 = vld [vmem:[#allocation18 + $0x178] sm:$0xff]
    %v7198 = vld [vmem:[#allocation18 + $0x180] sm:$0xff]
    %v7199 = vld [vmem:[#allocation18 + $0x188] sm:$0xff]
    %v7200 = vld [vmem:[#allocation18 + $0x190] sm:$0xff]
    %v7201 = vld [vmem:[#allocation18 + $0x198] sm:$0xff]
    %v7202 = vld [vmem:[#allocation18 + $0x1a0] sm:$0xff]
    %v7203 = vld [vmem:[#allocation18 + $0x1a8] sm:$0xff]
    %v7204 = vld [vmem:[#allocation18 + $0x1b0] sm:$0xff]
    %v7205 = vld [vmem:[#allocation18 + $0x1b8] sm:$0xff]
    %v7206 = vld [vmem:[#allocation18 + $0x1c0] sm:$0xff]
    %v7207 = vld [vmem:[#allocation18 + $0x1c8] sm:$0xff]
    %v7208 = vld [vmem:[#allocation18 + $0x1d0] sm:$0xff]
    %v7209 = vld [vmem:[#allocation18 + $0x1d8] sm:$0xff]
    %v7210 = vld [vmem:[#allocation18 + $0x1e0] sm:$0xff]
    %v7211 = vld [vmem:[#allocation18 + $0x1e8] sm:$0xff]
    %v7212 = vld [vmem:[#allocation18 + $0x1f0] sm:$0xff]
    %v7213 = vld [vmem:[#allocation18 + $0x1f8] sm:$0xff]
    %v7216 = vlaneseq
    %v7217 = vshrl.u32 %v7216, 7
    %v7218 = vsub.s32 0, %v7217
    %v7219 = vrot.slane %v7146, %v7218
    %v7220 = vlaneseq
    %v7221 = vshrl.u32 %v7220, 7
    %v7222 = vsub.s32 4, %v7221
    %v7223 = vrot.slane %v7146, %v7222
    %v7224 = vlaneseq
    %v7225 = vshrl.u32 %v7224, 7
    %v7226 = vsub.s32 0, %v7225
    %v7227 = vrot.slane %v7147, %v7226
    %v7228 = vlaneseq
    %v7229 = vshrl.u32 %v7228, 7
    %v7230 = vsub.s32 4, %v7229
    %v7231 = vrot.slane %v7147, %v7230
    %v7236 = vlaneseq
    %v7237 = vshrl.u32 %v7236, 7
    %v7238 = vsub.s32 0, %v7237
    %v7239 = vrot.slane %v7219, %v7238
    %v7240 = vlaneseq
    %v7241 = vshrl.u32 %v7240, 7
    %v7242 = vsub.s32 0, %v7241
    %v7243 = vrot.slane %v7223, %v7242
    %v7244 = vlaneseq
    %v7245 = vshrl.u32 %v7244, 7
    %v7246 = vsub.s32 0, %v7245
    %v7247 = vrot.slane %v7227, %v7246
    %v7248 = vlaneseq
    %v7249 = vshrl.u32 %v7248, 7
    %v7250 = vsub.s32 0, %v7249
    %v7251 = vrot.slane %v7231, %v7250
    %v7316 = vunpack.c.l.b16 %v7150
    %v7317 = vunpack.c.h.b16 %v7150
    %v7318 = vunpack.c.l.b16 %v7151
    %v7319 = vunpack.c.h.b16 %v7151
    %v7320 = vunpack.c.l.b16 %v7152
    %v7321 = vunpack.c.h.b16 %v7152
    %v7322 = vunpack.c.l.b16 %v7153
    %v7323 = vunpack.c.h.b16 %v7153
    %v7324 = vunpack.c.l.b16 %v7154
    %v7325 = vunpack.c.h.b16 %v7154
    %v7326 = vunpack.c.l.b16 %v7155
    %v7327 = vunpack.c.h.b16 %v7155
    %v7328 = vunpack.c.l.b16 %v7156
    %v7329 = vunpack.c.h.b16 %v7156
    %v7330 = vunpack.c.l.b16 %v7157
    %v7331 = vunpack.c.h.b16 %v7157
    %v7332 = vunpack.c.l.b16 %v7158
    %v7333 = vunpack.c.h.b16 %v7158
    %v7334 = vunpack.c.l.b16 %v7159
    %v7335 = vunpack.c.h.b16 %v7159
    %v7336 = vunpack.c.l.b16 %v7160
    %v7337 = vunpack.c.h.b16 %v7160
    %v7338 = vunpack.c.l.b16 %v7161
    %v7339 = vunpack.c.h.b16 %v7161
    %v7340 = vunpack.c.l.b16 %v7162
    %v7341 = vunpack.c.h.b16 %v7162
    %v7342 = vunpack.c.l.b16 %v7163
    %v7343 = vunpack.c.h.b16 %v7163
    %v7344 = vunpack.c.l.b16 %v7164
    %v7345 = vunpack.c.h.b16 %v7164
    %v7346 = vunpack.c.l.b16 %v7165
    %v7347 = vunpack.c.h.b16 %v7165
    %v7348 = vunpack.c.l.b16 %v7166
    %v7349 = vunpack.c.h.b16 %v7166
    %v7350 = vunpack.c.l.b16 %v7167
    %v7351 = vunpack.c.h.b16 %v7167
    %v7352 = vunpack.c.l.b16 %v7168
    %v7353 = vunpack.c.h.b16 %v7168
    %v7354 = vunpack.c.l.b16 %v7169
    %v7355 = vunpack.c.h.b16 %v7169
    %v7356 = vunpack.c.l.b16 %v7170
    %v7357 = vunpack.c.h.b16 %v7170
    %v7358 = vunpack.c.l.b16 %v7171
    %v7359 = vunpack.c.h.b16 %v7171
    %v7360 = vunpack.c.l.b16 %v7172
    %v7361 = vunpack.c.h.b16 %v7172
    %v7362 = vunpack.c.l.b16 %v7173
    %v7363 = vunpack.c.h.b16 %v7173
    %v7364 = vunpack.c.l.b16 %v7174
    %v7365 = vunpack.c.h.b16 %v7174
    %v7366 = vunpack.c.l.b16 %v7175
    %v7367 = vunpack.c.h.b16 %v7175
    %v7368 = vunpack.c.l.b16 %v7176
    %v7369 = vunpack.c.h.b16 %v7176
    %v7370 = vunpack.c.l.b16 %v7177
    %v7371 = vunpack.c.h.b16 %v7177
    %v7372 = vunpack.c.l.b16 %v7178
    %v7373 = vunpack.c.h.b16 %v7178
    %v7374 = vunpack.c.l.b16 %v7179
    %v7375 = vunpack.c.h.b16 %v7179
    %v7376 = vunpack.c.l.b16 %v7180
    %v7377 = vunpack.c.h.b16 %v7180
    %v7378 = vunpack.c.l.b16 %v7181
    %v7379 = vunpack.c.h.b16 %v7181
    %v7380 = vunpack.c.l.b16 %v7182
    %v7381 = vunpack.c.h.b16 %v7182
    %v7382 = vunpack.c.l.b16 %v7183
    %v7383 = vunpack.c.h.b16 %v7183
    %v7384 = vunpack.c.l.b16 %v7184
    %v7385 = vunpack.c.h.b16 %v7184
    %v7386 = vunpack.c.l.b16 %v7185
    %v7387 = vunpack.c.h.b16 %v7185
    %v7388 = vunpack.c.l.b16 %v7186
    %v7389 = vunpack.c.h.b16 %v7186
    %v7390 = vunpack.c.l.b16 %v7187
    %v7391 = vunpack.c.h.b16 %v7187
    %v7392 = vunpack.c.l.b16 %v7188
    %v7393 = vunpack.c.h.b16 %v7188
    %v7394 = vunpack.c.l.b16 %v7189
    %v7395 = vunpack.c.h.b16 %v7189
    %v7396 = vunpack.c.l.b16 %v7190
    %v7397 = vunpack.c.h.b16 %v7190
    %v7398 = vunpack.c.l.b16 %v7191
    %v7399 = vunpack.c.h.b16 %v7191
    %v7400 = vunpack.c.l.b16 %v7192
    %v7401 = vunpack.c.h.b16 %v7192
    %v7402 = vunpack.c.l.b16 %v7193
    %v7403 = vunpack.c.h.b16 %v7193
    %v7404 = vunpack.c.l.b16 %v7194
    %v7405 = vunpack.c.h.b16 %v7194
    %v7406 = vunpack.c.l.b16 %v7195
    %v7407 = vunpack.c.h.b16 %v7195
    %v7408 = vunpack.c.l.b16 %v7196
    %v7409 = vunpack.c.h.b16 %v7196
    %v7410 = vunpack.c.l.b16 %v7197
    %v7411 = vunpack.c.h.b16 %v7197
    %v7412 = vunpack.c.l.b16 %v7198
    %v7413 = vunpack.c.h.b16 %v7198
    %v7414 = vunpack.c.l.b16 %v7199
    %v7415 = vunpack.c.h.b16 %v7199
    %v7416 = vunpack.c.l.b16 %v7200
    %v7417 = vunpack.c.h.b16 %v7200
    %v7418 = vunpack.c.l.b16 %v7201
    %v7419 = vunpack.c.h.b16 %v7201
    %v7420 = vunpack.c.l.b16 %v7202
    %v7421 = vunpack.c.h.b16 %v7202
    %v7422 = vunpack.c.l.b16 %v7203
    %v7423 = vunpack.c.h.b16 %v7203
    %v7424 = vunpack.c.l.b16 %v7204
    %v7425 = vunpack.c.h.b16 %v7204
    %v7426 = vunpack.c.l.b16 %v7205
    %v7427 = vunpack.c.h.b16 %v7205
    %v7428 = vunpack.c.l.b16 %v7206
    %v7429 = vunpack.c.h.b16 %v7206
    %v7430 = vunpack.c.l.b16 %v7207
    %v7431 = vunpack.c.h.b16 %v7207
    %v7432 = vunpack.c.l.b16 %v7208
    %v7433 = vunpack.c.h.b16 %v7208
    %v7434 = vunpack.c.l.b16 %v7209
    %v7435 = vunpack.c.h.b16 %v7209
    %v7436 = vunpack.c.l.b16 %v7210
    %v7437 = vunpack.c.h.b16 %v7210
    %v7438 = vunpack.c.l.b16 %v7211
    %v7439 = vunpack.c.h.b16 %v7211
    %v7440 = vunpack.c.l.b16 %v7212
    %v7441 = vunpack.c.h.b16 %v7212
    %v7442 = vunpack.c.l.b16 %v7213
    %v7443 = vunpack.c.h.b16 %v7213
    %v7444 = vpack.c.b16 %v7320, %v7316
    %v7445 = vpack.c.b16 %v7321, %v7317
    %v7446 = vpack.c.b16 %v7322, %v7318
    %v7447 = vpack.c.b16 %v7323, %v7319
    %v7448 = vpack.c.b16 %v7328, %v7324
    %v7449 = vpack.c.b16 %v7329, %v7325
    %v7450 = vpack.c.b16 %v7330, %v7326
    %v7451 = vpack.c.b16 %v7331, %v7327
    %v7452 = vpack.c.b16 %v7336, %v7332
    %v7453 = vpack.c.b16 %v7337, %v7333
    %v7454 = vpack.c.b16 %v7338, %v7334
    %v7455 = vpack.c.b16 %v7339, %v7335
    %v7456 = vpack.c.b16 %v7344, %v7340
    %v7457 = vpack.c.b16 %v7345, %v7341
    %v7458 = vpack.c.b16 %v7346, %v7342
    %v7459 = vpack.c.b16 %v7347, %v7343
    %v7460 = vpack.c.b16 %v7352, %v7348
    %v7461 = vpack.c.b16 %v7353, %v7349
    %v7462 = vpack.c.b16 %v7354, %v7350
    %v7463 = vpack.c.b16 %v7355, %v7351
    %v7464 = vpack.c.b16 %v7360, %v7356
    %v7465 = vpack.c.b16 %v7361, %v7357
    %v7466 = vpack.c.b16 %v7362, %v7358
    %v7467 = vpack.c.b16 %v7363, %v7359
    %v7468 = vpack.c.b16 %v7368, %v7364
    %v7469 = vpack.c.b16 %v7369, %v7365
    %v7470 = vpack.c.b16 %v7370, %v7366
    %v7471 = vpack.c.b16 %v7371, %v7367
    %v7472 = vpack.c.b16 %v7376, %v7372
    %v7473 = vpack.c.b16 %v7377, %v7373
    %v7474 = vpack.c.b16 %v7378, %v7374
    %v7475 = vpack.c.b16 %v7379, %v7375
    %v7476 = vpack.c.b16 %v7384, %v7380
    %v7477 = vpack.c.b16 %v7385, %v7381
    %v7478 = vpack.c.b16 %v7386, %v7382
    %v7479 = vpack.c.b16 %v7387, %v7383
    %v7480 = vpack.c.b16 %v7392, %v7388
    %v7481 = vpack.c.b16 %v7393, %v7389
    %v7482 = vpack.c.b16 %v7394, %v7390
    %v7483 = vpack.c.b16 %v7395, %v7391
    %v7484 = vpack.c.b16 %v7400, %v7396
    %v7485 = vpack.c.b16 %v7401, %v7397
    %v7486 = vpack.c.b16 %v7402, %v7398
    %v7487 = vpack.c.b16 %v7403, %v7399
    %v7488 = vpack.c.b16 %v7408, %v7404
    %v7489 = vpack.c.b16 %v7409, %v7405
    %v7490 = vpack.c.b16 %v7410, %v7406
    %v7491 = vpack.c.b16 %v7411, %v7407
    %v7492 = vpack.c.b16 %v7416, %v7412
    %v7493 = vpack.c.b16 %v7417, %v7413
    %v7494 = vpack.c.b16 %v7418, %v7414
    %v7495 = vpack.c.b16 %v7419, %v7415
    %v7496 = vpack.c.b16 %v7424, %v7420
    %v7497 = vpack.c.b16 %v7425, %v7421
    %v7498 = vpack.c.b16 %v7426, %v7422
    %v7499 = vpack.c.b16 %v7427, %v7423
    %v7500 = vpack.c.b16 %v7432, %v7428
    %v7501 = vpack.c.b16 %v7433, %v7429
    %v7502 = vpack.c.b16 %v7434, %v7430
    %v7503 = vpack.c.b16 %v7435, %v7431
    %v7504 = vpack.c.b16 %v7440, %v7436
    %v7505 = vpack.c.b16 %v7441, %v7437
    %v7506 = vpack.c.b16 %v7442, %v7438
    %v7507 = vpack.c.b16 %v7443, %v7439
    %7572 = vmatprep.subr.bf16.mxu0 %v7473
    %7573 = vmatpush1.bf16.msra.mxu0 %v7472
    %7574 = vmatprep.subr.bf16.mxu0 %v7469
    %7575 = vmatpush1.bf16.msra.mxu0 %v7468
    %7576 = vmatprep.subr.bf16.mxu0 %v7465
    %7577 = vmatpush1.bf16.msra.mxu0 %v7464
    %7578 = vmatprep.subr.bf16.mxu0 %v7461
    %7579 = vmatpush1.bf16.msra.mxu0 %v7460
    %7580 = vmatprep.subr.bf16.mxu0 %v7457
    %7581 = vmatpush1.bf16.msra.mxu0 %v7456
    %7582 = vmatprep.subr.bf16.mxu0 %v7453
    %7583 = vmatpush1.bf16.msra.mxu0 %v7452
    %7584 = vmatprep.subr.bf16.mxu0 %v7449
    %7585 = vmatpush1.bf16.msra.mxu0 %v7448
    %7586 = vmatprep.subr.bf16.mxu0 %v7445
    %7587 = vmatpush1.bf16.msra.mxu0 %v7444
    %7588 = vmatprep.subr.bf16.mxu0 %v7505
    %7589 = vmatpush2.bf16.msra.mxu0 %v7504
    %7590 = vmatprep.subr.bf16.mxu0 %v7501
    %7591 = vmatpush2.bf16.msra.mxu0 %v7500
    %7592 = vmatprep.subr.bf16.mxu0 %v7497
    %7593 = vmatpush2.bf16.msra.mxu0 %v7496
    %7594 = vmatprep.subr.bf16.mxu0 %v7493
    %7595 = vmatpush2.bf16.msra.mxu0 %v7492
    %7596 = vmatprep.subr.bf16.mxu0 %v7489
    %7597 = vmatpush2.bf16.msra.mxu0 %v7488
    %7598 = vmatprep.subr.bf16.mxu0 %v7485
    %7599 = vmatpush2.bf16.msra.mxu0 %v7484
    %7600 = vmatprep.subr.bf16.mxu0 %v7481
    %7601 = vmatpush2.bf16.msra.mxu0 %v7480
    %7602 = vmatprep.subr.bf16.mxu0 %v7477
    %7603 = vmatpush2.bf16.msra.mxu0 %v7476
    %7604 = vmatprep.mubr.bf16.mxu0 %v7149
    %7605 = vmatmul.mubr.bf16.gmra.mxu0 %v7148
    %v7606 = vpop.f32.mrf.mxu0
    %v7607 = vadd.f32 %v7239, %v7606
    %v7608 = vpop.f32.mrf.mxu0
    %v7609 = vadd.f32 %v7243, %v7608
    %v7610 = vpop.f32.mrf.mxu0
    %v7611 = vpop.f32.mrf.mxu0
    %7612 = vdwg.mxu0
    %7613 = vmatprep.subr.bf16.mxu0 %v7475
    %7614 = vmatpush1.bf16.msra.mxu0 %v7474
    %7615 = vmatprep.subr.bf16.mxu0 %v7471
    %7616 = vmatpush1.bf16.msra.mxu0 %v7470
    %7617 = vmatprep.subr.bf16.mxu0 %v7467
    %7618 = vmatpush1.bf16.msra.mxu0 %v7466
    %7619 = vmatprep.subr.bf16.mxu0 %v7463
    %7620 = vmatpush1.bf16.msra.mxu0 %v7462
    %7621 = vmatprep.subr.bf16.mxu0 %v7459
    %7622 = vmatpush1.bf16.msra.mxu0 %v7458
    %7623 = vmatprep.subr.bf16.mxu0 %v7455
    %7624 = vmatpush1.bf16.msra.mxu0 %v7454
    %7625 = vmatprep.subr.bf16.mxu0 %v7451
    %7626 = vmatpush1.bf16.msra.mxu0 %v7450
    %7627 = vmatprep.subr.bf16.mxu0 %v7447
    %7628 = vmatpush1.bf16.msra.mxu0 %v7446
    %7629 = vmatprep.subr.bf16.mxu0 %v7507
    %7630 = vmatpush2.bf16.msra.mxu0 %v7506
    %7631 = vmatprep.subr.bf16.mxu0 %v7503
    %7632 = vmatpush2.bf16.msra.mxu0 %v7502
    %7633 = vmatprep.subr.bf16.mxu0 %v7499
    %7634 = vmatpush2.bf16.msra.mxu0 %v7498
    %7635 = vmatprep.subr.bf16.mxu0 %v7495
    %7636 = vmatpush2.bf16.msra.mxu0 %v7494
    %7637 = vmatprep.subr.bf16.mxu0 %v7491
    %7638 = vmatpush2.bf16.msra.mxu0 %v7490
    %7639 = vmatprep.subr.bf16.mxu0 %v7487
    %7640 = vmatpush2.bf16.msra.mxu0 %v7486
    %7641 = vmatprep.subr.bf16.mxu0 %v7483
    %7642 = vmatpush2.bf16.msra.mxu0 %v7482
    %7643 = vmatprep.subr.bf16.mxu0 %v7479
    %7644 = vmatpush2.bf16.msra.mxu0 %v7478
    %7645 = vmatprep.mubr.bf16.mxu0 %v7149
    %7646 = vmatmul.mubr.bf16.gmra.mxu0 %v7148
    %v7647 = vpop.f32.mrf.mxu0
    %v7648 = vadd.f32 %v7247, %v7647
    %v7649 = vpop.f32.mrf.mxu0
    %v7650 = vadd.f32 %v7251, %v7649
    %v7651 = vpop.f32.mrf.mxu0
    %v7652 = vpop.f32.mrf.mxu0
    %7653 = vdwg.mxu0
    %v7654 = vmax.f32 %v7607, 0.0
    %v7655 = vmax.f32 %v7609, 0.0
    %v7656 = vmax.f32 %v7648, 0.0
    %v7657 = vmax.f32 %v7650, 0.0
    %v7658 = vlaneseq
    %v7659 = vshrl.u32 %v7658, 7
    %v7660 = vsub.s32 1, %v7659
    %v7661 = vrot.slane %v7146, %v7660
    %v7662 = vlaneseq
    %v7663 = vshrl.u32 %v7662, 7
    %v7664 = vsub.s32 5, %v7663
    %v7665 = vrot.slane %v7146, %v7664
    %v7666 = vlaneseq
    %v7667 = vshrl.u32 %v7666, 7
    %v7668 = vsub.s32 1, %v7667
    %v7669 = vrot.slane %v7147, %v7668
    %v7670 = vlaneseq
    %v7671 = vshrl.u32 %v7670, 7
    %v7672 = vsub.s32 5, %v7671
    %v7673 = vrot.slane %v7147, %v7672
    %v7678 = vlaneseq
    %v7679 = vshrl.u32 %v7678, 7
    %v7680 = vsub.s32 1, %v7679
    %v7681 = vrot.slane %v7661, %v7680
    %v7682 = vlaneseq
    %v7683 = vshrl.u32 %v7682, 7
    %v7684 = vsub.s32 1, %v7683
    %v7685 = vrot.slane %v7665, %v7684
    %v7686 = vlaneseq
    %v7687 = vshrl.u32 %v7686, 7
    %v7688 = vsub.s32 1, %v7687
    %v7689 = vrot.slane %v7669, %v7688
    %v7690 = vlaneseq
    %v7691 = vshrl.u32 %v7690, 7
    %v7692 = vsub.s32 1, %v7691
    %v7693 = vrot.slane %v7673, %v7692
    %v7694 = vmul.f32 %v7654, %v7681
    %v7695 = vmul.f32 %v7655, %v7685
    %v7696 = vmul.f32 %v7656, %v7689
    %v7697 = vmul.f32 %v7657, %v7693
    %v7698 = vlaneseq
    %v7699 = vshrl.u32 %v7698, 7
    %v7700 = vsub.s32 2, %v7699
    %v7701 = vrot.slane %v7146, %v7700
    %v7702 = vlaneseq
    %v7703 = vshrl.u32 %v7702, 7
    %v7704 = vsub.s32 6, %v7703
    %v7705 = vrot.slane %v7146, %v7704
    %v7706 = vlaneseq
    %v7707 = vshrl.u32 %v7706, 7
    %v7708 = vsub.s32 2, %v7707
    %v7709 = vrot.slane %v7147, %v7708
    %v7710 = vlaneseq
    %v7711 = vshrl.u32 %v7710, 7
    %v7712 = vsub.s32 6, %v7711
    %v7713 = vrot.slane %v7147, %v7712
    %v7718 = vlaneseq
    %v7719 = vshrl.u32 %v7718, 7
    %v7720 = vsub.s32 2, %v7719
    %v7721 = vrot.slane %v7701, %v7720
    %v7722 = vlaneseq
    %v7723 = vshrl.u32 %v7722, 7
    %v7724 = vsub.s32 2, %v7723
    %v7725 = vrot.slane %v7705, %v7724
    %v7726 = vlaneseq
    %v7727 = vshrl.u32 %v7726, 7
    %v7728 = vsub.s32 2, %v7727
    %v7729 = vrot.slane %v7709, %v7728
    %v7730 = vlaneseq
    %v7731 = vshrl.u32 %v7730, 7
    %v7732 = vsub.s32 2, %v7731
    %v7733 = vrot.slane %v7713, %v7732
    %v7734 = vadd.f32 %v7694, %v7721
    %v7735 = vadd.f32 %v7695, %v7725
    %v7736 = vadd.f32 %v7696, %v7729
    %v7737 = vadd.f32 %v7697, %v7733
    %v7738 = vld [vmem:[#allocation22] sm:$0x77]
    %v7739 = vld [vmem:[#allocation22 + $0x8] sm:$0x77]
    %v7740 = vld [vmem:[#allocation22 + $0x10] sm:$0x77]
    %v7741 = vld [vmem:[#allocation22 + $0x18] sm:$0x77]
    %v7742 = vpack.c.bf16 %v7734, %v7734
    %v7743 = vpack.c.bf16 %v7735, %v7735
    %v7744 = vpack.c.bf16 %v7736, %v7736
    %v7745 = vpack.c.bf16 %v7737, %v7737
    %v7746 = vld [vmem:[#allocation21] sm:$0xff]
    %v7747 = vld [vmem:[#allocation21 + $0x8] sm:$0xff]
    %v7748 = vld [vmem:[#allocation21 + $0x10] sm:$0xff]
    %v7749 = vld [vmem:[#allocation21 + $0x18] sm:$0xff]
    %v7750 = vld [vmem:[#allocation21 + $0x20] sm:$0xff]
    %v7751 = vld [vmem:[#allocation21 + $0x28] sm:$0xff]
    %v7752 = vld [vmem:[#allocation21 + $0x30] sm:$0xff]
    %v7753 = vld [vmem:[#allocation21 + $0x38] sm:$0xff]
    %v7754 = vld [vmem:[#allocation21 + $0x40] sm:$0xff]
    %v7755 = vld [vmem:[#allocation21 + $0x48] sm:$0xff]
    %v7756 = vld [vmem:[#allocation21 + $0x50] sm:$0xff]
    %v7757 = vld [vmem:[#allocation21 + $0x58] sm:$0xff]
    %v7758 = vld [vmem:[#allocation21 + $0x60] sm:$0xff]
    %v7759 = vld [vmem:[#allocation21 + $0x68] sm:$0xff]
    %v7760 = vld [vmem:[#allocation21 + $0x70] sm:$0xff]
    %v7761 = vld [vmem:[#allocation21 + $0x78] sm:$0xff]
    %v7762 = vld [vmem:[#allocation21 + $0x80] sm:$0xff]
    %v7763 = vld [vmem:[#allocation21 + $0x88] sm:$0xff]
    %v7764 = vld [vmem:[#allocation21 + $0x90] sm:$0xff]
    %v7765 = vld [vmem:[#allocation21 + $0x98] sm:$0xff]
    %v7766 = vld [vmem:[#allocation21 + $0xa0] sm:$0xff]
    %v7767 = vld [vmem:[#allocation21 + $0xa8] sm:$0xff]
    %v7768 = vld [vmem:[#allocation21 + $0xb0] sm:$0xff]
    %v7769 = vld [vmem:[#allocation21 + $0xb8] sm:$0xff]
    %v7770 = vld [vmem:[#allocation21 + $0xc0] sm:$0xff]
    %v7771 = vld [vmem:[#allocation21 + $0xc8] sm:$0xff]
    %v7772 = vld [vmem:[#allocation21 + $0xd0] sm:$0xff]
    %v7773 = vld [vmem:[#allocation21 + $0xd8] sm:$0xff]
    %v7774 = vld [vmem:[#allocation21 + $0xe0] sm:$0xff]
    %v7775 = vld [vmem:[#allocation21 + $0xe8] sm:$0xff]
    %v7776 = vld [vmem:[#allocation21 + $0xf0] sm:$0xff]
    %v7777 = vld [vmem:[#allocation21 + $0xf8] sm:$0xff]
    %v7778 = vld [vmem:[#allocation21 + $0x100] sm:$0xff]
    %v7779 = vld [vmem:[#allocation21 + $0x108] sm:$0xff]
    %v7780 = vld [vmem:[#allocation21 + $0x110] sm:$0xff]
    %v7781 = vld [vmem:[#allocation21 + $0x118] sm:$0xff]
    %v7782 = vld [vmem:[#allocation21 + $0x120] sm:$0xff]
    %v7783 = vld [vmem:[#allocation21 + $0x128] sm:$0xff]
    %v7784 = vld [vmem:[#allocation21 + $0x130] sm:$0xff]
    %v7785 = vld [vmem:[#allocation21 + $0x138] sm:$0xff]
    %v7786 = vld [vmem:[#allocation21 + $0x140] sm:$0xff]
    %v7787 = vld [vmem:[#allocation21 + $0x148] sm:$0xff]
    %v7788 = vld [vmem:[#allocation21 + $0x150] sm:$0xff]
    %v7789 = vld [vmem:[#allocation21 + $0x158] sm:$0xff]
    %v7790 = vld [vmem:[#allocation21 + $0x160] sm:$0xff]
    %v7791 = vld [vmem:[#allocation21 + $0x168] sm:$0xff]
    %v7792 = vld [vmem:[#allocation21 + $0x170] sm:$0xff]
    %v7793 = vld [vmem:[#allocation21 + $0x178] sm:$0xff]
    %v7794 = vld [vmem:[#allocation21 + $0x180] sm:$0xff]
    %v7795 = vld [vmem:[#allocation21 + $0x188] sm:$0xff]
    %v7796 = vld [vmem:[#allocation21 + $0x190] sm:$0xff]
    %v7797 = vld [vmem:[#allocation21 + $0x198] sm:$0xff]
    %v7798 = vld [vmem:[#allocation21 + $0x1a0] sm:$0xff]
    %v7799 = vld [vmem:[#allocation21 + $0x1a8] sm:$0xff]
    %v7800 = vld [vmem:[#allocation21 + $0x1b0] sm:$0xff]
    %v7801 = vld [vmem:[#allocation21 + $0x1b8] sm:$0xff]
    %v7802 = vld [vmem:[#allocation21 + $0x1c0] sm:$0xff]
    %v7803 = vld [vmem:[#allocation21 + $0x1c8] sm:$0xff]
    %v7804 = vld [vmem:[#allocation21 + $0x1d0] sm:$0xff]
    %v7805 = vld [vmem:[#allocation21 + $0x1d8] sm:$0xff]
    %v7806 = vld [vmem:[#allocation21 + $0x1e0] sm:$0xff]
    %v7807 = vld [vmem:[#allocation21 + $0x1e8] sm:$0xff]
    %v7808 = vld [vmem:[#allocation21 + $0x1f0] sm:$0xff]
    %v7809 = vld [vmem:[#allocation21 + $0x1f8] sm:$0xff]
    %v7810 = vld [vmem:[#allocation21 + $0x200] sm:$0xff]
    %v7811 = vld [vmem:[#allocation21 + $0x208] sm:$0xff]
    %v7812 = vld [vmem:[#allocation21 + $0x210] sm:$0xff]
    %v7813 = vld [vmem:[#allocation21 + $0x218] sm:$0xff]
    %v7814 = vld [vmem:[#allocation21 + $0x220] sm:$0xff]
    %v7815 = vld [vmem:[#allocation21 + $0x228] sm:$0xff]
    %v7816 = vld [vmem:[#allocation21 + $0x230] sm:$0xff]
    %v7817 = vld [vmem:[#allocation21 + $0x238] sm:$0xff]
    %v7818 = vld [vmem:[#allocation21 + $0x240] sm:$0xff]
    %v7819 = vld [vmem:[#allocation21 + $0x248] sm:$0xff]
    %v7820 = vld [vmem:[#allocation21 + $0x250] sm:$0xff]
    %v7821 = vld [vmem:[#allocation21 + $0x258] sm:$0xff]
    %v7822 = vld [vmem:[#allocation21 + $0x260] sm:$0xff]
    %v7823 = vld [vmem:[#allocation21 + $0x268] sm:$0xff]
    %v7824 = vld [vmem:[#allocation21 + $0x270] sm:$0xff]
    %v7825 = vld [vmem:[#allocation21 + $0x278] sm:$0xff]
    %v7826 = vld [vmem:[#allocation21 + $0x280] sm:$0xff]
    %v7827 = vld [vmem:[#allocation21 + $0x288] sm:$0xff]
    %v7828 = vld [vmem:[#allocation21 + $0x290] sm:$0xff]
    %v7829 = vld [vmem:[#allocation21 + $0x298] sm:$0xff]
    %v7830 = vld [vmem:[#allocation21 + $0x2a0] sm:$0xff]
    %v7831 = vld [vmem:[#allocation21 + $0x2a8] sm:$0xff]
    %v7832 = vld [vmem:[#allocation21 + $0x2b0] sm:$0xff]
    %v7833 = vld [vmem:[#allocation21 + $0x2b8] sm:$0xff]
    %v7834 = vld [vmem:[#allocation21 + $0x2c0] sm:$0xff]
    %v7835 = vld [vmem:[#allocation21 + $0x2c8] sm:$0xff]
    %v7836 = vld [vmem:[#allocation21 + $0x2d0] sm:$0xff]
    %v7837 = vld [vmem:[#allocation21 + $0x2d8] sm:$0xff]
    %v7838 = vld [vmem:[#allocation21 + $0x2e0] sm:$0xff]
    %v7839 = vld [vmem:[#allocation21 + $0x2e8] sm:$0xff]
    %v7840 = vld [vmem:[#allocation21 + $0x2f0] sm:$0xff]
    %v7841 = vld [vmem:[#allocation21 + $0x2f8] sm:$0xff]
    %v7842 = vld [vmem:[#allocation21 + $0x300] sm:$0xff]
    %v7843 = vld [vmem:[#allocation21 + $0x308] sm:$0xff]
    %v7844 = vld [vmem:[#allocation21 + $0x310] sm:$0xff]
    %v7845 = vld [vmem:[#allocation21 + $0x318] sm:$0xff]
    %v7846 = vld [vmem:[#allocation21 + $0x320] sm:$0xff]
    %v7847 = vld [vmem:[#allocation21 + $0x328] sm:$0xff]
    %v7848 = vld [vmem:[#allocation21 + $0x330] sm:$0xff]
    %v7849 = vld [vmem:[#allocation21 + $0x338] sm:$0xff]
    %v7850 = vld [vmem:[#allocation21 + $0x340] sm:$0xff]
    %v7851 = vld [vmem:[#allocation21 + $0x348] sm:$0xff]
    %v7852 = vld [vmem:[#allocation21 + $0x350] sm:$0xff]
    %v7853 = vld [vmem:[#allocation21 + $0x358] sm:$0xff]
    %v7854 = vld [vmem:[#allocation21 + $0x360] sm:$0xff]
    %v7855 = vld [vmem:[#allocation21 + $0x368] sm:$0xff]
    %v7856 = vld [vmem:[#allocation21 + $0x370] sm:$0xff]
    %v7857 = vld [vmem:[#allocation21 + $0x378] sm:$0xff]
    %v7858 = vld [vmem:[#allocation21 + $0x380] sm:$0xff]
    %v7859 = vld [vmem:[#allocation21 + $0x388] sm:$0xff]
    %v7860 = vld [vmem:[#allocation21 + $0x390] sm:$0xff]
    %v7861 = vld [vmem:[#allocation21 + $0x398] sm:$0xff]
    %v7862 = vld [vmem:[#allocation21 + $0x3a0] sm:$0xff]
    %v7863 = vld [vmem:[#allocation21 + $0x3a8] sm:$0xff]
    %v7864 = vld [vmem:[#allocation21 + $0x3b0] sm:$0xff]
    %v7865 = vld [vmem:[#allocation21 + $0x3b8] sm:$0xff]
    %v7866 = vld [vmem:[#allocation21 + $0x3c0] sm:$0xff]
    %v7867 = vld [vmem:[#allocation21 + $0x3c8] sm:$0xff]
    %v7868 = vld [vmem:[#allocation21 + $0x3d0] sm:$0xff]
    %v7869 = vld [vmem:[#allocation21 + $0x3d8] sm:$0xff]
    %v7870 = vld [vmem:[#allocation21 + $0x3e0] sm:$0xff]
    %v7871 = vld [vmem:[#allocation21 + $0x3e8] sm:$0xff]
    %v7872 = vld [vmem:[#allocation21 + $0x3f0] sm:$0xff]
    %v7873 = vld [vmem:[#allocation21 + $0x3f8] sm:$0xff]
    %v7874 = vld [vmem:[#allocation21 + $0x400] sm:$0xff]
    %v7875 = vld [vmem:[#allocation21 + $0x408] sm:$0xff]
    %v7876 = vld [vmem:[#allocation21 + $0x410] sm:$0xff]
    %v7877 = vld [vmem:[#allocation21 + $0x418] sm:$0xff]
    %v7878 = vld [vmem:[#allocation21 + $0x420] sm:$0xff]
    %v7879 = vld [vmem:[#allocation21 + $0x428] sm:$0xff]
    %v7880 = vld [vmem:[#allocation21 + $0x430] sm:$0xff]
    %v7881 = vld [vmem:[#allocation21 + $0x438] sm:$0xff]
    %v7882 = vld [vmem:[#allocation21 + $0x440] sm:$0xff]
    %v7883 = vld [vmem:[#allocation21 + $0x448] sm:$0xff]
    %v7884 = vld [vmem:[#allocation21 + $0x450] sm:$0xff]
    %v7885 = vld [vmem:[#allocation21 + $0x458] sm:$0xff]
    %v7886 = vld [vmem:[#allocation21 + $0x460] sm:$0xff]
    %v7887 = vld [vmem:[#allocation21 + $0x468] sm:$0xff]
    %v7888 = vld [vmem:[#allocation21 + $0x470] sm:$0xff]
    %v7889 = vld [vmem:[#allocation21 + $0x478] sm:$0xff]
    %v7890 = vld [vmem:[#allocation21 + $0x480] sm:$0xff]
    %v7891 = vld [vmem:[#allocation21 + $0x488] sm:$0xff]
    %v7892 = vld [vmem:[#allocation21 + $0x490] sm:$0xff]
    %v7893 = vld [vmem:[#allocation21 + $0x498] sm:$0xff]
    %v7894 = vld [vmem:[#allocation21 + $0x4a0] sm:$0xff]
    %v7895 = vld [vmem:[#allocation21 + $0x4a8] sm:$0xff]
    %v7896 = vld [vmem:[#allocation21 + $0x4b0] sm:$0xff]
    %v7897 = vld [vmem:[#allocation21 + $0x4b8] sm:$0xff]
    %v7898 = vld [vmem:[#allocation21 + $0x4c0] sm:$0xff]
    %v7899 = vld [vmem:[#allocation21 + $0x4c8] sm:$0xff]
    %v7900 = vld [vmem:[#allocation21 + $0x4d0] sm:$0xff]
    %v7901 = vld [vmem:[#allocation21 + $0x4d8] sm:$0xff]
    %v7902 = vld [vmem:[#allocation21 + $0x4e0] sm:$0xff]
    %v7903 = vld [vmem:[#allocation21 + $0x4e8] sm:$0xff]
    %v7904 = vld [vmem:[#allocation21 + $0x4f0] sm:$0xff]
    %v7905 = vld [vmem:[#allocation21 + $0x4f8] sm:$0xff]
    %v7906 = vld [vmem:[#allocation21 + $0x500] sm:$0xff]
    %v7907 = vld [vmem:[#allocation21 + $0x508] sm:$0xff]
    %v7908 = vld [vmem:[#allocation21 + $0x510] sm:$0xff]
    %v7909 = vld [vmem:[#allocation21 + $0x518] sm:$0xff]
    %v7910 = vld [vmem:[#allocation21 + $0x520] sm:$0xff]
    %v7911 = vld [vmem:[#allocation21 + $0x528] sm:$0xff]
    %v7912 = vld [vmem:[#allocation21 + $0x530] sm:$0xff]
    %v7913 = vld [vmem:[#allocation21 + $0x538] sm:$0xff]
    %v7914 = vld [vmem:[#allocation21 + $0x540] sm:$0xff]
    %v7915 = vld [vmem:[#allocation21 + $0x548] sm:$0xff]
    %v7916 = vld [vmem:[#allocation21 + $0x550] sm:$0xff]
    %v7917 = vld [vmem:[#allocation21 + $0x558] sm:$0xff]
    %v7918 = vld [vmem:[#allocation21 + $0x560] sm:$0xff]
    %v7919 = vld [vmem:[#allocation21 + $0x568] sm:$0xff]
    %v7920 = vld [vmem:[#allocation21 + $0x570] sm:$0xff]
    %v7921 = vld [vmem:[#allocation21 + $0x578] sm:$0xff]
    %v7922 = vld [vmem:[#allocation21 + $0x580] sm:$0xff]
    %v7923 = vld [vmem:[#allocation21 + $0x588] sm:$0xff]
    %v7924 = vld [vmem:[#allocation21 + $0x590] sm:$0xff]
    %v7925 = vld [vmem:[#allocation21 + $0x598] sm:$0xff]
    %v7926 = vld [vmem:[#allocation21 + $0x5a0] sm:$0xff]
    %v7927 = vld [vmem:[#allocation21 + $0x5a8] sm:$0xff]
    %v7928 = vld [vmem:[#allocation21 + $0x5b0] sm:$0xff]
    %v7929 = vld [vmem:[#allocation21 + $0x5b8] sm:$0xff]
    %v7930 = vld [vmem:[#allocation21 + $0x5c0] sm:$0xff]
    %v7931 = vld [vmem:[#allocation21 + $0x5c8] sm:$0xff]
    %v7932 = vld [vmem:[#allocation21 + $0x5d0] sm:$0xff]
    %v7933 = vld [vmem:[#allocation21 + $0x5d8] sm:$0xff]
    %v7934 = vld [vmem:[#allocation21 + $0x5e0] sm:$0xff]
    %v7935 = vld [vmem:[#allocation21 + $0x5e8] sm:$0xff]
    %v7936 = vld [vmem:[#allocation21 + $0x5f0] sm:$0xff]
    %v7937 = vld [vmem:[#allocation21 + $0x5f8] sm:$0xff]
    %v7938 = vld [vmem:[#allocation21 + $0x600] sm:$0xff]
    %v7939 = vld [vmem:[#allocation21 + $0x608] sm:$0xff]
    %v7940 = vld [vmem:[#allocation21 + $0x610] sm:$0xff]
    %v7941 = vld [vmem:[#allocation21 + $0x618] sm:$0xff]
    %v7942 = vld [vmem:[#allocation21 + $0x620] sm:$0xff]
    %v7943 = vld [vmem:[#allocation21 + $0x628] sm:$0xff]
    %v7944 = vld [vmem:[#allocation21 + $0x630] sm:$0xff]
    %v7945 = vld [vmem:[#allocation21 + $0x638] sm:$0xff]
    %v7946 = vld [vmem:[#allocation21 + $0x640] sm:$0xff]
    %v7947 = vld [vmem:[#allocation21 + $0x648] sm:$0xff]
    %v7948 = vld [vmem:[#allocation21 + $0x650] sm:$0xff]
    %v7949 = vld [vmem:[#allocation21 + $0x658] sm:$0xff]
    %v7950 = vld [vmem:[#allocation21 + $0x660] sm:$0xff]
    %v7951 = vld [vmem:[#allocation21 + $0x668] sm:$0xff]
    %v7952 = vld [vmem:[#allocation21 + $0x670] sm:$0xff]
    %v7953 = vld [vmem:[#allocation21 + $0x678] sm:$0xff]
    %v7954 = vld [vmem:[#allocation21 + $0x680] sm:$0xff]
    %v7955 = vld [vmem:[#allocation21 + $0x688] sm:$0xff]
    %v7956 = vld [vmem:[#allocation21 + $0x690] sm:$0xff]
    %v7957 = vld [vmem:[#allocation21 + $0x698] sm:$0xff]
    %v7958 = vld [vmem:[#allocation21 + $0x6a0] sm:$0xff]
    %v7959 = vld [vmem:[#allocation21 + $0x6a8] sm:$0xff]
    %v7960 = vld [vmem:[#allocation21 + $0x6b0] sm:$0xff]
    %v7961 = vld [vmem:[#allocation21 + $0x6b8] sm:$0xff]
    %v7962 = vld [vmem:[#allocation21 + $0x6c0] sm:$0xff]
    %v7963 = vld [vmem:[#allocation21 + $0x6c8] sm:$0xff]
    %v7964 = vld [vmem:[#allocation21 + $0x6d0] sm:$0xff]
    %v7965 = vld [vmem:[#allocation21 + $0x6d8] sm:$0xff]
    %v7966 = vld [vmem:[#allocation21 + $0x6e0] sm:$0xff]
    %v7967 = vld [vmem:[#allocation21 + $0x6e8] sm:$0xff]
    %v7968 = vld [vmem:[#allocation21 + $0x6f0] sm:$0xff]
    %v7969 = vld [vmem:[#allocation21 + $0x6f8] sm:$0xff]
    %v7970 = vld [vmem:[#allocation21 + $0x700] sm:$0xff]
    %v7971 = vld [vmem:[#allocation21 + $0x708] sm:$0xff]
    %v7972 = vld [vmem:[#allocation21 + $0x710] sm:$0xff]
    %v7973 = vld [vmem:[#allocation21 + $0x718] sm:$0xff]
    %v7974 = vld [vmem:[#allocation21 + $0x720] sm:$0xff]
    %v7975 = vld [vmem:[#allocation21 + $0x728] sm:$0xff]
    %v7976 = vld [vmem:[#allocation21 + $0x730] sm:$0xff]
    %v7977 = vld [vmem:[#allocation21 + $0x738] sm:$0xff]
    %v7978 = vld [vmem:[#allocation21 + $0x740] sm:$0xff]
    %v7979 = vld [vmem:[#allocation21 + $0x748] sm:$0xff]
    %v7980 = vld [vmem:[#allocation21 + $0x750] sm:$0xff]
    %v7981 = vld [vmem:[#allocation21 + $0x758] sm:$0xff]
    %v7982 = vld [vmem:[#allocation21 + $0x760] sm:$0xff]
    %v7983 = vld [vmem:[#allocation21 + $0x768] sm:$0xff]
    %v7984 = vld [vmem:[#allocation21 + $0x770] sm:$0xff]
    %v7985 = vld [vmem:[#allocation21 + $0x778] sm:$0xff]
    %v7986 = vld [vmem:[#allocation21 + $0x780] sm:$0xff]
    %v7987 = vld [vmem:[#allocation21 + $0x788] sm:$0xff]
    %v7988 = vld [vmem:[#allocation21 + $0x790] sm:$0xff]
    %v7989 = vld [vmem:[#allocation21 + $0x798] sm:$0xff]
    %v7990 = vld [vmem:[#allocation21 + $0x7a0] sm:$0xff]
    %v7991 = vld [vmem:[#allocation21 + $0x7a8] sm:$0xff]
    %v7992 = vld [vmem:[#allocation21 + $0x7b0] sm:$0xff]
    %v7993 = vld [vmem:[#allocation21 + $0x7b8] sm:$0xff]
    %v7994 = vld [vmem:[#allocation21 + $0x7c0] sm:$0xff]
    %v7995 = vld [vmem:[#allocation21 + $0x7c8] sm:$0xff]
    %v7996 = vld [vmem:[#allocation21 + $0x7d0] sm:$0xff]
    %v7997 = vld [vmem:[#allocation21 + $0x7d8] sm:$0xff]
    %v7998 = vld [vmem:[#allocation21 + $0x7e0] sm:$0xff]
    %v7999 = vld [vmem:[#allocation21 + $0x7e8] sm:$0xff]
    %v8000 = vld [vmem:[#allocation21 + $0x7f0] sm:$0xff]
    %v8001 = vld [vmem:[#allocation21 + $0x7f8] sm:$0xff]
    %v8006 = vlaneseq
    %v8007 = vshrl.u32 %v8006, 7
    %v8008 = vsub.s32 0, %v8007
    %v8009 = vrot.slane %v7738, %v8008
    %v8010 = vlaneseq
    %v8011 = vshrl.u32 %v8010, 7
    %v8012 = vsub.s32 4, %v8011
    %v8013 = vrot.slane %v7738, %v8012
    %v8014 = vlaneseq
    %v8015 = vshrl.u32 %v8014, 7
    %v8016 = vsub.s32 0, %v8015
    %v8017 = vrot.slane %v7739, %v8016
    %v8018 = vlaneseq
    %v8019 = vshrl.u32 %v8018, 7
    %v8020 = vsub.s32 4, %v8019
    %v8021 = vrot.slane %v7739, %v8020
    %v8022 = vlaneseq
    %v8023 = vshrl.u32 %v8022, 7
    %v8024 = vsub.s32 0, %v8023
    %v8025 = vrot.slane %v7740, %v8024
    %v8026 = vlaneseq
    %v8027 = vshrl.u32 %v8026, 7
    %v8028 = vsub.s32 4, %v8027
    %v8029 = vrot.slane %v7740, %v8028
    %v8030 = vlaneseq
    %v8031 = vshrl.u32 %v8030, 7
    %v8032 = vsub.s32 0, %v8031
    %v8033 = vrot.slane %v7741, %v8032
    %v8034 = vlaneseq
    %v8035 = vshrl.u32 %v8034, 7
    %v8036 = vsub.s32 4, %v8035
    %v8037 = vrot.slane %v7741, %v8036
    %v8046 = vlaneseq
    %v8047 = vshrl.u32 %v8046, 7
    %v8048 = vsub.s32 0, %v8047
    %v8049 = vrot.slane %v8009, %v8048
    %v8050 = vlaneseq
    %v8051 = vshrl.u32 %v8050, 7
    %v8052 = vsub.s32 0, %v8051
    %v8053 = vrot.slane %v8013, %v8052
    %v8054 = vlaneseq
    %v8055 = vshrl.u32 %v8054, 7
    %v8056 = vsub.s32 0, %v8055
    %v8057 = vrot.slane %v8017, %v8056
    %v8058 = vlaneseq
    %v8059 = vshrl.u32 %v8058, 7
    %v8060 = vsub.s32 0, %v8059
    %v8061 = vrot.slane %v8021, %v8060
    %v8062 = vlaneseq
    %v8063 = vshrl.u32 %v8062, 7
    %v8064 = vsub.s32 0, %v8063
    %v8065 = vrot.slane %v8025, %v8064
    %v8066 = vlaneseq
    %v8067 = vshrl.u32 %v8066, 7
    %v8068 = vsub.s32 0, %v8067
    %v8069 = vrot.slane %v8029, %v8068
    %v8070 = vlaneseq
    %v8071 = vshrl.u32 %v8070, 7
    %v8072 = vsub.s32 0, %v8071
    %v8073 = vrot.slane %v8033, %v8072
    %v8074 = vlaneseq
    %v8075 = vshrl.u32 %v8074, 7
    %v8076 = vsub.s32 0, %v8075
    %v8077 = vrot.slane %v8037, %v8076
    %v8334 = vunpack.c.l.b16 %v7746
    %v8335 = vunpack.c.h.b16 %v7746
    %v8336 = vunpack.c.l.b16 %v7747
    %v8337 = vunpack.c.h.b16 %v7747
    %v8338 = vunpack.c.l.b16 %v7748
    %v8339 = vunpack.c.h.b16 %v7748
    %v8340 = vunpack.c.l.b16 %v7749
    %v8341 = vunpack.c.h.b16 %v7749
    %v8342 = vunpack.c.l.b16 %v7750
    %v8343 = vunpack.c.h.b16 %v7750
    %v8344 = vunpack.c.l.b16 %v7751
    %v8345 = vunpack.c.h.b16 %v7751
    %v8346 = vunpack.c.l.b16 %v7752
    %v8347 = vunpack.c.h.b16 %v7752
    %v8348 = vunpack.c.l.b16 %v7753
    %v8349 = vunpack.c.h.b16 %v7753
    %v8350 = vunpack.c.l.b16 %v7754
    %v8351 = vunpack.c.h.b16 %v7754
    %v8352 = vunpack.c.l.b16 %v7755
    %v8353 = vunpack.c.h.b16 %v7755
    %v8354 = vunpack.c.l.b16 %v7756
    %v8355 = vunpack.c.h.b16 %v7756
    %v8356 = vunpack.c.l.b16 %v7757
    %v8357 = vunpack.c.h.b16 %v7757
    %v8358 = vunpack.c.l.b16 %v7758
    %v8359 = vunpack.c.h.b16 %v7758
    %v8360 = vunpack.c.l.b16 %v7759
    %v8361 = vunpack.c.h.b16 %v7759
    %v8362 = vunpack.c.l.b16 %v7760
    %v8363 = vunpack.c.h.b16 %v7760
    %v8364 = vunpack.c.l.b16 %v7761
    %v8365 = vunpack.c.h.b16 %v7761
    %v8366 = vunpack.c.l.b16 %v7762
    %v8367 = vunpack.c.h.b16 %v7762
    %v8368 = vunpack.c.l.b16 %v7763
    %v8369 = vunpack.c.h.b16 %v7763
    %v8370 = vunpack.c.l.b16 %v7764
    %v8371 = vunpack.c.h.b16 %v7764
    %v8372 = vunpack.c.l.b16 %v7765
    %v8373 = vunpack.c.h.b16 %v7765
    %v8374 = vunpack.c.l.b16 %v7766
    %v8375 = vunpack.c.h.b16 %v7766
    %v8376 = vunpack.c.l.b16 %v7767
    %v8377 = vunpack.c.h.b16 %v7767
    %v8378 = vunpack.c.l.b16 %v7768
    %v8379 = vunpack.c.h.b16 %v7768
    %v8380 = vunpack.c.l.b16 %v7769
    %v8381 = vunpack.c.h.b16 %v7769
    %v8382 = vunpack.c.l.b16 %v7770
    %v8383 = vunpack.c.h.b16 %v7770
    %v8384 = vunpack.c.l.b16 %v7771
    %v8385 = vunpack.c.h.b16 %v7771
    %v8386 = vunpack.c.l.b16 %v7772
    %v8387 = vunpack.c.h.b16 %v7772
    %v8388 = vunpack.c.l.b16 %v7773
    %v8389 = vunpack.c.h.b16 %v7773
    %v8390 = vunpack.c.l.b16 %v7774
    %v8391 = vunpack.c.h.b16 %v7774
    %v8392 = vunpack.c.l.b16 %v7775
    %v8393 = vunpack.c.h.b16 %v7775
    %v8394 = vunpack.c.l.b16 %v7776
    %v8395 = vunpack.c.h.b16 %v7776
    %v8396 = vunpack.c.l.b16 %v7777
    %v8397 = vunpack.c.h.b16 %v7777
    %v8398 = vunpack.c.l.b16 %v7778
    %v8399 = vunpack.c.h.b16 %v7778
    %v8400 = vunpack.c.l.b16 %v7779
    %v8401 = vunpack.c.h.b16 %v7779
    %v8402 = vunpack.c.l.b16 %v7780
    %v8403 = vunpack.c.h.b16 %v7780
    %v8404 = vunpack.c.l.b16 %v7781
    %v8405 = vunpack.c.h.b16 %v7781
    %v8406 = vunpack.c.l.b16 %v7782
    %v8407 = vunpack.c.h.b16 %v7782
    %v8408 = vunpack.c.l.b16 %v7783
    %v8409 = vunpack.c.h.b16 %v7783
    %v8410 = vunpack.c.l.b16 %v7784
    %v8411 = vunpack.c.h.b16 %v7784
    %v8412 = vunpack.c.l.b16 %v7785
    %v8413 = vunpack.c.h.b16 %v7785
    %v8414 = vunpack.c.l.b16 %v7786
    %v8415 = vunpack.c.h.b16 %v7786
    %v8416 = vunpack.c.l.b16 %v7787
    %v8417 = vunpack.c.h.b16 %v7787
    %v8418 = vunpack.c.l.b16 %v7788
    %v8419 = vunpack.c.h.b16 %v7788
    %v8420 = vunpack.c.l.b16 %v7789
    %v8421 = vunpack.c.h.b16 %v7789
    %v8422 = vunpack.c.l.b16 %v7790
    %v8423 = vunpack.c.h.b16 %v7790
    %v8424 = vunpack.c.l.b16 %v7791
    %v8425 = vunpack.c.h.b16 %v7791
    %v8426 = vunpack.c.l.b16 %v7792
    %v8427 = vunpack.c.h.b16 %v7792
    %v8428 = vunpack.c.l.b16 %v7793
    %v8429 = vunpack.c.h.b16 %v7793
    %v8430 = vunpack.c.l.b16 %v7794
    %v8431 = vunpack.c.h.b16 %v7794
    %v8432 = vunpack.c.l.b16 %v7795
    %v8433 = vunpack.c.h.b16 %v7795
    %v8434 = vunpack.c.l.b16 %v7796
    %v8435 = vunpack.c.h.b16 %v7796
    %v8436 = vunpack.c.l.b16 %v7797
    %v8437 = vunpack.c.h.b16 %v7797
    %v8438 = vunpack.c.l.b16 %v7798
    %v8439 = vunpack.c.h.b16 %v7798
    %v8440 = vunpack.c.l.b16 %v7799
    %v8441 = vunpack.c.h.b16 %v7799
    %v8442 = vunpack.c.l.b16 %v7800
    %v8443 = vunpack.c.h.b16 %v7800
    %v8444 = vunpack.c.l.b16 %v7801
    %v8445 = vunpack.c.h.b16 %v7801
    %v8446 = vunpack.c.l.b16 %v7802
    %v8447 = vunpack.c.h.b16 %v7802
    %v8448 = vunpack.c.l.b16 %v7803
    %v8449 = vunpack.c.h.b16 %v7803
    %v8450 = vunpack.c.l.b16 %v7804
    %v8451 = vunpack.c.h.b16 %v7804
    %v8452 = vunpack.c.l.b16 %v7805
    %v8453 = vunpack.c.h.b16 %v7805
    %v8454 = vunpack.c.l.b16 %v7806
    %v8455 = vunpack.c.h.b16 %v7806
    %v8456 = vunpack.c.l.b16 %v7807
    %v8457 = vunpack.c.h.b16 %v7807
    %v8458 = vunpack.c.l.b16 %v7808
    %v8459 = vunpack.c.h.b16 %v7808
    %v8460 = vunpack.c.l.b16 %v7809
    %v8461 = vunpack.c.h.b16 %v7809
    %v8462 = vunpack.c.l.b16 %v7810
    %v8463 = vunpack.c.h.b16 %v7810
    %v8464 = vunpack.c.l.b16 %v7811
    %v8465 = vunpack.c.h.b16 %v7811
    %v8466 = vunpack.c.l.b16 %v7812
    %v8467 = vunpack.c.h.b16 %v7812
    %v8468 = vunpack.c.l.b16 %v7813
    %v8469 = vunpack.c.h.b16 %v7813
    %v8470 = vunpack.c.l.b16 %v7814
    %v8471 = vunpack.c.h.b16 %v7814
    %v8472 = vunpack.c.l.b16 %v7815
    %v8473 = vunpack.c.h.b16 %v7815
    %v8474 = vunpack.c.l.b16 %v7816
    %v8475 = vunpack.c.h.b16 %v7816
    %v8476 = vunpack.c.l.b16 %v7817
    %v8477 = vunpack.c.h.b16 %v7817
    %v8478 = vunpack.c.l.b16 %v7818
    %v8479 = vunpack.c.h.b16 %v7818
    %v8480 = vunpack.c.l.b16 %v7819
    %v8481 = vunpack.c.h.b16 %v7819
    %v8482 = vunpack.c.l.b16 %v7820
    %v8483 = vunpack.c.h.b16 %v7820
    %v8484 = vunpack.c.l.b16 %v7821
    %v8485 = vunpack.c.h.b16 %v7821
    %v8486 = vunpack.c.l.b16 %v7822
    %v8487 = vunpack.c.h.b16 %v7822
    %v8488 = vunpack.c.l.b16 %v7823
    %v8489 = vunpack.c.h.b16 %v7823
    %v8490 = vunpack.c.l.b16 %v7824
    %v8491 = vunpack.c.h.b16 %v7824
    %v8492 = vunpack.c.l.b16 %v7825
    %v8493 = vunpack.c.h.b16 %v7825
    %v8494 = vunpack.c.l.b16 %v7826
    %v8495 = vunpack.c.h.b16 %v7826
    %v8496 = vunpack.c.l.b16 %v7827
    %v8497 = vunpack.c.h.b16 %v7827
    %v8498 = vunpack.c.l.b16 %v7828
    %v8499 = vunpack.c.h.b16 %v7828
    %v8500 = vunpack.c.l.b16 %v7829
    %v8501 = vunpack.c.h.b16 %v7829
    %v8502 = vunpack.c.l.b16 %v7830
    %v8503 = vunpack.c.h.b16 %v7830
    %v8504 = vunpack.c.l.b16 %v7831
    %v8505 = vunpack.c.h.b16 %v7831
    %v8506 = vunpack.c.l.b16 %v7832
    %v8507 = vunpack.c.h.b16 %v7832
    %v8508 = vunpack.c.l.b16 %v7833
    %v8509 = vunpack.c.h.b16 %v7833
    %v8510 = vunpack.c.l.b16 %v7834
    %v8511 = vunpack.c.h.b16 %v7834
    %v8512 = vunpack.c.l.b16 %v7835
    %v8513 = vunpack.c.h.b16 %v7835
    %v8514 = vunpack.c.l.b16 %v7836
    %v8515 = vunpack.c.h.b16 %v7836
    %v8516 = vunpack.c.l.b16 %v7837
    %v8517 = vunpack.c.h.b16 %v7837
    %v8518 = vunpack.c.l.b16 %v7838
    %v8519 = vunpack.c.h.b16 %v7838
    %v8520 = vunpack.c.l.b16 %v7839
    %v8521 = vunpack.c.h.b16 %v7839
    %v8522 = vunpack.c.l.b16 %v7840
    %v8523 = vunpack.c.h.b16 %v7840
    %v8524 = vunpack.c.l.b16 %v7841
    %v8525 = vunpack.c.h.b16 %v7841
    %v8526 = vunpack.c.l.b16 %v7842
    %v8527 = vunpack.c.h.b16 %v7842
    %v8528 = vunpack.c.l.b16 %v7843
    %v8529 = vunpack.c.h.b16 %v7843
    %v8530 = vunpack.c.l.b16 %v7844
    %v8531 = vunpack.c.h.b16 %v7844
    %v8532 = vunpack.c.l.b16 %v7845
    %v8533 = vunpack.c.h.b16 %v7845
    %v8534 = vunpack.c.l.b16 %v7846
    %v8535 = vunpack.c.h.b16 %v7846
    %v8536 = vunpack.c.l.b16 %v7847
    %v8537 = vunpack.c.h.b16 %v7847
    %v8538 = vunpack.c.l.b16 %v7848
    %v8539 = vunpack.c.h.b16 %v7848
    %v8540 = vunpack.c.l.b16 %v7849
    %v8541 = vunpack.c.h.b16 %v7849
    %v8542 = vunpack.c.l.b16 %v7850
    %v8543 = vunpack.c.h.b16 %v7850
    %v8544 = vunpack.c.l.b16 %v7851
    %v8545 = vunpack.c.h.b16 %v7851
    %v8546 = vunpack.c.l.b16 %v7852
    %v8547 = vunpack.c.h.b16 %v7852
    %v8548 = vunpack.c.l.b16 %v7853
    %v8549 = vunpack.c.h.b16 %v7853
    %v8550 = vunpack.c.l.b16 %v7854
    %v8551 = vunpack.c.h.b16 %v7854
    %v8552 = vunpack.c.l.b16 %v7855
    %v8553 = vunpack.c.h.b16 %v7855
    %v8554 = vunpack.c.l.b16 %v7856
    %v8555 = vunpack.c.h.b16 %v7856
    %v8556 = vunpack.c.l.b16 %v7857
    %v8557 = vunpack.c.h.b16 %v7857
    %v8558 = vunpack.c.l.b16 %v7858
    %v8559 = vunpack.c.h.b16 %v7858
    %v8560 = vunpack.c.l.b16 %v7859
    %v8561 = vunpack.c.h.b16 %v7859
    %v8562 = vunpack.c.l.b16 %v7860
    %v8563 = vunpack.c.h.b16 %v7860
    %v8564 = vunpack.c.l.b16 %v7861
    %v8565 = vunpack.c.h.b16 %v7861
    %v8566 = vunpack.c.l.b16 %v7862
    %v8567 = vunpack.c.h.b16 %v7862
    %v8568 = vunpack.c.l.b16 %v7863
    %v8569 = vunpack.c.h.b16 %v7863
    %v8570 = vunpack.c.l.b16 %v7864
    %v8571 = vunpack.c.h.b16 %v7864
    %v8572 = vunpack.c.l.b16 %v7865
    %v8573 = vunpack.c.h.b16 %v7865
    %v8574 = vunpack.c.l.b16 %v7866
    %v8575 = vunpack.c.h.b16 %v7866
    %v8576 = vunpack.c.l.b16 %v7867
    %v8577 = vunpack.c.h.b16 %v7867
    %v8578 = vunpack.c.l.b16 %v7868
    %v8579 = vunpack.c.h.b16 %v7868
    %v8580 = vunpack.c.l.b16 %v7869
    %v8581 = vunpack.c.h.b16 %v7869
    %v8582 = vunpack.c.l.b16 %v7870
    %v8583 = vunpack.c.h.b16 %v7870
    %v8584 = vunpack.c.l.b16 %v7871
    %v8585 = vunpack.c.h.b16 %v7871
    %v8586 = vunpack.c.l.b16 %v7872
    %v8587 = vunpack.c.h.b16 %v7872
    %v8588 = vunpack.c.l.b16 %v7873
    %v8589 = vunpack.c.h.b16 %v7873
    %v8590 = vunpack.c.l.b16 %v7874
    %v8591 = vunpack.c.h.b16 %v7874
    %v8592 = vunpack.c.l.b16 %v7875
    %v8593 = vunpack.c.h.b16 %v7875
    %v8594 = vunpack.c.l.b16 %v7876
    %v8595 = vunpack.c.h.b16 %v7876
    %v8596 = vunpack.c.l.b16 %v7877
    %v8597 = vunpack.c.h.b16 %v7877
    %v8598 = vunpack.c.l.b16 %v7878
    %v8599 = vunpack.c.h.b16 %v7878
    %v8600 = vunpack.c.l.b16 %v7879
    %v8601 = vunpack.c.h.b16 %v7879
    %v8602 = vunpack.c.l.b16 %v7880
    %v8603 = vunpack.c.h.b16 %v7880
    %v8604 = vunpack.c.l.b16 %v7881
    %v8605 = vunpack.c.h.b16 %v7881
    %v8606 = vunpack.c.l.b16 %v7882
    %v8607 = vunpack.c.h.b16 %v7882
    %v8608 = vunpack.c.l.b16 %v7883
    %v8609 = vunpack.c.h.b16 %v7883
    %v8610 = vunpack.c.l.b16 %v7884
    %v8611 = vunpack.c.h.b16 %v7884
    %v8612 = vunpack.c.l.b16 %v7885
    %v8613 = vunpack.c.h.b16 %v7885
    %v8614 = vunpack.c.l.b16 %v7886
    %v8615 = vunpack.c.h.b16 %v7886
    %v8616 = vunpack.c.l.b16 %v7887
    %v8617 = vunpack.c.h.b16 %v7887
    %v8618 = vunpack.c.l.b16 %v7888
    %v8619 = vunpack.c.h.b16 %v7888
    %v8620 = vunpack.c.l.b16 %v7889
    %v8621 = vunpack.c.h.b16 %v7889
    %v8622 = vunpack.c.l.b16 %v7890
    %v8623 = vunpack.c.h.b16 %v7890
    %v8624 = vunpack.c.l.b16 %v7891
    %v8625 = vunpack.c.h.b16 %v7891
    %v8626 = vunpack.c.l.b16 %v7892
    %v8627 = vunpack.c.h.b16 %v7892
    %v8628 = vunpack.c.l.b16 %v7893
    %v8629 = vunpack.c.h.b16 %v7893
    %v8630 = vunpack.c.l.b16 %v7894
    %v8631 = vunpack.c.h.b16 %v7894
    %v8632 = vunpack.c.l.b16 %v7895
    %v8633 = vunpack.c.h.b16 %v7895
    %v8634 = vunpack.c.l.b16 %v7896
    %v8635 = vunpack.c.h.b16 %v7896
    %v8636 = vunpack.c.l.b16 %v7897
    %v8637 = vunpack.c.h.b16 %v7897
    %v8638 = vunpack.c.l.b16 %v7898
    %v8639 = vunpack.c.h.b16 %v7898
    %v8640 = vunpack.c.l.b16 %v7899
    %v8641 = vunpack.c.h.b16 %v7899
    %v8642 = vunpack.c.l.b16 %v7900
    %v8643 = vunpack.c.h.b16 %v7900
    %v8644 = vunpack.c.l.b16 %v7901
    %v8645 = vunpack.c.h.b16 %v7901
    %v8646 = vunpack.c.l.b16 %v7902
    %v8647 = vunpack.c.h.b16 %v7902
    %v8648 = vunpack.c.l.b16 %v7903
    %v8649 = vunpack.c.h.b16 %v7903
    %v8650 = vunpack.c.l.b16 %v7904
    %v8651 = vunpack.c.h.b16 %v7904
    %v8652 = vunpack.c.l.b16 %v7905
    %v8653 = vunpack.c.h.b16 %v7905
    %v8654 = vunpack.c.l.b16 %v7906
    %v8655 = vunpack.c.h.b16 %v7906
    %v8656 = vunpack.c.l.b16 %v7907
    %v8657 = vunpack.c.h.b16 %v7907
    %v8658 = vunpack.c.l.b16 %v7908
    %v8659 = vunpack.c.h.b16 %v7908
    %v8660 = vunpack.c.l.b16 %v7909
    %v8661 = vunpack.c.h.b16 %v7909
    %v8662 = vunpack.c.l.b16 %v7910
    %v8663 = vunpack.c.h.b16 %v7910
    %v8664 = vunpack.c.l.b16 %v7911
    %v8665 = vunpack.c.h.b16 %v7911
    %v8666 = vunpack.c.l.b16 %v7912
    %v8667 = vunpack.c.h.b16 %v7912
    %v8668 = vunpack.c.l.b16 %v7913
    %v8669 = vunpack.c.h.b16 %v7913
    %v8670 = vunpack.c.l.b16 %v7914
    %v8671 = vunpack.c.h.b16 %v7914
    %v8672 = vunpack.c.l.b16 %v7915
    %v8673 = vunpack.c.h.b16 %v7915
    %v8674 = vunpack.c.l.b16 %v7916
    %v8675 = vunpack.c.h.b16 %v7916
    %v8676 = vunpack.c.l.b16 %v7917
    %v8677 = vunpack.c.h.b16 %v7917
    %v8678 = vunpack.c.l.b16 %v7918
    %v8679 = vunpack.c.h.b16 %v7918
    %v8680 = vunpack.c.l.b16 %v7919
    %v8681 = vunpack.c.h.b16 %v7919
    %v8682 = vunpack.c.l.b16 %v7920
    %v8683 = vunpack.c.h.b16 %v7920
    %v8684 = vunpack.c.l.b16 %v7921
    %v8685 = vunpack.c.h.b16 %v7921
    %v8686 = vunpack.c.l.b16 %v7922
    %v8687 = vunpack.c.h.b16 %v7922
    %v8688 = vunpack.c.l.b16 %v7923
    %v8689 = vunpack.c.h.b16 %v7923
    %v8690 = vunpack.c.l.b16 %v7924
    %v8691 = vunpack.c.h.b16 %v7924
    %v8692 = vunpack.c.l.b16 %v7925
    %v8693 = vunpack.c.h.b16 %v7925
    %v8694 = vunpack.c.l.b16 %v7926
    %v8695 = vunpack.c.h.b16 %v7926
    %v8696 = vunpack.c.l.b16 %v7927
    %v8697 = vunpack.c.h.b16 %v7927
    %v8698 = vunpack.c.l.b16 %v7928
    %v8699 = vunpack.c.h.b16 %v7928
    %v8700 = vunpack.c.l.b16 %v7929
    %v8701 = vunpack.c.h.b16 %v7929
    %v8702 = vunpack.c.l.b16 %v7930
    %v8703 = vunpack.c.h.b16 %v7930
    %v8704 = vunpack.c.l.b16 %v7931
    %v8705 = vunpack.c.h.b16 %v7931
    %v8706 = vunpack.c.l.b16 %v7932
    %v8707 = vunpack.c.h.b16 %v7932
    %v8708 = vunpack.c.l.b16 %v7933
    %v8709 = vunpack.c.h.b16 %v7933
    %v8710 = vunpack.c.l.b16 %v7934
    %v8711 = vunpack.c.h.b16 %v7934
    %v8712 = vunpack.c.l.b16 %v7935
    %v8713 = vunpack.c.h.b16 %v7935
    %v8714 = vunpack.c.l.b16 %v7936
    %v8715 = vunpack.c.h.b16 %v7936
    %v8716 = vunpack.c.l.b16 %v7937
    %v8717 = vunpack.c.h.b16 %v7937
    %v8718 = vunpack.c.l.b16 %v7938
    %v8719 = vunpack.c.h.b16 %v7938
    %v8720 = vunpack.c.l.b16 %v7939
    %v8721 = vunpack.c.h.b16 %v7939
    %v8722 = vunpack.c.l.b16 %v7940
    %v8723 = vunpack.c.h.b16 %v7940
    %v8724 = vunpack.c.l.b16 %v7941
    %v8725 = vunpack.c.h.b16 %v7941
    %v8726 = vunpack.c.l.b16 %v7942
    %v8727 = vunpack.c.h.b16 %v7942
    %v8728 = vunpack.c.l.b16 %v7943
    %v8729 = vunpack.c.h.b16 %v7943
    %v8730 = vunpack.c.l.b16 %v7944
    %v8731 = vunpack.c.h.b16 %v7944
    %v8732 = vunpack.c.l.b16 %v7945
    %v8733 = vunpack.c.h.b16 %v7945
    %v8734 = vunpack.c.l.b16 %v7946
    %v8735 = vunpack.c.h.b16 %v7946
    %v8736 = vunpack.c.l.b16 %v7947
    %v8737 = vunpack.c.h.b16 %v7947
    %v8738 = vunpack.c.l.b16 %v7948
    %v8739 = vunpack.c.h.b16 %v7948
    %v8740 = vunpack.c.l.b16 %v7949
    %v8741 = vunpack.c.h.b16 %v7949
    %v8742 = vunpack.c.l.b16 %v7950
    %v8743 = vunpack.c.h.b16 %v7950
    %v8744 = vunpack.c.l.b16 %v7951
    %v8745 = vunpack.c.h.b16 %v7951
    %v8746 = vunpack.c.l.b16 %v7952
    %v8747 = vunpack.c.h.b16 %v7952
    %v8748 = vunpack.c.l.b16 %v7953
    %v8749 = vunpack.c.h.b16 %v7953
    %v8750 = vunpack.c.l.b16 %v7954
    %v8751 = vunpack.c.h.b16 %v7954
    %v8752 = vunpack.c.l.b16 %v7955
    %v8753 = vunpack.c.h.b16 %v7955
    %v8754 = vunpack.c.l.b16 %v7956
    %v8755 = vunpack.c.h.b16 %v7956
    %v8756 = vunpack.c.l.b16 %v7957
    %v8757 = vunpack.c.h.b16 %v7957
    %v8758 = vunpack.c.l.b16 %v7958
    %v8759 = vunpack.c.h.b16 %v7958
    %v8760 = vunpack.c.l.b16 %v7959
    %v8761 = vunpack.c.h.b16 %v7959
    %v8762 = vunpack.c.l.b16 %v7960
    %v8763 = vunpack.c.h.b16 %v7960
    %v8764 = vunpack.c.l.b16 %v7961
    %v8765 = vunpack.c.h.b16 %v7961
    %v8766 = vunpack.c.l.b16 %v7962
    %v8767 = vunpack.c.h.b16 %v7962
    %v8768 = vunpack.c.l.b16 %v7963
    %v8769 = vunpack.c.h.b16 %v7963
    %v8770 = vunpack.c.l.b16 %v7964
    %v8771 = vunpack.c.h.b16 %v7964
    %v8772 = vunpack.c.l.b16 %v7965
    %v8773 = vunpack.c.h.b16 %v7965
    %v8774 = vunpack.c.l.b16 %v7966
    %v8775 = vunpack.c.h.b16 %v7966
    %v8776 = vunpack.c.l.b16 %v7967
    %v8777 = vunpack.c.h.b16 %v7967
    %v8778 = vunpack.c.l.b16 %v7968
    %v8779 = vunpack.c.h.b16 %v7968
    %v8780 = vunpack.c.l.b16 %v7969
    %v8781 = vunpack.c.h.b16 %v7969
    %v8782 = vunpack.c.l.b16 %v7970
    %v8783 = vunpack.c.h.b16 %v7970
    %v8784 = vunpack.c.l.b16 %v7971
    %v8785 = vunpack.c.h.b16 %v7971
    %v8786 = vunpack.c.l.b16 %v7972
    %v8787 = vunpack.c.h.b16 %v7972
    %v8788 = vunpack.c.l.b16 %v7973
    %v8789 = vunpack.c.h.b16 %v7973
    %v8790 = vunpack.c.l.b16 %v7974
    %v8791 = vunpack.c.h.b16 %v7974
    %v8792 = vunpack.c.l.b16 %v7975
    %v8793 = vunpack.c.h.b16 %v7975
    %v8794 = vunpack.c.l.b16 %v7976
    %v8795 = vunpack.c.h.b16 %v7976
    %v8796 = vunpack.c.l.b16 %v7977
    %v8797 = vunpack.c.h.b16 %v7977
    %v8798 = vunpack.c.l.b16 %v7978
    %v8799 = vunpack.c.h.b16 %v7978
    %v8800 = vunpack.c.l.b16 %v7979
    %v8801 = vunpack.c.h.b16 %v7979
    %v8802 = vunpack.c.l.b16 %v7980
    %v8803 = vunpack.c.h.b16 %v7980
    %v8804 = vunpack.c.l.b16 %v7981
    %v8805 = vunpack.c.h.b16 %v7981
    %v8806 = vunpack.c.l.b16 %v7982
    %v8807 = vunpack.c.h.b16 %v7982
    %v8808 = vunpack.c.l.b16 %v7983
    %v8809 = vunpack.c.h.b16 %v7983
    %v8810 = vunpack.c.l.b16 %v7984
    %v8811 = vunpack.c.h.b16 %v7984
    %v8812 = vunpack.c.l.b16 %v7985
    %v8813 = vunpack.c.h.b16 %v7985
    %v8814 = vunpack.c.l.b16 %v7986
    %v8815 = vunpack.c.h.b16 %v7986
    %v8816 = vunpack.c.l.b16 %v7987
    %v8817 = vunpack.c.h.b16 %v7987
    %v8818 = vunpack.c.l.b16 %v7988
    %v8819 = vunpack.c.h.b16 %v7988
    %v8820 = vunpack.c.l.b16 %v7989
    %v8821 = vunpack.c.h.b16 %v7989
    %v8822 = vunpack.c.l.b16 %v7990
    %v8823 = vunpack.c.h.b16 %v7990
    %v8824 = vunpack.c.l.b16 %v7991
    %v8825 = vunpack.c.h.b16 %v7991
    %v8826 = vunpack.c.l.b16 %v7992
    %v8827 = vunpack.c.h.b16 %v7992
    %v8828 = vunpack.c.l.b16 %v7993
    %v8829 = vunpack.c.h.b16 %v7993
    %v8830 = vunpack.c.l.b16 %v7994
    %v8831 = vunpack.c.h.b16 %v7994
    %v8832 = vunpack.c.l.b16 %v7995
    %v8833 = vunpack.c.h.b16 %v7995
    %v8834 = vunpack.c.l.b16 %v7996
    %v8835 = vunpack.c.h.b16 %v7996
    %v8836 = vunpack.c.l.b16 %v7997
    %v8837 = vunpack.c.h.b16 %v7997
    %v8838 = vunpack.c.l.b16 %v7998
    %v8839 = vunpack.c.h.b16 %v7998
    %v8840 = vunpack.c.l.b16 %v7999
    %v8841 = vunpack.c.h.b16 %v7999
    %v8842 = vunpack.c.l.b16 %v8000
    %v8843 = vunpack.c.h.b16 %v8000
    %v8844 = vunpack.c.l.b16 %v8001
    %v8845 = vunpack.c.h.b16 %v8001
    %v8846 = vpack.c.b16 %v8342, %v8334
    %v8847 = vpack.c.b16 %v8343, %v8335
    %v8848 = vpack.c.b16 %v8344, %v8336
    %v8849 = vpack.c.b16 %v8345, %v8337
    %v8850 = vpack.c.b16 %v8346, %v8338
    %v8851 = vpack.c.b16 %v8347, %v8339
    %v8852 = vpack.c.b16 %v8348, %v8340
    %v8853 = vpack.c.b16 %v8349, %v8341
    %v8854 = vpack.c.b16 %v8358, %v8350
    %v8855 = vpack.c.b16 %v8359, %v8351
    %v8856 = vpack.c.b16 %v8360, %v8352
    %v8857 = vpack.c.b16 %v8361, %v8353
    %v8858 = vpack.c.b16 %v8362, %v8354
    %v8859 = vpack.c.b16 %v8363, %v8355
    %v8860 = vpack.c.b16 %v8364, %v8356
    %v8861 = vpack.c.b16 %v8365, %v8357
    %v8862 = vpack.c.b16 %v8374, %v8366
    %v8863 = vpack.c.b16 %v8375, %v8367
    %v8864 = vpack.c.b16 %v8376, %v8368
    %v8865 = vpack.c.b16 %v8377, %v8369
    %v8866 = vpack.c.b16 %v8378, %v8370
    %v8867 = vpack.c.b16 %v8379, %v8371
    %v8868 = vpack.c.b16 %v8380, %v8372
    %v8869 = vpack.c.b16 %v8381, %v8373
    %v8870 = vpack.c.b16 %v8390, %v8382
    %v8871 = vpack.c.b16 %v8391, %v8383
    %v8872 = vpack.c.b16 %v8392, %v8384
    %v8873 = vpack.c.b16 %v8393, %v8385
    %v8874 = vpack.c.b16 %v8394, %v8386
    %v8875 = vpack.c.b16 %v8395, %v8387
    %v8876 = vpack.c.b16 %v8396, %v8388
    %v8877 = vpack.c.b16 %v8397, %v8389
    %v8878 = vpack.c.b16 %v8406, %v8398
    %v8879 = vpack.c.b16 %v8407, %v8399
    %v8880 = vpack.c.b16 %v8408, %v8400
    %v8881 = vpack.c.b16 %v8409, %v8401
    %v8882 = vpack.c.b16 %v8410, %v8402
    %v8883 = vpack.c.b16 %v8411, %v8403
    %v8884 = vpack.c.b16 %v8412, %v8404
    %v8885 = vpack.c.b16 %v8413, %v8405
    %v8886 = vpack.c.b16 %v8422, %v8414
    %v8887 = vpack.c.b16 %v8423, %v8415
    %v8888 = vpack.c.b16 %v8424, %v8416
    %v8889 = vpack.c.b16 %v8425, %v8417
    %v8890 = vpack.c.b16 %v8426, %v8418
    %v8891 = vpack.c.b16 %v8427, %v8419
    %v8892 = vpack.c.b16 %v8428, %v8420
    %v8893 = vpack.c.b16 %v8429, %v8421
    %v8894 = vpack.c.b16 %v8438, %v8430
    %v8895 = vpack.c.b16 %v8439, %v8431
    %v8896 = vpack.c.b16 %v8440, %v8432
    %v8897 = vpack.c.b16 %v8441, %v8433
    %v8898 = vpack.c.b16 %v8442, %v8434
    %v8899 = vpack.c.b16 %v8443, %v8435
    %v8900 = vpack.c.b16 %v8444, %v8436
    %v8901 = vpack.c.b16 %v8445, %v8437
    %v8902 = vpack.c.b16 %v8454, %v8446
    %v8903 = vpack.c.b16 %v8455, %v8447
    %v8904 = vpack.c.b16 %v8456, %v8448
    %v8905 = vpack.c.b16 %v8457, %v8449
    %v8906 = vpack.c.b16 %v8458, %v8450
    %v8907 = vpack.c.b16 %v8459, %v8451
    %v8908 = vpack.c.b16 %v8460, %v8452
    %v8909 = vpack.c.b16 %v8461, %v8453
    %v8910 = vpack.c.b16 %v8470, %v8462
    %v8911 = vpack.c.b16 %v8471, %v8463
    %v8912 = vpack.c.b16 %v8472, %v8464
    %v8913 = vpack.c.b16 %v8473, %v8465
    %v8914 = vpack.c.b16 %v8474, %v8466
    %v8915 = vpack.c.b16 %v8475, %v8467
    %v8916 = vpack.c.b16 %v8476, %v8468
    %v8917 = vpack.c.b16 %v8477, %v8469
    %v8918 = vpack.c.b16 %v8486, %v8478
    %v8919 = vpack.c.b16 %v8487, %v8479
    %v8920 = vpack.c.b16 %v8488, %v8480
    %v8921 = vpack.c.b16 %v8489, %v8481
    %v8922 = vpack.c.b16 %v8490, %v8482
    %v8923 = vpack.c.b16 %v8491, %v8483
    %v8924 = vpack.c.b16 %v8492, %v8484
    %v8925 = vpack.c.b16 %v8493, %v8485
    %v8926 = vpack.c.b16 %v8502, %v8494
    %v8927 = vpack.c.b16 %v8503, %v8495
    %v8928 = vpack.c.b16 %v8504, %v8496
    %v8929 = vpack.c.b16 %v8505, %v8497
    %v8930 = vpack.c.b16 %v8506, %v8498
    %v8931 = vpack.c.b16 %v8507, %v8499
    %v8932 = vpack.c.b16 %v8508, %v8500
    %v8933 = vpack.c.b16 %v8509, %v8501
    %v8934 = vpack.c.b16 %v8518, %v8510
    %v8935 = vpack.c.b16 %v8519, %v8511
    %v8936 = vpack.c.b16 %v8520, %v8512
    %v8937 = vpack.c.b16 %v8521, %v8513
    %v8938 = vpack.c.b16 %v8522, %v8514
    %v8939 = vpack.c.b16 %v8523, %v8515
    %v8940 = vpack.c.b16 %v8524, %v8516
    %v8941 = vpack.c.b16 %v8525, %v8517
    %v8942 = vpack.c.b16 %v8534, %v8526
    %v8943 = vpack.c.b16 %v8535, %v8527
    %v8944 = vpack.c.b16 %v8536, %v8528
    %v8945 = vpack.c.b16 %v8537, %v8529
    %v8946 = vpack.c.b16 %v8538, %v8530
    %v8947 = vpack.c.b16 %v8539, %v8531
    %v8948 = vpack.c.b16 %v8540, %v8532
    %v8949 = vpack.c.b16 %v8541, %v8533
    %v8950 = vpack.c.b16 %v8550, %v8542
    %v8951 = vpack.c.b16 %v8551, %v8543
    %v8952 = vpack.c.b16 %v8552, %v8544
    %v8953 = vpack.c.b16 %v8553, %v8545
    %v8954 = vpack.c.b16 %v8554, %v8546
    %v8955 = vpack.c.b16 %v8555, %v8547
    %v8956 = vpack.c.b16 %v8556, %v8548
    %v8957 = vpack.c.b16 %v8557, %v8549
    %v8958 = vpack.c.b16 %v8566, %v8558
    %v8959 = vpack.c.b16 %v8567, %v8559
    %v8960 = vpack.c.b16 %v8568, %v8560
    %v8961 = vpack.c.b16 %v8569, %v8561
    %v8962 = vpack.c.b16 %v8570, %v8562
    %v8963 = vpack.c.b16 %v8571, %v8563
    %v8964 = vpack.c.b16 %v8572, %v8564
    %v8965 = vpack.c.b16 %v8573, %v8565
    %v8966 = vpack.c.b16 %v8582, %v8574
    %v8967 = vpack.c.b16 %v8583, %v8575
    %v8968 = vpack.c.b16 %v8584, %v8576
    %v8969 = vpack.c.b16 %v8585, %v8577
    %v8970 = vpack.c.b16 %v8586, %v8578
    %v8971 = vpack.c.b16 %v8587, %v8579
    %v8972 = vpack.c.b16 %v8588, %v8580
    %v8973 = vpack.c.b16 %v8589, %v8581
    %v8974 = vpack.c.b16 %v8598, %v8590
    %v8975 = vpack.c.b16 %v8599, %v8591
    %v8976 = vpack.c.b16 %v8600, %v8592
    %v8977 = vpack.c.b16 %v8601, %v8593
    %v8978 = vpack.c.b16 %v8602, %v8594
    %v8979 = vpack.c.b16 %v8603, %v8595
    %v8980 = vpack.c.b16 %v8604, %v8596
    %v8981 = vpack.c.b16 %v8605, %v8597
    %v8982 = vpack.c.b16 %v8614, %v8606
    %v8983 = vpack.c.b16 %v8615, %v8607
    %v8984 = vpack.c.b16 %v8616, %v8608
    %v8985 = vpack.c.b16 %v8617, %v8609
    %v8986 = vpack.c.b16 %v8618, %v8610
    %v8987 = vpack.c.b16 %v8619, %v8611
    %v8988 = vpack.c.b16 %v8620, %v8612
    %v8989 = vpack.c.b16 %v8621, %v8613
    %v8990 = vpack.c.b16 %v8630, %v8622
    %v8991 = vpack.c.b16 %v8631, %v8623
    %v8992 = vpack.c.b16 %v8632, %v8624
    %v8993 = vpack.c.b16 %v8633, %v8625
    %v8994 = vpack.c.b16 %v8634, %v8626
    %v8995 = vpack.c.b16 %v8635, %v8627
    %v8996 = vpack.c.b16 %v8636, %v8628
    %v8997 = vpack.c.b16 %v8637, %v8629
    %v8998 = vpack.c.b16 %v8646, %v8638
    %v8999 = vpack.c.b16 %v8647, %v8639
    %v9000 = vpack.c.b16 %v8648, %v8640
    %v9001 = vpack.c.b16 %v8649, %v8641
    %v9002 = vpack.c.b16 %v8650, %v8642
    %v9003 = vpack.c.b16 %v8651, %v8643
    %v9004 = vpack.c.b16 %v8652, %v8644
    %v9005 = vpack.c.b16 %v8653, %v8645
    %v9006 = vpack.c.b16 %v8662, %v8654
    %v9007 = vpack.c.b16 %v8663, %v8655
    %v9008 = vpack.c.b16 %v8664, %v8656
    %v9009 = vpack.c.b16 %v8665, %v8657
    %v9010 = vpack.c.b16 %v8666, %v8658
    %v9011 = vpack.c.b16 %v8667, %v8659
    %v9012 = vpack.c.b16 %v8668, %v8660
    %v9013 = vpack.c.b16 %v8669, %v8661
    %v9014 = vpack.c.b16 %v8678, %v8670
    %v9015 = vpack.c.b16 %v8679, %v8671
    %v9016 = vpack.c.b16 %v8680, %v8672
    %v9017 = vpack.c.b16 %v8681, %v8673
    %v9018 = vpack.c.b16 %v8682, %v8674
    %v9019 = vpack.c.b16 %v8683, %v8675
    %v9020 = vpack.c.b16 %v8684, %v8676
    %v9021 = vpack.c.b16 %v8685, %v8677
    %v9022 = vpack.c.b16 %v8694, %v8686
    %v9023 = vpack.c.b16 %v8695, %v8687
    %v9024 = vpack.c.b16 %v8696, %v8688
    %v9025 = vpack.c.b16 %v8697, %v8689
    %v9026 = vpack.c.b16 %v8698, %v8690
    %v9027 = vpack.c.b16 %v8699, %v8691
    %v9028 = vpack.c.b16 %v8700, %v8692
    %v9029 = vpack.c.b16 %v8701, %v8693
    %v9030 = vpack.c.b16 %v8710, %v8702
    %v9031 = vpack.c.b16 %v8711, %v8703
    %v9032 = vpack.c.b16 %v8712, %v8704
    %v9033 = vpack.c.b16 %v8713, %v8705
    %v9034 = vpack.c.b16 %v8714, %v8706
    %v9035 = vpack.c.b16 %v8715, %v8707
    %v9036 = vpack.c.b16 %v8716, %v8708
    %v9037 = vpack.c.b16 %v8717, %v8709
    %v9038 = vpack.c.b16 %v8726, %v8718
    %v9039 = vpack.c.b16 %v8727, %v8719
    %v9040 = vpack.c.b16 %v8728, %v8720
    %v9041 = vpack.c.b16 %v8729, %v8721
    %v9042 = vpack.c.b16 %v8730, %v8722
    %v9043 = vpack.c.b16 %v8731, %v8723
    %v9044 = vpack.c.b16 %v8732, %v8724
    %v9045 = vpack.c.b16 %v8733, %v8725
    %v9046 = vpack.c.b16 %v8742, %v8734
    %v9047 = vpack.c.b16 %v8743, %v8735
    %v9048 = vpack.c.b16 %v8744, %v8736
    %v9049 = vpack.c.b16 %v8745, %v8737
    %v9050 = vpack.c.b16 %v8746, %v8738
    %v9051 = vpack.c.b16 %v8747, %v8739
    %v9052 = vpack.c.b16 %v8748, %v8740
    %v9053 = vpack.c.b16 %v8749, %v8741
    %v9054 = vpack.c.b16 %v8758, %v8750
    %v9055 = vpack.c.b16 %v8759, %v8751
    %v9056 = vpack.c.b16 %v8760, %v8752
    %v9057 = vpack.c.b16 %v8761, %v8753
    %v9058 = vpack.c.b16 %v8762, %v8754
    %v9059 = vpack.c.b16 %v8763, %v8755
    %v9060 = vpack.c.b16 %v8764, %v8756
    %v9061 = vpack.c.b16 %v8765, %v8757
    %v9062 = vpack.c.b16 %v8774, %v8766
    %v9063 = vpack.c.b16 %v8775, %v8767
    %v9064 = vpack.c.b16 %v8776, %v8768
    %v9065 = vpack.c.b16 %v8777, %v8769
    %v9066 = vpack.c.b16 %v8778, %v8770
    %v9067 = vpack.c.b16 %v8779, %v8771
    %v9068 = vpack.c.b16 %v8780, %v8772
    %v9069 = vpack.c.b16 %v8781, %v8773
    %v9070 = vpack.c.b16 %v8790, %v8782
    %v9071 = vpack.c.b16 %v8791, %v8783
    %v9072 = vpack.c.b16 %v8792, %v8784
    %v9073 = vpack.c.b16 %v8793, %v8785
    %v9074 = vpack.c.b16 %v8794, %v8786
    %v9075 = vpack.c.b16 %v8795, %v8787
    %v9076 = vpack.c.b16 %v8796, %v8788
    %v9077 = vpack.c.b16 %v8797, %v8789
    %v9078 = vpack.c.b16 %v8806, %v8798
    %v9079 = vpack.c.b16 %v8807, %v8799
    %v9080 = vpack.c.b16 %v8808, %v8800
    %v9081 = vpack.c.b16 %v8809, %v8801
    %v9082 = vpack.c.b16 %v8810, %v8802
    %v9083 = vpack.c.b16 %v8811, %v8803
    %v9084 = vpack.c.b16 %v8812, %v8804
    %v9085 = vpack.c.b16 %v8813, %v8805
    %v9086 = vpack.c.b16 %v8822, %v8814
    %v9087 = vpack.c.b16 %v8823, %v8815
    %v9088 = vpack.c.b16 %v8824, %v8816
    %v9089 = vpack.c.b16 %v8825, %v8817
    %v9090 = vpack.c.b16 %v8826, %v8818
    %v9091 = vpack.c.b16 %v8827, %v8819
    %v9092 = vpack.c.b16 %v8828, %v8820
    %v9093 = vpack.c.b16 %v8829, %v8821
    %v9094 = vpack.c.b16 %v8838, %v8830
    %v9095 = vpack.c.b16 %v8839, %v8831
    %v9096 = vpack.c.b16 %v8840, %v8832
    %v9097 = vpack.c.b16 %v8841, %v8833
    %v9098 = vpack.c.b16 %v8842, %v8834
    %v9099 = vpack.c.b16 %v8843, %v8835
    %v9100 = vpack.c.b16 %v8844, %v8836
    %v9101 = vpack.c.b16 %v8845, %v8837
    %9358 = vmatprep.subr.bf16.mxu0 %v8903
    %9359 = vmatpush1.bf16.msra.mxu0 %v8902
    %9360 = vmatprep.subr.bf16.mxu0 %v8895
    %9361 = vmatpush1.bf16.msra.mxu0 %v8894
    %9362 = vmatprep.subr.bf16.mxu0 %v8887
    %9363 = vmatpush1.bf16.msra.mxu0 %v8886
    %9364 = vmatprep.subr.bf16.mxu0 %v8879
    %9365 = vmatpush1.bf16.msra.mxu0 %v8878
    %9366 = vmatprep.subr.bf16.mxu0 %v8871
    %9367 = vmatpush1.bf16.msra.mxu0 %v8870
    %9368 = vmatprep.subr.bf16.mxu0 %v8863
    %9369 = vmatpush1.bf16.msra.mxu0 %v8862
    %9370 = vmatprep.subr.bf16.mxu0 %v8855
    %9371 = vmatpush1.bf16.msra.mxu0 %v8854
    %9372 = vmatprep.subr.bf16.mxu0 %v8847
    %9373 = vmatpush1.bf16.msra.mxu0 %v8846
    %9374 = vmatprep.subr.bf16.mxu0 %v8967
    %9375 = vmatpush2.bf16.msra.mxu0 %v8966
    %9376 = vmatprep.subr.bf16.mxu0 %v8959
    %9377 = vmatpush2.bf16.msra.mxu0 %v8958
    %9378 = vmatprep.subr.bf16.mxu0 %v8951
    %9379 = vmatpush2.bf16.msra.mxu0 %v8950
    %9380 = vmatprep.subr.bf16.mxu0 %v8943
    %9381 = vmatpush2.bf16.msra.mxu0 %v8942
    %9382 = vmatprep.subr.bf16.mxu0 %v8935
    %9383 = vmatpush2.bf16.msra.mxu0 %v8934
    %9384 = vmatprep.subr.bf16.mxu0 %v8927
    %9385 = vmatpush2.bf16.msra.mxu0 %v8926
    %9386 = vmatprep.subr.bf16.mxu0 %v8919
    %9387 = vmatpush2.bf16.msra.mxu0 %v8918
    %9388 = vmatprep.subr.bf16.mxu0 %v8911
    %9389 = vmatpush2.bf16.msra.mxu0 %v8910
    %9390 = vmatprep.mubr.bf16.mxu0 %v7743
    %9391 = vmatmul.mubr.bf16.gmra.mxu0 %v7742
    %v9392 = vpop.f32.mrf.mxu0
    %v9393 = vadd.f32 %v8049, %v9392
    %v9394 = vpop.f32.mrf.mxu0
    %v9395 = vadd.f32 %v8053, %v9394
    %v9396 = vpop.f32.mrf.mxu0
    %v9397 = vpop.f32.mrf.mxu0
    %9398 = vdwg.mxu0
    %9399 = vmatprep.subr.bf16.mxu0 %v9031
    %9400 = vmatpush1.bf16.msra.mxu0 %v9030
    %9401 = vmatprep.subr.bf16.mxu0 %v9023
    %9402 = vmatpush1.bf16.msra.mxu0 %v9022
    %9403 = vmatprep.subr.bf16.mxu0 %v9015
    %9404 = vmatpush1.bf16.msra.mxu0 %v9014
    %9405 = vmatprep.subr.bf16.mxu0 %v9007
    %9406 = vmatpush1.bf16.msra.mxu0 %v9006
    %9407 = vmatprep.subr.bf16.mxu0 %v8999
    %9408 = vmatpush1.bf16.msra.mxu0 %v8998
    %9409 = vmatprep.subr.bf16.mxu0 %v8991
    %9410 = vmatpush1.bf16.msra.mxu0 %v8990
    %9411 = vmatprep.subr.bf16.mxu0 %v8983
    %9412 = vmatpush1.bf16.msra.mxu0 %v8982
    %9413 = vmatprep.subr.bf16.mxu0 %v8975
    %9414 = vmatpush1.bf16.msra.mxu0 %v8974
    %9415 = vmatprep.subr.bf16.mxu0 %v9095
    %9416 = vmatpush2.bf16.msra.mxu0 %v9094
    %9417 = vmatprep.subr.bf16.mxu0 %v9087
    %9418 = vmatpush2.bf16.msra.mxu0 %v9086
    %9419 = vmatprep.subr.bf16.mxu0 %v9079
    %9420 = vmatpush2.bf16.msra.mxu0 %v9078
    %9421 = vmatprep.subr.bf16.mxu0 %v9071
    %9422 = vmatpush2.bf16.msra.mxu0 %v9070
    %9423 = vmatprep.subr.bf16.mxu0 %v9063
    %9424 = vmatpush2.bf16.msra.mxu0 %v9062
    %9425 = vmatprep.subr.bf16.mxu0 %v9055
    %9426 = vmatpush2.bf16.msra.mxu0 %v9054
    %9427 = vmatprep.subr.bf16.mxu0 %v9047
    %9428 = vmatpush2.bf16.msra.mxu0 %v9046
    %9429 = vmatprep.subr.bf16.mxu0 %v9039
    %9430 = vmatpush2.bf16.msra.mxu0 %v9038
    %9431 = vmatprep.mubr.bf16.mxu0 %v7745
    %9432 = vmatmul.mubr.bf16.gmra.mxu0 %v7744
    %v9433 = vpop.f32.mrf.mxu0
    %v9434 = vadd.f32 %v9393, %v9433
    %v9435 = vpop.f32.mrf.mxu0
    %v9436 = vadd.f32 %v9395, %v9435
    %v9437 = vpop.f32.mrf.mxu0
    %v9438 = vpop.f32.mrf.mxu0
    %9439 = vdwg.mxu0
    %9440 = vmatprep.subr.bf16.mxu0 %v8905
    %9441 = vmatpush1.bf16.msra.mxu0 %v8904
    %9442 = vmatprep.subr.bf16.mxu0 %v8897
    %9443 = vmatpush1.bf16.msra.mxu0 %v8896
    %9444 = vmatprep.subr.bf16.mxu0 %v8889
    %9445 = vmatpush1.bf16.msra.mxu0 %v8888
    %9446 = vmatprep.subr.bf16.mxu0 %v8881
    %9447 = vmatpush1.bf16.msra.mxu0 %v8880
    %9448 = vmatprep.subr.bf16.mxu0 %v8873
    %9449 = vmatpush1.bf16.msra.mxu0 %v8872
    %9450 = vmatprep.subr.bf16.mxu0 %v8865
    %9451 = vmatpush1.bf16.msra.mxu0 %v8864
    %9452 = vmatprep.subr.bf16.mxu0 %v8857
    %9453 = vmatpush1.bf16.msra.mxu0 %v8856
    %9454 = vmatprep.subr.bf16.mxu0 %v8849
    %9455 = vmatpush1.bf16.msra.mxu0 %v8848
    %9456 = vmatprep.subr.bf16.mxu0 %v8969
    %9457 = vmatpush2.bf16.msra.mxu0 %v8968
    %9458 = vmatprep.subr.bf16.mxu0 %v8961
    %9459 = vmatpush2.bf16.msra.mxu0 %v8960
    %9460 = vmatprep.subr.bf16.mxu0 %v8953
    %9461 = vmatpush2.bf16.msra.mxu0 %v8952
    %9462 = vmatprep.subr.bf16.mxu0 %v8945
    %9463 = vmatpush2.bf16.msra.mxu0 %v8944
    %9464 = vmatprep.subr.bf16.mxu0 %v8937
    %9465 = vmatpush2.bf16.msra.mxu0 %v8936
    %9466 = vmatprep.subr.bf16.mxu0 %v8929
    %9467 = vmatpush2.bf16.msra.mxu0 %v8928
    %9468 = vmatprep.subr.bf16.mxu0 %v8921
    %9469 = vmatpush2.bf16.msra.mxu0 %v8920
    %9470 = vmatprep.subr.bf16.mxu0 %v8913
    %9471 = vmatpush2.bf16.msra.mxu0 %v8912
    %9472 = vmatprep.mubr.bf16.mxu0 %v7743
    %9473 = vmatmul.mubr.bf16.gmra.mxu0 %v7742
    %v9474 = vpop.f32.mrf.mxu0
    %v9475 = vadd.f32 %v8057, %v9474
    %v9476 = vpop.f32.mrf.mxu0
    %v9477 = vadd.f32 %v8061, %v9476
    %v9478 = vpop.f32.mrf.mxu0
    %v9479 = vpop.f32.mrf.mxu0
    %9480 = vdwg.mxu0
    %9481 = vmatprep.subr.bf16.mxu0 %v9033
    %9482 = vmatpush1.bf16.msra.mxu0 %v9032
    %9483 = vmatprep.subr.bf16.mxu0 %v9025
    %9484 = vmatpush1.bf16.msra.mxu0 %v9024
    %9485 = vmatprep.subr.bf16.mxu0 %v9017
    %9486 = vmatpush1.bf16.msra.mxu0 %v9016
    %9487 = vmatprep.subr.bf16.mxu0 %v9009
    %9488 = vmatpush1.bf16.msra.mxu0 %v9008
    %9489 = vmatprep.subr.bf16.mxu0 %v9001
    %9490 = vmatpush1.bf16.msra.mxu0 %v9000
    %9491 = vmatprep.subr.bf16.mxu0 %v8993
    %9492 = vmatpush1.bf16.msra.mxu0 %v8992
    %9493 = vmatprep.subr.bf16.mxu0 %v8985
    %9494 = vmatpush1.bf16.msra.mxu0 %v8984
    %9495 = vmatprep.subr.bf16.mxu0 %v8977
    %9496 = vmatpush1.bf16.msra.mxu0 %v8976
    %9497 = vmatprep.subr.bf16.mxu0 %v9097
    %9498 = vmatpush2.bf16.msra.mxu0 %v9096
    %9499 = vmatprep.subr.bf16.mxu0 %v9089
    %9500 = vmatpush2.bf16.msra.mxu0 %v9088
    %9501 = vmatprep.subr.bf16.mxu0 %v9081
    %9502 = vmatpush2.bf16.msra.mxu0 %v9080
    %9503 = vmatprep.subr.bf16.mxu0 %v9073
    %9504 = vmatpush2.bf16.msra.mxu0 %v9072
    %9505 = vmatprep.subr.bf16.mxu0 %v9065
    %9506 = vmatpush2.bf16.msra.mxu0 %v9064
    %9507 = vmatprep.subr.bf16.mxu0 %v9057
    %9508 = vmatpush2.bf16.msra.mxu0 %v9056
    %9509 = vmatprep.subr.bf16.mxu0 %v9049
    %9510 = vmatpush2.bf16.msra.mxu0 %v9048
    %9511 = vmatprep.subr.bf16.mxu0 %v9041
    %9512 = vmatpush2.bf16.msra.mxu0 %v9040
    %9513 = vmatprep.mubr.bf16.mxu0 %v7745
    %9514 = vmatmul.mubr.bf16.gmra.mxu0 %v7744
    %v9515 = vpop.f32.mrf.mxu0
    %v9516 = vadd.f32 %v9475, %v9515
    %v9517 = vpop.f32.mrf.mxu0
    %v9518 = vadd.f32 %v9477, %v9517
    %v9519 = vpop.f32.mrf.mxu0
    %v9520 = vpop.f32.mrf.mxu0
    %9521 = vdwg.mxu0
    %9522 = vmatprep.subr.bf16.mxu0 %v8907
    %9523 = vmatpush1.bf16.msra.mxu0 %v8906
    %9524 = vmatprep.subr.bf16.mxu0 %v8899
    %9525 = vmatpush1.bf16.msra.mxu0 %v8898
    %9526 = vmatprep.subr.bf16.mxu0 %v8891
    %9527 = vmatpush1.bf16.msra.mxu0 %v8890
    %9528 = vmatprep.subr.bf16.mxu0 %v8883
    %9529 = vmatpush1.bf16.msra.mxu0 %v8882
    %9530 = vmatprep.subr.bf16.mxu0 %v8875
    %9531 = vmatpush1.bf16.msra.mxu0 %v8874
    %9532 = vmatprep.subr.bf16.mxu0 %v8867
    %9533 = vmatpush1.bf16.msra.mxu0 %v8866
    %9534 = vmatprep.subr.bf16.mxu0 %v8859
    %9535 = vmatpush1.bf16.msra.mxu0 %v8858
    %9536 = vmatprep.subr.bf16.mxu0 %v8851
    %9537 = vmatpush1.bf16.msra.mxu0 %v8850
    %9538 = vmatprep.subr.bf16.mxu0 %v8971
    %9539 = vmatpush2.bf16.msra.mxu0 %v8970
    %9540 = vmatprep.subr.bf16.mxu0 %v8963
    %9541 = vmatpush2.bf16.msra.mxu0 %v8962
    %9542 = vmatprep.subr.bf16.mxu0 %v8955
    %9543 = vmatpush2.bf16.msra.mxu0 %v8954
    %9544 = vmatprep.subr.bf16.mxu0 %v8947
    %9545 = vmatpush2.bf16.msra.mxu0 %v8946
    %9546 = vmatprep.subr.bf16.mxu0 %v8939
    %9547 = vmatpush2.bf16.msra.mxu0 %v8938
    %9548 = vmatprep.subr.bf16.mxu0 %v8931
    %9549 = vmatpush2.bf16.msra.mxu0 %v8930
    %9550 = vmatprep.subr.bf16.mxu0 %v8923
    %9551 = vmatpush2.bf16.msra.mxu0 %v8922
    %9552 = vmatprep.subr.bf16.mxu0 %v8915
    %9553 = vmatpush2.bf16.msra.mxu0 %v8914
    %9554 = vmatprep.mubr.bf16.mxu0 %v7743
    %9555 = vmatmul.mubr.bf16.gmra.mxu0 %v7742
    %v9556 = vpop.f32.mrf.mxu0
    %v9557 = vadd.f32 %v8065, %v9556
    %v9558 = vpop.f32.mrf.mxu0
    %v9559 = vadd.f32 %v8069, %v9558
    %v9560 = vpop.f32.mrf.mxu0
    %v9561 = vpop.f32.mrf.mxu0
    %9562 = vdwg.mxu0
    %9563 = vmatprep.subr.bf16.mxu0 %v9035
    %9564 = vmatpush1.bf16.msra.mxu0 %v9034
    %9565 = vmatprep.subr.bf16.mxu0 %v9027
    %9566 = vmatpush1.bf16.msra.mxu0 %v9026
    %9567 = vmatprep.subr.bf16.mxu0 %v9019
    %9568 = vmatpush1.bf16.msra.mxu0 %v9018
    %9569 = vmatprep.subr.bf16.mxu0 %v9011
    %9570 = vmatpush1.bf16.msra.mxu0 %v9010
    %9571 = vmatprep.subr.bf16.mxu0 %v9003
    %9572 = vmatpush1.bf16.msra.mxu0 %v9002
    %9573 = vmatprep.subr.bf16.mxu0 %v8995
    %9574 = vmatpush1.bf16.msra.mxu0 %v8994
    %9575 = vmatprep.subr.bf16.mxu0 %v8987
    %9576 = vmatpush1.bf16.msra.mxu0 %v8986
    %9577 = vmatprep.subr.bf16.mxu0 %v8979
    %9578 = vmatpush1.bf16.msra.mxu0 %v8978
    %9579 = vmatprep.subr.bf16.mxu0 %v9099
    %9580 = vmatpush2.bf16.msra.mxu0 %v9098
    %9581 = vmatprep.subr.bf16.mxu0 %v9091
    %9582 = vmatpush2.bf16.msra.mxu0 %v9090
    %9583 = vmatprep.subr.bf16.mxu0 %v9083
    %9584 = vmatpush2.bf16.msra.mxu0 %v9082
    %9585 = vmatprep.subr.bf16.mxu0 %v9075
    %9586 = vmatpush2.bf16.msra.mxu0 %v9074
    %9587 = vmatprep.subr.bf16.mxu0 %v9067
    %9588 = vmatpush2.bf16.msra.mxu0 %v9066
    %9589 = vmatprep.subr.bf16.mxu0 %v9059
    %9590 = vmatpush2.bf16.msra.mxu0 %v9058
    %9591 = vmatprep.subr.bf16.mxu0 %v9051
    %9592 = vmatpush2.bf16.msra.mxu0 %v9050
    %9593 = vmatprep.subr.bf16.mxu0 %v9043
    %9594 = vmatpush2.bf16.msra.mxu0 %v9042
    %9595 = vmatprep.mubr.bf16.mxu0 %v7745
    %9596 = vmatmul.mubr.bf16.gmra.mxu0 %v7744
    %v9597 = vpop.f32.mrf.mxu0
    %v9598 = vadd.f32 %v9557, %v9597
    %v9599 = vpop.f32.mrf.mxu0
    %v9600 = vadd.f32 %v9559, %v9599
    %v9601 = vpop.f32.mrf.mxu0
    %v9602 = vpop.f32.mrf.mxu0
    %9603 = vdwg.mxu0
    %9604 = vmatprep.subr.bf16.mxu0 %v8909
    %9605 = vmatpush1.bf16.msra.mxu0 %v8908
    %9606 = vmatprep.subr.bf16.mxu0 %v8901
    %9607 = vmatpush1.bf16.msra.mxu0 %v8900
    %9608 = vmatprep.subr.bf16.mxu0 %v8893
    %9609 = vmatpush1.bf16.msra.mxu0 %v8892
    %9610 = vmatprep.subr.bf16.mxu0 %v8885
    %9611 = vmatpush1.bf16.msra.mxu0 %v8884
    %9612 = vmatprep.subr.bf16.mxu0 %v8877
    %9613 = vmatpush1.bf16.msra.mxu0 %v8876
    %9614 = vmatprep.subr.bf16.mxu0 %v8869
    %9615 = vmatpush1.bf16.msra.mxu0 %v8868
    %9616 = vmatprep.subr.bf16.mxu0 %v8861
    %9617 = vmatpush1.bf16.msra.mxu0 %v8860
    %9618 = vmatprep.subr.bf16.mxu0 %v8853
    %9619 = vmatpush1.bf16.msra.mxu0 %v8852
    %9620 = vmatprep.subr.bf16.mxu0 %v8973
    %9621 = vmatpush2.bf16.msra.mxu0 %v8972
    %9622 = vmatprep.subr.bf16.mxu0 %v8965
    %9623 = vmatpush2.bf16.msra.mxu0 %v8964
    %9624 = vmatprep.subr.bf16.mxu0 %v8957
    %9625 = vmatpush2.bf16.msra.mxu0 %v8956
    %9626 = vmatprep.subr.bf16.mxu0 %v8949
    %9627 = vmatpush2.bf16.msra.mxu0 %v8948
    %9628 = vmatprep.subr.bf16.mxu0 %v8941
    %9629 = vmatpush2.bf16.msra.mxu0 %v8940
    %9630 = vmatprep.subr.bf16.mxu0 %v8933
    %9631 = vmatpush2.bf16.msra.mxu0 %v8932
    %9632 = vmatprep.subr.bf16.mxu0 %v8925
    %9633 = vmatpush2.bf16.msra.mxu0 %v8924
    %9634 = vmatprep.subr.bf16.mxu0 %v8917
    %9635 = vmatpush2.bf16.msra.mxu0 %v8916
    %9636 = vmatprep.mubr.bf16.mxu0 %v7743
    %9637 = vmatmul.mubr.bf16.gmra.mxu0 %v7742
    %v9638 = vpop.f32.mrf.mxu0
    %v9639 = vadd.f32 %v8073, %v9638
    %v9640 = vpop.f32.mrf.mxu0
    %v9641 = vadd.f32 %v8077, %v9640
    %v9642 = vpop.f32.mrf.mxu0
    %v9643 = vpop.f32.mrf.mxu0
    %9644 = vdwg.mxu0
    %9645 = vmatprep.subr.bf16.mxu0 %v9037
    %9646 = vmatpush1.bf16.msra.mxu0 %v9036
    %9647 = vmatprep.subr.bf16.mxu0 %v9029
    %9648 = vmatpush1.bf16.msra.mxu0 %v9028
    %9649 = vmatprep.subr.bf16.mxu0 %v9021
    %9650 = vmatpush1.bf16.msra.mxu0 %v9020
    %9651 = vmatprep.subr.bf16.mxu0 %v9013
    %9652 = vmatpush1.bf16.msra.mxu0 %v9012
    %9653 = vmatprep.subr.bf16.mxu0 %v9005
    %9654 = vmatpush1.bf16.msra.mxu0 %v9004
    %9655 = vmatprep.subr.bf16.mxu0 %v8997
    %9656 = vmatpush1.bf16.msra.mxu0 %v8996
    %9657 = vmatprep.subr.bf16.mxu0 %v8989
    %9658 = vmatpush1.bf16.msra.mxu0 %v8988
    %9659 = vmatprep.subr.bf16.mxu0 %v8981
    %9660 = vmatpush1.bf16.msra.mxu0 %v8980
    %9661 = vmatprep.subr.bf16.mxu0 %v9101
    %9662 = vmatpush2.bf16.msra.mxu0 %v9100
    %9663 = vmatprep.subr.bf16.mxu0 %v9093
    %9664 = vmatpush2.bf16.msra.mxu0 %v9092
    %9665 = vmatprep.subr.bf16.mxu0 %v9085
    %9666 = vmatpush2.bf16.msra.mxu0 %v9084
    %9667 = vmatprep.subr.bf16.mxu0 %v9077
    %9668 = vmatpush2.bf16.msra.mxu0 %v9076
    %9669 = vmatprep.subr.bf16.mxu0 %v9069
    %9670 = vmatpush2.bf16.msra.mxu0 %v9068
    %9671 = vmatprep.subr.bf16.mxu0 %v9061
    %9672 = vmatpush2.bf16.msra.mxu0 %v9060
    %9673 = vmatprep.subr.bf16.mxu0 %v9053
    %9674 = vmatpush2.bf16.msra.mxu0 %v9052
    %9675 = vmatprep.subr.bf16.mxu0 %v9045
    %9676 = vmatpush2.bf16.msra.mxu0 %v9044
    %9677 = vmatprep.mubr.bf16.mxu0 %v7745
    %9678 = vmatmul.mubr.bf16.gmra.mxu0 %v7744
    %v9679 = vpop.f32.mrf.mxu0
    %v9680 = vadd.f32 %v9639, %v9679
    %v9681 = vpop.f32.mrf.mxu0
    %v9682 = vadd.f32 %v9641, %v9681
    %v9683 = vpop.f32.mrf.mxu0
    %v9684 = vpop.f32.mrf.mxu0
    %9685 = vdwg.mxu0
    %v9686 = vmax.f32 %v9434, 0.0
    %v9687 = vmax.f32 %v9436, 0.0
    %v9688 = vmax.f32 %v9516, 0.0
    %v9689 = vmax.f32 %v9518, 0.0
    %v9690 = vmax.f32 %v9598, 0.0
    %v9691 = vmax.f32 %v9600, 0.0
    %v9692 = vmax.f32 %v9680, 0.0
    %v9693 = vmax.f32 %v9682, 0.0
    %v9694 = vlaneseq
    %v9695 = vshrl.u32 %v9694, 7
    %v9696 = vsub.s32 1, %v9695
    %v9697 = vrot.slane %v7738, %v9696
    %v9698 = vlaneseq
    %v9699 = vshrl.u32 %v9698, 7
    %v9700 = vsub.s32 5, %v9699
    %v9701 = vrot.slane %v7738, %v9700
    %v9702 = vlaneseq
    %v9703 = vshrl.u32 %v9702, 7
    %v9704 = vsub.s32 1, %v9703
    %v9705 = vrot.slane %v7739, %v9704
    %v9706 = vlaneseq
    %v9707 = vshrl.u32 %v9706, 7
    %v9708 = vsub.s32 5, %v9707
    %v9709 = vrot.slane %v7739, %v9708
    %v9710 = vlaneseq
    %v9711 = vshrl.u32 %v9710, 7
    %v9712 = vsub.s32 1, %v9711
    %v9713 = vrot.slane %v7740, %v9712
    %v9714 = vlaneseq
    %v9715 = vshrl.u32 %v9714, 7
    %v9716 = vsub.s32 5, %v9715
    %v9717 = vrot.slane %v7740, %v9716
    %v9718 = vlaneseq
    %v9719 = vshrl.u32 %v9718, 7
    %v9720 = vsub.s32 1, %v9719
    %v9721 = vrot.slane %v7741, %v9720
    %v9722 = vlaneseq
    %v9723 = vshrl.u32 %v9722, 7
    %v9724 = vsub.s32 5, %v9723
    %v9725 = vrot.slane %v7741, %v9724
    %v9734 = vlaneseq
    %v9735 = vshrl.u32 %v9734, 7
    %v9736 = vsub.s32 1, %v9735
    %v9737 = vrot.slane %v9697, %v9736
    %v9738 = vlaneseq
    %v9739 = vshrl.u32 %v9738, 7
    %v9740 = vsub.s32 1, %v9739
    %v9741 = vrot.slane %v9701, %v9740
    %v9742 = vlaneseq
    %v9743 = vshrl.u32 %v9742, 7
    %v9744 = vsub.s32 1, %v9743
    %v9745 = vrot.slane %v9705, %v9744
    %v9746 = vlaneseq
    %v9747 = vshrl.u32 %v9746, 7
    %v9748 = vsub.s32 1, %v9747
    %v9749 = vrot.slane %v9709, %v9748
    %v9750 = vlaneseq
    %v9751 = vshrl.u32 %v9750, 7
    %v9752 = vsub.s32 1, %v9751
    %v9753 = vrot.slane %v9713, %v9752
    %v9754 = vlaneseq
    %v9755 = vshrl.u32 %v9754, 7
    %v9756 = vsub.s32 1, %v9755
    %v9757 = vrot.slane %v9717, %v9756
    %v9758 = vlaneseq
    %v9759 = vshrl.u32 %v9758, 7
    %v9760 = vsub.s32 1, %v9759
    %v9761 = vrot.slane %v9721, %v9760
    %v9762 = vlaneseq
    %v9763 = vshrl.u32 %v9762, 7
    %v9764 = vsub.s32 1, %v9763
    %v9765 = vrot.slane %v9725, %v9764
    %v9766 = vmul.f32 %v9686, %v9737
    %v9767 = vmul.f32 %v9687, %v9741
    %v9768 = vmul.f32 %v9688, %v9745
    %v9769 = vmul.f32 %v9689, %v9749
    %v9770 = vmul.f32 %v9690, %v9753
    %v9771 = vmul.f32 %v9691, %v9757
    %v9772 = vmul.f32 %v9692, %v9761
    %v9773 = vmul.f32 %v9693, %v9765
    %v9774 = vlaneseq
    %v9775 = vshrl.u32 %v9774, 7
    %v9776 = vsub.s32 2, %v9775
    %v9777 = vrot.slane %v7738, %v9776
    %v9778 = vlaneseq
    %v9779 = vshrl.u32 %v9778, 7
    %v9780 = vsub.s32 6, %v9779
    %v9781 = vrot.slane %v7738, %v9780
    %v9782 = vlaneseq
    %v9783 = vshrl.u32 %v9782, 7
    %v9784 = vsub.s32 2, %v9783
    %v9785 = vrot.slane %v7739, %v9784
    %v9786 = vlaneseq
    %v9787 = vshrl.u32 %v9786, 7
    %v9788 = vsub.s32 6, %v9787
    %v9789 = vrot.slane %v7739, %v9788
    %v9790 = vlaneseq
    %v9791 = vshrl.u32 %v9790, 7
    %v9792 = vsub.s32 2, %v9791
    %v9793 = vrot.slane %v7740, %v9792
    %v9794 = vlaneseq
    %v9795 = vshrl.u32 %v9794, 7
    %v9796 = vsub.s32 6, %v9795
    %v9797 = vrot.slane %v7740, %v9796
    %v9798 = vlaneseq
    %v9799 = vshrl.u32 %v9798, 7
    %v9800 = vsub.s32 2, %v9799
    %v9801 = vrot.slane %v7741, %v9800
    %v9802 = vlaneseq
    %v9803 = vshrl.u32 %v9802, 7
    %v9804 = vsub.s32 6, %v9803
    %v9805 = vrot.slane %v7741, %v9804
    %v9814 = vlaneseq
    %v9815 = vshrl.u32 %v9814, 7
    %v9816 = vsub.s32 2, %v9815
    %v9817 = vrot.slane %v9777, %v9816
    %v9818 = vlaneseq
    %v9819 = vshrl.u32 %v9818, 7
    %v9820 = vsub.s32 2, %v9819
    %v9821 = vrot.slane %v9781, %v9820
    %v9822 = vlaneseq
    %v9823 = vshrl.u32 %v9822, 7
    %v9824 = vsub.s32 2, %v9823
    %v9825 = vrot.slane %v9785, %v9824
    %v9826 = vlaneseq
    %v9827 = vshrl.u32 %v9826, 7
    %v9828 = vsub.s32 2, %v9827
    %v9829 = vrot.slane %v9789, %v9828
    %v9830 = vlaneseq
    %v9831 = vshrl.u32 %v9830, 7
    %v9832 = vsub.s32 2, %v9831
    %v9833 = vrot.slane %v9793, %v9832
    %v9834 = vlaneseq
    %v9835 = vshrl.u32 %v9834, 7
    %v9836 = vsub.s32 2, %v9835
    %v9837 = vrot.slane %v9797, %v9836
    %v9838 = vlaneseq
    %v9839 = vshrl.u32 %v9838, 7
    %v9840 = vsub.s32 2, %v9839
    %v9841 = vrot.slane %v9801, %v9840
    %v9842 = vlaneseq
    %v9843 = vshrl.u32 %v9842, 7
    %v9844 = vsub.s32 2, %v9843
    %v9845 = vrot.slane %v9805, %v9844
    %v9846 = vadd.f32 %v9766, %v9817
    %v9847 = vadd.f32 %v9767, %v9821
    %v9848 = vadd.f32 %v9768, %v9825
    %v9849 = vadd.f32 %v9769, %v9829
    %v9850 = vadd.f32 %v9770, %v9833
    %v9851 = vadd.f32 %v9771, %v9837
    %v9852 = vadd.f32 %v9772, %v9841
    %v9853 = vadd.f32 %v9773, %v9845
    %v9854 = vld [vmem:[#allocation25] sm:$0x77]
    %v9855 = vld [vmem:[#allocation25 + $0x8] sm:$0x77]
    %v9856 = vld [vmem:[#allocation25 + $0x10] sm:$0x77]
    %v9857 = vld [vmem:[#allocation25 + $0x18] sm:$0x77]
    %v9858 = vpack.c.bf16 %v9846, %v9846
    %v9859 = vpack.c.bf16 %v9847, %v9847
    %v9860 = vpack.c.bf16 %v9848, %v9848
    %v9861 = vpack.c.bf16 %v9849, %v9849
    %v9862 = vpack.c.bf16 %v9850, %v9850
    %v9863 = vpack.c.bf16 %v9851, %v9851
    %v9864 = vpack.c.bf16 %v9852, %v9852
    %v9865 = vpack.c.bf16 %v9853, %v9853
    %v9866 = vld [vmem:[#allocation24] sm:$0xff]
    %v9867 = vld [vmem:[#allocation24 + $0x8] sm:$0xff]
    %v9868 = vld [vmem:[#allocation24 + $0x10] sm:$0xff]
    %v9869 = vld [vmem:[#allocation24 + $0x18] sm:$0xff]
    %v9870 = vld [vmem:[#allocation24 + $0x20] sm:$0xff]
    %v9871 = vld [vmem:[#allocation24 + $0x28] sm:$0xff]
    %v9872 = vld [vmem:[#allocation24 + $0x30] sm:$0xff]
    %v9873 = vld [vmem:[#allocation24 + $0x38] sm:$0xff]
    %v9874 = vld [vmem:[#allocation24 + $0x40] sm:$0xff]
    %v9875 = vld [vmem:[#allocation24 + $0x48] sm:$0xff]
    %v9876 = vld [vmem:[#allocation24 + $0x50] sm:$0xff]
    %v9877 = vld [vmem:[#allocation24 + $0x58] sm:$0xff]
    %v9878 = vld [vmem:[#allocation24 + $0x60] sm:$0xff]
    %v9879 = vld [vmem:[#allocation24 + $0x68] sm:$0xff]
    %v9880 = vld [vmem:[#allocation24 + $0x70] sm:$0xff]
    %v9881 = vld [vmem:[#allocation24 + $0x78] sm:$0xff]
    %v9882 = vld [vmem:[#allocation24 + $0x80] sm:$0xff]
    %v9883 = vld [vmem:[#allocation24 + $0x88] sm:$0xff]
    %v9884 = vld [vmem:[#allocation24 + $0x90] sm:$0xff]
    %v9885 = vld [vmem:[#allocation24 + $0x98] sm:$0xff]
    %v9886 = vld [vmem:[#allocation24 + $0xa0] sm:$0xff]
    %v9887 = vld [vmem:[#allocation24 + $0xa8] sm:$0xff]
    %v9888 = vld [vmem:[#allocation24 + $0xb0] sm:$0xff]
    %v9889 = vld [vmem:[#allocation24 + $0xb8] sm:$0xff]
    %v9890 = vld [vmem:[#allocation24 + $0xc0] sm:$0xff]
    %v9891 = vld [vmem:[#allocation24 + $0xc8] sm:$0xff]
    %v9892 = vld [vmem:[#allocation24 + $0xd0] sm:$0xff]
    %v9893 = vld [vmem:[#allocation24 + $0xd8] sm:$0xff]
    %v9894 = vld [vmem:[#allocation24 + $0xe0] sm:$0xff]
    %v9895 = vld [vmem:[#allocation24 + $0xe8] sm:$0xff]
    %v9896 = vld [vmem:[#allocation24 + $0xf0] sm:$0xff]
    %v9897 = vld [vmem:[#allocation24 + $0xf8] sm:$0xff]
    %v9898 = vld [vmem:[#allocation24 + $0x100] sm:$0xff]
    %v9899 = vld [vmem:[#allocation24 + $0x108] sm:$0xff]
    %v9900 = vld [vmem:[#allocation24 + $0x110] sm:$0xff]
    %v9901 = vld [vmem:[#allocation24 + $0x118] sm:$0xff]
    %v9902 = vld [vmem:[#allocation24 + $0x120] sm:$0xff]
    %v9903 = vld [vmem:[#allocation24 + $0x128] sm:$0xff]
    %v9904 = vld [vmem:[#allocation24 + $0x130] sm:$0xff]
    %v9905 = vld [vmem:[#allocation24 + $0x138] sm:$0xff]
    %v9906 = vld [vmem:[#allocation24 + $0x140] sm:$0xff]
    %v9907 = vld [vmem:[#allocation24 + $0x148] sm:$0xff]
    %v9908 = vld [vmem:[#allocation24 + $0x150] sm:$0xff]
    %v9909 = vld [vmem:[#allocation24 + $0x158] sm:$0xff]
    %v9910 = vld [vmem:[#allocation24 + $0x160] sm:$0xff]
    %v9911 = vld [vmem:[#allocation24 + $0x168] sm:$0xff]
    %v9912 = vld [vmem:[#allocation24 + $0x170] sm:$0xff]
    %v9913 = vld [vmem:[#allocation24 + $0x178] sm:$0xff]
    %v9914 = vld [vmem:[#allocation24 + $0x180] sm:$0xff]
    %v9915 = vld [vmem:[#allocation24 + $0x188] sm:$0xff]
    %v9916 = vld [vmem:[#allocation24 + $0x190] sm:$0xff]
    %v9917 = vld [vmem:[#allocation24 + $0x198] sm:$0xff]
    %v9918 = vld [vmem:[#allocation24 + $0x1a0] sm:$0xff]
    %v9919 = vld [vmem:[#allocation24 + $0x1a8] sm:$0xff]
    %v9920 = vld [vmem:[#allocation24 + $0x1b0] sm:$0xff]
    %v9921 = vld [vmem:[#allocation24 + $0x1b8] sm:$0xff]
    %v9922 = vld [vmem:[#allocation24 + $0x1c0] sm:$0xff]
    %v9923 = vld [vmem:[#allocation24 + $0x1c8] sm:$0xff]
    %v9924 = vld [vmem:[#allocation24 + $0x1d0] sm:$0xff]
    %v9925 = vld [vmem:[#allocation24 + $0x1d8] sm:$0xff]
    %v9926 = vld [vmem:[#allocation24 + $0x1e0] sm:$0xff]
    %v9927 = vld [vmem:[#allocation24 + $0x1e8] sm:$0xff]
    %v9928 = vld [vmem:[#allocation24 + $0x1f0] sm:$0xff]
    %v9929 = vld [vmem:[#allocation24 + $0x1f8] sm:$0xff]
    %v9930 = vld [vmem:[#allocation24 + $0x200] sm:$0xff]
    %v9931 = vld [vmem:[#allocation24 + $0x208] sm:$0xff]
    %v9932 = vld [vmem:[#allocation24 + $0x210] sm:$0xff]
    %v9933 = vld [vmem:[#allocation24 + $0x218] sm:$0xff]
    %v9934 = vld [vmem:[#allocation24 + $0x220] sm:$0xff]
    %v9935 = vld [vmem:[#allocation24 + $0x228] sm:$0xff]
    %v9936 = vld [vmem:[#allocation24 + $0x230] sm:$0xff]
    %v9937 = vld [vmem:[#allocation24 + $0x238] sm:$0xff]
    %v9938 = vld [vmem:[#allocation24 + $0x240] sm:$0xff]
    %v9939 = vld [vmem:[#allocation24 + $0x248] sm:$0xff]
    %v9940 = vld [vmem:[#allocation24 + $0x250] sm:$0xff]
    %v9941 = vld [vmem:[#allocation24 + $0x258] sm:$0xff]
    %v9942 = vld [vmem:[#allocation24 + $0x260] sm:$0xff]
    %v9943 = vld [vmem:[#allocation24 + $0x268] sm:$0xff]
    %v9944 = vld [vmem:[#allocation24 + $0x270] sm:$0xff]
    %v9945 = vld [vmem:[#allocation24 + $0x278] sm:$0xff]
    %v9946 = vld [vmem:[#allocation24 + $0x280] sm:$0xff]
    %v9947 = vld [vmem:[#allocation24 + $0x288] sm:$0xff]
    %v9948 = vld [vmem:[#allocation24 + $0x290] sm:$0xff]
    %v9949 = vld [vmem:[#allocation24 + $0x298] sm:$0xff]
    %v9950 = vld [vmem:[#allocation24 + $0x2a0] sm:$0xff]
    %v9951 = vld [vmem:[#allocation24 + $0x2a8] sm:$0xff]
    %v9952 = vld [vmem:[#allocation24 + $0x2b0] sm:$0xff]
    %v9953 = vld [vmem:[#allocation24 + $0x2b8] sm:$0xff]
    %v9954 = vld [vmem:[#allocation24 + $0x2c0] sm:$0xff]
    %v9955 = vld [vmem:[#allocation24 + $0x2c8] sm:$0xff]
    %v9956 = vld [vmem:[#allocation24 + $0x2d0] sm:$0xff]
    %v9957 = vld [vmem:[#allocation24 + $0x2d8] sm:$0xff]
    %v9958 = vld [vmem:[#allocation24 + $0x2e0] sm:$0xff]
    %v9959 = vld [vmem:[#allocation24 + $0x2e8] sm:$0xff]
    %v9960 = vld [vmem:[#allocation24 + $0x2f0] sm:$0xff]
    %v9961 = vld [vmem:[#allocation24 + $0x2f8] sm:$0xff]
    %v9962 = vld [vmem:[#allocation24 + $0x300] sm:$0xff]
    %v9963 = vld [vmem:[#allocation24 + $0x308] sm:$0xff]
    %v9964 = vld [vmem:[#allocation24 + $0x310] sm:$0xff]
    %v9965 = vld [vmem:[#allocation24 + $0x318] sm:$0xff]
    %v9966 = vld [vmem:[#allocation24 + $0x320] sm:$0xff]
    %v9967 = vld [vmem:[#allocation24 + $0x328] sm:$0xff]
    %v9968 = vld [vmem:[#allocation24 + $0x330] sm:$0xff]
    %v9969 = vld [vmem:[#allocation24 + $0x338] sm:$0xff]
    %v9970 = vld [vmem:[#allocation24 + $0x340] sm:$0xff]
    %v9971 = vld [vmem:[#allocation24 + $0x348] sm:$0xff]
    %v9972 = vld [vmem:[#allocation24 + $0x350] sm:$0xff]
    %v9973 = vld [vmem:[#allocation24 + $0x358] sm:$0xff]
    %v9974 = vld [vmem:[#allocation24 + $0x360] sm:$0xff]
    %v9975 = vld [vmem:[#allocation24 + $0x368] sm:$0xff]
    %v9976 = vld [vmem:[#allocation24 + $0x370] sm:$0xff]
    %v9977 = vld [vmem:[#allocation24 + $0x378] sm:$0xff]
    %v9978 = vld [vmem:[#allocation24 + $0x380] sm:$0xff]
    %v9979 = vld [vmem:[#allocation24 + $0x388] sm:$0xff]
    %v9980 = vld [vmem:[#allocation24 + $0x390] sm:$0xff]
    %v9981 = vld [vmem:[#allocation24 + $0x398] sm:$0xff]
    %v9982 = vld [vmem:[#allocation24 + $0x3a0] sm:$0xff]
    %v9983 = vld [vmem:[#allocation24 + $0x3a8] sm:$0xff]
    %v9984 = vld [vmem:[#allocation24 + $0x3b0] sm:$0xff]
    %v9985 = vld [vmem:[#allocation24 + $0x3b8] sm:$0xff]
    %v9986 = vld [vmem:[#allocation24 + $0x3c0] sm:$0xff]
    %v9987 = vld [vmem:[#allocation24 + $0x3c8] sm:$0xff]
    %v9988 = vld [vmem:[#allocation24 + $0x3d0] sm:$0xff]
    %v9989 = vld [vmem:[#allocation24 + $0x3d8] sm:$0xff]
    %v9990 = vld [vmem:[#allocation24 + $0x3e0] sm:$0xff]
    %v9991 = vld [vmem:[#allocation24 + $0x3e8] sm:$0xff]
    %v9992 = vld [vmem:[#allocation24 + $0x3f0] sm:$0xff]
    %v9993 = vld [vmem:[#allocation24 + $0x3f8] sm:$0xff]
    %v9994 = vld [vmem:[#allocation24 + $0x400] sm:$0xff]
    %v9995 = vld [vmem:[#allocation24 + $0x408] sm:$0xff]
    %v9996 = vld [vmem:[#allocation24 + $0x410] sm:$0xff]
    %v9997 = vld [vmem:[#allocation24 + $0x418] sm:$0xff]
    %v9998 = vld [vmem:[#allocation24 + $0x420] sm:$0xff]
    %v9999 = vld [vmem:[#allocation24 + $0x428] sm:$0xff]
    %v10000 = vld [vmem:[#allocation24 + $0x430] sm:$0xff]
    %v10001 = vld [vmem:[#allocation24 + $0x438] sm:$0xff]
    %v10002 = vld [vmem:[#allocation24 + $0x440] sm:$0xff]
    %v10003 = vld [vmem:[#allocation24 + $0x448] sm:$0xff]
    %v10004 = vld [vmem:[#allocation24 + $0x450] sm:$0xff]
    %v10005 = vld [vmem:[#allocation24 + $0x458] sm:$0xff]
    %v10006 = vld [vmem:[#allocation24 + $0x460] sm:$0xff]
    %v10007 = vld [vmem:[#allocation24 + $0x468] sm:$0xff]
    %v10008 = vld [vmem:[#allocation24 + $0x470] sm:$0xff]
    %v10009 = vld [vmem:[#allocation24 + $0x478] sm:$0xff]
    %v10010 = vld [vmem:[#allocation24 + $0x480] sm:$0xff]
    %v10011 = vld [vmem:[#allocation24 + $0x488] sm:$0xff]
    %v10012 = vld [vmem:[#allocation24 + $0x490] sm:$0xff]
    %v10013 = vld [vmem:[#allocation24 + $0x498] sm:$0xff]
    %v10014 = vld [vmem:[#allocation24 + $0x4a0] sm:$0xff]
    %v10015 = vld [vmem:[#allocation24 + $0x4a8] sm:$0xff]
    %v10016 = vld [vmem:[#allocation24 + $0x4b0] sm:$0xff]
    %v10017 = vld [vmem:[#allocation24 + $0x4b8] sm:$0xff]
    %v10018 = vld [vmem:[#allocation24 + $0x4c0] sm:$0xff]
    %v10019 = vld [vmem:[#allocation24 + $0x4c8] sm:$0xff]
    %v10020 = vld [vmem:[#allocation24 + $0x4d0] sm:$0xff]
    %v10021 = vld [vmem:[#allocation24 + $0x4d8] sm:$0xff]
    %v10022 = vld [vmem:[#allocation24 + $0x4e0] sm:$0xff]
    %v10023 = vld [vmem:[#allocation24 + $0x4e8] sm:$0xff]
    %v10024 = vld [vmem:[#allocation24 + $0x4f0] sm:$0xff]
    %v10025 = vld [vmem:[#allocation24 + $0x4f8] sm:$0xff]
    %v10026 = vld [vmem:[#allocation24 + $0x500] sm:$0xff]
    %v10027 = vld [vmem:[#allocation24 + $0x508] sm:$0xff]
    %v10028 = vld [vmem:[#allocation24 + $0x510] sm:$0xff]
    %v10029 = vld [vmem:[#allocation24 + $0x518] sm:$0xff]
    %v10030 = vld [vmem:[#allocation24 + $0x520] sm:$0xff]
    %v10031 = vld [vmem:[#allocation24 + $0x528] sm:$0xff]
    %v10032 = vld [vmem:[#allocation24 + $0x530] sm:$0xff]
    %v10033 = vld [vmem:[#allocation24 + $0x538] sm:$0xff]
    %v10034 = vld [vmem:[#allocation24 + $0x540] sm:$0xff]
    %v10035 = vld [vmem:[#allocation24 + $0x548] sm:$0xff]
    %v10036 = vld [vmem:[#allocation24 + $0x550] sm:$0xff]
    %v10037 = vld [vmem:[#allocation24 + $0x558] sm:$0xff]
    %v10038 = vld [vmem:[#allocation24 + $0x560] sm:$0xff]
    %v10039 = vld [vmem:[#allocation24 + $0x568] sm:$0xff]
    %v10040 = vld [vmem:[#allocation24 + $0x570] sm:$0xff]
    %v10041 = vld [vmem:[#allocation24 + $0x578] sm:$0xff]
    %v10042 = vld [vmem:[#allocation24 + $0x580] sm:$0xff]
    %v10043 = vld [vmem:[#allocation24 + $0x588] sm:$0xff]
    %v10044 = vld [vmem:[#allocation24 + $0x590] sm:$0xff]
    %v10045 = vld [vmem:[#allocation24 + $0x598] sm:$0xff]
    %v10046 = vld [vmem:[#allocation24 + $0x5a0] sm:$0xff]
    %v10047 = vld [vmem:[#allocation24 + $0x5a8] sm:$0xff]
    %v10048 = vld [vmem:[#allocation24 + $0x5b0] sm:$0xff]
    %v10049 = vld [vmem:[#allocation24 + $0x5b8] sm:$0xff]
    %v10050 = vld [vmem:[#allocation24 + $0x5c0] sm:$0xff]
    %v10051 = vld [vmem:[#allocation24 + $0x5c8] sm:$0xff]
    %v10052 = vld [vmem:[#allocation24 + $0x5d0] sm:$0xff]
    %v10053 = vld [vmem:[#allocation24 + $0x5d8] sm:$0xff]
    %v10054 = vld [vmem:[#allocation24 + $0x5e0] sm:$0xff]
    %v10055 = vld [vmem:[#allocation24 + $0x5e8] sm:$0xff]
    %v10056 = vld [vmem:[#allocation24 + $0x5f0] sm:$0xff]
    %v10057 = vld [vmem:[#allocation24 + $0x5f8] sm:$0xff]
    %v10058 = vld [vmem:[#allocation24 + $0x600] sm:$0xff]
    %v10059 = vld [vmem:[#allocation24 + $0x608] sm:$0xff]
    %v10060 = vld [vmem:[#allocation24 + $0x610] sm:$0xff]
    %v10061 = vld [vmem:[#allocation24 + $0x618] sm:$0xff]
    %v10062 = vld [vmem:[#allocation24 + $0x620] sm:$0xff]
    %v10063 = vld [vmem:[#allocation24 + $0x628] sm:$0xff]
    %v10064 = vld [vmem:[#allocation24 + $0x630] sm:$0xff]
    %v10065 = vld [vmem:[#allocation24 + $0x638] sm:$0xff]
    %v10066 = vld [vmem:[#allocation24 + $0x640] sm:$0xff]
    %v10067 = vld [vmem:[#allocation24 + $0x648] sm:$0xff]
    %v10068 = vld [vmem:[#allocation24 + $0x650] sm:$0xff]
    %v10069 = vld [vmem:[#allocation24 + $0x658] sm:$0xff]
    %v10070 = vld [vmem:[#allocation24 + $0x660] sm:$0xff]
    %v10071 = vld [vmem:[#allocation24 + $0x668] sm:$0xff]
    %v10072 = vld [vmem:[#allocation24 + $0x670] sm:$0xff]
    %v10073 = vld [vmem:[#allocation24 + $0x678] sm:$0xff]
    %v10074 = vld [vmem:[#allocation24 + $0x680] sm:$0xff]
    %v10075 = vld [vmem:[#allocation24 + $0x688] sm:$0xff]
    %v10076 = vld [vmem:[#allocation24 + $0x690] sm:$0xff]
    %v10077 = vld [vmem:[#allocation24 + $0x698] sm:$0xff]
    %v10078 = vld [vmem:[#allocation24 + $0x6a0] sm:$0xff]
    %v10079 = vld [vmem:[#allocation24 + $0x6a8] sm:$0xff]
    %v10080 = vld [vmem:[#allocation24 + $0x6b0] sm:$0xff]
    %v10081 = vld [vmem:[#allocation24 + $0x6b8] sm:$0xff]
    %v10082 = vld [vmem:[#allocation24 + $0x6c0] sm:$0xff]
    %v10083 = vld [vmem:[#allocation24 + $0x6c8] sm:$0xff]
    %v10084 = vld [vmem:[#allocation24 + $0x6d0] sm:$0xff]
    %v10085 = vld [vmem:[#allocation24 + $0x6d8] sm:$0xff]
    %v10086 = vld [vmem:[#allocation24 + $0x6e0] sm:$0xff]
    %v10087 = vld [vmem:[#allocation24 + $0x6e8] sm:$0xff]
    %v10088 = vld [vmem:[#allocation24 + $0x6f0] sm:$0xff]
    %v10089 = vld [vmem:[#allocation24 + $0x6f8] sm:$0xff]
    %v10090 = vld [vmem:[#allocation24 + $0x700] sm:$0xff]
    %v10091 = vld [vmem:[#allocation24 + $0x708] sm:$0xff]
    %v10092 = vld [vmem:[#allocation24 + $0x710] sm:$0xff]
    %v10093 = vld [vmem:[#allocation24 + $0x718] sm:$0xff]
    %v10094 = vld [vmem:[#allocation24 + $0x720] sm:$0xff]
    %v10095 = vld [vmem:[#allocation24 + $0x728] sm:$0xff]
    %v10096 = vld [vmem:[#allocation24 + $0x730] sm:$0xff]
    %v10097 = vld [vmem:[#allocation24 + $0x738] sm:$0xff]
    %v10098 = vld [vmem:[#allocation24 + $0x740] sm:$0xff]
    %v10099 = vld [vmem:[#allocation24 + $0x748] sm:$0xff]
    %v10100 = vld [vmem:[#allocation24 + $0x750] sm:$0xff]
    %v10101 = vld [vmem:[#allocation24 + $0x758] sm:$0xff]
    %v10102 = vld [vmem:[#allocation24 + $0x760] sm:$0xff]
    %v10103 = vld [vmem:[#allocation24 + $0x768] sm:$0xff]
    %v10104 = vld [vmem:[#allocation24 + $0x770] sm:$0xff]
    %v10105 = vld [vmem:[#allocation24 + $0x778] sm:$0xff]
    %v10106 = vld [vmem:[#allocation24 + $0x780] sm:$0xff]
    %v10107 = vld [vmem:[#allocation24 + $0x788] sm:$0xff]
    %v10108 = vld [vmem:[#allocation24 + $0x790] sm:$0xff]
    %v10109 = vld [vmem:[#allocation24 + $0x798] sm:$0xff]
    %v10110 = vld [vmem:[#allocation24 + $0x7a0] sm:$0xff]
    %v10111 = vld [vmem:[#allocation24 + $0x7a8] sm:$0xff]
    %v10112 = vld [vmem:[#allocation24 + $0x7b0] sm:$0xff]
    %v10113 = vld [vmem:[#allocation24 + $0x7b8] sm:$0xff]
    %v10114 = vld [vmem:[#allocation24 + $0x7c0] sm:$0xff]
    %v10115 = vld [vmem:[#allocation24 + $0x7c8] sm:$0xff]
    %v10116 = vld [vmem:[#allocation24 + $0x7d0] sm:$0xff]
    %v10117 = vld [vmem:[#allocation24 + $0x7d8] sm:$0xff]
    %v10118 = vld [vmem:[#allocation24 + $0x7e0] sm:$0xff]
    %v10119 = vld [vmem:[#allocation24 + $0x7e8] sm:$0xff]
    %v10120 = vld [vmem:[#allocation24 + $0x7f0] sm:$0xff]
    %v10121 = vld [vmem:[#allocation24 + $0x7f8] sm:$0xff]
    %v10122 = vld [vmem:[#allocation24 + $0x800] sm:$0xff]
    %v10123 = vld [vmem:[#allocation24 + $0x808] sm:$0xff]
    %v10124 = vld [vmem:[#allocation24 + $0x810] sm:$0xff]
    %v10125 = vld [vmem:[#allocation24 + $0x818] sm:$0xff]
    %v10126 = vld [vmem:[#allocation24 + $0x820] sm:$0xff]
    %v10127 = vld [vmem:[#allocation24 + $0x828] sm:$0xff]
    %v10128 = vld [vmem:[#allocation24 + $0x830] sm:$0xff]
    %v10129 = vld [vmem:[#allocation24 + $0x838] sm:$0xff]
    %v10130 = vld [vmem:[#allocation24 + $0x840] sm:$0xff]
    %v10131 = vld [vmem:[#allocation24 + $0x848] sm:$0xff]
    %v10132 = vld [vmem:[#allocation24 + $0x850] sm:$0xff]
    %v10133 = vld [vmem:[#allocation24 + $0x858] sm:$0xff]
    %v10134 = vld [vmem:[#allocation24 + $0x860] sm:$0xff]
    %v10135 = vld [vmem:[#allocation24 + $0x868] sm:$0xff]
    %v10136 = vld [vmem:[#allocation24 + $0x870] sm:$0xff]
    %v10137 = vld [vmem:[#allocation24 + $0x878] sm:$0xff]
    %v10138 = vld [vmem:[#allocation24 + $0x880] sm:$0xff]
    %v10139 = vld [vmem:[#allocation24 + $0x888] sm:$0xff]
    %v10140 = vld [vmem:[#allocation24 + $0x890] sm:$0xff]
    %v10141 = vld [vmem:[#allocation24 + $0x898] sm:$0xff]
    %v10142 = vld [vmem:[#allocation24 + $0x8a0] sm:$0xff]
    %v10143 = vld [vmem:[#allocation24 + $0x8a8] sm:$0xff]
    %v10144 = vld [vmem:[#allocation24 + $0x8b0] sm:$0xff]
    %v10145 = vld [vmem:[#allocation24 + $0x8b8] sm:$0xff]
    %v10146 = vld [vmem:[#allocation24 + $0x8c0] sm:$0xff]
    %v10147 = vld [vmem:[#allocation24 + $0x8c8] sm:$0xff]
    %v10148 = vld [vmem:[#allocation24 + $0x8d0] sm:$0xff]
    %v10149 = vld [vmem:[#allocation24 + $0x8d8] sm:$0xff]
    %v10150 = vld [vmem:[#allocation24 + $0x8e0] sm:$0xff]
    %v10151 = vld [vmem:[#allocation24 + $0x8e8] sm:$0xff]
    %v10152 = vld [vmem:[#allocation24 + $0x8f0] sm:$0xff]
    %v10153 = vld [vmem:[#allocation24 + $0x8f8] sm:$0xff]
    %v10154 = vld [vmem:[#allocation24 + $0x900] sm:$0xff]
    %v10155 = vld [vmem:[#allocation24 + $0x908] sm:$0xff]
    %v10156 = vld [vmem:[#allocation24 + $0x910] sm:$0xff]
    %v10157 = vld [vmem:[#allocation24 + $0x918] sm:$0xff]
    %v10158 = vld [vmem:[#allocation24 + $0x920] sm:$0xff]
    %v10159 = vld [vmem:[#allocation24 + $0x928] sm:$0xff]
    %v10160 = vld [vmem:[#allocation24 + $0x930] sm:$0xff]
    %v10161 = vld [vmem:[#allocation24 + $0x938] sm:$0xff]
    %v10162 = vld [vmem:[#allocation24 + $0x940] sm:$0xff]
    %v10163 = vld [vmem:[#allocation24 + $0x948] sm:$0xff]
    %v10164 = vld [vmem:[#allocation24 + $0x950] sm:$0xff]
    %v10165 = vld [vmem:[#allocation24 + $0x958] sm:$0xff]
    %v10166 = vld [vmem:[#allocation24 + $0x960] sm:$0xff]
    %v10167 = vld [vmem:[#allocation24 + $0x968] sm:$0xff]
    %v10168 = vld [vmem:[#allocation24 + $0x970] sm:$0xff]
    %v10169 = vld [vmem:[#allocation24 + $0x978] sm:$0xff]
    %v10170 = vld [vmem:[#allocation24 + $0x980] sm:$0xff]
    %v10171 = vld [vmem:[#allocation24 + $0x988] sm:$0xff]
    %v10172 = vld [vmem:[#allocation24 + $0x990] sm:$0xff]
    %v10173 = vld [vmem:[#allocation24 + $0x998] sm:$0xff]
    %v10174 = vld [vmem:[#allocation24 + $0x9a0] sm:$0xff]
    %v10175 = vld [vmem:[#allocation24 + $0x9a8] sm:$0xff]
    %v10176 = vld [vmem:[#allocation24 + $0x9b0] sm:$0xff]
    %v10177 = vld [vmem:[#allocation24 + $0x9b8] sm:$0xff]
    %v10178 = vld [vmem:[#allocation24 + $0x9c0] sm:$0xff]
    %v10179 = vld [vmem:[#allocation24 + $0x9c8] sm:$0xff]
    %v10180 = vld [vmem:[#allocation24 + $0x9d0] sm:$0xff]
    %v10181 = vld [vmem:[#allocation24 + $0x9d8] sm:$0xff]
    %v10182 = vld [vmem:[#allocation24 + $0x9e0] sm:$0xff]
    %v10183 = vld [vmem:[#allocation24 + $0x9e8] sm:$0xff]
    %v10184 = vld [vmem:[#allocation24 + $0x9f0] sm:$0xff]
    %v10185 = vld [vmem:[#allocation24 + $0x9f8] sm:$0xff]
    %v10186 = vld [vmem:[#allocation24 + $0xa00] sm:$0xff]
    %v10187 = vld [vmem:[#allocation24 + $0xa08] sm:$0xff]
    %v10188 = vld [vmem:[#allocation24 + $0xa10] sm:$0xff]
    %v10189 = vld [vmem:[#allocation24 + $0xa18] sm:$0xff]
    %v10190 = vld [vmem:[#allocation24 + $0xa20] sm:$0xff]
    %v10191 = vld [vmem:[#allocation24 + $0xa28] sm:$0xff]
    %v10192 = vld [vmem:[#allocation24 + $0xa30] sm:$0xff]
    %v10193 = vld [vmem:[#allocation24 + $0xa38] sm:$0xff]
    %v10194 = vld [vmem:[#allocation24 + $0xa40] sm:$0xff]
    %v10195 = vld [vmem:[#allocation24 + $0xa48] sm:$0xff]
    %v10196 = vld [vmem:[#allocation24 + $0xa50] sm:$0xff]
    %v10197 = vld [vmem:[#allocation24 + $0xa58] sm:$0xff]
    %v10198 = vld [vmem:[#allocation24 + $0xa60] sm:$0xff]
    %v10199 = vld [vmem:[#allocation24 + $0xa68] sm:$0xff]
    %v10200 = vld [vmem:[#allocation24 + $0xa70] sm:$0xff]
    %v10201 = vld [vmem:[#allocation24 + $0xa78] sm:$0xff]
    %v10202 = vld [vmem:[#allocation24 + $0xa80] sm:$0xff]
    %v10203 = vld [vmem:[#allocation24 + $0xa88] sm:$0xff]
    %v10204 = vld [vmem:[#allocation24 + $0xa90] sm:$0xff]
    %v10205 = vld [vmem:[#allocation24 + $0xa98] sm:$0xff]
    %v10206 = vld [vmem:[#allocation24 + $0xaa0] sm:$0xff]
    %v10207 = vld [vmem:[#allocation24 + $0xaa8] sm:$0xff]
    %v10208 = vld [vmem:[#allocation24 + $0xab0] sm:$0xff]
    %v10209 = vld [vmem:[#allocation24 + $0xab8] sm:$0xff]
    %v10210 = vld [vmem:[#allocation24 + $0xac0] sm:$0xff]
    %v10211 = vld [vmem:[#allocation24 + $0xac8] sm:$0xff]
    %v10212 = vld [vmem:[#allocation24 + $0xad0] sm:$0xff]
    %v10213 = vld [vmem:[#allocation24 + $0xad8] sm:$0xff]
    %v10214 = vld [vmem:[#allocation24 + $0xae0] sm:$0xff]
    %v10215 = vld [vmem:[#allocation24 + $0xae8] sm:$0xff]
    %v10216 = vld [vmem:[#allocation24 + $0xaf0] sm:$0xff]
    %v10217 = vld [vmem:[#allocation24 + $0xaf8] sm:$0xff]
    %v10218 = vld [vmem:[#allocation24 + $0xb00] sm:$0xff]
    %v10219 = vld [vmem:[#allocation24 + $0xb08] sm:$0xff]
    %v10220 = vld [vmem:[#allocation24 + $0xb10] sm:$0xff]
    %v10221 = vld [vmem:[#allocation24 + $0xb18] sm:$0xff]
    %v10222 = vld [vmem:[#allocation24 + $0xb20] sm:$0xff]
    %v10223 = vld [vmem:[#allocation24 + $0xb28] sm:$0xff]
    %v10224 = vld [vmem:[#allocation24 + $0xb30] sm:$0xff]
    %v10225 = vld [vmem:[#allocation24 + $0xb38] sm:$0xff]
    %v10226 = vld [vmem:[#allocation24 + $0xb40] sm:$0xff]
    %v10227 = vld [vmem:[#allocation24 + $0xb48] sm:$0xff]
    %v10228 = vld [vmem:[#allocation24 + $0xb50] sm:$0xff]
    %v10229 = vld [vmem:[#allocation24 + $0xb58] sm:$0xff]
    %v10230 = vld [vmem:[#allocation24 + $0xb60] sm:$0xff]
    %v10231 = vld [vmem:[#allocation24 + $0xb68] sm:$0xff]
    %v10232 = vld [vmem:[#allocation24 + $0xb70] sm:$0xff]
    %v10233 = vld [vmem:[#allocation24 + $0xb78] sm:$0xff]
    %v10234 = vld [vmem:[#allocation24 + $0xb80] sm:$0xff]
    %v10235 = vld [vmem:[#allocation24 + $0xb88] sm:$0xff]
    %v10236 = vld [vmem:[#allocation24 + $0xb90] sm:$0xff]
    %v10237 = vld [vmem:[#allocation24 + $0xb98] sm:$0xff]
    %v10238 = vld [vmem:[#allocation24 + $0xba0] sm:$0xff]
    %v10239 = vld [vmem:[#allocation24 + $0xba8] sm:$0xff]
    %v10240 = vld [vmem:[#allocation24 + $0xbb0] sm:$0xff]
    %v10241 = vld [vmem:[#allocation24 + $0xbb8] sm:$0xff]
    %v10242 = vld [vmem:[#allocation24 + $0xbc0] sm:$0xff]
    %v10243 = vld [vmem:[#allocation24 + $0xbc8] sm:$0xff]
    %v10244 = vld [vmem:[#allocation24 + $0xbd0] sm:$0xff]
    %v10245 = vld [vmem:[#allocation24 + $0xbd8] sm:$0xff]
    %v10246 = vld [vmem:[#allocation24 + $0xbe0] sm:$0xff]
    %v10247 = vld [vmem:[#allocation24 + $0xbe8] sm:$0xff]
    %v10248 = vld [vmem:[#allocation24 + $0xbf0] sm:$0xff]
    %v10249 = vld [vmem:[#allocation24 + $0xbf8] sm:$0xff]
    %v10250 = vld [vmem:[#allocation24 + $0xc00] sm:$0xff]
    %v10251 = vld [vmem:[#allocation24 + $0xc08] sm:$0xff]
    %v10252 = vld [vmem:[#allocation24 + $0xc10] sm:$0xff]
    %v10253 = vld [vmem:[#allocation24 + $0xc18] sm:$0xff]
    %v10254 = vld [vmem:[#allocation24 + $0xc20] sm:$0xff]
    %v10255 = vld [vmem:[#allocation24 + $0xc28] sm:$0xff]
    %v10256 = vld [vmem:[#allocation24 + $0xc30] sm:$0xff]
    %v10257 = vld [vmem:[#allocation24 + $0xc38] sm:$0xff]
    %v10258 = vld [vmem:[#allocation24 + $0xc40] sm:$0xff]
    %v10259 = vld [vmem:[#allocation24 + $0xc48] sm:$0xff]
    %v10260 = vld [vmem:[#allocation24 + $0xc50] sm:$0xff]
    %v10261 = vld [vmem:[#allocation24 + $0xc58] sm:$0xff]
    %v10262 = vld [vmem:[#allocation24 + $0xc60] sm:$0xff]
    %v10263 = vld [vmem:[#allocation24 + $0xc68] sm:$0xff]
    %v10264 = vld [vmem:[#allocation24 + $0xc70] sm:$0xff]
    %v10265 = vld [vmem:[#allocation24 + $0xc78] sm:$0xff]
    %v10266 = vld [vmem:[#allocation24 + $0xc80] sm:$0xff]
    %v10267 = vld [vmem:[#allocation24 + $0xc88] sm:$0xff]
    %v10268 = vld [vmem:[#allocation24 + $0xc90] sm:$0xff]
    %v10269 = vld [vmem:[#allocation24 + $0xc98] sm:$0xff]
    %v10270 = vld [vmem:[#allocation24 + $0xca0] sm:$0xff]
    %v10271 = vld [vmem:[#allocation24 + $0xca8] sm:$0xff]
    %v10272 = vld [vmem:[#allocation24 + $0xcb0] sm:$0xff]
    %v10273 = vld [vmem:[#allocation24 + $0xcb8] sm:$0xff]
    %v10274 = vld [vmem:[#allocation24 + $0xcc0] sm:$0xff]
    %v10275 = vld [vmem:[#allocation24 + $0xcc8] sm:$0xff]
    %v10276 = vld [vmem:[#allocation24 + $0xcd0] sm:$0xff]
    %v10277 = vld [vmem:[#allocation24 + $0xcd8] sm:$0xff]
    %v10278 = vld [vmem:[#allocation24 + $0xce0] sm:$0xff]
    %v10279 = vld [vmem:[#allocation24 + $0xce8] sm:$0xff]
    %v10280 = vld [vmem:[#allocation24 + $0xcf0] sm:$0xff]
    %v10281 = vld [vmem:[#allocation24 + $0xcf8] sm:$0xff]
    %v10282 = vld [vmem:[#allocation24 + $0xd00] sm:$0xff]
    %v10283 = vld [vmem:[#allocation24 + $0xd08] sm:$0xff]
    %v10284 = vld [vmem:[#allocation24 + $0xd10] sm:$0xff]
    %v10285 = vld [vmem:[#allocation24 + $0xd18] sm:$0xff]
    %v10286 = vld [vmem:[#allocation24 + $0xd20] sm:$0xff]
    %v10287 = vld [vmem:[#allocation24 + $0xd28] sm:$0xff]
    %v10288 = vld [vmem:[#allocation24 + $0xd30] sm:$0xff]
    %v10289 = vld [vmem:[#allocation24 + $0xd38] sm:$0xff]
    %v10290 = vld [vmem:[#allocation24 + $0xd40] sm:$0xff]
    %v10291 = vld [vmem:[#allocation24 + $0xd48] sm:$0xff]
    %v10292 = vld [vmem:[#allocation24 + $0xd50] sm:$0xff]
    %v10293 = vld [vmem:[#allocation24 + $0xd58] sm:$0xff]
    %v10294 = vld [vmem:[#allocation24 + $0xd60] sm:$0xff]
    %v10295 = vld [vmem:[#allocation24 + $0xd68] sm:$0xff]
    %v10296 = vld [vmem:[#allocation24 + $0xd70] sm:$0xff]
    %v10297 = vld [vmem:[#allocation24 + $0xd78] sm:$0xff]
    %v10298 = vld [vmem:[#allocation24 + $0xd80] sm:$0xff]
    %v10299 = vld [vmem:[#allocation24 + $0xd88] sm:$0xff]
    %v10300 = vld [vmem:[#allocation24 + $0xd90] sm:$0xff]
    %v10301 = vld [vmem:[#allocation24 + $0xd98] sm:$0xff]
    %v10302 = vld [vmem:[#allocation24 + $0xda0] sm:$0xff]
    %v10303 = vld [vmem:[#allocation24 + $0xda8] sm:$0xff]
    %v10304 = vld [vmem:[#allocation24 + $0xdb0] sm:$0xff]
    %v10305 = vld [vmem:[#allocation24 + $0xdb8] sm:$0xff]
    %v10306 = vld [vmem:[#allocation24 + $0xdc0] sm:$0xff]
    %v10307 = vld [vmem:[#allocation24 + $0xdc8] sm:$0xff]
    %v10308 = vld [vmem:[#allocation24 + $0xdd0] sm:$0xff]
    %v10309 = vld [vmem:[#allocation24 + $0xdd8] sm:$0xff]
    %v10310 = vld [vmem:[#allocation24 + $0xde0] sm:$0xff]
    %v10311 = vld [vmem:[#allocation24 + $0xde8] sm:$0xff]
    %v10312 = vld [vmem:[#allocation24 + $0xdf0] sm:$0xff]
    %v10313 = vld [vmem:[#allocation24 + $0xdf8] sm:$0xff]
    %v10314 = vld [vmem:[#allocation24 + $0xe00] sm:$0xff]
    %v10315 = vld [vmem:[#allocation24 + $0xe08] sm:$0xff]
    %v10316 = vld [vmem:[#allocation24 + $0xe10] sm:$0xff]
    %v10317 = vld [vmem:[#allocation24 + $0xe18] sm:$0xff]
    %v10318 = vld [vmem:[#allocation24 + $0xe20] sm:$0xff]
    %v10319 = vld [vmem:[#allocation24 + $0xe28] sm:$0xff]
    %v10320 = vld [vmem:[#allocation24 + $0xe30] sm:$0xff]
    %v10321 = vld [vmem:[#allocation24 + $0xe38] sm:$0xff]
    %v10322 = vld [vmem:[#allocation24 + $0xe40] sm:$0xff]
    %v10323 = vld [vmem:[#allocation24 + $0xe48] sm:$0xff]
    %v10324 = vld [vmem:[#allocation24 + $0xe50] sm:$0xff]
    %v10325 = vld [vmem:[#allocation24 + $0xe58] sm:$0xff]
    %v10326 = vld [vmem:[#allocation24 + $0xe60] sm:$0xff]
    %v10327 = vld [vmem:[#allocation24 + $0xe68] sm:$0xff]
    %v10328 = vld [vmem:[#allocation24 + $0xe70] sm:$0xff]
    %v10329 = vld [vmem:[#allocation24 + $0xe78] sm:$0xff]
    %v10330 = vld [vmem:[#allocation24 + $0xe80] sm:$0xff]
    %v10331 = vld [vmem:[#allocation24 + $0xe88] sm:$0xff]
    %v10332 = vld [vmem:[#allocation24 + $0xe90] sm:$0xff]
    %v10333 = vld [vmem:[#allocation24 + $0xe98] sm:$0xff]
    %v10334 = vld [vmem:[#allocation24 + $0xea0] sm:$0xff]
    %v10335 = vld [vmem:[#allocation24 + $0xea8] sm:$0xff]
    %v10336 = vld [vmem:[#allocation24 + $0xeb0] sm:$0xff]
    %v10337 = vld [vmem:[#allocation24 + $0xeb8] sm:$0xff]
    %v10338 = vld [vmem:[#allocation24 + $0xec0] sm:$0xff]
    %v10339 = vld [vmem:[#allocation24 + $0xec8] sm:$0xff]
    %v10340 = vld [vmem:[#allocation24 + $0xed0] sm:$0xff]
    %v10341 = vld [vmem:[#allocation24 + $0xed8] sm:$0xff]
    %v10342 = vld [vmem:[#allocation24 + $0xee0] sm:$0xff]
    %v10343 = vld [vmem:[#allocation24 + $0xee8] sm:$0xff]
    %v10344 = vld [vmem:[#allocation24 + $0xef0] sm:$0xff]
    %v10345 = vld [vmem:[#allocation24 + $0xef8] sm:$0xff]
    %v10346 = vld [vmem:[#allocation24 + $0xf00] sm:$0xff]
    %v10347 = vld [vmem:[#allocation24 + $0xf08] sm:$0xff]
    %v10348 = vld [vmem:[#allocation24 + $0xf10] sm:$0xff]
    %v10349 = vld [vmem:[#allocation24 + $0xf18] sm:$0xff]
    %v10350 = vld [vmem:[#allocation24 + $0xf20] sm:$0xff]
    %v10351 = vld [vmem:[#allocation24 + $0xf28] sm:$0xff]
    %v10352 = vld [vmem:[#allocation24 + $0xf30] sm:$0xff]
    %v10353 = vld [vmem:[#allocation24 + $0xf38] sm:$0xff]
    %v10354 = vld [vmem:[#allocation24 + $0xf40] sm:$0xff]
    %v10355 = vld [vmem:[#allocation24 + $0xf48] sm:$0xff]
    %v10356 = vld [vmem:[#allocation24 + $0xf50] sm:$0xff]
    %v10357 = vld [vmem:[#allocation24 + $0xf58] sm:$0xff]
    %v10358 = vld [vmem:[#allocation24 + $0xf60] sm:$0xff]
    %v10359 = vld [vmem:[#allocation24 + $0xf68] sm:$0xff]
    %v10360 = vld [vmem:[#allocation24 + $0xf70] sm:$0xff]
    %v10361 = vld [vmem:[#allocation24 + $0xf78] sm:$0xff]
    %v10362 = vld [vmem:[#allocation24 + $0xf80] sm:$0xff]
    %v10363 = vld [vmem:[#allocation24 + $0xf88] sm:$0xff]
    %v10364 = vld [vmem:[#allocation24 + $0xf90] sm:$0xff]
    %v10365 = vld [vmem:[#allocation24 + $0xf98] sm:$0xff]
    %v10366 = vld [vmem:[#allocation24 + $0xfa0] sm:$0xff]
    %v10367 = vld [vmem:[#allocation24 + $0xfa8] sm:$0xff]
    %v10368 = vld [vmem:[#allocation24 + $0xfb0] sm:$0xff]
    %v10369 = vld [vmem:[#allocation24 + $0xfb8] sm:$0xff]
    %v10370 = vld [vmem:[#allocation24 + $0xfc0] sm:$0xff]
    %v10371 = vld [vmem:[#allocation24 + $0xfc8] sm:$0xff]
    %v10372 = vld [vmem:[#allocation24 + $0xfd0] sm:$0xff]
    %v10373 = vld [vmem:[#allocation24 + $0xfd8] sm:$0xff]
    %v10374 = vld [vmem:[#allocation24 + $0xfe0] sm:$0xff]
    %v10375 = vld [vmem:[#allocation24 + $0xfe8] sm:$0xff]
    %v10376 = vld [vmem:[#allocation24 + $0xff0] sm:$0xff]
    %v10377 = vld [vmem:[#allocation24 + $0xff8] sm:$0xff]
    %v10382 = vlaneseq
    %v10383 = vshrl.u32 %v10382, 7
    %v10384 = vsub.s32 0, %v10383
    %v10385 = vrot.slane %v9854, %v10384
    %v10386 = vlaneseq
    %v10387 = vshrl.u32 %v10386, 7
    %v10388 = vsub.s32 4, %v10387
    %v10389 = vrot.slane %v9854, %v10388
    %v10390 = vlaneseq
    %v10391 = vshrl.u32 %v10390, 7
    %v10392 = vsub.s32 0, %v10391
    %v10393 = vrot.slane %v9855, %v10392
    %v10394 = vlaneseq
    %v10395 = vshrl.u32 %v10394, 7
    %v10396 = vsub.s32 4, %v10395
    %v10397 = vrot.slane %v9855, %v10396
    %v10398 = vlaneseq
    %v10399 = vshrl.u32 %v10398, 7
    %v10400 = vsub.s32 0, %v10399
    %v10401 = vrot.slane %v9856, %v10400
    %v10402 = vlaneseq
    %v10403 = vshrl.u32 %v10402, 7
    %v10404 = vsub.s32 4, %v10403
    %v10405 = vrot.slane %v9856, %v10404
    %v10406 = vlaneseq
    %v10407 = vshrl.u32 %v10406, 7
    %v10408 = vsub.s32 0, %v10407
    %v10409 = vrot.slane %v9857, %v10408
    %v10410 = vlaneseq
    %v10411 = vshrl.u32 %v10410, 7
    %v10412 = vsub.s32 4, %v10411
    %v10413 = vrot.slane %v9857, %v10412
    %v10422 = vlaneseq
    %v10423 = vshrl.u32 %v10422, 7
    %v10424 = vsub.s32 0, %v10423
    %v10425 = vrot.slane %v10385, %v10424
    %v10426 = vlaneseq
    %v10427 = vshrl.u32 %v10426, 7
    %v10428 = vsub.s32 0, %v10427
    %v10429 = vrot.slane %v10389, %v10428
    %v10430 = vlaneseq
    %v10431 = vshrl.u32 %v10430, 7
    %v10432 = vsub.s32 0, %v10431
    %v10433 = vrot.slane %v10393, %v10432
    %v10434 = vlaneseq
    %v10435 = vshrl.u32 %v10434, 7
    %v10436 = vsub.s32 0, %v10435
    %v10437 = vrot.slane %v10397, %v10436
    %v10438 = vlaneseq
    %v10439 = vshrl.u32 %v10438, 7
    %v10440 = vsub.s32 0, %v10439
    %v10441 = vrot.slane %v10401, %v10440
    %v10442 = vlaneseq
    %v10443 = vshrl.u32 %v10442, 7
    %v10444 = vsub.s32 0, %v10443
    %v10445 = vrot.slane %v10405, %v10444
    %v10446 = vlaneseq
    %v10447 = vshrl.u32 %v10446, 7
    %v10448 = vsub.s32 0, %v10447
    %v10449 = vrot.slane %v10409, %v10448
    %v10450 = vlaneseq
    %v10451 = vshrl.u32 %v10450, 7
    %v10452 = vsub.s32 0, %v10451
    %v10453 = vrot.slane %v10413, %v10452
    %v10966 = vunpack.c.l.b16 %v9866
    %v10967 = vunpack.c.h.b16 %v9866
    %v10968 = vunpack.c.l.b16 %v9867
    %v10969 = vunpack.c.h.b16 %v9867
    %v10970 = vunpack.c.l.b16 %v9868
    %v10971 = vunpack.c.h.b16 %v9868
    %v10972 = vunpack.c.l.b16 %v9869
    %v10973 = vunpack.c.h.b16 %v9869
    %v10974 = vunpack.c.l.b16 %v9870
    %v10975 = vunpack.c.h.b16 %v9870
    %v10976 = vunpack.c.l.b16 %v9871
    %v10977 = vunpack.c.h.b16 %v9871
    %v10978 = vunpack.c.l.b16 %v9872
    %v10979 = vunpack.c.h.b16 %v9872
    %v10980 = vunpack.c.l.b16 %v9873
    %v10981 = vunpack.c.h.b16 %v9873
    %v10982 = vunpack.c.l.b16 %v9874
    %v10983 = vunpack.c.h.b16 %v9874
    %v10984 = vunpack.c.l.b16 %v9875
    %v10985 = vunpack.c.h.b16 %v9875
    %v10986 = vunpack.c.l.b16 %v9876
    %v10987 = vunpack.c.h.b16 %v9876
    %v10988 = vunpack.c.l.b16 %v9877
    %v10989 = vunpack.c.h.b16 %v9877
    %v10990 = vunpack.c.l.b16 %v9878
    %v10991 = vunpack.c.h.b16 %v9878
    %v10992 = vunpack.c.l.b16 %v9879
    %v10993 = vunpack.c.h.b16 %v9879
    %v10994 = vunpack.c.l.b16 %v9880
    %v10995 = vunpack.c.h.b16 %v9880
    %v10996 = vunpack.c.l.b16 %v9881
    %v10997 = vunpack.c.h.b16 %v9881
    %v10998 = vunpack.c.l.b16 %v9882
    %v10999 = vunpack.c.h.b16 %v9882
    %v11000 = vunpack.c.l.b16 %v9883
    %v11001 = vunpack.c.h.b16 %v9883
    %v11002 = vunpack.c.l.b16 %v9884
    %v11003 = vunpack.c.h.b16 %v9884
    %v11004 = vunpack.c.l.b16 %v9885
    %v11005 = vunpack.c.h.b16 %v9885
    %v11006 = vunpack.c.l.b16 %v9886
    %v11007 = vunpack.c.h.b16 %v9886
    %v11008 = vunpack.c.l.b16 %v9887
    %v11009 = vunpack.c.h.b16 %v9887
    %v11010 = vunpack.c.l.b16 %v9888
    %v11011 = vunpack.c.h.b16 %v9888
    %v11012 = vunpack.c.l.b16 %v9889
    %v11013 = vunpack.c.h.b16 %v9889
    %v11014 = vunpack.c.l.b16 %v9890
    %v11015 = vunpack.c.h.b16 %v9890
    %v11016 = vunpack.c.l.b16 %v9891
    %v11017 = vunpack.c.h.b16 %v9891
    %v11018 = vunpack.c.l.b16 %v9892
    %v11019 = vunpack.c.h.b16 %v9892
    %v11020 = vunpack.c.l.b16 %v9893
    %v11021 = vunpack.c.h.b16 %v9893
    %v11022 = vunpack.c.l.b16 %v9894
    %v11023 = vunpack.c.h.b16 %v9894
    %v11024 = vunpack.c.l.b16 %v9895
    %v11025 = vunpack.c.h.b16 %v9895
    %v11026 = vunpack.c.l.b16 %v9896
    %v11027 = vunpack.c.h.b16 %v9896
    %v11028 = vunpack.c.l.b16 %v9897
    %v11029 = vunpack.c.h.b16 %v9897
    %v11030 = vunpack.c.l.b16 %v9898
    %v11031 = vunpack.c.h.b16 %v9898
    %v11032 = vunpack.c.l.b16 %v9899
    %v11033 = vunpack.c.h.b16 %v9899
    %v11034 = vunpack.c.l.b16 %v9900
    %v11035 = vunpack.c.h.b16 %v9900
    %v11036 = vunpack.c.l.b16 %v9901
    %v11037 = vunpack.c.h.b16 %v9901
    %v11038 = vunpack.c.l.b16 %v9902
    %v11039 = vunpack.c.h.b16 %v9902
    %v11040 = vunpack.c.l.b16 %v9903
    %v11041 = vunpack.c.h.b16 %v9903
    %v11042 = vunpack.c.l.b16 %v9904
    %v11043 = vunpack.c.h.b16 %v9904
    %v11044 = vunpack.c.l.b16 %v9905
    %v11045 = vunpack.c.h.b16 %v9905
    %v11046 = vunpack.c.l.b16 %v9906
    %v11047 = vunpack.c.h.b16 %v9906
    %v11048 = vunpack.c.l.b16 %v9907
    %v11049 = vunpack.c.h.b16 %v9907
    %v11050 = vunpack.c.l.b16 %v9908
    %v11051 = vunpack.c.h.b16 %v9908
    %v11052 = vunpack.c.l.b16 %v9909
    %v11053 = vunpack.c.h.b16 %v9909
    %v11054 = vunpack.c.l.b16 %v9910
    %v11055 = vunpack.c.h.b16 %v9910
    %v11056 = vunpack.c.l.b16 %v9911
    %v11057 = vunpack.c.h.b16 %v9911
    %v11058 = vunpack.c.l.b16 %v9912
    %v11059 = vunpack.c.h.b16 %v9912
    %v11060 = vunpack.c.l.b16 %v9913
    %v11061 = vunpack.c.h.b16 %v9913
    %v11062 = vunpack.c.l.b16 %v9914
    %v11063 = vunpack.c.h.b16 %v9914
    %v11064 = vunpack.c.l.b16 %v9915
    %v11065 = vunpack.c.h.b16 %v9915
    %v11066 = vunpack.c.l.b16 %v9916
    %v11067 = vunpack.c.h.b16 %v9916
    %v11068 = vunpack.c.l.b16 %v9917
    %v11069 = vunpack.c.h.b16 %v9917
    %v11070 = vunpack.c.l.b16 %v9918
    %v11071 = vunpack.c.h.b16 %v9918
    %v11072 = vunpack.c.l.b16 %v9919
    %v11073 = vunpack.c.h.b16 %v9919
    %v11074 = vunpack.c.l.b16 %v9920
    %v11075 = vunpack.c.h.b16 %v9920
    %v11076 = vunpack.c.l.b16 %v9921
    %v11077 = vunpack.c.h.b16 %v9921
    %v11078 = vunpack.c.l.b16 %v9922
    %v11079 = vunpack.c.h.b16 %v9922
    %v11080 = vunpack.c.l.b16 %v9923
    %v11081 = vunpack.c.h.b16 %v9923
    %v11082 = vunpack.c.l.b16 %v9924
    %v11083 = vunpack.c.h.b16 %v9924
    %v11084 = vunpack.c.l.b16 %v9925
    %v11085 = vunpack.c.h.b16 %v9925
    %v11086 = vunpack.c.l.b16 %v9926
    %v11087 = vunpack.c.h.b16 %v9926
    %v11088 = vunpack.c.l.b16 %v9927
    %v11089 = vunpack.c.h.b16 %v9927
    %v11090 = vunpack.c.l.b16 %v9928
    %v11091 = vunpack.c.h.b16 %v9928
    %v11092 = vunpack.c.l.b16 %v9929
    %v11093 = vunpack.c.h.b16 %v9929
    %v11094 = vunpack.c.l.b16 %v9930
    %v11095 = vunpack.c.h.b16 %v9930
    %v11096 = vunpack.c.l.b16 %v9931
    %v11097 = vunpack.c.h.b16 %v9931
    %v11098 = vunpack.c.l.b16 %v9932
    %v11099 = vunpack.c.h.b16 %v9932
    %v11100 = vunpack.c.l.b16 %v9933
    %v11101 = vunpack.c.h.b16 %v9933
    %v11102 = vunpack.c.l.b16 %v9934
    %v11103 = vunpack.c.h.b16 %v9934
    %v11104 = vunpack.c.l.b16 %v9935
    %v11105 = vunpack.c.h.b16 %v9935
    %v11106 = vunpack.c.l.b16 %v9936
    %v11107 = vunpack.c.h.b16 %v9936
    %v11108 = vunpack.c.l.b16 %v9937
    %v11109 = vunpack.c.h.b16 %v9937
    %v11110 = vunpack.c.l.b16 %v9938
    %v11111 = vunpack.c.h.b16 %v9938
    %v11112 = vunpack.c.l.b16 %v9939
    %v11113 = vunpack.c.h.b16 %v9939
    %v11114 = vunpack.c.l.b16 %v9940
    %v11115 = vunpack.c.h.b16 %v9940
    %v11116 = vunpack.c.l.b16 %v9941
    %v11117 = vunpack.c.h.b16 %v9941
    %v11118 = vunpack.c.l.b16 %v9942
    %v11119 = vunpack.c.h.b16 %v9942
    %v11120 = vunpack.c.l.b16 %v9943
    %v11121 = vunpack.c.h.b16 %v9943
    %v11122 = vunpack.c.l.b16 %v9944
    %v11123 = vunpack.c.h.b16 %v9944
    %v11124 = vunpack.c.l.b16 %v9945
    %v11125 = vunpack.c.h.b16 %v9945
    %v11126 = vunpack.c.l.b16 %v9946
    %v11127 = vunpack.c.h.b16 %v9946
    %v11128 = vunpack.c.l.b16 %v9947
    %v11129 = vunpack.c.h.b16 %v9947
    %v11130 = vunpack.c.l.b16 %v9948
    %v11131 = vunpack.c.h.b16 %v9948
    %v11132 = vunpack.c.l.b16 %v9949
    %v11133 = vunpack.c.h.b16 %v9949
    %v11134 = vunpack.c.l.b16 %v9950
    %v11135 = vunpack.c.h.b16 %v9950
    %v11136 = vunpack.c.l.b16 %v9951
    %v11137 = vunpack.c.h.b16 %v9951
    %v11138 = vunpack.c.l.b16 %v9952
    %v11139 = vunpack.c.h.b16 %v9952
    %v11140 = vunpack.c.l.b16 %v9953
    %v11141 = vunpack.c.h.b16 %v9953
    %v11142 = vunpack.c.l.b16 %v9954
    %v11143 = vunpack.c.h.b16 %v9954
    %v11144 = vunpack.c.l.b16 %v9955
    %v11145 = vunpack.c.h.b16 %v9955
    %v11146 = vunpack.c.l.b16 %v9956
    %v11147 = vunpack.c.h.b16 %v9956
    %v11148 = vunpack.c.l.b16 %v9957
    %v11149 = vunpack.c.h.b16 %v9957
    %v11150 = vunpack.c.l.b16 %v9958
    %v11151 = vunpack.c.h.b16 %v9958
    %v11152 = vunpack.c.l.b16 %v9959
    %v11153 = vunpack.c.h.b16 %v9959
    %v11154 = vunpack.c.l.b16 %v9960
    %v11155 = vunpack.c.h.b16 %v9960
    %v11156 = vunpack.c.l.b16 %v9961
    %v11157 = vunpack.c.h.b16 %v9961
    %v11158 = vunpack.c.l.b16 %v9962
    %v11159 = vunpack.c.h.b16 %v9962
    %v11160 = vunpack.c.l.b16 %v9963
    %v11161 = vunpack.c.h.b16 %v9963
    %v11162 = vunpack.c.l.b16 %v9964
    %v11163 = vunpack.c.h.b16 %v9964
    %v11164 = vunpack.c.l.b16 %v9965
    %v11165 = vunpack.c.h.b16 %v9965
    %v11166 = vunpack.c.l.b16 %v9966
    %v11167 = vunpack.c.h.b16 %v9966
    %v11168 = vunpack.c.l.b16 %v9967
    %v11169 = vunpack.c.h.b16 %v9967
    %v11170 = vunpack.c.l.b16 %v9968
    %v11171 = vunpack.c.h.b16 %v9968
    %v11172 = vunpack.c.l.b16 %v9969
    %v11173 = vunpack.c.h.b16 %v9969
    %v11174 = vunpack.c.l.b16 %v9970
    %v11175 = vunpack.c.h.b16 %v9970
    %v11176 = vunpack.c.l.b16 %v9971
    %v11177 = vunpack.c.h.b16 %v9971
    %v11178 = vunpack.c.l.b16 %v9972
    %v11179 = vunpack.c.h.b16 %v9972
    %v11180 = vunpack.c.l.b16 %v9973
    %v11181 = vunpack.c.h.b16 %v9973
    %v11182 = vunpack.c.l.b16 %v9974
    %v11183 = vunpack.c.h.b16 %v9974
    %v11184 = vunpack.c.l.b16 %v9975
    %v11185 = vunpack.c.h.b16 %v9975
    %v11186 = vunpack.c.l.b16 %v9976
    %v11187 = vunpack.c.h.b16 %v9976
    %v11188 = vunpack.c.l.b16 %v9977
    %v11189 = vunpack.c.h.b16 %v9977
    %v11190 = vunpack.c.l.b16 %v9978
    %v11191 = vunpack.c.h.b16 %v9978
    %v11192 = vunpack.c.l.b16 %v9979
    %v11193 = vunpack.c.h.b16 %v9979
    %v11194 = vunpack.c.l.b16 %v9980
    %v11195 = vunpack.c.h.b16 %v9980
    %v11196 = vunpack.c.l.b16 %v9981
    %v11197 = vunpack.c.h.b16 %v9981
    %v11198 = vunpack.c.l.b16 %v9982
    %v11199 = vunpack.c.h.b16 %v9982
    %v11200 = vunpack.c.l.b16 %v9983
    %v11201 = vunpack.c.h.b16 %v9983
    %v11202 = vunpack.c.l.b16 %v9984
    %v11203 = vunpack.c.h.b16 %v9984
    %v11204 = vunpack.c.l.b16 %v9985
    %v11205 = vunpack.c.h.b16 %v9985
    %v11206 = vunpack.c.l.b16 %v9986
    %v11207 = vunpack.c.h.b16 %v9986
    %v11208 = vunpack.c.l.b16 %v9987
    %v11209 = vunpack.c.h.b16 %v9987
    %v11210 = vunpack.c.l.b16 %v9988
    %v11211 = vunpack.c.h.b16 %v9988
    %v11212 = vunpack.c.l.b16 %v9989
    %v11213 = vunpack.c.h.b16 %v9989
    %v11214 = vunpack.c.l.b16 %v9990
    %v11215 = vunpack.c.h.b16 %v9990
    %v11216 = vunpack.c.l.b16 %v9991
    %v11217 = vunpack.c.h.b16 %v9991
    %v11218 = vunpack.c.l.b16 %v9992
    %v11219 = vunpack.c.h.b16 %v9992
    %v11220 = vunpack.c.l.b16 %v9993
    %v11221 = vunpack.c.h.b16 %v9993
    %v11222 = vunpack.c.l.b16 %v9994
    %v11223 = vunpack.c.h.b16 %v9994
    %v11224 = vunpack.c.l.b16 %v9995
    %v11225 = vunpack.c.h.b16 %v9995
    %v11226 = vunpack.c.l.b16 %v9996
    %v11227 = vunpack.c.h.b16 %v9996
    %v11228 = vunpack.c.l.b16 %v9997
    %v11229 = vunpack.c.h.b16 %v9997
    %v11230 = vunpack.c.l.b16 %v9998
    %v11231 = vunpack.c.h.b16 %v9998
    %v11232 = vunpack.c.l.b16 %v9999
    %v11233 = vunpack.c.h.b16 %v9999
    %v11234 = vunpack.c.l.b16 %v10000
    %v11235 = vunpack.c.h.b16 %v10000
    %v11236 = vunpack.c.l.b16 %v10001
    %v11237 = vunpack.c.h.b16 %v10001
    %v11238 = vunpack.c.l.b16 %v10002
    %v11239 = vunpack.c.h.b16 %v10002
    %v11240 = vunpack.c.l.b16 %v10003
    %v11241 = vunpack.c.h.b16 %v10003
    %v11242 = vunpack.c.l.b16 %v10004
    %v11243 = vunpack.c.h.b16 %v10004
    %v11244 = vunpack.c.l.b16 %v10005
    %v11245 = vunpack.c.h.b16 %v10005
    %v11246 = vunpack.c.l.b16 %v10006
    %v11247 = vunpack.c.h.b16 %v10006
    %v11248 = vunpack.c.l.b16 %v10007
    %v11249 = vunpack.c.h.b16 %v10007
    %v11250 = vunpack.c.l.b16 %v10008
    %v11251 = vunpack.c.h.b16 %v10008
    %v11252 = vunpack.c.l.b16 %v10009
    %v11253 = vunpack.c.h.b16 %v10009
    %v11254 = vunpack.c.l.b16 %v10010
    %v11255 = vunpack.c.h.b16 %v10010
    %v11256 = vunpack.c.l.b16 %v10011
    %v11257 = vunpack.c.h.b16 %v10011
    %v11258 = vunpack.c.l.b16 %v10012
    %v11259 = vunpack.c.h.b16 %v10012
    %v11260 = vunpack.c.l.b16 %v10013
    %v11261 = vunpack.c.h.b16 %v10013
    %v11262 = vunpack.c.l.b16 %v10014
    %v11263 = vunpack.c.h.b16 %v10014
    %v11264 = vunpack.c.l.b16 %v10015
    %v11265 = vunpack.c.h.b16 %v10015
    %v11266 = vunpack.c.l.b16 %v10016
    %v11267 = vunpack.c.h.b16 %v10016
    %v11268 = vunpack.c.l.b16 %v10017
    %v11269 = vunpack.c.h.b16 %v10017
    %v11270 = vunpack.c.l.b16 %v10018
    %v11271 = vunpack.c.h.b16 %v10018
    %v11272 = vunpack.c.l.b16 %v10019
    %v11273 = vunpack.c.h.b16 %v10019
    %v11274 = vunpack.c.l.b16 %v10020
    %v11275 = vunpack.c.h.b16 %v10020
    %v11276 = vunpack.c.l.b16 %v10021
    %v11277 = vunpack.c.h.b16 %v10021
    %v11278 = vunpack.c.l.b16 %v10022
    %v11279 = vunpack.c.h.b16 %v10022
    %v11280 = vunpack.c.l.b16 %v10023
    %v11281 = vunpack.c.h.b16 %v10023
    %v11282 = vunpack.c.l.b16 %v10024
    %v11283 = vunpack.c.h.b16 %v10024
    %v11284 = vunpack.c.l.b16 %v10025
    %v11285 = vunpack.c.h.b16 %v10025
    %v11286 = vunpack.c.l.b16 %v10026
    %v11287 = vunpack.c.h.b16 %v10026
    %v11288 = vunpack.c.l.b16 %v10027
    %v11289 = vunpack.c.h.b16 %v10027
    %v11290 = vunpack.c.l.b16 %v10028
    %v11291 = vunpack.c.h.b16 %v10028
    %v11292 = vunpack.c.l.b16 %v10029
    %v11293 = vunpack.c.h.b16 %v10029
    %v11294 = vunpack.c.l.b16 %v10030
    %v11295 = vunpack.c.h.b16 %v10030
    %v11296 = vunpack.c.l.b16 %v10031
    %v11297 = vunpack.c.h.b16 %v10031
    %v11298 = vunpack.c.l.b16 %v10032
    %v11299 = vunpack.c.h.b16 %v10032
    %v11300 = vunpack.c.l.b16 %v10033
    %v11301 = vunpack.c.h.b16 %v10033
    %v11302 = vunpack.c.l.b16 %v10034
    %v11303 = vunpack.c.h.b16 %v10034
    %v11304 = vunpack.c.l.b16 %v10035
    %v11305 = vunpack.c.h.b16 %v10035
    %v11306 = vunpack.c.l.b16 %v10036
    %v11307 = vunpack.c.h.b16 %v10036
    %v11308 = vunpack.c.l.b16 %v10037
    %v11309 = vunpack.c.h.b16 %v10037
    %v11310 = vunpack.c.l.b16 %v10038
    %v11311 = vunpack.c.h.b16 %v10038
    %v11312 = vunpack.c.l.b16 %v10039
    %v11313 = vunpack.c.h.b16 %v10039
    %v11314 = vunpack.c.l.b16 %v10040
    %v11315 = vunpack.c.h.b16 %v10040
    %v11316 = vunpack.c.l.b16 %v10041
    %v11317 = vunpack.c.h.b16 %v10041
    %v11318 = vunpack.c.l.b16 %v10042
    %v11319 = vunpack.c.h.b16 %v10042
    %v11320 = vunpack.c.l.b16 %v10043
    %v11321 = vunpack.c.h.b16 %v10043
    %v11322 = vunpack.c.l.b16 %v10044
    %v11323 = vunpack.c.h.b16 %v10044
    %v11324 = vunpack.c.l.b16 %v10045
    %v11325 = vunpack.c.h.b16 %v10045
    %v11326 = vunpack.c.l.b16 %v10046
    %v11327 = vunpack.c.h.b16 %v10046
    %v11328 = vunpack.c.l.b16 %v10047
    %v11329 = vunpack.c.h.b16 %v10047
    %v11330 = vunpack.c.l.b16 %v10048
    %v11331 = vunpack.c.h.b16 %v10048
    %v11332 = vunpack.c.l.b16 %v10049
    %v11333 = vunpack.c.h.b16 %v10049
    %v11334 = vunpack.c.l.b16 %v10050
    %v11335 = vunpack.c.h.b16 %v10050
    %v11336 = vunpack.c.l.b16 %v10051
    %v11337 = vunpack.c.h.b16 %v10051
    %v11338 = vunpack.c.l.b16 %v10052
    %v11339 = vunpack.c.h.b16 %v10052
    %v11340 = vunpack.c.l.b16 %v10053
    %v11341 = vunpack.c.h.b16 %v10053
    %v11342 = vunpack.c.l.b16 %v10054
    %v11343 = vunpack.c.h.b16 %v10054
    %v11344 = vunpack.c.l.b16 %v10055
    %v11345 = vunpack.c.h.b16 %v10055
    %v11346 = vunpack.c.l.b16 %v10056
    %v11347 = vunpack.c.h.b16 %v10056
    %v11348 = vunpack.c.l.b16 %v10057
    %v11349 = vunpack.c.h.b16 %v10057
    %v11350 = vunpack.c.l.b16 %v10058
    %v11351 = vunpack.c.h.b16 %v10058
    %v11352 = vunpack.c.l.b16 %v10059
    %v11353 = vunpack.c.h.b16 %v10059
    %v11354 = vunpack.c.l.b16 %v10060
    %v11355 = vunpack.c.h.b16 %v10060
    %v11356 = vunpack.c.l.b16 %v10061
    %v11357 = vunpack.c.h.b16 %v10061
    %v11358 = vunpack.c.l.b16 %v10062
    %v11359 = vunpack.c.h.b16 %v10062
    %v11360 = vunpack.c.l.b16 %v10063
    %v11361 = vunpack.c.h.b16 %v10063
    %v11362 = vunpack.c.l.b16 %v10064
    %v11363 = vunpack.c.h.b16 %v10064
    %v11364 = vunpack.c.l.b16 %v10065
    %v11365 = vunpack.c.h.b16 %v10065
    %v11366 = vunpack.c.l.b16 %v10066
    %v11367 = vunpack.c.h.b16 %v10066
    %v11368 = vunpack.c.l.b16 %v10067
    %v11369 = vunpack.c.h.b16 %v10067
    %v11370 = vunpack.c.l.b16 %v10068
    %v11371 = vunpack.c.h.b16 %v10068
    %v11372 = vunpack.c.l.b16 %v10069
    %v11373 = vunpack.c.h.b16 %v10069
    %v11374 = vunpack.c.l.b16 %v10070
    %v11375 = vunpack.c.h.b16 %v10070
    %v11376 = vunpack.c.l.b16 %v10071
    %v11377 = vunpack.c.h.b16 %v10071
    %v11378 = vunpack.c.l.b16 %v10072
    %v11379 = vunpack.c.h.b16 %v10072
    %v11380 = vunpack.c.l.b16 %v10073
    %v11381 = vunpack.c.h.b16 %v10073
    %v11382 = vunpack.c.l.b16 %v10074
    %v11383 = vunpack.c.h.b16 %v10074
    %v11384 = vunpack.c.l.b16 %v10075
    %v11385 = vunpack.c.h.b16 %v10075
    %v11386 = vunpack.c.l.b16 %v10076
    %v11387 = vunpack.c.h.b16 %v10076
    %v11388 = vunpack.c.l.b16 %v10077
    %v11389 = vunpack.c.h.b16 %v10077
    %v11390 = vunpack.c.l.b16 %v10078
    %v11391 = vunpack.c.h.b16 %v10078
    %v11392 = vunpack.c.l.b16 %v10079
    %v11393 = vunpack.c.h.b16 %v10079
    %v11394 = vunpack.c.l.b16 %v10080
    %v11395 = vunpack.c.h.b16 %v10080
    %v11396 = vunpack.c.l.b16 %v10081
    %v11397 = vunpack.c.h.b16 %v10081
    %v11398 = vunpack.c.l.b16 %v10082
    %v11399 = vunpack.c.h.b16 %v10082
    %v11400 = vunpack.c.l.b16 %v10083
    %v11401 = vunpack.c.h.b16 %v10083
    %v11402 = vunpack.c.l.b16 %v10084
    %v11403 = vunpack.c.h.b16 %v10084
    %v11404 = vunpack.c.l.b16 %v10085
    %v11405 = vunpack.c.h.b16 %v10085
    %v11406 = vunpack.c.l.b16 %v10086
    %v11407 = vunpack.c.h.b16 %v10086
    %v11408 = vunpack.c.l.b16 %v10087
    %v11409 = vunpack.c.h.b16 %v10087
    %v11410 = vunpack.c.l.b16 %v10088
    %v11411 = vunpack.c.h.b16 %v10088
    %v11412 = vunpack.c.l.b16 %v10089
    %v11413 = vunpack.c.h.b16 %v10089
    %v11414 = vunpack.c.l.b16 %v10090
    %v11415 = vunpack.c.h.b16 %v10090
    %v11416 = vunpack.c.l.b16 %v10091
    %v11417 = vunpack.c.h.b16 %v10091
    %v11418 = vunpack.c.l.b16 %v10092
    %v11419 = vunpack.c.h.b16 %v10092
    %v11420 = vunpack.c.l.b16 %v10093
    %v11421 = vunpack.c.h.b16 %v10093
    %v11422 = vunpack.c.l.b16 %v10094
    %v11423 = vunpack.c.h.b16 %v10094
    %v11424 = vunpack.c.l.b16 %v10095
    %v11425 = vunpack.c.h.b16 %v10095
    %v11426 = vunpack.c.l.b16 %v10096
    %v11427 = vunpack.c.h.b16 %v10096
    %v11428 = vunpack.c.l.b16 %v10097
    %v11429 = vunpack.c.h.b16 %v10097
    %v11430 = vunpack.c.l.b16 %v10098
    %v11431 = vunpack.c.h.b16 %v10098
    %v11432 = vunpack.c.l.b16 %v10099
    %v11433 = vunpack.c.h.b16 %v10099
    %v11434 = vunpack.c.l.b16 %v10100
    %v11435 = vunpack.c.h.b16 %v10100
    %v11436 = vunpack.c.l.b16 %v10101
    %v11437 = vunpack.c.h.b16 %v10101
    %v11438 = vunpack.c.l.b16 %v10102
    %v11439 = vunpack.c.h.b16 %v10102
    %v11440 = vunpack.c.l.b16 %v10103
    %v11441 = vunpack.c.h.b16 %v10103
    %v11442 = vunpack.c.l.b16 %v10104
    %v11443 = vunpack.c.h.b16 %v10104
    %v11444 = vunpack.c.l.b16 %v10105
    %v11445 = vunpack.c.h.b16 %v10105
    %v11446 = vunpack.c.l.b16 %v10106
    %v11447 = vunpack.c.h.b16 %v10106
    %v11448 = vunpack.c.l.b16 %v10107
    %v11449 = vunpack.c.h.b16 %v10107
    %v11450 = vunpack.c.l.b16 %v10108
    %v11451 = vunpack.c.h.b16 %v10108
    %v11452 = vunpack.c.l.b16 %v10109
    %v11453 = vunpack.c.h.b16 %v10109
    %v11454 = vunpack.c.l.b16 %v10110
    %v11455 = vunpack.c.h.b16 %v10110
    %v11456 = vunpack.c.l.b16 %v10111
    %v11457 = vunpack.c.h.b16 %v10111
    %v11458 = vunpack.c.l.b16 %v10112
    %v11459 = vunpack.c.h.b16 %v10112
    %v11460 = vunpack.c.l.b16 %v10113
    %v11461 = vunpack.c.h.b16 %v10113
    %v11462 = vunpack.c.l.b16 %v10114
    %v11463 = vunpack.c.h.b16 %v10114
    %v11464 = vunpack.c.l.b16 %v10115
    %v11465 = vunpack.c.h.b16 %v10115
    %v11466 = vunpack.c.l.b16 %v10116
    %v11467 = vunpack.c.h.b16 %v10116
    %v11468 = vunpack.c.l.b16 %v10117
    %v11469 = vunpack.c.h.b16 %v10117
    %v11470 = vunpack.c.l.b16 %v10118
    %v11471 = vunpack.c.h.b16 %v10118
    %v11472 = vunpack.c.l.b16 %v10119
    %v11473 = vunpack.c.h.b16 %v10119
    %v11474 = vunpack.c.l.b16 %v10120
    %v11475 = vunpack.c.h.b16 %v10120
    %v11476 = vunpack.c.l.b16 %v10121
    %v11477 = vunpack.c.h.b16 %v10121
    %v11478 = vunpack.c.l.b16 %v10122
    %v11479 = vunpack.c.h.b16 %v10122
    %v11480 = vunpack.c.l.b16 %v10123
    %v11481 = vunpack.c.h.b16 %v10123
    %v11482 = vunpack.c.l.b16 %v10124
    %v11483 = vunpack.c.h.b16 %v10124
    %v11484 = vunpack.c.l.b16 %v10125
    %v11485 = vunpack.c.h.b16 %v10125
    %v11486 = vunpack.c.l.b16 %v10126
    %v11487 = vunpack.c.h.b16 %v10126
    %v11488 = vunpack.c.l.b16 %v10127
    %v11489 = vunpack.c.h.b16 %v10127
    %v11490 = vunpack.c.l.b16 %v10128
    %v11491 = vunpack.c.h.b16 %v10128
    %v11492 = vunpack.c.l.b16 %v10129
    %v11493 = vunpack.c.h.b16 %v10129
    %v11494 = vunpack.c.l.b16 %v10130
    %v11495 = vunpack.c.h.b16 %v10130
    %v11496 = vunpack.c.l.b16 %v10131
    %v11497 = vunpack.c.h.b16 %v10131
    %v11498 = vunpack.c.l.b16 %v10132
    %v11499 = vunpack.c.h.b16 %v10132
    %v11500 = vunpack.c.l.b16 %v10133
    %v11501 = vunpack.c.h.b16 %v10133
    %v11502 = vunpack.c.l.b16 %v10134
    %v11503 = vunpack.c.h.b16 %v10134
    %v11504 = vunpack.c.l.b16 %v10135
    %v11505 = vunpack.c.h.b16 %v10135
    %v11506 = vunpack.c.l.b16 %v10136
    %v11507 = vunpack.c.h.b16 %v10136
    %v11508 = vunpack.c.l.b16 %v10137
    %v11509 = vunpack.c.h.b16 %v10137
    %v11510 = vunpack.c.l.b16 %v10138
    %v11511 = vunpack.c.h.b16 %v10138
    %v11512 = vunpack.c.l.b16 %v10139
    %v11513 = vunpack.c.h.b16 %v10139
    %v11514 = vunpack.c.l.b16 %v10140
    %v11515 = vunpack.c.h.b16 %v10140
    %v11516 = vunpack.c.l.b16 %v10141
    %v11517 = vunpack.c.h.b16 %v10141
    %v11518 = vunpack.c.l.b16 %v10142
    %v11519 = vunpack.c.h.b16 %v10142
    %v11520 = vunpack.c.l.b16 %v10143
    %v11521 = vunpack.c.h.b16 %v10143
    %v11522 = vunpack.c.l.b16 %v10144
    %v11523 = vunpack.c.h.b16 %v10144
    %v11524 = vunpack.c.l.b16 %v10145
    %v11525 = vunpack.c.h.b16 %v10145
    %v11526 = vunpack.c.l.b16 %v10146
    %v11527 = vunpack.c.h.b16 %v10146
    %v11528 = vunpack.c.l.b16 %v10147
    %v11529 = vunpack.c.h.b16 %v10147
    %v11530 = vunpack.c.l.b16 %v10148
    %v11531 = vunpack.c.h.b16 %v10148
    %v11532 = vunpack.c.l.b16 %v10149
    %v11533 = vunpack.c.h.b16 %v10149
    %v11534 = vunpack.c.l.b16 %v10150
    %v11535 = vunpack.c.h.b16 %v10150
    %v11536 = vunpack.c.l.b16 %v10151
    %v11537 = vunpack.c.h.b16 %v10151
    %v11538 = vunpack.c.l.b16 %v10152
    %v11539 = vunpack.c.h.b16 %v10152
    %v11540 = vunpack.c.l.b16 %v10153
    %v11541 = vunpack.c.h.b16 %v10153
    %v11542 = vunpack.c.l.b16 %v10154
    %v11543 = vunpack.c.h.b16 %v10154
    %v11544 = vunpack.c.l.b16 %v10155
    %v11545 = vunpack.c.h.b16 %v10155
    %v11546 = vunpack.c.l.b16 %v10156
    %v11547 = vunpack.c.h.b16 %v10156
    %v11548 = vunpack.c.l.b16 %v10157
    %v11549 = vunpack.c.h.b16 %v10157
    %v11550 = vunpack.c.l.b16 %v10158
    %v11551 = vunpack.c.h.b16 %v10158
    %v11552 = vunpack.c.l.b16 %v10159
    %v11553 = vunpack.c.h.b16 %v10159
    %v11554 = vunpack.c.l.b16 %v10160
    %v11555 = vunpack.c.h.b16 %v10160
    %v11556 = vunpack.c.l.b16 %v10161
    %v11557 = vunpack.c.h.b16 %v10161
    %v11558 = vunpack.c.l.b16 %v10162
    %v11559 = vunpack.c.h.b16 %v10162
    %v11560 = vunpack.c.l.b16 %v10163
    %v11561 = vunpack.c.h.b16 %v10163
    %v11562 = vunpack.c.l.b16 %v10164
    %v11563 = vunpack.c.h.b16 %v10164
    %v11564 = vunpack.c.l.b16 %v10165
    %v11565 = vunpack.c.h.b16 %v10165
    %v11566 = vunpack.c.l.b16 %v10166
    %v11567 = vunpack.c.h.b16 %v10166
    %v11568 = vunpack.c.l.b16 %v10167
    %v11569 = vunpack.c.h.b16 %v10167
    %v11570 = vunpack.c.l.b16 %v10168
    %v11571 = vunpack.c.h.b16 %v10168
    %v11572 = vunpack.c.l.b16 %v10169
    %v11573 = vunpack.c.h.b16 %v10169
    %v11574 = vunpack.c.l.b16 %v10170
    %v11575 = vunpack.c.h.b16 %v10170
    %v11576 = vunpack.c.l.b16 %v10171
    %v11577 = vunpack.c.h.b16 %v10171
    %v11578 = vunpack.c.l.b16 %v10172
    %v11579 = vunpack.c.h.b16 %v10172
    %v11580 = vunpack.c.l.b16 %v10173
    %v11581 = vunpack.c.h.b16 %v10173
    %v11582 = vunpack.c.l.b16 %v10174
    %v11583 = vunpack.c.h.b16 %v10174
    %v11584 = vunpack.c.l.b16 %v10175
    %v11585 = vunpack.c.h.b16 %v10175
    %v11586 = vunpack.c.l.b16 %v10176
    %v11587 = vunpack.c.h.b16 %v10176
    %v11588 = vunpack.c.l.b16 %v10177
    %v11589 = vunpack.c.h.b16 %v10177
    %v11590 = vunpack.c.l.b16 %v10178
    %v11591 = vunpack.c.h.b16 %v10178
    %v11592 = vunpack.c.l.b16 %v10179
    %v11593 = vunpack.c.h.b16 %v10179
    %v11594 = vunpack.c.l.b16 %v10180
    %v11595 = vunpack.c.h.b16 %v10180
    %v11596 = vunpack.c.l.b16 %v10181
    %v11597 = vunpack.c.h.b16 %v10181
    %v11598 = vunpack.c.l.b16 %v10182
    %v11599 = vunpack.c.h.b16 %v10182
    %v11600 = vunpack.c.l.b16 %v10183
    %v11601 = vunpack.c.h.b16 %v10183
    %v11602 = vunpack.c.l.b16 %v10184
    %v11603 = vunpack.c.h.b16 %v10184
    %v11604 = vunpack.c.l.b16 %v10185
    %v11605 = vunpack.c.h.b16 %v10185
    %v11606 = vunpack.c.l.b16 %v10186
    %v11607 = vunpack.c.h.b16 %v10186
    %v11608 = vunpack.c.l.b16 %v10187
    %v11609 = vunpack.c.h.b16 %v10187
    %v11610 = vunpack.c.l.b16 %v10188
    %v11611 = vunpack.c.h.b16 %v10188
    %v11612 = vunpack.c.l.b16 %v10189
    %v11613 = vunpack.c.h.b16 %v10189
    %v11614 = vunpack.c.l.b16 %v10190
    %v11615 = vunpack.c.h.b16 %v10190
    %v11616 = vunpack.c.l.b16 %v10191
    %v11617 = vunpack.c.h.b16 %v10191
    %v11618 = vunpack.c.l.b16 %v10192
    %v11619 = vunpack.c.h.b16 %v10192
    %v11620 = vunpack.c.l.b16 %v10193
    %v11621 = vunpack.c.h.b16 %v10193
    %v11622 = vunpack.c.l.b16 %v10194
    %v11623 = vunpack.c.h.b16 %v10194
    %v11624 = vunpack.c.l.b16 %v10195
    %v11625 = vunpack.c.h.b16 %v10195
    %v11626 = vunpack.c.l.b16 %v10196
    %v11627 = vunpack.c.h.b16 %v10196
    %v11628 = vunpack.c.l.b16 %v10197
    %v11629 = vunpack.c.h.b16 %v10197
    %v11630 = vunpack.c.l.b16 %v10198
    %v11631 = vunpack.c.h.b16 %v10198
    %v11632 = vunpack.c.l.b16 %v10199
    %v11633 = vunpack.c.h.b16 %v10199
    %v11634 = vunpack.c.l.b16 %v10200
    %v11635 = vunpack.c.h.b16 %v10200
    %v11636 = vunpack.c.l.b16 %v10201
    %v11637 = vunpack.c.h.b16 %v10201
    %v11638 = vunpack.c.l.b16 %v10202
    %v11639 = vunpack.c.h.b16 %v10202
    %v11640 = vunpack.c.l.b16 %v10203
    %v11641 = vunpack.c.h.b16 %v10203
    %v11642 = vunpack.c.l.b16 %v10204
    %v11643 = vunpack.c.h.b16 %v10204
    %v11644 = vunpack.c.l.b16 %v10205
    %v11645 = vunpack.c.h.b16 %v10205
    %v11646 = vunpack.c.l.b16 %v10206
    %v11647 = vunpack.c.h.b16 %v10206
    %v11648 = vunpack.c.l.b16 %v10207
    %v11649 = vunpack.c.h.b16 %v10207
    %v11650 = vunpack.c.l.b16 %v10208
    %v11651 = vunpack.c.h.b16 %v10208
    %v11652 = vunpack.c.l.b16 %v10209
    %v11653 = vunpack.c.h.b16 %v10209
    %v11654 = vunpack.c.l.b16 %v10210
    %v11655 = vunpack.c.h.b16 %v10210
    %v11656 = vunpack.c.l.b16 %v10211
    %v11657 = vunpack.c.h.b16 %v10211
    %v11658 = vunpack.c.l.b16 %v10212
    %v11659 = vunpack.c.h.b16 %v10212
    %v11660 = vunpack.c.l.b16 %v10213
    %v11661 = vunpack.c.h.b16 %v10213
    %v11662 = vunpack.c.l.b16 %v10214
    %v11663 = vunpack.c.h.b16 %v10214
    %v11664 = vunpack.c.l.b16 %v10215
    %v11665 = vunpack.c.h.b16 %v10215
    %v11666 = vunpack.c.l.b16 %v10216
    %v11667 = vunpack.c.h.b16 %v10216
    %v11668 = vunpack.c.l.b16 %v10217
    %v11669 = vunpack.c.h.b16 %v10217
    %v11670 = vunpack.c.l.b16 %v10218
    %v11671 = vunpack.c.h.b16 %v10218
    %v11672 = vunpack.c.l.b16 %v10219
    %v11673 = vunpack.c.h.b16 %v10219
    %v11674 = vunpack.c.l.b16 %v10220
    %v11675 = vunpack.c.h.b16 %v10220
    %v11676 = vunpack.c.l.b16 %v10221
    %v11677 = vunpack.c.h.b16 %v10221
    %v11678 = vunpack.c.l.b16 %v10222
    %v11679 = vunpack.c.h.b16 %v10222
    %v11680 = vunpack.c.l.b16 %v10223
    %v11681 = vunpack.c.h.b16 %v10223
    %v11682 = vunpack.c.l.b16 %v10224
    %v11683 = vunpack.c.h.b16 %v10224
    %v11684 = vunpack.c.l.b16 %v10225
    %v11685 = vunpack.c.h.b16 %v10225
    %v11686 = vunpack.c.l.b16 %v10226
    %v11687 = vunpack.c.h.b16 %v10226
    %v11688 = vunpack.c.l.b16 %v10227
    %v11689 = vunpack.c.h.b16 %v10227
    %v11690 = vunpack.c.l.b16 %v10228
    %v11691 = vunpack.c.h.b16 %v10228
    %v11692 = vunpack.c.l.b16 %v10229
    %v11693 = vunpack.c.h.b16 %v10229
    %v11694 = vunpack.c.l.b16 %v10230
    %v11695 = vunpack.c.h.b16 %v10230
    %v11696 = vunpack.c.l.b16 %v10231
    %v11697 = vunpack.c.h.b16 %v10231
    %v11698 = vunpack.c.l.b16 %v10232
    %v11699 = vunpack.c.h.b16 %v10232
    %v11700 = vunpack.c.l.b16 %v10233
    %v11701 = vunpack.c.h.b16 %v10233
    %v11702 = vunpack.c.l.b16 %v10234
    %v11703 = vunpack.c.h.b16 %v10234
    %v11704 = vunpack.c.l.b16 %v10235
    %v11705 = vunpack.c.h.b16 %v10235
    %v11706 = vunpack.c.l.b16 %v10236
    %v11707 = vunpack.c.h.b16 %v10236
    %v11708 = vunpack.c.l.b16 %v10237
    %v11709 = vunpack.c.h.b16 %v10237
    %v11710 = vunpack.c.l.b16 %v10238
    %v11711 = vunpack.c.h.b16 %v10238
    %v11712 = vunpack.c.l.b16 %v10239
    %v11713 = vunpack.c.h.b16 %v10239
    %v11714 = vunpack.c.l.b16 %v10240
    %v11715 = vunpack.c.h.b16 %v10240
    %v11716 = vunpack.c.l.b16 %v10241
    %v11717 = vunpack.c.h.b16 %v10241
    %v11718 = vunpack.c.l.b16 %v10242
    %v11719 = vunpack.c.h.b16 %v10242
    %v11720 = vunpack.c.l.b16 %v10243
    %v11721 = vunpack.c.h.b16 %v10243
    %v11722 = vunpack.c.l.b16 %v10244
    %v11723 = vunpack.c.h.b16 %v10244
    %v11724 = vunpack.c.l.b16 %v10245
    %v11725 = vunpack.c.h.b16 %v10245
    %v11726 = vunpack.c.l.b16 %v10246
    %v11727 = vunpack.c.h.b16 %v10246
    %v11728 = vunpack.c.l.b16 %v10247
    %v11729 = vunpack.c.h.b16 %v10247
    %v11730 = vunpack.c.l.b16 %v10248
    %v11731 = vunpack.c.h.b16 %v10248
    %v11732 = vunpack.c.l.b16 %v10249
    %v11733 = vunpack.c.h.b16 %v10249
    %v11734 = vunpack.c.l.b16 %v10250
    %v11735 = vunpack.c.h.b16 %v10250
    %v11736 = vunpack.c.l.b16 %v10251
    %v11737 = vunpack.c.h.b16 %v10251
    %v11738 = vunpack.c.l.b16 %v10252
    %v11739 = vunpack.c.h.b16 %v10252
    %v11740 = vunpack.c.l.b16 %v10253
    %v11741 = vunpack.c.h.b16 %v10253
    %v11742 = vunpack.c.l.b16 %v10254
    %v11743 = vunpack.c.h.b16 %v10254
    %v11744 = vunpack.c.l.b16 %v10255
    %v11745 = vunpack.c.h.b16 %v10255
    %v11746 = vunpack.c.l.b16 %v10256
    %v11747 = vunpack.c.h.b16 %v10256
    %v11748 = vunpack.c.l.b16 %v10257
    %v11749 = vunpack.c.h.b16 %v10257
    %v11750 = vunpack.c.l.b16 %v10258
    %v11751 = vunpack.c.h.b16 %v10258
    %v11752 = vunpack.c.l.b16 %v10259
    %v11753 = vunpack.c.h.b16 %v10259
    %v11754 = vunpack.c.l.b16 %v10260
    %v11755 = vunpack.c.h.b16 %v10260
    %v11756 = vunpack.c.l.b16 %v10261
    %v11757 = vunpack.c.h.b16 %v10261
    %v11758 = vunpack.c.l.b16 %v10262
    %v11759 = vunpack.c.h.b16 %v10262
    %v11760 = vunpack.c.l.b16 %v10263
    %v11761 = vunpack.c.h.b16 %v10263
    %v11762 = vunpack.c.l.b16 %v10264
    %v11763 = vunpack.c.h.b16 %v10264
    %v11764 = vunpack.c.l.b16 %v10265
    %v11765 = vunpack.c.h.b16 %v10265
    %v11766 = vunpack.c.l.b16 %v10266
    %v11767 = vunpack.c.h.b16 %v10266
    %v11768 = vunpack.c.l.b16 %v10267
    %v11769 = vunpack.c.h.b16 %v10267
    %v11770 = vunpack.c.l.b16 %v10268
    %v11771 = vunpack.c.h.b16 %v10268
    %v11772 = vunpack.c.l.b16 %v10269
    %v11773 = vunpack.c.h.b16 %v10269
    %v11774 = vunpack.c.l.b16 %v10270
    %v11775 = vunpack.c.h.b16 %v10270
    %v11776 = vunpack.c.l.b16 %v10271
    %v11777 = vunpack.c.h.b16 %v10271
    %v11778 = vunpack.c.l.b16 %v10272
    %v11779 = vunpack.c.h.b16 %v10272
    %v11780 = vunpack.c.l.b16 %v10273
    %v11781 = vunpack.c.h.b16 %v10273
    %v11782 = vunpack.c.l.b16 %v10274
    %v11783 = vunpack.c.h.b16 %v10274
    %v11784 = vunpack.c.l.b16 %v10275
    %v11785 = vunpack.c.h.b16 %v10275
    %v11786 = vunpack.c.l.b16 %v10276
    %v11787 = vunpack.c.h.b16 %v10276
    %v11788 = vunpack.c.l.b16 %v10277
    %v11789 = vunpack.c.h.b16 %v10277
    %v11790 = vunpack.c.l.b16 %v10278
    %v11791 = vunpack.c.h.b16 %v10278
    %v11792 = vunpack.c.l.b16 %v10279
    %v11793 = vunpack.c.h.b16 %v10279
    %v11794 = vunpack.c.l.b16 %v10280
    %v11795 = vunpack.c.h.b16 %v10280
    %v11796 = vunpack.c.l.b16 %v10281
    %v11797 = vunpack.c.h.b16 %v10281
    %v11798 = vunpack.c.l.b16 %v10282
    %v11799 = vunpack.c.h.b16 %v10282
    %v11800 = vunpack.c.l.b16 %v10283
    %v11801 = vunpack.c.h.b16 %v10283
    %v11802 = vunpack.c.l.b16 %v10284
    %v11803 = vunpack.c.h.b16 %v10284
    %v11804 = vunpack.c.l.b16 %v10285
    %v11805 = vunpack.c.h.b16 %v10285
    %v11806 = vunpack.c.l.b16 %v10286
    %v11807 = vunpack.c.h.b16 %v10286
    %v11808 = vunpack.c.l.b16 %v10287
    %v11809 = vunpack.c.h.b16 %v10287
    %v11810 = vunpack.c.l.b16 %v10288
    %v11811 = vunpack.c.h.b16 %v10288
    %v11812 = vunpack.c.l.b16 %v10289
    %v11813 = vunpack.c.h.b16 %v10289
    %v11814 = vunpack.c.l.b16 %v10290
    %v11815 = vunpack.c.h.b16 %v10290
    %v11816 = vunpack.c.l.b16 %v10291
    %v11817 = vunpack.c.h.b16 %v10291
    %v11818 = vunpack.c.l.b16 %v10292
    %v11819 = vunpack.c.h.b16 %v10292
    %v11820 = vunpack.c.l.b16 %v10293
    %v11821 = vunpack.c.h.b16 %v10293
    %v11822 = vunpack.c.l.b16 %v10294
    %v11823 = vunpack.c.h.b16 %v10294
    %v11824 = vunpack.c.l.b16 %v10295
    %v11825 = vunpack.c.h.b16 %v10295
    %v11826 = vunpack.c.l.b16 %v10296
    %v11827 = vunpack.c.h.b16 %v10296
    %v11828 = vunpack.c.l.b16 %v10297
    %v11829 = vunpack.c.h.b16 %v10297
    %v11830 = vunpack.c.l.b16 %v10298
    %v11831 = vunpack.c.h.b16 %v10298
    %v11832 = vunpack.c.l.b16 %v10299
    %v11833 = vunpack.c.h.b16 %v10299
    %v11834 = vunpack.c.l.b16 %v10300
    %v11835 = vunpack.c.h.b16 %v10300
    %v11836 = vunpack.c.l.b16 %v10301
    %v11837 = vunpack.c.h.b16 %v10301
    %v11838 = vunpack.c.l.b16 %v10302
    %v11839 = vunpack.c.h.b16 %v10302
    %v11840 = vunpack.c.l.b16 %v10303
    %v11841 = vunpack.c.h.b16 %v10303
    %v11842 = vunpack.c.l.b16 %v10304
    %v11843 = vunpack.c.h.b16 %v10304
    %v11844 = vunpack.c.l.b16 %v10305
    %v11845 = vunpack.c.h.b16 %v10305
    %v11846 = vunpack.c.l.b16 %v10306
    %v11847 = vunpack.c.h.b16 %v10306
    %v11848 = vunpack.c.l.b16 %v10307
    %v11849 = vunpack.c.h.b16 %v10307
    %v11850 = vunpack.c.l.b16 %v10308
    %v11851 = vunpack.c.h.b16 %v10308
    %v11852 = vunpack.c.l.b16 %v10309
    %v11853 = vunpack.c.h.b16 %v10309
    %v11854 = vunpack.c.l.b16 %v10310
    %v11855 = vunpack.c.h.b16 %v10310
    %v11856 = vunpack.c.l.b16 %v10311
    %v11857 = vunpack.c.h.b16 %v10311
    %v11858 = vunpack.c.l.b16 %v10312
    %v11859 = vunpack.c.h.b16 %v10312
    %v11860 = vunpack.c.l.b16 %v10313
    %v11861 = vunpack.c.h.b16 %v10313
    %v11862 = vunpack.c.l.b16 %v10314
    %v11863 = vunpack.c.h.b16 %v10314
    %v11864 = vunpack.c.l.b16 %v10315
    %v11865 = vunpack.c.h.b16 %v10315
    %v11866 = vunpack.c.l.b16 %v10316
    %v11867 = vunpack.c.h.b16 %v10316
    %v11868 = vunpack.c.l.b16 %v10317
    %v11869 = vunpack.c.h.b16 %v10317
    %v11870 = vunpack.c.l.b16 %v10318
    %v11871 = vunpack.c.h.b16 %v10318
    %v11872 = vunpack.c.l.b16 %v10319
    %v11873 = vunpack.c.h.b16 %v10319
    %v11874 = vunpack.c.l.b16 %v10320
    %v11875 = vunpack.c.h.b16 %v10320
    %v11876 = vunpack.c.l.b16 %v10321
    %v11877 = vunpack.c.h.b16 %v10321
    %v11878 = vunpack.c.l.b16 %v10322
    %v11879 = vunpack.c.h.b16 %v10322
    %v11880 = vunpack.c.l.b16 %v10323
    %v11881 = vunpack.c.h.b16 %v10323
    %v11882 = vunpack.c.l.b16 %v10324
    %v11883 = vunpack.c.h.b16 %v10324
    %v11884 = vunpack.c.l.b16 %v10325
    %v11885 = vunpack.c.h.b16 %v10325
    %v11886 = vunpack.c.l.b16 %v10326
    %v11887 = vunpack.c.h.b16 %v10326
    %v11888 = vunpack.c.l.b16 %v10327
    %v11889 = vunpack.c.h.b16 %v10327
    %v11890 = vunpack.c.l.b16 %v10328
    %v11891 = vunpack.c.h.b16 %v10328
    %v11892 = vunpack.c.l.b16 %v10329
    %v11893 = vunpack.c.h.b16 %v10329
    %v11894 = vunpack.c.l.b16 %v10330
    %v11895 = vunpack.c.h.b16 %v10330
    %v11896 = vunpack.c.l.b16 %v10331
    %v11897 = vunpack.c.h.b16 %v10331
    %v11898 = vunpack.c.l.b16 %v10332
    %v11899 = vunpack.c.h.b16 %v10332
    %v11900 = vunpack.c.l.b16 %v10333
    %v11901 = vunpack.c.h.b16 %v10333
    %v11902 = vunpack.c.l.b16 %v10334
    %v11903 = vunpack.c.h.b16 %v10334
    %v11904 = vunpack.c.l.b16 %v10335
    %v11905 = vunpack.c.h.b16 %v10335
    %v11906 = vunpack.c.l.b16 %v10336
    %v11907 = vunpack.c.h.b16 %v10336
    %v11908 = vunpack.c.l.b16 %v10337
    %v11909 = vunpack.c.h.b16 %v10337
    %v11910 = vunpack.c.l.b16 %v10338
    %v11911 = vunpack.c.h.b16 %v10338
    %v11912 = vunpack.c.l.b16 %v10339
    %v11913 = vunpack.c.h.b16 %v10339
    %v11914 = vunpack.c.l.b16 %v10340
    %v11915 = vunpack.c.h.b16 %v10340
    %v11916 = vunpack.c.l.b16 %v10341
    %v11917 = vunpack.c.h.b16 %v10341
    %v11918 = vunpack.c.l.b16 %v10342
    %v11919 = vunpack.c.h.b16 %v10342
    %v11920 = vunpack.c.l.b16 %v10343
    %v11921 = vunpack.c.h.b16 %v10343
    %v11922 = vunpack.c.l.b16 %v10344
    %v11923 = vunpack.c.h.b16 %v10344
    %v11924 = vunpack.c.l.b16 %v10345
    %v11925 = vunpack.c.h.b16 %v10345
    %v11926 = vunpack.c.l.b16 %v10346
    %v11927 = vunpack.c.h.b16 %v10346
    %v11928 = vunpack.c.l.b16 %v10347
    %v11929 = vunpack.c.h.b16 %v10347
    %v11930 = vunpack.c.l.b16 %v10348
    %v11931 = vunpack.c.h.b16 %v10348
    %v11932 = vunpack.c.l.b16 %v10349
    %v11933 = vunpack.c.h.b16 %v10349
    %v11934 = vunpack.c.l.b16 %v10350
    %v11935 = vunpack.c.h.b16 %v10350
    %v11936 = vunpack.c.l.b16 %v10351
    %v11937 = vunpack.c.h.b16 %v10351
    %v11938 = vunpack.c.l.b16 %v10352
    %v11939 = vunpack.c.h.b16 %v10352
    %v11940 = vunpack.c.l.b16 %v10353
    %v11941 = vunpack.c.h.b16 %v10353
    %v11942 = vunpack.c.l.b16 %v10354
    %v11943 = vunpack.c.h.b16 %v10354
    %v11944 = vunpack.c.l.b16 %v10355
    %v11945 = vunpack.c.h.b16 %v10355
    %v11946 = vunpack.c.l.b16 %v10356
    %v11947 = vunpack.c.h.b16 %v10356
    %v11948 = vunpack.c.l.b16 %v10357
    %v11949 = vunpack.c.h.b16 %v10357
    %v11950 = vunpack.c.l.b16 %v10358
    %v11951 = vunpack.c.h.b16 %v10358
    %v11952 = vunpack.c.l.b16 %v10359
    %v11953 = vunpack.c.h.b16 %v10359
    %v11954 = vunpack.c.l.b16 %v10360
    %v11955 = vunpack.c.h.b16 %v10360
    %v11956 = vunpack.c.l.b16 %v10361
    %v11957 = vunpack.c.h.b16 %v10361
    %v11958 = vunpack.c.l.b16 %v10362
    %v11959 = vunpack.c.h.b16 %v10362
    %v11960 = vunpack.c.l.b16 %v10363
    %v11961 = vunpack.c.h.b16 %v10363
    %v11962 = vunpack.c.l.b16 %v10364
    %v11963 = vunpack.c.h.b16 %v10364
    %v11964 = vunpack.c.l.b16 %v10365
    %v11965 = vunpack.c.h.b16 %v10365
    %v11966 = vunpack.c.l.b16 %v10366
    %v11967 = vunpack.c.h.b16 %v10366
    %v11968 = vunpack.c.l.b16 %v10367
    %v11969 = vunpack.c.h.b16 %v10367
    %v11970 = vunpack.c.l.b16 %v10368
    %v11971 = vunpack.c.h.b16 %v10368
    %v11972 = vunpack.c.l.b16 %v10369
    %v11973 = vunpack.c.h.b16 %v10369
    %v11974 = vunpack.c.l.b16 %v10370
    %v11975 = vunpack.c.h.b16 %v10370
    %v11976 = vunpack.c.l.b16 %v10371
    %v11977 = vunpack.c.h.b16 %v10371
    %v11978 = vunpack.c.l.b16 %v10372
    %v11979 = vunpack.c.h.b16 %v10372
    %v11980 = vunpack.c.l.b16 %v10373
    %v11981 = vunpack.c.h.b16 %v10373
    %v11982 = vunpack.c.l.b16 %v10374
    %v11983 = vunpack.c.h.b16 %v10374
    %v11984 = vunpack.c.l.b16 %v10375
    %v11985 = vunpack.c.h.b16 %v10375
    %v11986 = vunpack.c.l.b16 %v10376
    %v11987 = vunpack.c.h.b16 %v10376
    %v11988 = vunpack.c.l.b16 %v10377
    %v11989 = vunpack.c.h.b16 %v10377
    %v11990 = vpack.c.b16 %v10974, %v10966
    %v11991 = vpack.c.b16 %v10975, %v10967
    %v11992 = vpack.c.b16 %v10976, %v10968
    %v11993 = vpack.c.b16 %v10977, %v10969
    %v11994 = vpack.c.b16 %v10978, %v10970
    %v11995 = vpack.c.b16 %v10979, %v10971
    %v11996 = vpack.c.b16 %v10980, %v10972
    %v11997 = vpack.c.b16 %v10981, %v10973
    %v11998 = vpack.c.b16 %v10990, %v10982
    %v11999 = vpack.c.b16 %v10991, %v10983
    %v12000 = vpack.c.b16 %v10992, %v10984
    %v12001 = vpack.c.b16 %v10993, %v10985
    %v12002 = vpack.c.b16 %v10994, %v10986
    %v12003 = vpack.c.b16 %v10995, %v10987
    %v12004 = vpack.c.b16 %v10996, %v10988
    %v12005 = vpack.c.b16 %v10997, %v10989
    %v12006 = vpack.c.b16 %v11006, %v10998
    %v12007 = vpack.c.b16 %v11007, %v10999
    %v12008 = vpack.c.b16 %v11008, %v11000
    %v12009 = vpack.c.b16 %v11009, %v11001
    %v12010 = vpack.c.b16 %v11010, %v11002
    %v12011 = vpack.c.b16 %v11011, %v11003
    %v12012 = vpack.c.b16 %v11012, %v11004
    %v12013 = vpack.c.b16 %v11013, %v11005
    %v12014 = vpack.c.b16 %v11022, %v11014
    %v12015 = vpack.c.b16 %v11023, %v11015
    %v12016 = vpack.c.b16 %v11024, %v11016
    %v12017 = vpack.c.b16 %v11025, %v11017
    %v12018 = vpack.c.b16 %v11026, %v11018
    %v12019 = vpack.c.b16 %v11027, %v11019
    %v12020 = vpack.c.b16 %v11028, %v11020
    %v12021 = vpack.c.b16 %v11029, %v11021
    %v12022 = vpack.c.b16 %v11038, %v11030
    %v12023 = vpack.c.b16 %v11039, %v11031
    %v12024 = vpack.c.b16 %v11040, %v11032
    %v12025 = vpack.c.b16 %v11041, %v11033
    %v12026 = vpack.c.b16 %v11042, %v11034
    %v12027 = vpack.c.b16 %v11043, %v11035
    %v12028 = vpack.c.b16 %v11044, %v11036
    %v12029 = vpack.c.b16 %v11045, %v11037
    %v12030 = vpack.c.b16 %v11054, %v11046
    %v12031 = vpack.c.b16 %v11055, %v11047
    %v12032 = vpack.c.b16 %v11056, %v11048
    %v12033 = vpack.c.b16 %v11057, %v11049
    %v12034 = vpack.c.b16 %v11058, %v11050
    %v12035 = vpack.c.b16 %v11059, %v11051
    %v12036 = vpack.c.b16 %v11060, %v11052
    %v12037 = vpack.c.b16 %v11061, %v11053
    %v12038 = vpack.c.b16 %v11070, %v11062
    %v12039 = vpack.c.b16 %v11071, %v11063
    %v12040 = vpack.c.b16 %v11072, %v11064
    %v12041 = vpack.c.b16 %v11073, %v11065
    %v12042 = vpack.c.b16 %v11074, %v11066
    %v12043 = vpack.c.b16 %v11075, %v11067
    %v12044 = vpack.c.b16 %v11076, %v11068
    %v12045 = vpack.c.b16 %v11077, %v11069
    %v12046 = vpack.c.b16 %v11086, %v11078
    %v12047 = vpack.c.b16 %v11087, %v11079
    %v12048 = vpack.c.b16 %v11088, %v11080
    %v12049 = vpack.c.b16 %v11089, %v11081
    %v12050 = vpack.c.b16 %v11090, %v11082
    %v12051 = vpack.c.b16 %v11091, %v11083
    %v12052 = vpack.c.b16 %v11092, %v11084
    %v12053 = vpack.c.b16 %v11093, %v11085
    %v12054 = vpack.c.b16 %v11102, %v11094
    %v12055 = vpack.c.b16 %v11103, %v11095
    %v12056 = vpack.c.b16 %v11104, %v11096
    %v12057 = vpack.c.b16 %v11105, %v11097
    %v12058 = vpack.c.b16 %v11106, %v11098
    %v12059 = vpack.c.b16 %v11107, %v11099
    %v12060 = vpack.c.b16 %v11108, %v11100
    %v12061 = vpack.c.b16 %v11109, %v11101
    %v12062 = vpack.c.b16 %v11118, %v11110
    %v12063 = vpack.c.b16 %v11119, %v11111
    %v12064 = vpack.c.b16 %v11120, %v11112
    %v12065 = vpack.c.b16 %v11121, %v11113
    %v12066 = vpack.c.b16 %v11122, %v11114
    %v12067 = vpack.c.b16 %v11123, %v11115
    %v12068 = vpack.c.b16 %v11124, %v11116
    %v12069 = vpack.c.b16 %v11125, %v11117
    %v12070 = vpack.c.b16 %v11134, %v11126
    %v12071 = vpack.c.b16 %v11135, %v11127
    %v12072 = vpack.c.b16 %v11136, %v11128
    %v12073 = vpack.c.b16 %v11137, %v11129
    %v12074 = vpack.c.b16 %v11138, %v11130
    %v12075 = vpack.c.b16 %v11139, %v11131
    %v12076 = vpack.c.b16 %v11140, %v11132
    %v12077 = vpack.c.b16 %v11141, %v11133
    %v12078 = vpack.c.b16 %v11150, %v11142
    %v12079 = vpack.c.b16 %v11151, %v11143
    %v12080 = vpack.c.b16 %v11152, %v11144
    %v12081 = vpack.c.b16 %v11153, %v11145
    %v12082 = vpack.c.b16 %v11154, %v11146
    %v12083 = vpack.c.b16 %v11155, %v11147
    %v12084 = vpack.c.b16 %v11156, %v11148
    %v12085 = vpack.c.b16 %v11157, %v11149
    %v12086 = vpack.c.b16 %v11166, %v11158
    %v12087 = vpack.c.b16 %v11167, %v11159
    %v12088 = vpack.c.b16 %v11168, %v11160
    %v12089 = vpack.c.b16 %v11169, %v11161
    %v12090 = vpack.c.b16 %v11170, %v11162
    %v12091 = vpack.c.b16 %v11171, %v11163
    %v12092 = vpack.c.b16 %v11172, %v11164
    %v12093 = vpack.c.b16 %v11173, %v11165
    %v12094 = vpack.c.b16 %v11182, %v11174
    %v12095 = vpack.c.b16 %v11183, %v11175
    %v12096 = vpack.c.b16 %v11184, %v11176
    %v12097 = vpack.c.b16 %v11185, %v11177
    %v12098 = vpack.c.b16 %v11186, %v11178
    %v12099 = vpack.c.b16 %v11187, %v11179
    %v12100 = vpack.c.b16 %v11188, %v11180
    %v12101 = vpack.c.b16 %v11189, %v11181
    %v12102 = vpack.c.b16 %v11198, %v11190
    %v12103 = vpack.c.b16 %v11199, %v11191
    %v12104 = vpack.c.b16 %v11200, %v11192
    %v12105 = vpack.c.b16 %v11201, %v11193
    %v12106 = vpack.c.b16 %v11202, %v11194
    %v12107 = vpack.c.b16 %v11203, %v11195
    %v12108 = vpack.c.b16 %v11204, %v11196
    %v12109 = vpack.c.b16 %v11205, %v11197
    %v12110 = vpack.c.b16 %v11214, %v11206
    %v12111 = vpack.c.b16 %v11215, %v11207
    %v12112 = vpack.c.b16 %v11216, %v11208
    %v12113 = vpack.c.b16 %v11217, %v11209
    %v12114 = vpack.c.b16 %v11218, %v11210
    %v12115 = vpack.c.b16 %v11219, %v11211
    %v12116 = vpack.c.b16 %v11220, %v11212
    %v12117 = vpack.c.b16 %v11221, %v11213
    %v12118 = vpack.c.b16 %v11230, %v11222
    %v12119 = vpack.c.b16 %v11231, %v11223
    %v12120 = vpack.c.b16 %v11232, %v11224
    %v12121 = vpack.c.b16 %v11233, %v11225
    %v12122 = vpack.c.b16 %v11234, %v11226
    %v12123 = vpack.c.b16 %v11235, %v11227
    %v12124 = vpack.c.b16 %v11236, %v11228
    %v12125 = vpack.c.b16 %v11237, %v11229
    %v12126 = vpack.c.b16 %v11246, %v11238
    %v12127 = vpack.c.b16 %v11247, %v11239
    %v12128 = vpack.c.b16 %v11248, %v11240
    %v12129 = vpack.c.b16 %v11249, %v11241
    %v12130 = vpack.c.b16 %v11250, %v11242
    %v12131 = vpack.c.b16 %v11251, %v11243
    %v12132 = vpack.c.b16 %v11252, %v11244
    %v12133 = vpack.c.b16 %v11253, %v11245
    %v12134 = vpack.c.b16 %v11262, %v11254
    %v12135 = vpack.c.b16 %v11263, %v11255
    %v12136 = vpack.c.b16 %v11264, %v11256
    %v12137 = vpack.c.b16 %v11265, %v11257
    %v12138 = vpack.c.b16 %v11266, %v11258
    %v12139 = vpack.c.b16 %v11267, %v11259
    %v12140 = vpack.c.b16 %v11268, %v11260
    %v12141 = vpack.c.b16 %v11269, %v11261
    %v12142 = vpack.c.b16 %v11278, %v11270
    %v12143 = vpack.c.b16 %v11279, %v11271
    %v12144 = vpack.c.b16 %v11280, %v11272
    %v12145 = vpack.c.b16 %v11281, %v11273
    %v12146 = vpack.c.b16 %v11282, %v11274
    %v12147 = vpack.c.b16 %v11283, %v11275
    %v12148 = vpack.c.b16 %v11284, %v11276
    %v12149 = vpack.c.b16 %v11285, %v11277
    %v12150 = vpack.c.b16 %v11294, %v11286
    %v12151 = vpack.c.b16 %v11295, %v11287
    %v12152 = vpack.c.b16 %v11296, %v11288
    %v12153 = vpack.c.b16 %v11297, %v11289
    %v12154 = vpack.c.b16 %v11298, %v11290
    %v12155 = vpack.c.b16 %v11299, %v11291
    %v12156 = vpack.c.b16 %v11300, %v11292
    %v12157 = vpack.c.b16 %v11301, %v11293
    %v12158 = vpack.c.b16 %v11310, %v11302
    %v12159 = vpack.c.b16 %v11311, %v11303
    %v12160 = vpack.c.b16 %v11312, %v11304
    %v12161 = vpack.c.b16 %v11313, %v11305
    %v12162 = vpack.c.b16 %v11314, %v11306
    %v12163 = vpack.c.b16 %v11315, %v11307
    %v12164 = vpack.c.b16 %v11316, %v11308
    %v12165 = vpack.c.b16 %v11317, %v11309
    %v12166 = vpack.c.b16 %v11326, %v11318
    %v12167 = vpack.c.b16 %v11327, %v11319
    %v12168 = vpack.c.b16 %v11328, %v11320
    %v12169 = vpack.c.b16 %v11329, %v11321
    %v12170 = vpack.c.b16 %v11330, %v11322
    %v12171 = vpack.c.b16 %v11331, %v11323
    %v12172 = vpack.c.b16 %v11332, %v11324
    %v12173 = vpack.c.b16 %v11333, %v11325
    %v12174 = vpack.c.b16 %v11342, %v11334
    %v12175 = vpack.c.b16 %v11343, %v11335
    %v12176 = vpack.c.b16 %v11344, %v11336
    %v12177 = vpack.c.b16 %v11345, %v11337
    %v12178 = vpack.c.b16 %v11346, %v11338
    %v12179 = vpack.c.b16 %v11347, %v11339
    %v12180 = vpack.c.b16 %v11348, %v11340
    %v12181 = vpack.c.b16 %v11349, %v11341
    %v12182 = vpack.c.b16 %v11358, %v11350
    %v12183 = vpack.c.b16 %v11359, %v11351
    %v12184 = vpack.c.b16 %v11360, %v11352
    %v12185 = vpack.c.b16 %v11361, %v11353
    %v12186 = vpack.c.b16 %v11362, %v11354
    %v12187 = vpack.c.b16 %v11363, %v11355
    %v12188 = vpack.c.b16 %v11364, %v11356
    %v12189 = vpack.c.b16 %v11365, %v11357
    %v12190 = vpack.c.b16 %v11374, %v11366
    %v12191 = vpack.c.b16 %v11375, %v11367
    %v12192 = vpack.c.b16 %v11376, %v11368
    %v12193 = vpack.c.b16 %v11377, %v11369
    %v12194 = vpack.c.b16 %v11378, %v11370
    %v12195 = vpack.c.b16 %v11379, %v11371
    %v12196 = vpack.c.b16 %v11380, %v11372
    %v12197 = vpack.c.b16 %v11381, %v11373
    %v12198 = vpack.c.b16 %v11390, %v11382
    %v12199 = vpack.c.b16 %v11391, %v11383
    %v12200 = vpack.c.b16 %v11392, %v11384
    %v12201 = vpack.c.b16 %v11393, %v11385
    %v12202 = vpack.c.b16 %v11394, %v11386
    %v12203 = vpack.c.b16 %v11395, %v11387
    %v12204 = vpack.c.b16 %v11396, %v11388
    %v12205 = vpack.c.b16 %v11397, %v11389
    %v12206 = vpack.c.b16 %v11406, %v11398
    %v12207 = vpack.c.b16 %v11407, %v11399
    %v12208 = vpack.c.b16 %v11408, %v11400
    %v12209 = vpack.c.b16 %v11409, %v11401
    %v12210 = vpack.c.b16 %v11410, %v11402
    %v12211 = vpack.c.b16 %v11411, %v11403
    %v12212 = vpack.c.b16 %v11412, %v11404
    %v12213 = vpack.c.b16 %v11413, %v11405
    %v12214 = vpack.c.b16 %v11422, %v11414
    %v12215 = vpack.c.b16 %v11423, %v11415
    %v12216 = vpack.c.b16 %v11424, %v11416
    %v12217 = vpack.c.b16 %v11425, %v11417
    %v12218 = vpack.c.b16 %v11426, %v11418
    %v12219 = vpack.c.b16 %v11427, %v11419
    %v12220 = vpack.c.b16 %v11428, %v11420
    %v12221 = vpack.c.b16 %v11429, %v11421
    %v12222 = vpack.c.b16 %v11438, %v11430
    %v12223 = vpack.c.b16 %v11439, %v11431
    %v12224 = vpack.c.b16 %v11440, %v11432
    %v12225 = vpack.c.b16 %v11441, %v11433
    %v12226 = vpack.c.b16 %v11442, %v11434
    %v12227 = vpack.c.b16 %v11443, %v11435
    %v12228 = vpack.c.b16 %v11444, %v11436
    %v12229 = vpack.c.b16 %v11445, %v11437
    %v12230 = vpack.c.b16 %v11454, %v11446
    %v12231 = vpack.c.b16 %v11455, %v11447
    %v12232 = vpack.c.b16 %v11456, %v11448
    %v12233 = vpack.c.b16 %v11457, %v11449
    %v12234 = vpack.c.b16 %v11458, %v11450
    %v12235 = vpack.c.b16 %v11459, %v11451
    %v12236 = vpack.c.b16 %v11460, %v11452
    %v12237 = vpack.c.b16 %v11461, %v11453
    %v12238 = vpack.c.b16 %v11470, %v11462
    %v12239 = vpack.c.b16 %v11471, %v11463
    %v12240 = vpack.c.b16 %v11472, %v11464
    %v12241 = vpack.c.b16 %v11473, %v11465
    %v12242 = vpack.c.b16 %v11474, %v11466
    %v12243 = vpack.c.b16 %v11475, %v11467
    %v12244 = vpack.c.b16 %v11476, %v11468
    %v12245 = vpack.c.b16 %v11477, %v11469
    %v12246 = vpack.c.b16 %v11486, %v11478
    %v12247 = vpack.c.b16 %v11487, %v11479
    %v12248 = vpack.c.b16 %v11488, %v11480
    %v12249 = vpack.c.b16 %v11489, %v11481
    %v12250 = vpack.c.b16 %v11490, %v11482
    %v12251 = vpack.c.b16 %v11491, %v11483
    %v12252 = vpack.c.b16 %v11492, %v11484
    %v12253 = vpack.c.b16 %v11493, %v11485
    %v12254 = vpack.c.b16 %v11502, %v11494
    %v12255 = vpack.c.b16 %v11503, %v11495
    %v12256 = vpack.c.b16 %v11504, %v11496
    %v12257 = vpack.c.b16 %v11505, %v11497
    %v12258 = vpack.c.b16 %v11506, %v11498
    %v12259 = vpack.c.b16 %v11507, %v11499
    %v12260 = vpack.c.b16 %v11508, %v11500
    %v12261 = vpack.c.b16 %v11509, %v11501
    %v12262 = vpack.c.b16 %v11518, %v11510
    %v12263 = vpack.c.b16 %v11519, %v11511
    %v12264 = vpack.c.b16 %v11520, %v11512
    %v12265 = vpack.c.b16 %v11521, %v11513
    %v12266 = vpack.c.b16 %v11522, %v11514
    %v12267 = vpack.c.b16 %v11523, %v11515
    %v12268 = vpack.c.b16 %v11524, %v11516
    %v12269 = vpack.c.b16 %v11525, %v11517
    %v12270 = vpack.c.b16 %v11534, %v11526
    %v12271 = vpack.c.b16 %v11535, %v11527
    %v12272 = vpack.c.b16 %v11536, %v11528
    %v12273 = vpack.c.b16 %v11537, %v11529
    %v12274 = vpack.c.b16 %v11538, %v11530
    %v12275 = vpack.c.b16 %v11539, %v11531
    %v12276 = vpack.c.b16 %v11540, %v11532
    %v12277 = vpack.c.b16 %v11541, %v11533
    %v12278 = vpack.c.b16 %v11550, %v11542
    %v12279 = vpack.c.b16 %v11551, %v11543
    %v12280 = vpack.c.b16 %v11552, %v11544
    %v12281 = vpack.c.b16 %v11553, %v11545
    %v12282 = vpack.c.b16 %v11554, %v11546
    %v12283 = vpack.c.b16 %v11555, %v11547
    %v12284 = vpack.c.b16 %v11556, %v11548
    %v12285 = vpack.c.b16 %v11557, %v11549
    %v12286 = vpack.c.b16 %v11566, %v11558
    %v12287 = vpack.c.b16 %v11567, %v11559
    %v12288 = vpack.c.b16 %v11568, %v11560
    %v12289 = vpack.c.b16 %v11569, %v11561
    %v12290 = vpack.c.b16 %v11570, %v11562
    %v12291 = vpack.c.b16 %v11571, %v11563
    %v12292 = vpack.c.b16 %v11572, %v11564
    %v12293 = vpack.c.b16 %v11573, %v11565
    %v12294 = vpack.c.b16 %v11582, %v11574
    %v12295 = vpack.c.b16 %v11583, %v11575
    %v12296 = vpack.c.b16 %v11584, %v11576
    %v12297 = vpack.c.b16 %v11585, %v11577
    %v12298 = vpack.c.b16 %v11586, %v11578
    %v12299 = vpack.c.b16 %v11587, %v11579
    %v12300 = vpack.c.b16 %v11588, %v11580
    %v12301 = vpack.c.b16 %v11589, %v11581
    %v12302 = vpack.c.b16 %v11598, %v11590
    %v12303 = vpack.c.b16 %v11599, %v11591
    %v12304 = vpack.c.b16 %v11600, %v11592
    %v12305 = vpack.c.b16 %v11601, %v11593
    %v12306 = vpack.c.b16 %v11602, %v11594
    %v12307 = vpack.c.b16 %v11603, %v11595
    %v12308 = vpack.c.b16 %v11604, %v11596
    %v12309 = vpack.c.b16 %v11605, %v11597
    %v12310 = vpack.c.b16 %v11614, %v11606
    %v12311 = vpack.c.b16 %v11615, %v11607
    %v12312 = vpack.c.b16 %v11616, %v11608
    %v12313 = vpack.c.b16 %v11617, %v11609
    %v12314 = vpack.c.b16 %v11618, %v11610
    %v12315 = vpack.c.b16 %v11619, %v11611
    %v12316 = vpack.c.b16 %v11620, %v11612
    %v12317 = vpack.c.b16 %v11621, %v11613
    %v12318 = vpack.c.b16 %v11630, %v11622
    %v12319 = vpack.c.b16 %v11631, %v11623
    %v12320 = vpack.c.b16 %v11632, %v11624
    %v12321 = vpack.c.b16 %v11633, %v11625
    %v12322 = vpack.c.b16 %v11634, %v11626
    %v12323 = vpack.c.b16 %v11635, %v11627
    %v12324 = vpack.c.b16 %v11636, %v11628
    %v12325 = vpack.c.b16 %v11637, %v11629
    %v12326 = vpack.c.b16 %v11646, %v11638
    %v12327 = vpack.c.b16 %v11647, %v11639
    %v12328 = vpack.c.b16 %v11648, %v11640
    %v12329 = vpack.c.b16 %v11649, %v11641
    %v12330 = vpack.c.b16 %v11650, %v11642
    %v12331 = vpack.c.b16 %v11651, %v11643
    %v12332 = vpack.c.b16 %v11652, %v11644
    %v12333 = vpack.c.b16 %v11653, %v11645
    %v12334 = vpack.c.b16 %v11662, %v11654
    %v12335 = vpack.c.b16 %v11663, %v11655
    %v12336 = vpack.c.b16 %v11664, %v11656
    %v12337 = vpack.c.b16 %v11665, %v11657
    %v12338 = vpack.c.b16 %v11666, %v11658
    %v12339 = vpack.c.b16 %v11667, %v11659
    %v12340 = vpack.c.b16 %v11668, %v11660
    %v12341 = vpack.c.b16 %v11669, %v11661
    %v12342 = vpack.c.b16 %v11678, %v11670
    %v12343 = vpack.c.b16 %v11679, %v11671
    %v12344 = vpack.c.b16 %v11680, %v11672
    %v12345 = vpack.c.b16 %v11681, %v11673
    %v12346 = vpack.c.b16 %v11682, %v11674
    %v12347 = vpack.c.b16 %v11683, %v11675
    %v12348 = vpack.c.b16 %v11684, %v11676
    %v12349 = vpack.c.b16 %v11685, %v11677
    %v12350 = vpack.c.b16 %v11694, %v11686
    %v12351 = vpack.c.b16 %v11695, %v11687
    %v12352 = vpack.c.b16 %v11696, %v11688
    %v12353 = vpack.c.b16 %v11697, %v11689
    %v12354 = vpack.c.b16 %v11698, %v11690
    %v12355 = vpack.c.b16 %v11699, %v11691
    %v12356 = vpack.c.b16 %v11700, %v11692
    %v12357 = vpack.c.b16 %v11701, %v11693
    %v12358 = vpack.c.b16 %v11710, %v11702
    %v12359 = vpack.c.b16 %v11711, %v11703
    %v12360 = vpack.c.b16 %v11712, %v11704
    %v12361 = vpack.c.b16 %v11713, %v11705
    %v12362 = vpack.c.b16 %v11714, %v11706
    %v12363 = vpack.c.b16 %v11715, %v11707
    %v12364 = vpack.c.b16 %v11716, %v11708
    %v12365 = vpack.c.b16 %v11717, %v11709
    %v12366 = vpack.c.b16 %v11726, %v11718
    %v12367 = vpack.c.b16 %v11727, %v11719
    %v12368 = vpack.c.b16 %v11728, %v11720
    %v12369 = vpack.c.b16 %v11729, %v11721
    %v12370 = vpack.c.b16 %v11730, %v11722
    %v12371 = vpack.c.b16 %v11731, %v11723
    %v12372 = vpack.c.b16 %v11732, %v11724
    %v12373 = vpack.c.b16 %v11733, %v11725
    %v12374 = vpack.c.b16 %v11742, %v11734
    %v12375 = vpack.c.b16 %v11743, %v11735
    %v12376 = vpack.c.b16 %v11744, %v11736
    %v12377 = vpack.c.b16 %v11745, %v11737
    %v12378 = vpack.c.b16 %v11746, %v11738
    %v12379 = vpack.c.b16 %v11747, %v11739
    %v12380 = vpack.c.b16 %v11748, %v11740
    %v12381 = vpack.c.b16 %v11749, %v11741
    %v12382 = vpack.c.b16 %v11758, %v11750
    %v12383 = vpack.c.b16 %v11759, %v11751
    %v12384 = vpack.c.b16 %v11760, %v11752
    %v12385 = vpack.c.b16 %v11761, %v11753
    %v12386 = vpack.c.b16 %v11762, %v11754
    %v12387 = vpack.c.b16 %v11763, %v11755
    %v12388 = vpack.c.b16 %v11764, %v11756
    %v12389 = vpack.c.b16 %v11765, %v11757
    %v12390 = vpack.c.b16 %v11774, %v11766
    %v12391 = vpack.c.b16 %v11775, %v11767
    %v12392 = vpack.c.b16 %v11776, %v11768
    %v12393 = vpack.c.b16 %v11777, %v11769
    %v12394 = vpack.c.b16 %v11778, %v11770
    %v12395 = vpack.c.b16 %v11779, %v11771
    %v12396 = vpack.c.b16 %v11780, %v11772
    %v12397 = vpack.c.b16 %v11781, %v11773
    %v12398 = vpack.c.b16 %v11790, %v11782
    %v12399 = vpack.c.b16 %v11791, %v11783
    %v12400 = vpack.c.b16 %v11792, %v11784
    %v12401 = vpack.c.b16 %v11793, %v11785
    %v12402 = vpack.c.b16 %v11794, %v11786
    %v12403 = vpack.c.b16 %v11795, %v11787
    %v12404 = vpack.c.b16 %v11796, %v11788
    %v12405 = vpack.c.b16 %v11797, %v11789
    %v12406 = vpack.c.b16 %v11806, %v11798
    %v12407 = vpack.c.b16 %v11807, %v11799
    %v12408 = vpack.c.b16 %v11808, %v11800
    %v12409 = vpack.c.b16 %v11809, %v11801
    %v12410 = vpack.c.b16 %v11810, %v11802
    %v12411 = vpack.c.b16 %v11811, %v11803
    %v12412 = vpack.c.b16 %v11812, %v11804
    %v12413 = vpack.c.b16 %v11813, %v11805
    %v12414 = vpack.c.b16 %v11822, %v11814
    %v12415 = vpack.c.b16 %v11823, %v11815
    %v12416 = vpack.c.b16 %v11824, %v11816
    %v12417 = vpack.c.b16 %v11825, %v11817
    %v12418 = vpack.c.b16 %v11826, %v11818
    %v12419 = vpack.c.b16 %v11827, %v11819
    %v12420 = vpack.c.b16 %v11828, %v11820
    %v12421 = vpack.c.b16 %v11829, %v11821
    %v12422 = vpack.c.b16 %v11838, %v11830
    %v12423 = vpack.c.b16 %v11839, %v11831
    %v12424 = vpack.c.b16 %v11840, %v11832
    %v12425 = vpack.c.b16 %v11841, %v11833
    %v12426 = vpack.c.b16 %v11842, %v11834
    %v12427 = vpack.c.b16 %v11843, %v11835
    %v12428 = vpack.c.b16 %v11844, %v11836
    %v12429 = vpack.c.b16 %v11845, %v11837
    %v12430 = vpack.c.b16 %v11854, %v11846
    %v12431 = vpack.c.b16 %v11855, %v11847
    %v12432 = vpack.c.b16 %v11856, %v11848
    %v12433 = vpack.c.b16 %v11857, %v11849
    %v12434 = vpack.c.b16 %v11858, %v11850
    %v12435 = vpack.c.b16 %v11859, %v11851
    %v12436 = vpack.c.b16 %v11860, %v11852
    %v12437 = vpack.c.b16 %v11861, %v11853
    %v12438 = vpack.c.b16 %v11870, %v11862
    %v12439 = vpack.c.b16 %v11871, %v11863
    %v12440 = vpack.c.b16 %v11872, %v11864
    %v12441 = vpack.c.b16 %v11873, %v11865
    %v12442 = vpack.c.b16 %v11874, %v11866
    %v12443 = vpack.c.b16 %v11875, %v11867
    %v12444 = vpack.c.b16 %v11876, %v11868
    %v12445 = vpack.c.b16 %v11877, %v11869
    %v12446 = vpack.c.b16 %v11886, %v11878
    %v12447 = vpack.c.b16 %v11887, %v11879
    %v12448 = vpack.c.b16 %v11888, %v11880
    %v12449 = vpack.c.b16 %v11889, %v11881
    %v12450 = vpack.c.b16 %v11890, %v11882
    %v12451 = vpack.c.b16 %v11891, %v11883
    %v12452 = vpack.c.b16 %v11892, %v11884
    %v12453 = vpack.c.b16 %v11893, %v11885
    %v12454 = vpack.c.b16 %v11902, %v11894
    %v12455 = vpack.c.b16 %v11903, %v11895
    %v12456 = vpack.c.b16 %v11904, %v11896
    %v12457 = vpack.c.b16 %v11905, %v11897
    %v12458 = vpack.c.b16 %v11906, %v11898
    %v12459 = vpack.c.b16 %v11907, %v11899
    %v12460 = vpack.c.b16 %v11908, %v11900
    %v12461 = vpack.c.b16 %v11909, %v11901
    %v12462 = vpack.c.b16 %v11918, %v11910
    %v12463 = vpack.c.b16 %v11919, %v11911
    %v12464 = vpack.c.b16 %v11920, %v11912
    %v12465 = vpack.c.b16 %v11921, %v11913
    %v12466 = vpack.c.b16 %v11922, %v11914
    %v12467 = vpack.c.b16 %v11923, %v11915
    %v12468 = vpack.c.b16 %v11924, %v11916
    %v12469 = vpack.c.b16 %v11925, %v11917
    %v12470 = vpack.c.b16 %v11934, %v11926
    %v12471 = vpack.c.b16 %v11935, %v11927
    %v12472 = vpack.c.b16 %v11936, %v11928
    %v12473 = vpack.c.b16 %v11937, %v11929
    %v12474 = vpack.c.b16 %v11938, %v11930
    %v12475 = vpack.c.b16 %v11939, %v11931
    %v12476 = vpack.c.b16 %v11940, %v11932
    %v12477 = vpack.c.b16 %v11941, %v11933
    %v12478 = vpack.c.b16 %v11950, %v11942
    %v12479 = vpack.c.b16 %v11951, %v11943
    %v12480 = vpack.c.b16 %v11952, %v11944
    %v12481 = vpack.c.b16 %v11953, %v11945
    %v12482 = vpack.c.b16 %v11954, %v11946
    %v12483 = vpack.c.b16 %v11955, %v11947
    %v12484 = vpack.c.b16 %v11956, %v11948
    %v12485 = vpack.c.b16 %v11957, %v11949
    %v12486 = vpack.c.b16 %v11966, %v11958
    %v12487 = vpack.c.b16 %v11967, %v11959
    %v12488 = vpack.c.b16 %v11968, %v11960
    %v12489 = vpack.c.b16 %v11969, %v11961
    %v12490 = vpack.c.b16 %v11970, %v11962
    %v12491 = vpack.c.b16 %v11971, %v11963
    %v12492 = vpack.c.b16 %v11972, %v11964
    %v12493 = vpack.c.b16 %v11973, %v11965
    %v12494 = vpack.c.b16 %v11982, %v11974
    %v12495 = vpack.c.b16 %v11983, %v11975
    %v12496 = vpack.c.b16 %v11984, %v11976
    %v12497 = vpack.c.b16 %v11985, %v11977
    %v12498 = vpack.c.b16 %v11986, %v11978
    %v12499 = vpack.c.b16 %v11987, %v11979
    %v12500 = vpack.c.b16 %v11988, %v11980
    %v12501 = vpack.c.b16 %v11989, %v11981
    %13014 = vmatprep.subr.bf16.mxu0 %v12047
    %13015 = vmatpush1.bf16.msra.mxu0 %v12046
    %13016 = vmatprep.subr.bf16.mxu0 %v12039
    %13017 = vmatpush1.bf16.msra.mxu0 %v12038
    %13018 = vmatprep.subr.bf16.mxu0 %v12031
    %13019 = vmatpush1.bf16.msra.mxu0 %v12030
    %13020 = vmatprep.subr.bf16.mxu0 %v12023
    %13021 = vmatpush1.bf16.msra.mxu0 %v12022
    %13022 = vmatprep.subr.bf16.mxu0 %v12015
    %13023 = vmatpush1.bf16.msra.mxu0 %v12014
    %13024 = vmatprep.subr.bf16.mxu0 %v12007
    %13025 = vmatpush1.bf16.msra.mxu0 %v12006
    %13026 = vmatprep.subr.bf16.mxu0 %v11999
    %13027 = vmatpush1.bf16.msra.mxu0 %v11998
    %13028 = vmatprep.subr.bf16.mxu0 %v11991
    %13029 = vmatpush1.bf16.msra.mxu0 %v11990
    %13030 = vmatprep.subr.bf16.mxu0 %v12111
    %13031 = vmatpush2.bf16.msra.mxu0 %v12110
    %13032 = vmatprep.subr.bf16.mxu0 %v12103
    %13033 = vmatpush2.bf16.msra.mxu0 %v12102
    %13034 = vmatprep.subr.bf16.mxu0 %v12095
    %13035 = vmatpush2.bf16.msra.mxu0 %v12094
    %13036 = vmatprep.subr.bf16.mxu0 %v12087
    %13037 = vmatpush2.bf16.msra.mxu0 %v12086
    %13038 = vmatprep.subr.bf16.mxu0 %v12079
    %13039 = vmatpush2.bf16.msra.mxu0 %v12078
    %13040 = vmatprep.subr.bf16.mxu0 %v12071
    %13041 = vmatpush2.bf16.msra.mxu0 %v12070
    %13042 = vmatprep.subr.bf16.mxu0 %v12063
    %13043 = vmatpush2.bf16.msra.mxu0 %v12062
    %13044 = vmatprep.subr.bf16.mxu0 %v12055
    %13045 = vmatpush2.bf16.msra.mxu0 %v12054
    %13046 = vmatprep.mubr.bf16.mxu0 %v9859
    %13047 = vmatmul.mubr.bf16.gmra.mxu0 %v9858
    %v13048 = vpop.f32.mrf.mxu0
    %v13049 = vadd.f32 %v10425, %v13048
    %v13050 = vpop.f32.mrf.mxu0
    %v13051 = vadd.f32 %v10429, %v13050
    %v13052 = vpop.f32.mrf.mxu0
    %v13053 = vpop.f32.mrf.mxu0
    %13054 = vdwg.mxu0
    %13055 = vmatprep.subr.bf16.mxu0 %v12175
    %13056 = vmatpush1.bf16.msra.mxu0 %v12174
    %13057 = vmatprep.subr.bf16.mxu0 %v12167
    %13058 = vmatpush1.bf16.msra.mxu0 %v12166
    %13059 = vmatprep.subr.bf16.mxu0 %v12159
    %13060 = vmatpush1.bf16.msra.mxu0 %v12158
    %13061 = vmatprep.subr.bf16.mxu0 %v12151
    %13062 = vmatpush1.bf16.msra.mxu0 %v12150
    %13063 = vmatprep.subr.bf16.mxu0 %v12143
    %13064 = vmatpush1.bf16.msra.mxu0 %v12142
    %13065 = vmatprep.subr.bf16.mxu0 %v12135
    %13066 = vmatpush1.bf16.msra.mxu0 %v12134
    %13067 = vmatprep.subr.bf16.mxu0 %v12127
    %13068 = vmatpush1.bf16.msra.mxu0 %v12126
    %13069 = vmatprep.subr.bf16.mxu0 %v12119
    %13070 = vmatpush1.bf16.msra.mxu0 %v12118
    %13071 = vmatprep.subr.bf16.mxu0 %v12239
    %13072 = vmatpush2.bf16.msra.mxu0 %v12238
    %13073 = vmatprep.subr.bf16.mxu0 %v12231
    %13074 = vmatpush2.bf16.msra.mxu0 %v12230
    %13075 = vmatprep.subr.bf16.mxu0 %v12223
    %13076 = vmatpush2.bf16.msra.mxu0 %v12222
    %13077 = vmatprep.subr.bf16.mxu0 %v12215
    %13078 = vmatpush2.bf16.msra.mxu0 %v12214
    %13079 = vmatprep.subr.bf16.mxu0 %v12207
    %13080 = vmatpush2.bf16.msra.mxu0 %v12206
    %13081 = vmatprep.subr.bf16.mxu0 %v12199
    %13082 = vmatpush2.bf16.msra.mxu0 %v12198
    %13083 = vmatprep.subr.bf16.mxu0 %v12191
    %13084 = vmatpush2.bf16.msra.mxu0 %v12190
    %13085 = vmatprep.subr.bf16.mxu0 %v12183
    %13086 = vmatpush2.bf16.msra.mxu0 %v12182
    %13087 = vmatprep.mubr.bf16.mxu0 %v9861
    %13088 = vmatmul.mubr.bf16.gmra.mxu0 %v9860
    %v13089 = vpop.f32.mrf.mxu0
    %v13090 = vadd.f32 %v13049, %v13089
    %v13091 = vpop.f32.mrf.mxu0
    %v13092 = vadd.f32 %v13051, %v13091
    %v13093 = vpop.f32.mrf.mxu0
    %v13094 = vpop.f32.mrf.mxu0
    %13095 = vdwg.mxu0
    %13096 = vmatprep.subr.bf16.mxu0 %v12303
    %13097 = vmatpush1.bf16.msra.mxu0 %v12302
    %13098 = vmatprep.subr.bf16.mxu0 %v12295
    %13099 = vmatpush1.bf16.msra.mxu0 %v12294
    %13100 = vmatprep.subr.bf16.mxu0 %v12287
    %13101 = vmatpush1.bf16.msra.mxu0 %v12286
    %13102 = vmatprep.subr.bf16.mxu0 %v12279
    %13103 = vmatpush1.bf16.msra.mxu0 %v12278
    %13104 = vmatprep.subr.bf16.mxu0 %v12271
    %13105 = vmatpush1.bf16.msra.mxu0 %v12270
    %13106 = vmatprep.subr.bf16.mxu0 %v12263
    %13107 = vmatpush1.bf16.msra.mxu0 %v12262
    %13108 = vmatprep.subr.bf16.mxu0 %v12255
    %13109 = vmatpush1.bf16.msra.mxu0 %v12254
    %13110 = vmatprep.subr.bf16.mxu0 %v12247
    %13111 = vmatpush1.bf16.msra.mxu0 %v12246
    %13112 = vmatprep.subr.bf16.mxu0 %v12367
    %13113 = vmatpush2.bf16.msra.mxu0 %v12366
    %13114 = vmatprep.subr.bf16.mxu0 %v12359
    %13115 = vmatpush2.bf16.msra.mxu0 %v12358
    %13116 = vmatprep.subr.bf16.mxu0 %v12351
    %13117 = vmatpush2.bf16.msra.mxu0 %v12350
    %13118 = vmatprep.subr.bf16.mxu0 %v12343
    %13119 = vmatpush2.bf16.msra.mxu0 %v12342
    %13120 = vmatprep.subr.bf16.mxu0 %v12335
    %13121 = vmatpush2.bf16.msra.mxu0 %v12334
    %13122 = vmatprep.subr.bf16.mxu0 %v12327
    %13123 = vmatpush2.bf16.msra.mxu0 %v12326
    %13124 = vmatprep.subr.bf16.mxu0 %v12319
    %13125 = vmatpush2.bf16.msra.mxu0 %v12318
    %13126 = vmatprep.subr.bf16.mxu0 %v12311
    %13127 = vmatpush2.bf16.msra.mxu0 %v12310
    %13128 = vmatprep.mubr.bf16.mxu0 %v9863
    %13129 = vmatmul.mubr.bf16.gmra.mxu0 %v9862
    %v13130 = vpop.f32.mrf.mxu0
    %v13131 = vadd.f32 %v13090, %v13130
    %v13132 = vpop.f32.mrf.mxu0
    %v13133 = vadd.f32 %v13092, %v13132
    %v13134 = vpop.f32.mrf.mxu0
    %v13135 = vpop.f32.mrf.mxu0
    %13136 = vdwg.mxu0
    %13137 = vmatprep.subr.bf16.mxu0 %v12431
    %13138 = vmatpush1.bf16.msra.mxu0 %v12430
    %13139 = vmatprep.subr.bf16.mxu0 %v12423
    %13140 = vmatpush1.bf16.msra.mxu0 %v12422
    %13141 = vmatprep.subr.bf16.mxu0 %v12415
    %13142 = vmatpush1.bf16.msra.mxu0 %v12414
    %13143 = vmatprep.subr.bf16.mxu0 %v12407
    %13144 = vmatpush1.bf16.msra.mxu0 %v12406
    %13145 = vmatprep.subr.bf16.mxu0 %v12399
    %13146 = vmatpush1.bf16.msra.mxu0 %v12398
    %13147 = vmatprep.subr.bf16.mxu0 %v12391
    %13148 = vmatpush1.bf16.msra.mxu0 %v12390
    %13149 = vmatprep.subr.bf16.mxu0 %v12383
    %13150 = vmatpush1.bf16.msra.mxu0 %v12382
    %13151 = vmatprep.subr.bf16.mxu0 %v12375
    %13152 = vmatpush1.bf16.msra.mxu0 %v12374
    %13153 = vmatprep.subr.bf16.mxu0 %v12495
    %13154 = vmatpush2.bf16.msra.mxu0 %v12494
    %13155 = vmatprep.subr.bf16.mxu0 %v12487
    %13156 = vmatpush2.bf16.msra.mxu0 %v12486
    %13157 = vmatprep.subr.bf16.mxu0 %v12479
    %13158 = vmatpush2.bf16.msra.mxu0 %v12478
    %13159 = vmatprep.subr.bf16.mxu0 %v12471
    %13160 = vmatpush2.bf16.msra.mxu0 %v12470
    %13161 = vmatprep.subr.bf16.mxu0 %v12463
    %13162 = vmatpush2.bf16.msra.mxu0 %v12462
    %13163 = vmatprep.subr.bf16.mxu0 %v12455
    %13164 = vmatpush2.bf16.msra.mxu0 %v12454
    %13165 = vmatprep.subr.bf16.mxu0 %v12447
    %13166 = vmatpush2.bf16.msra.mxu0 %v12446
    %13167 = vmatprep.subr.bf16.mxu0 %v12439
    %13168 = vmatpush2.bf16.msra.mxu0 %v12438
    %13169 = vmatprep.mubr.bf16.mxu0 %v9865
    %13170 = vmatmul.mubr.bf16.gmra.mxu0 %v9864
    %v13171 = vpop.f32.mrf.mxu0
    %v13172 = vadd.f32 %v13131, %v13171
    %v13173 = vpop.f32.mrf.mxu0
    %v13174 = vadd.f32 %v13133, %v13173
    %v13175 = vpop.f32.mrf.mxu0
    %v13176 = vpop.f32.mrf.mxu0
    %13177 = vdwg.mxu0
    %13178 = vmatprep.subr.bf16.mxu0 %v12049
    %13179 = vmatpush1.bf16.msra.mxu0 %v12048
    %13180 = vmatprep.subr.bf16.mxu0 %v12041
    %13181 = vmatpush1.bf16.msra.mxu0 %v12040
    %13182 = vmatprep.subr.bf16.mxu0 %v12033
    %13183 = vmatpush1.bf16.msra.mxu0 %v12032
    %13184 = vmatprep.subr.bf16.mxu0 %v12025
    %13185 = vmatpush1.bf16.msra.mxu0 %v12024
    %13186 = vmatprep.subr.bf16.mxu0 %v12017
    %13187 = vmatpush1.bf16.msra.mxu0 %v12016
    %13188 = vmatprep.subr.bf16.mxu0 %v12009
    %13189 = vmatpush1.bf16.msra.mxu0 %v12008
    %13190 = vmatprep.subr.bf16.mxu0 %v12001
    %13191 = vmatpush1.bf16.msra.mxu0 %v12000
    %13192 = vmatprep.subr.bf16.mxu0 %v11993
    %13193 = vmatpush1.bf16.msra.mxu0 %v11992
    %13194 = vmatprep.subr.bf16.mxu0 %v12113
    %13195 = vmatpush2.bf16.msra.mxu0 %v12112
    %13196 = vmatprep.subr.bf16.mxu0 %v12105
    %13197 = vmatpush2.bf16.msra.mxu0 %v12104
    %13198 = vmatprep.subr.bf16.mxu0 %v12097
    %13199 = vmatpush2.bf16.msra.mxu0 %v12096
    %13200 = vmatprep.subr.bf16.mxu0 %v12089
    %13201 = vmatpush2.bf16.msra.mxu0 %v12088
    %13202 = vmatprep.subr.bf16.mxu0 %v12081
    %13203 = vmatpush2.bf16.msra.mxu0 %v12080
    %13204 = vmatprep.subr.bf16.mxu0 %v12073
    %13205 = vmatpush2.bf16.msra.mxu0 %v12072
    %13206 = vmatprep.subr.bf16.mxu0 %v12065
    %13207 = vmatpush2.bf16.msra.mxu0 %v12064
    %13208 = vmatprep.subr.bf16.mxu0 %v12057
    %13209 = vmatpush2.bf16.msra.mxu0 %v12056
    %13210 = vmatprep.mubr.bf16.mxu0 %v9859
    %13211 = vmatmul.mubr.bf16.gmra.mxu0 %v9858
    %v13212 = vpop.f32.mrf.mxu0
    %v13213 = vadd.f32 %v10433, %v13212
    %v13214 = vpop.f32.mrf.mxu0
    %v13215 = vadd.f32 %v10437, %v13214
    %v13216 = vpop.f32.mrf.mxu0
    %v13217 = vpop.f32.mrf.mxu0
    %13218 = vdwg.mxu0
    %13219 = vmatprep.subr.bf16.mxu0 %v12177
    %13220 = vmatpush1.bf16.msra.mxu0 %v12176
    %13221 = vmatprep.subr.bf16.mxu0 %v12169
    %13222 = vmatpush1.bf16.msra.mxu0 %v12168
    %13223 = vmatprep.subr.bf16.mxu0 %v12161
    %13224 = vmatpush1.bf16.msra.mxu0 %v12160
    %13225 = vmatprep.subr.bf16.mxu0 %v12153
    %13226 = vmatpush1.bf16.msra.mxu0 %v12152
    %13227 = vmatprep.subr.bf16.mxu0 %v12145
    %13228 = vmatpush1.bf16.msra.mxu0 %v12144
    %13229 = vmatprep.subr.bf16.mxu0 %v12137
    %13230 = vmatpush1.bf16.msra.mxu0 %v12136
    %13231 = vmatprep.subr.bf16.mxu0 %v12129
    %13232 = vmatpush1.bf16.msra.mxu0 %v12128
    %13233 = vmatprep.subr.bf16.mxu0 %v12121
    %13234 = vmatpush1.bf16.msra.mxu0 %v12120
    %13235 = vmatprep.subr.bf16.mxu0 %v12241
    %13236 = vmatpush2.bf16.msra.mxu0 %v12240
    %13237 = vmatprep.subr.bf16.mxu0 %v12233
    %13238 = vmatpush2.bf16.msra.mxu0 %v12232
    %13239 = vmatprep.subr.bf16.mxu0 %v12225
    %13240 = vmatpush2.bf16.msra.mxu0 %v12224
    %13241 = vmatprep.subr.bf16.mxu0 %v12217
    %13242 = vmatpush2.bf16.msra.mxu0 %v12216
    %13243 = vmatprep.subr.bf16.mxu0 %v12209
    %13244 = vmatpush2.bf16.msra.mxu0 %v12208
    %13245 = vmatprep.subr.bf16.mxu0 %v12201
    %13246 = vmatpush2.bf16.msra.mxu0 %v12200
    %13247 = vmatprep.subr.bf16.mxu0 %v12193
    %13248 = vmatpush2.bf16.msra.mxu0 %v12192
    %13249 = vmatprep.subr.bf16.mxu0 %v12185
    %13250 = vmatpush2.bf16.msra.mxu0 %v12184
    %13251 = vmatprep.mubr.bf16.mxu0 %v9861
    %13252 = vmatmul.mubr.bf16.gmra.mxu0 %v9860
    %v13253 = vpop.f32.mrf.mxu0
    %v13254 = vadd.f32 %v13213, %v13253
    %v13255 = vpop.f32.mrf.mxu0
    %v13256 = vadd.f32 %v13215, %v13255
    %v13257 = vpop.f32.mrf.mxu0
    %v13258 = vpop.f32.mrf.mxu0
    %13259 = vdwg.mxu0
    %13260 = vmatprep.subr.bf16.mxu0 %v12305
    %13261 = vmatpush1.bf16.msra.mxu0 %v12304
    %13262 = vmatprep.subr.bf16.mxu0 %v12297
    %13263 = vmatpush1.bf16.msra.mxu0 %v12296
    %13264 = vmatprep.subr.bf16.mxu0 %v12289
    %13265 = vmatpush1.bf16.msra.mxu0 %v12288
    %13266 = vmatprep.subr.bf16.mxu0 %v12281
    %13267 = vmatpush1.bf16.msra.mxu0 %v12280
    %13268 = vmatprep.subr.bf16.mxu0 %v12273
    %13269 = vmatpush1.bf16.msra.mxu0 %v12272
    %13270 = vmatprep.subr.bf16.mxu0 %v12265
    %13271 = vmatpush1.bf16.msra.mxu0 %v12264
    %13272 = vmatprep.subr.bf16.mxu0 %v12257
    %13273 = vmatpush1.bf16.msra.mxu0 %v12256
    %13274 = vmatprep.subr.bf16.mxu0 %v12249
    %13275 = vmatpush1.bf16.msra.mxu0 %v12248
    %13276 = vmatprep.subr.bf16.mxu0 %v12369
    %13277 = vmatpush2.bf16.msra.mxu0 %v12368
    %13278 = vmatprep.subr.bf16.mxu0 %v12361
    %13279 = vmatpush2.bf16.msra.mxu0 %v12360
    %13280 = vmatprep.subr.bf16.mxu0 %v12353
    %13281 = vmatpush2.bf16.msra.mxu0 %v12352
    %13282 = vmatprep.subr.bf16.mxu0 %v12345
    %13283 = vmatpush2.bf16.msra.mxu0 %v12344
    %13284 = vmatprep.subr.bf16.mxu0 %v12337
    %13285 = vmatpush2.bf16.msra.mxu0 %v12336
    %13286 = vmatprep.subr.bf16.mxu0 %v12329
    %13287 = vmatpush2.bf16.msra.mxu0 %v12328
    %13288 = vmatprep.subr.bf16.mxu0 %v12321
    %13289 = vmatpush2.bf16.msra.mxu0 %v12320
    %13290 = vmatprep.subr.bf16.mxu0 %v12313
    %13291 = vmatpush2.bf16.msra.mxu0 %v12312
    %13292 = vmatprep.mubr.bf16.mxu0 %v9863
    %13293 = vmatmul.mubr.bf16.gmra.mxu0 %v9862
    %v13294 = vpop.f32.mrf.mxu0
    %v13295 = vadd.f32 %v13254, %v13294
    %v13296 = vpop.f32.mrf.mxu0
    %v13297 = vadd.f32 %v13256, %v13296
    %v13298 = vpop.f32.mrf.mxu0
    %v13299 = vpop.f32.mrf.mxu0
    %13300 = vdwg.mxu0
    %13301 = vmatprep.subr.bf16.mxu0 %v12433
    %13302 = vmatpush1.bf16.msra.mxu0 %v12432
    %13303 = vmatprep.subr.bf16.mxu0 %v12425
    %13304 = vmatpush1.bf16.msra.mxu0 %v12424
    %13305 = vmatprep.subr.bf16.mxu0 %v12417
    %13306 = vmatpush1.bf16.msra.mxu0 %v12416
    %13307 = vmatprep.subr.bf16.mxu0 %v12409
    %13308 = vmatpush1.bf16.msra.mxu0 %v12408
    %13309 = vmatprep.subr.bf16.mxu0 %v12401
    %13310 = vmatpush1.bf16.msra.mxu0 %v12400
    %13311 = vmatprep.subr.bf16.mxu0 %v12393
    %13312 = vmatpush1.bf16.msra.mxu0 %v12392
    %13313 = vmatprep.subr.bf16.mxu0 %v12385
    %13314 = vmatpush1.bf16.msra.mxu0 %v12384
    %13315 = vmatprep.subr.bf16.mxu0 %v12377
    %13316 = vmatpush1.bf16.msra.mxu0 %v12376
    %13317 = vmatprep.subr.bf16.mxu0 %v12497
    %13318 = vmatpush2.bf16.msra.mxu0 %v12496
    %13319 = vmatprep.subr.bf16.mxu0 %v12489
    %13320 = vmatpush2.bf16.msra.mxu0 %v12488
    %13321 = vmatprep.subr.bf16.mxu0 %v12481
    %13322 = vmatpush2.bf16.msra.mxu0 %v12480
    %13323 = vmatprep.subr.bf16.mxu0 %v12473
    %13324 = vmatpush2.bf16.msra.mxu0 %v12472
    %13325 = vmatprep.subr.bf16.mxu0 %v12465
    %13326 = vmatpush2.bf16.msra.mxu0 %v12464
    %13327 = vmatprep.subr.bf16.mxu0 %v12457
    %13328 = vmatpush2.bf16.msra.mxu0 %v12456
    %13329 = vmatprep.subr.bf16.mxu0 %v12449
    %13330 = vmatpush2.bf16.msra.mxu0 %v12448
    %13331 = vmatprep.subr.bf16.mxu0 %v12441
    %13332 = vmatpush2.bf16.msra.mxu0 %v12440
    %13333 = vmatprep.mubr.bf16.mxu0 %v9865
    %13334 = vmatmul.mubr.bf16.gmra.mxu0 %v9864
    %v13335 = vpop.f32.mrf.mxu0
    %v13336 = vadd.f32 %v13295, %v13335
    %v13337 = vpop.f32.mrf.mxu0
    %v13338 = vadd.f32 %v13297, %v13337
    %v13339 = vpop.f32.mrf.mxu0
    %v13340 = vpop.f32.mrf.mxu0
    %13341 = vdwg.mxu0
    %13342 = vmatprep.subr.bf16.mxu0 %v12051
    %13343 = vmatpush1.bf16.msra.mxu0 %v12050
    %13344 = vmatprep.subr.bf16.mxu0 %v12043
    %13345 = vmatpush1.bf16.msra.mxu0 %v12042
    %13346 = vmatprep.subr.bf16.mxu0 %v12035
    %13347 = vmatpush1.bf16.msra.mxu0 %v12034
    %13348 = vmatprep.subr.bf16.mxu0 %v12027
    %13349 = vmatpush1.bf16.msra.mxu0 %v12026
    %13350 = vmatprep.subr.bf16.mxu0 %v12019
    %13351 = vmatpush1.bf16.msra.mxu0 %v12018
    %13352 = vmatprep.subr.bf16.mxu0 %v12011
    %13353 = vmatpush1.bf16.msra.mxu0 %v12010
    %13354 = vmatprep.subr.bf16.mxu0 %v12003
    %13355 = vmatpush1.bf16.msra.mxu0 %v12002
    %13356 = vmatprep.subr.bf16.mxu0 %v11995
    %13357 = vmatpush1.bf16.msra.mxu0 %v11994
    %13358 = vmatprep.subr.bf16.mxu0 %v12115
    %13359 = vmatpush2.bf16.msra.mxu0 %v12114
    %13360 = vmatprep.subr.bf16.mxu0 %v12107
    %13361 = vmatpush2.bf16.msra.mxu0 %v12106
    %13362 = vmatprep.subr.bf16.mxu0 %v12099
    %13363 = vmatpush2.bf16.msra.mxu0 %v12098
    %13364 = vmatprep.subr.bf16.mxu0 %v12091
    %13365 = vmatpush2.bf16.msra.mxu0 %v12090
    %13366 = vmatprep.subr.bf16.mxu0 %v12083
    %13367 = vmatpush2.bf16.msra.mxu0 %v12082
    %13368 = vmatprep.subr.bf16.mxu0 %v12075
    %13369 = vmatpush2.bf16.msra.mxu0 %v12074
    %13370 = vmatprep.subr.bf16.mxu0 %v12067
    %13371 = vmatpush2.bf16.msra.mxu0 %v12066
    %13372 = vmatprep.subr.bf16.mxu0 %v12059
    %13373 = vmatpush2.bf16.msra.mxu0 %v12058
    %13374 = vmatprep.mubr.bf16.mxu0 %v9859
    %13375 = vmatmul.mubr.bf16.gmra.mxu0 %v9858
    %v13376 = vpop.f32.mrf.mxu0
    %v13377 = vadd.f32 %v10441, %v13376
    %v13378 = vpop.f32.mrf.mxu0
    %v13379 = vadd.f32 %v10445, %v13378
    %v13380 = vpop.f32.mrf.mxu0
    %v13381 = vpop.f32.mrf.mxu0
    %13382 = vdwg.mxu0
    %13383 = vmatprep.subr.bf16.mxu0 %v12179
    %13384 = vmatpush1.bf16.msra.mxu0 %v12178
    %13385 = vmatprep.subr.bf16.mxu0 %v12171
    %13386 = vmatpush1.bf16.msra.mxu0 %v12170
    %13387 = vmatprep.subr.bf16.mxu0 %v12163
    %13388 = vmatpush1.bf16.msra.mxu0 %v12162
    %13389 = vmatprep.subr.bf16.mxu0 %v12155
    %13390 = vmatpush1.bf16.msra.mxu0 %v12154
    %13391 = vmatprep.subr.bf16.mxu0 %v12147
    %13392 = vmatpush1.bf16.msra.mxu0 %v12146
    %13393 = vmatprep.subr.bf16.mxu0 %v12139
    %13394 = vmatpush1.bf16.msra.mxu0 %v12138
    %13395 = vmatprep.subr.bf16.mxu0 %v12131
    %13396 = vmatpush1.bf16.msra.mxu0 %v12130
    %13397 = vmatprep.subr.bf16.mxu0 %v12123
    %13398 = vmatpush1.bf16.msra.mxu0 %v12122
    %13399 = vmatprep.subr.bf16.mxu0 %v12243
    %13400 = vmatpush2.bf16.msra.mxu0 %v12242
    %13401 = vmatprep.subr.bf16.mxu0 %v12235
    %13402 = vmatpush2.bf16.msra.mxu0 %v12234
    %13403 = vmatprep.subr.bf16.mxu0 %v12227
    %13404 = vmatpush2.bf16.msra.mxu0 %v12226
    %13405 = vmatprep.subr.bf16.mxu0 %v12219
    %13406 = vmatpush2.bf16.msra.mxu0 %v12218
    %13407 = vmatprep.subr.bf16.mxu0 %v12211
    %13408 = vmatpush2.bf16.msra.mxu0 %v12210
    %13409 = vmatprep.subr.bf16.mxu0 %v12203
    %13410 = vmatpush2.bf16.msra.mxu0 %v12202
    %13411 = vmatprep.subr.bf16.mxu0 %v12195
    %13412 = vmatpush2.bf16.msra.mxu0 %v12194
    %13413 = vmatprep.subr.bf16.mxu0 %v12187
    %13414 = vmatpush2.bf16.msra.mxu0 %v12186
    %13415 = vmatprep.mubr.bf16.mxu0 %v9861
    %13416 = vmatmul.mubr.bf16.gmra.mxu0 %v9860
    %v13417 = vpop.f32.mrf.mxu0
    %v13418 = vadd.f32 %v13377, %v13417
    %v13419 = vpop.f32.mrf.mxu0
    %v13420 = vadd.f32 %v13379, %v13419
    %v13421 = vpop.f32.mrf.mxu0
    %v13422 = vpop.f32.mrf.mxu0
    %13423 = vdwg.mxu0
    %13424 = vmatprep.subr.bf16.mxu0 %v12307
    %13425 = vmatpush1.bf16.msra.mxu0 %v12306
    %13426 = vmatprep.subr.bf16.mxu0 %v12299
    %13427 = vmatpush1.bf16.msra.mxu0 %v12298
    %13428 = vmatprep.subr.bf16.mxu0 %v12291
    %13429 = vmatpush1.bf16.msra.mxu0 %v12290
    %13430 = vmatprep.subr.bf16.mxu0 %v12283
    %13431 = vmatpush1.bf16.msra.mxu0 %v12282
    %13432 = vmatprep.subr.bf16.mxu0 %v12275
    %13433 = vmatpush1.bf16.msra.mxu0 %v12274
    %13434 = vmatprep.subr.bf16.mxu0 %v12267
    %13435 = vmatpush1.bf16.msra.mxu0 %v12266
    %13436 = vmatprep.subr.bf16.mxu0 %v12259
    %13437 = vmatpush1.bf16.msra.mxu0 %v12258
    %13438 = vmatprep.subr.bf16.mxu0 %v12251
    %13439 = vmatpush1.bf16.msra.mxu0 %v12250
    %13440 = vmatprep.subr.bf16.mxu0 %v12371
    %13441 = vmatpush2.bf16.msra.mxu0 %v12370
    %13442 = vmatprep.subr.bf16.mxu0 %v12363
    %13443 = vmatpush2.bf16.msra.mxu0 %v12362
    %13444 = vmatprep.subr.bf16.mxu0 %v12355
    %13445 = vmatpush2.bf16.msra.mxu0 %v12354
    %13446 = vmatprep.subr.bf16.mxu0 %v12347
    %13447 = vmatpush2.bf16.msra.mxu0 %v12346
    %13448 = vmatprep.subr.bf16.mxu0 %v12339
    %13449 = vmatpush2.bf16.msra.mxu0 %v12338
    %13450 = vmatprep.subr.bf16.mxu0 %v12331
    %13451 = vmatpush2.bf16.msra.mxu0 %v12330
    %13452 = vmatprep.subr.bf16.mxu0 %v12323
    %13453 = vmatpush2.bf16.msra.mxu0 %v12322
    %13454 = vmatprep.subr.bf16.mxu0 %v12315
    %13455 = vmatpush2.bf16.msra.mxu0 %v12314
    %13456 = vmatprep.mubr.bf16.mxu0 %v9863
    %13457 = vmatmul.mubr.bf16.gmra.mxu0 %v9862
    %v13458 = vpop.f32.mrf.mxu0
    %v13459 = vadd.f32 %v13418, %v13458
    %v13460 = vpop.f32.mrf.mxu0
    %v13461 = vadd.f32 %v13420, %v13460
    %v13462 = vpop.f32.mrf.mxu0
    %v13463 = vpop.f32.mrf.mxu0
    %13464 = vdwg.mxu0
    %13465 = vmatprep.subr.bf16.mxu0 %v12435
    %13466 = vmatpush1.bf16.msra.mxu0 %v12434
    %13467 = vmatprep.subr.bf16.mxu0 %v12427
    %13468 = vmatpush1.bf16.msra.mxu0 %v12426
    %13469 = vmatprep.subr.bf16.mxu0 %v12419
    %13470 = vmatpush1.bf16.msra.mxu0 %v12418
    %13471 = vmatprep.subr.bf16.mxu0 %v12411
    %13472 = vmatpush1.bf16.msra.mxu0 %v12410
    %13473 = vmatprep.subr.bf16.mxu0 %v12403
    %13474 = vmatpush1.bf16.msra.mxu0 %v12402
    %13475 = vmatprep.subr.bf16.mxu0 %v12395
    %13476 = vmatpush1.bf16.msra.mxu0 %v12394
    %13477 = vmatprep.subr.bf16.mxu0 %v12387
    %13478 = vmatpush1.bf16.msra.mxu0 %v12386
    %13479 = vmatprep.subr.bf16.mxu0 %v12379
    %13480 = vmatpush1.bf16.msra.mxu0 %v12378
    %13481 = vmatprep.subr.bf16.mxu0 %v12499
    %13482 = vmatpush2.bf16.msra.mxu0 %v12498
    %13483 = vmatprep.subr.bf16.mxu0 %v12491
    %13484 = vmatpush2.bf16.msra.mxu0 %v12490
    %13485 = vmatprep.subr.bf16.mxu0 %v12483
    %13486 = vmatpush2.bf16.msra.mxu0 %v12482
    %13487 = vmatprep.subr.bf16.mxu0 %v12475
    %13488 = vmatpush2.bf16.msra.mxu0 %v12474
    %13489 = vmatprep.subr.bf16.mxu0 %v12467
    %13490 = vmatpush2.bf16.msra.mxu0 %v12466
    %13491 = vmatprep.subr.bf16.mxu0 %v12459
    %13492 = vmatpush2.bf16.msra.mxu0 %v12458
    %13493 = vmatprep.subr.bf16.mxu0 %v12451
    %13494 = vmatpush2.bf16.msra.mxu0 %v12450
    %13495 = vmatprep.subr.bf16.mxu0 %v12443
    %13496 = vmatpush2.bf16.msra.mxu0 %v12442
    %13497 = vmatprep.mubr.bf16.mxu0 %v9865
    %13498 = vmatmul.mubr.bf16.gmra.mxu0 %v9864
    %v13499 = vpop.f32.mrf.mxu0
    %v13500 = vadd.f32 %v13459, %v13499
    %v13501 = vpop.f32.mrf.mxu0
    %v13502 = vadd.f32 %v13461, %v13501
    %v13503 = vpop.f32.mrf.mxu0
    %v13504 = vpop.f32.mrf.mxu0
    %13505 = vdwg.mxu0
    %13506 = vmatprep.subr.bf16.mxu0 %v12053
    %13507 = vmatpush1.bf16.msra.mxu0 %v12052
    %13508 = vmatprep.subr.bf16.mxu0 %v12045
    %13509 = vmatpush1.bf16.msra.mxu0 %v12044
    %13510 = vmatprep.subr.bf16.mxu0 %v12037
    %13511 = vmatpush1.bf16.msra.mxu0 %v12036
    %13512 = vmatprep.subr.bf16.mxu0 %v12029
    %13513 = vmatpush1.bf16.msra.mxu0 %v12028
    %13514 = vmatprep.subr.bf16.mxu0 %v12021
    %13515 = vmatpush1.bf16.msra.mxu0 %v12020
    %13516 = vmatprep.subr.bf16.mxu0 %v12013
    %13517 = vmatpush1.bf16.msra.mxu0 %v12012
    %13518 = vmatprep.subr.bf16.mxu0 %v12005
    %13519 = vmatpush1.bf16.msra.mxu0 %v12004
    %13520 = vmatprep.subr.bf16.mxu0 %v11997
    %13521 = vmatpush1.bf16.msra.mxu0 %v11996
    %13522 = vmatprep.subr.bf16.mxu0 %v12117
    %13523 = vmatpush2.bf16.msra.mxu0 %v12116
    %13524 = vmatprep.subr.bf16.mxu0 %v12109
    %13525 = vmatpush2.bf16.msra.mxu0 %v12108
    %13526 = vmatprep.subr.bf16.mxu0 %v12101
    %13527 = vmatpush2.bf16.msra.mxu0 %v12100
    %13528 = vmatprep.subr.bf16.mxu0 %v12093
    %13529 = vmatpush2.bf16.msra.mxu0 %v12092
    %13530 = vmatprep.subr.bf16.mxu0 %v12085
    %13531 = vmatpush2.bf16.msra.mxu0 %v12084
    %13532 = vmatprep.subr.bf16.mxu0 %v12077
    %13533 = vmatpush2.bf16.msra.mxu0 %v12076
    %13534 = vmatprep.subr.bf16.mxu0 %v12069
    %13535 = vmatpush2.bf16.msra.mxu0 %v12068
    %13536 = vmatprep.subr.bf16.mxu0 %v12061
    %13537 = vmatpush2.bf16.msra.mxu0 %v12060
    %13538 = vmatprep.mubr.bf16.mxu0 %v9859
    %13539 = vmatmul.mubr.bf16.gmra.mxu0 %v9858
    %v13540 = vpop.f32.mrf.mxu0
    %v13541 = vadd.f32 %v10449, %v13540
    %v13542 = vpop.f32.mrf.mxu0
    %v13543 = vadd.f32 %v10453, %v13542
    %v13544 = vpop.f32.mrf.mxu0
    %v13545 = vpop.f32.mrf.mxu0
    %13546 = vdwg.mxu0
    %13547 = vmatprep.subr.bf16.mxu0 %v12181
    %13548 = vmatpush1.bf16.msra.mxu0 %v12180
    %13549 = vmatprep.subr.bf16.mxu0 %v12173
    %13550 = vmatpush1.bf16.msra.mxu0 %v12172
    %13551 = vmatprep.subr.bf16.mxu0 %v12165
    %13552 = vmatpush1.bf16.msra.mxu0 %v12164
    %13553 = vmatprep.subr.bf16.mxu0 %v12157
    %13554 = vmatpush1.bf16.msra.mxu0 %v12156
    %13555 = vmatprep.subr.bf16.mxu0 %v12149
    %13556 = vmatpush1.bf16.msra.mxu0 %v12148
    %13557 = vmatprep.subr.bf16.mxu0 %v12141
    %13558 = vmatpush1.bf16.msra.mxu0 %v12140
    %13559 = vmatprep.subr.bf16.mxu0 %v12133
    %13560 = vmatpush1.bf16.msra.mxu0 %v12132
    %13561 = vmatprep.subr.bf16.mxu0 %v12125
    %13562 = vmatpush1.bf16.msra.mxu0 %v12124
    %13563 = vmatprep.subr.bf16.mxu0 %v12245
    %13564 = vmatpush2.bf16.msra.mxu0 %v12244
    %13565 = vmatprep.subr.bf16.mxu0 %v12237
    %13566 = vmatpush2.bf16.msra.mxu0 %v12236
    %13567 = vmatprep.subr.bf16.mxu0 %v12229
    %13568 = vmatpush2.bf16.msra.mxu0 %v12228
    %13569 = vmatprep.subr.bf16.mxu0 %v12221
    %13570 = vmatpush2.bf16.msra.mxu0 %v12220
    %13571 = vmatprep.subr.bf16.mxu0 %v12213
    %13572 = vmatpush2.bf16.msra.mxu0 %v12212
    %13573 = vmatprep.subr.bf16.mxu0 %v12205
    %13574 = vmatpush2.bf16.msra.mxu0 %v12204
    %13575 = vmatprep.subr.bf16.mxu0 %v12197
    %13576 = vmatpush2.bf16.msra.mxu0 %v12196
    %13577 = vmatprep.subr.bf16.mxu0 %v12189
    %13578 = vmatpush2.bf16.msra.mxu0 %v12188
    %13579 = vmatprep.mubr.bf16.mxu0 %v9861
    %13580 = vmatmul.mubr.bf16.gmra.mxu0 %v9860
    %v13581 = vpop.f32.mrf.mxu0
    %v13582 = vadd.f32 %v13541, %v13581
    %v13583 = vpop.f32.mrf.mxu0
    %v13584 = vadd.f32 %v13543, %v13583
    %v13585 = vpop.f32.mrf.mxu0
    %v13586 = vpop.f32.mrf.mxu0
    %13587 = vdwg.mxu0
    %13588 = vmatprep.subr.bf16.mxu0 %v12309
    %13589 = vmatpush1.bf16.msra.mxu0 %v12308
    %13590 = vmatprep.subr.bf16.mxu0 %v12301
    %13591 = vmatpush1.bf16.msra.mxu0 %v12300
    %13592 = vmatprep.subr.bf16.mxu0 %v12293
    %13593 = vmatpush1.bf16.msra.mxu0 %v12292
    %13594 = vmatprep.subr.bf16.mxu0 %v12285
    %13595 = vmatpush1.bf16.msra.mxu0 %v12284
    %13596 = vmatprep.subr.bf16.mxu0 %v12277
    %13597 = vmatpush1.bf16.msra.mxu0 %v12276
    %13598 = vmatprep.subr.bf16.mxu0 %v12269
    %13599 = vmatpush1.bf16.msra.mxu0 %v12268
    %13600 = vmatprep.subr.bf16.mxu0 %v12261
    %13601 = vmatpush1.bf16.msra.mxu0 %v12260
    %13602 = vmatprep.subr.bf16.mxu0 %v12253
    %13603 = vmatpush1.bf16.msra.mxu0 %v12252
    %13604 = vmatprep.subr.bf16.mxu0 %v12373
    %13605 = vmatpush2.bf16.msra.mxu0 %v12372
    %13606 = vmatprep.subr.bf16.mxu0 %v12365
    %13607 = vmatpush2.bf16.msra.mxu0 %v12364
    %13608 = vmatprep.subr.bf16.mxu0 %v12357
    %13609 = vmatpush2.bf16.msra.mxu0 %v12356
    %13610 = vmatprep.subr.bf16.mxu0 %v12349
    %13611 = vmatpush2.bf16.msra.mxu0 %v12348
    %13612 = vmatprep.subr.bf16.mxu0 %v12341
    %13613 = vmatpush2.bf16.msra.mxu0 %v12340
    %13614 = vmatprep.subr.bf16.mxu0 %v12333
    %13615 = vmatpush2.bf16.msra.mxu0 %v12332
    %13616 = vmatprep.subr.bf16.mxu0 %v12325
    %13617 = vmatpush2.bf16.msra.mxu0 %v12324
    %13618 = vmatprep.subr.bf16.mxu0 %v12317
    %13619 = vmatpush2.bf16.msra.mxu0 %v12316
    %13620 = vmatprep.mubr.bf16.mxu0 %v9863
    %13621 = vmatmul.mubr.bf16.gmra.mxu0 %v9862
    %v13622 = vpop.f32.mrf.mxu0
    %v13623 = vadd.f32 %v13582, %v13622
    %v13624 = vpop.f32.mrf.mxu0
    %v13625 = vadd.f32 %v13584, %v13624
    %v13626 = vpop.f32.mrf.mxu0
    %v13627 = vpop.f32.mrf.mxu0
    %13628 = vdwg.mxu0
    %13629 = vmatprep.subr.bf16.mxu0 %v12437
    %13630 = vmatpush1.bf16.msra.mxu0 %v12436
    %13631 = vmatprep.subr.bf16.mxu0 %v12429
    %13632 = vmatpush1.bf16.msra.mxu0 %v12428
    %13633 = vmatprep.subr.bf16.mxu0 %v12421
    %13634 = vmatpush1.bf16.msra.mxu0 %v12420
    %13635 = vmatprep.subr.bf16.mxu0 %v12413
    %13636 = vmatpush1.bf16.msra.mxu0 %v12412
    %13637 = vmatprep.subr.bf16.mxu0 %v12405
    %13638 = vmatpush1.bf16.msra.mxu0 %v12404
    %13639 = vmatprep.subr.bf16.mxu0 %v12397
    %13640 = vmatpush1.bf16.msra.mxu0 %v12396
    %13641 = vmatprep.subr.bf16.mxu0 %v12389
    %13642 = vmatpush1.bf16.msra.mxu0 %v12388
    %13643 = vmatprep.subr.bf16.mxu0 %v12381
    %13644 = vmatpush1.bf16.msra.mxu0 %v12380
    %13645 = vmatprep.subr.bf16.mxu0 %v12501
    %13646 = vmatpush2.bf16.msra.mxu0 %v12500
    %13647 = vmatprep.subr.bf16.mxu0 %v12493
    %13648 = vmatpush2.bf16.msra.mxu0 %v12492
    %13649 = vmatprep.subr.bf16.mxu0 %v12485
    %13650 = vmatpush2.bf16.msra.mxu0 %v12484
    %13651 = vmatprep.subr.bf16.mxu0 %v12477
    %13652 = vmatpush2.bf16.msra.mxu0 %v12476
    %13653 = vmatprep.subr.bf16.mxu0 %v12469
    %13654 = vmatpush2.bf16.msra.mxu0 %v12468
    %13655 = vmatprep.subr.bf16.mxu0 %v12461
    %13656 = vmatpush2.bf16.msra.mxu0 %v12460
    %13657 = vmatprep.subr.bf16.mxu0 %v12453
    %13658 = vmatpush2.bf16.msra.mxu0 %v12452
    %13659 = vmatprep.subr.bf16.mxu0 %v12445
    %13660 = vmatpush2.bf16.msra.mxu0 %v12444
    %13661 = vmatprep.mubr.bf16.mxu0 %v9865
    %13662 = vmatmul.mubr.bf16.gmra.mxu0 %v9864
    %v13663 = vpop.f32.mrf.mxu0
    %v13664 = vadd.f32 %v13623, %v13663
    %v13665 = vpop.f32.mrf.mxu0
    %v13666 = vadd.f32 %v13625, %v13665
    %v13667 = vpop.f32.mrf.mxu0
    %v13668 = vpop.f32.mrf.mxu0
    %13669 = vdwg.mxu0
    %v13670 = vxor.u32 %v13172, 2147483648
    %v13671 = vxor.u32 %v13174, 2147483648
    %v13672 = vxor.u32 %v13336, 2147483648
    %v13673 = vxor.u32 %v13338, 2147483648
    %v13674 = vxor.u32 %v13500, 2147483648
    %v13675 = vxor.u32 %v13502, 2147483648
    %v13676 = vxor.u32 %v13664, 2147483648
    %v13677 = vxor.u32 %v13666, 2147483648
    %v13678 = vmul.f32 %v13670, 1.442695
    %v13679 = vpow.pop %v13678
    %v13680 = vmul.f32 %v13671, 1.442695
    %v13681 = vpow.pop %v13680
    %v13682 = vmul.f32 %v13672, 1.442695
    %v13683 = vpow.pop %v13682
    %v13684 = vmul.f32 %v13673, 1.442695
    %v13685 = vpow.pop %v13684
    %v13686 = vmul.f32 %v13674, 1.442695
    %v13687 = vpow.pop %v13686
    %v13688 = vmul.f32 %v13675, 1.442695
    %v13689 = vpow.pop %v13688
    %v13690 = vmul.f32 %v13676, 1.442695
    %v13691 = vpow.pop %v13690
    %v13692 = vmul.f32 %v13677, 1.442695
    %v13693 = vpow.pop %v13692
    %v13694 = vadd.f32 %v13679, 1.0
    %v13695 = vadd.f32 %v13681, 1.0
    %v13696 = vadd.f32 %v13683, 1.0
    %v13697 = vadd.f32 %v13685, 1.0
    %v13698 = vadd.f32 %v13687, 1.0
    %v13699 = vadd.f32 %v13689, 1.0
    %v13700 = vadd.f32 %v13691, 1.0
    %v13701 = vadd.f32 %v13693, 1.0
    %v13702 = vrcp.pop %v13694
    %v13703 = vmul.f32 1.0, %v13702
    %v13704 = vrcp.pop %v13695
    %v13705 = vmul.f32 1.0, %v13704
    %v13706 = vrcp.pop %v13696
    %v13707 = vmul.f32 1.0, %v13706
    %v13708 = vrcp.pop %v13697
    %v13709 = vmul.f32 1.0, %v13708
    %v13710 = vrcp.pop %v13698
    %v13711 = vmul.f32 1.0, %v13710
    %v13712 = vrcp.pop %v13699
    %v13713 = vmul.f32 1.0, %v13712
    %v13714 = vrcp.pop %v13700
    %v13715 = vmul.f32 1.0, %v13714
    %v13716 = vrcp.pop %v13701
    %v13717 = vmul.f32 1.0, %v13716
    %v13718 = vlaneseq
    %v13719 = vshrl.u32 %v13718, 7
    %v13720 = vsub.s32 1, %v13719
    %v13721 = vrot.slane %v9854, %v13720
    %v13722 = vlaneseq
    %v13723 = vshrl.u32 %v13722, 7
    %v13724 = vsub.s32 5, %v13723
    %v13725 = vrot.slane %v9854, %v13724
    %v13726 = vlaneseq
    %v13727 = vshrl.u32 %v13726, 7
    %v13728 = vsub.s32 1, %v13727
    %v13729 = vrot.slane %v9855, %v13728
    %v13730 = vlaneseq
    %v13731 = vshrl.u32 %v13730, 7
    %v13732 = vsub.s32 5, %v13731
    %v13733 = vrot.slane %v9855, %v13732
    %v13734 = vlaneseq
    %v13735 = vshrl.u32 %v13734, 7
    %v13736 = vsub.s32 1, %v13735
    %v13737 = vrot.slane %v9856, %v13736
    %v13738 = vlaneseq
    %v13739 = vshrl.u32 %v13738, 7
    %v13740 = vsub.s32 5, %v13739
    %v13741 = vrot.slane %v9856, %v13740
    %v13742 = vlaneseq
    %v13743 = vshrl.u32 %v13742, 7
    %v13744 = vsub.s32 1, %v13743
    %v13745 = vrot.slane %v9857, %v13744
    %v13746 = vlaneseq
    %v13747 = vshrl.u32 %v13746, 7
    %v13748 = vsub.s32 5, %v13747
    %v13749 = vrot.slane %v9857, %v13748
    %v13758 = vlaneseq
    %v13759 = vshrl.u32 %v13758, 7
    %v13760 = vsub.s32 1, %v13759
    %v13761 = vrot.slane %v13721, %v13760
    %v13762 = vlaneseq
    %v13763 = vshrl.u32 %v13762, 7
    %v13764 = vsub.s32 1, %v13763
    %v13765 = vrot.slane %v13725, %v13764
    %v13766 = vlaneseq
    %v13767 = vshrl.u32 %v13766, 7
    %v13768 = vsub.s32 1, %v13767
    %v13769 = vrot.slane %v13729, %v13768
    %v13770 = vlaneseq
    %v13771 = vshrl.u32 %v13770, 7
    %v13772 = vsub.s32 1, %v13771
    %v13773 = vrot.slane %v13733, %v13772
    %v13774 = vlaneseq
    %v13775 = vshrl.u32 %v13774, 7
    %v13776 = vsub.s32 1, %v13775
    %v13777 = vrot.slane %v13737, %v13776
    %v13778 = vlaneseq
    %v13779 = vshrl.u32 %v13778, 7
    %v13780 = vsub.s32 1, %v13779
    %v13781 = vrot.slane %v13741, %v13780
    %v13782 = vlaneseq
    %v13783 = vshrl.u32 %v13782, 7
    %v13784 = vsub.s32 1, %v13783
    %v13785 = vrot.slane %v13745, %v13784
    %v13786 = vlaneseq
    %v13787 = vshrl.u32 %v13786, 7
    %v13788 = vsub.s32 1, %v13787
    %v13789 = vrot.slane %v13749, %v13788
    %v13790 = vmul.f32 %v13703, %v13761
    %v13791 = vmul.f32 %v13705, %v13765
    %v13792 = vmul.f32 %v13707, %v13769
    %v13793 = vmul.f32 %v13709, %v13773
    %v13794 = vmul.f32 %v13711, %v13777
    %v13795 = vmul.f32 %v13713, %v13781
    %v13796 = vmul.f32 %v13715, %v13785
    %v13797 = vmul.f32 %v13717, %v13789
    %v13798 = vlaneseq
    %v13799 = vshrl.u32 %v13798, 7
    %v13800 = vsub.s32 2, %v13799
    %v13801 = vrot.slane %v9854, %v13800
    %v13802 = vlaneseq
    %v13803 = vshrl.u32 %v13802, 7
    %v13804 = vsub.s32 6, %v13803
    %v13805 = vrot.slane %v9854, %v13804
    %v13806 = vlaneseq
    %v13807 = vshrl.u32 %v13806, 7
    %v13808 = vsub.s32 2, %v13807
    %v13809 = vrot.slane %v9855, %v13808
    %v13810 = vlaneseq
    %v13811 = vshrl.u32 %v13810, 7
    %v13812 = vsub.s32 6, %v13811
    %v13813 = vrot.slane %v9855, %v13812
    %v13814 = vlaneseq
    %v13815 = vshrl.u32 %v13814, 7
    %v13816 = vsub.s32 2, %v13815
    %v13817 = vrot.slane %v9856, %v13816
    %v13818 = vlaneseq
    %v13819 = vshrl.u32 %v13818, 7
    %v13820 = vsub.s32 6, %v13819
    %v13821 = vrot.slane %v9856, %v13820
    %v13822 = vlaneseq
    %v13823 = vshrl.u32 %v13822, 7
    %v13824 = vsub.s32 2, %v13823
    %v13825 = vrot.slane %v9857, %v13824
    %v13826 = vlaneseq
    %v13827 = vshrl.u32 %v13826, 7
    %v13828 = vsub.s32 6, %v13827
    %v13829 = vrot.slane %v9857, %v13828
    %v13838 = vlaneseq
    %v13839 = vshrl.u32 %v13838, 7
    %v13840 = vsub.s32 2, %v13839
    %v13841 = vrot.slane %v13801, %v13840
    %v13842 = vlaneseq
    %v13843 = vshrl.u32 %v13842, 7
    %v13844 = vsub.s32 2, %v13843
    %v13845 = vrot.slane %v13805, %v13844
    %v13846 = vlaneseq
    %v13847 = vshrl.u32 %v13846, 7
    %v13848 = vsub.s32 2, %v13847
    %v13849 = vrot.slane %v13809, %v13848
    %v13850 = vlaneseq
    %v13851 = vshrl.u32 %v13850, 7
    %v13852 = vsub.s32 2, %v13851
    %v13853 = vrot.slane %v13813, %v13852
    %v13854 = vlaneseq
    %v13855 = vshrl.u32 %v13854, 7
    %v13856 = vsub.s32 2, %v13855
    %v13857 = vrot.slane %v13817, %v13856
    %v13858 = vlaneseq
    %v13859 = vshrl.u32 %v13858, 7
    %v13860 = vsub.s32 2, %v13859
    %v13861 = vrot.slane %v13821, %v13860
    %v13862 = vlaneseq
    %v13863 = vshrl.u32 %v13862, 7
    %v13864 = vsub.s32 2, %v13863
    %v13865 = vrot.slane %v13825, %v13864
    %v13866 = vlaneseq
    %v13867 = vshrl.u32 %v13866, 7
    %v13868 = vsub.s32 2, %v13867
    %v13869 = vrot.slane %v13829, %v13868
    %v13870 = vadd.f32 %v13790, %v13841
    %v13871 = vadd.f32 %v13791, %v13845
    %v13872 = vadd.f32 %v13792, %v13849
    %v13873 = vadd.f32 %v13793, %v13853
    %v13874 = vadd.f32 %v13794, %v13857
    %v13875 = vadd.f32 %v13795, %v13861
    %v13876 = vadd.f32 %v13796, %v13865
    %v13877 = vadd.f32 %v13797, %v13869
    %v13886 = vcombine.low %v13870, %v13871
    %v13887 = vcombine.low %v13872, %v13873
    %v13889 = vunpack.c.l.s4 1983009808
    %v13890 = vunpack.c.0.s8 %v13889
    %v13891 = vlaneseq
    %v13892 = vshrl.u32 %v13891, 7
    %v13893 = vsub.s32 %v13890, %v13892
    %v13894 = vrot.slane %v13886, %v13893
    %v13896 = vunpack.c.l.s4 1983009808
    %v13897 = vunpack.c.0.s8 %v13896
    %v13898 = vlaneseq
    %v13899 = vshrl.u32 %v13898, 7
    %v13900 = vsub.s32 %v13897, %v13899
    %v13901 = vrot.slane %v13887, %v13900
    %v13902 = vcombine.low %v13894, %v13901
    %v13903 = vcombine.low %v13874, %v13875
    %v13904 = vcombine.low %v13876, %v13877
    %v13906 = vunpack.c.l.s4 1983009808
    %v13907 = vunpack.c.0.s8 %v13906
    %v13908 = vlaneseq
    %v13909 = vshrl.u32 %v13908, 7
    %v13910 = vsub.s32 %v13907, %v13909
    %v13911 = vrot.slane %v13903, %v13910
    %v13913 = vunpack.c.l.s4 1983009808
    %v13914 = vunpack.c.0.s8 %v13913
    %v13915 = vlaneseq
    %v13916 = vshrl.u32 %v13915, 7
    %v13917 = vsub.s32 %v13914, %v13916
    %v13918 = vrot.slane %v13904, %v13917
    %v13919 = vcombine.low %v13911, %v13918
    %13922 = vst [vmem:[%s18] sm:$0xff] %v13902
    %13923 = vst [vmem:[%s18 + $0x8] sm:$0xff] %v13919
    // Predicated region
    $region138: #{vae_forward.1} parent=1 // pred_check
      _
    $region139: #{vae_forward.1} parent=1 // pred_check_branch
      %13925 = sbr.rel (0) target = $region141
    $region140: #{vae_forward.1} parent=1 // pred_region
      _
    $region141: #{vae_forward.1} parent=1 // pred_fallthru
      _
    // Predicated region
    $region142: #{vae_forward.1} parent=1 // pred_check
      _
    $region143: #{vae_forward.1} parent=1 // pred_check_branch
      %13927 = sbr.rel (0) target = $region145
    $region144: #{vae_forward.1} parent=1 // pred_region
      _
    $region145: #{vae_forward.1} parent=1 // pred_fallthru
      _
    // Predicated region
    $region146: #{vae_forward.1} parent=1 // pred_check
      _
    $region147: #{vae_forward.1} parent=1 // pred_check_branch
      %13929 = sbr.rel (0) target = $region149
    $region148: #{vae_forward.1} parent=1 // pred_region
      _
    $region149: #{vae_forward.1} parent=1 // pred_fallthru
      _
    // Predicated region
    $region150: #{vae_forward.1} parent=1 // pred_check
      _
    $region151: #{vae_forward.1} parent=1 // pred_check_branch
      %13931 = sbr.rel (0) target = $region153
    $region152: #{vae_forward.1} parent=1 // pred_region
      _
    $region153: #{vae_forward.1} parent=1 // pred_fallthru
      _
    %13932 = vsyncpa [#allocation3], 1
    %13933 = vsyncpa [#allocation5], 1
    %13934 = vsyncpa [#allocation8], 1
    %13935 = vsyncpa [#allocation11], 1
    %13936 = vsyncpa [#allocation14], 1
    %13937 = vsyncpa [#allocation17], 1
    %13938 = vsyncpa [#allocation20], 1
    %13939 = vsyncpa [#allocation23], 1
    %13940 = vsyncpa [#allocation26], 1

</llo_original>
